<compile_context>
chip_gen: v7x
topology: tpu7x:2x2x1
jax: 0.10.0
libtpu: 0.0.40
codegen_flags: <defaults>
</compile_context>

<pallas_src>
import math

import jax
import jax.numpy as jnp
from jax import lax
from jax.experimental import pallas as pl
from jax.experimental.pallas import tpu as pltpu

BN_EPS = 1e-5
NUM_CLASSES = 10

# ----------------------------- flat-grid geometry --------------------------
N_IMG = 2                 # batch size (kernel is specialized to this)
IMG = 32                  # input spatial size; also the flat-grid row stride
IMG_PIX = IMG * IMG       # 1024 flat positions per image
# Lane widths chosen back-to-front so every shifted slice stays in bounds:
L_POOL2 = 1664            # pool-2 map width   (needs >= 1553, and >= 1024+640)
L_CONV2 = 1792            # conv-2 out width   (needs >= L_POOL2 + 66)
L_POOL1 = 2176            # pool-1 map width   (needs >= L_CONV2 + 264)
L_CONV1 = 2304            # conv-1 out width   (needs >= L_POOL1 + 33)
L_IN = 2560               # padded input width (needs >= L_CONV1 + 132)
W_WIN = 640               # per-image window for the flatten selection matmul
FC_LANES = 512            # 16 channels * 32 (25 pooled positions padded to 32)


# ----------------------------- the fused Pallas kernel ---------------------

def lenet5_kernel(x_ref, w1_ref, w2_ref, aux_ref, fcw_ref, fc1w_ref, fc2w_ref,
                  fcb_ref, out_ref, slab1_ref, slab2_ref, xfc_ref):
    """Whole LeNet5 forward.  Conv activations are (C, flat) lane-dense."""
    xv = x_ref[...]                                        # (1, L_IN)

    # ---- layer 1: conv(1->6[pad 8], 5x5) as ONE MXU matmul ------------------
    # im2col slab: slab1[i*5+j, m] = x_flat[m + 32*i + j]
    for i in range(5):
        for j in range(5):
            t = i * 5 + j
            off = i * IMG + j
            slab1_ref[t:t + 1, :] = xv[:, off:off + L_CONV1]
    acc1 = jnp.dot(w1_ref[...], slab1_ref[...],
                   preferred_element_type=jnp.float32)     # (8, L_CONV1)
    acc1 = acc1 + aux_ref[0:8, 0:1]                        # conv1 bias

    # BatchNorm2d (training-mode batch stats) over valid positions only.
    lane1 = lax.broadcasted_iota(jnp.int32, (1, L_CONV1), 1)
    m1 = ((lane1 < N_IMG * IMG_PIX)
          & ((lane1 & 31) < 28)
          & (((lane1 >> 5) & 31) < 28)).astype(jnp.float32)
    cnt1 = float(N_IMG * 28 * 28)
    masked1 = acc1 * m1
    mean1 = jnp.sum(masked1, axis=1, keepdims=True) * (1.0 / cnt1)
    ex2_1 = jnp.sum(masked1 * acc1, axis=1, keepdims=True) * (1.0 / cnt1)
    var1 = ex2_1 - mean1 * mean1
    t1 = jnp.tanh(aux_ref[0:8, 1:2] * (acc1 - mean1)
                  * lax.rsqrt(var1 + BN_EPS) + aux_ref[0:8, 2:3])

    # ---- maxpool 2x2/2: window corners at flat offsets {0, 1, 32, 33};
    # pooled (n, ph, pw) lands at flat index n*1024 + 64*ph + 2*pw.
    p1 = jnp.maximum(
        jnp.maximum(t1[:, 0:L_POOL1], t1[:, 1:1 + L_POOL1]),
        jnp.maximum(t1[:, IMG:IMG + L_POOL1],
                    t1[:, IMG + 1:IMG + 1 + L_POOL1]))      # (8, L_POOL1)

    # ---- layer 2: conv(6[pad 8]->16, 5x5) as ONE MXU matmul (K = 200) ------
    # slab2 rows (i*5+j)*8 + cin = p1[cin, m + 64*i + 2*j]
    for i in range(5):
        for j in range(5):
            t = i * 5 + j
            off = 2 * i * IMG + 2 * j
            slab2_ref[t * 8:(t + 1) * 8, :] = p1[:, off:off + L_CONV2]
    acc2 = jnp.dot(w2_ref[...], slab2_ref[...],
                   preferred_element_type=jnp.float32)     # (16, L_CONV2)
    acc2 = acc2 + aux_ref[:, 3:4]                          # conv2 bias

    lane2 = lax.broadcasted_iota(jnp.int32, (1, L_CONV2), 1)
    r2 = lane2 & (IMG_PIX - 1)
    m2 = ((lane2 < N_IMG * IMG_PIX)
          & ((r2 & 1) == 0)
          & (((r2 >> 1) & 31) < 10)
          & ((r2 >> 6) < 10)).astype(jnp.float32)
    cnt2 = float(N_IMG * 10 * 10)
    masked2 = acc2 * m2
    mean2 = jnp.sum(masked2, axis=1, keepdims=True) * (1.0 / cnt2)
    ex2_2 = jnp.sum(masked2 * acc2, axis=1, keepdims=True) * (1.0 / cnt2)
    var2 = ex2_2 - mean2 * mean2
    t2 = jnp.tanh(aux_ref[:, 4:5] * (acc2 - mean2)
                  * lax.rsqrt(var2 + BN_EPS) + aux_ref[:, 5:6])

    # ---- maxpool 2x2/2 on the stride-2 grid: corner offsets {0, 2, 64, 66};
    # pooled (n, ph, pw) lands at flat index n*1024 + 128*ph + 4*pw.
    p2 = jnp.maximum(
        jnp.maximum(t2[:, 0:L_POOL2], t2[:, 2:2 + L_POOL2]),
        jnp.maximum(t2[:, 2 * IMG:2 * IMG + L_POOL2],
                    t2[:, 2 * IMG + 2:2 * IMG + 2 + L_POOL2]))  # (16, L_POOL2)

    # ---- flatten: pull the 16x5x5 pooled map per image via a 0/1 selection
    # matmul (MXU), then write 32 contiguous (1,32) row blocks into a
    # lane-dense (N, 512) scratch that feeds the FC head.
    win = jnp.concatenate([p2[:, 0:W_WIN],
                           p2[:, IMG_PIX:IMG_PIX + W_WIN]], axis=0)  # (32, 640)
    col_io = lax.broadcasted_iota(jnp.int32, (W_WIN, 32), 0)
    s_io = lax.broadcasted_iota(jnp.int32, (W_WIN, 32), 1)
    pw_c = (col_io >> 2) & 31
    ph_c = col_io >> 7
    sel = (((col_io & 3) == 0) & (pw_c < 5) & (ph_c < 5)
           & (s_io == (ph_c * 5 + pw_c))).astype(jnp.float32)        # (640, 32)
    e = jnp.dot(win, sel, preferred_element_type=jnp.float32)        # (32, 32)
    # e[n*16 + c, s] = pool2[n, c, ph, pw]  with s = ph*5 + pw
    for n in range(N_IMG):
        for c in range(16):
            r = n * 16 + c
            xfc_ref[n:n + 1, c * 32:(c + 1) * 32] = e[r:r + 1, :]

    # ---- fully-connected head in (batch, features) orientation -------------
    xfcT = xfc_ref[0:N_IMG, :]                                       # (2, 512)
    h = jnp.tanh(jnp.dot(xfcT, fcw_ref[...],
                         preferred_element_type=jnp.float32)
                 + fcb_ref[0:1, 0:120])
    h = jnp.tanh(jnp.dot(h, fc1w_ref[...],
                         preferred_element_type=jnp.float32)
                 + fcb_ref[1:2, 0:84])
    out_ref[...] = (jnp.dot(h, fc2w_ref[...],
                            preferred_element_type=jnp.float32)
                    + fcb_ref[2:3, 0:NUM_CLASSES])


# ----------------------------- host-side wrappers --------------------------

def _full_spec(shape):
    # Single full-array block (block == array dims, so tiling rules are met).
    r = len(shape)
    return pl.BlockSpec(shape, lambda i, _r=r: (0,) * _r)


def lenet5_forward(x_nchw, kp):
    """x_nchw: (N_IMG, 1, 32, 32) float32; kp: output of prepare_params()."""
    x_flat = x_nchw.astype(jnp.float32).reshape(-1)       # n*1024 + h*32 + w
    x_flat = jnp.pad(x_flat, (0, L_IN - x_flat.shape[0])).reshape(1, L_IN)

    return pl.pallas_call(
        lenet5_kernel,
        grid=(1,),
        in_specs=[
            _full_spec((1, L_IN)),
            _full_spec((8, 25)),
            _full_spec((16, 200)),
            _full_spec((16, 8)),
            _full_spec((FC_LANES, 120)),
            _full_spec((120, 84)),
            _full_spec((84, NUM_CLASSES)),
            _full_spec((3, 128)),
        ],
        out_specs=_full_spec((N_IMG, NUM_CLASSES)),
        out_shape=jax.ShapeDtypeStruct((N_IMG, NUM_CLASSES), jnp.float32),
        scratch_shapes=[
            pltpu.VMEM((25, L_CONV1), jnp.float32),    # conv1 im2col slab
            pltpu.VMEM((200, L_CONV2), jnp.float32),   # conv2 im2col slab
            pltpu.VMEM((8, FC_LANES), jnp.float32),    # flattened features
        ],
        compiler_params=pltpu.CompilerParams(
            dimension_semantics=("arbitrary",)),
    )(x_flat, kp["w1"], kp["w2"], kp["aux"], kp["fcwT"], kp["fc1wT"],
      kp["fc2wT"], kp["fcbias"])


def prepare_params(p):
    """One-time re-layout of PyTorch-style params into kernel layout."""
    # conv1: (6,1,5,5) -> (8, 25) (rows 6,7 zero; column t = i*5 + j)
    w1 = jnp.pad(p["conv1_w"].reshape(6, 25), ((0, 2), (0, 0)))
    # conv2: (16,6,5,5) -> (16, 200) with column (i*5+j)*8 + cin (cin 6,7 zero)
    w2 = jnp.transpose(p["conv2_w"], (2, 3, 1, 0))           # (5,5,6,16)
    w2 = jnp.pad(w2, ((0, 0), (0, 0), (0, 2), (0, 0)))       # (5,5,8,16)
    w2 = jnp.transpose(w2.reshape(200, 16), (1, 0))          # (16,200)
    # per-layer bias/gamma/beta packed into one (16, 8) blob
    aux = jnp.zeros((16, 8), jnp.float32)
    aux = aux.at[0:6, 0].set(p["conv1_b"])
    aux = aux.at[0:6, 1].set(p["bn1_g"])
    aux = aux.at[0:6, 2].set(p["bn1_b"])
    aux = aux.at[0:16, 3].set(p["conv2_b"])
    aux = aux.at[0:16, 4].set(p["bn2_g"])
    aux = aux.at[0:16, 5].set(p["bn2_b"])
    # fc: (120, 400) with feature index c*25+s -> (512, 120), row c*32+s
    fcw = p["fc_w"].reshape(120, 16, 25)
    fcw = jnp.pad(fcw, ((0, 0), (0, 0), (0, 7)))             # (120,16,32)
    fcwT = jnp.transpose(fcw, (1, 2, 0)).reshape(FC_LANES, 120)
    # FC biases packed into one (3, 128) blob
    fcb = jnp.zeros((3, 128), jnp.float32)
    fcb = fcb.at[0, 0:120].set(p["fc_b"])
    fcb = fcb.at[1, 0:84].set(p["fc1_b"])
    fcb = fcb.at[2, 0:NUM_CLASSES].set(p["fc2_b"])
    return dict(w1=w1, w2=w2, aux=aux, fcwT=fcwT,
                fc1wT=jnp.transpose(p["fc1_w"]),
                fc2wT=jnp.transpose(p["fc2_w"]),
                fcbias=fcb)


def init_params(key):
    """PyTorch-default-style init (uniform +-1/sqrt(fan_in))."""
    ks = jax.random.split(key, 10)

    def u(k, shape, fan_in):
        b = 1.0 / math.sqrt(fan_in)
        return jax.random.uniform(k, shape, jnp.float32, -b, b)

    return {
        "conv1_w": u(ks[0], (6, 1, 5, 5), 25), "conv1_b": u(ks[1], (6,), 25),
        "bn1_g": jnp.ones((6,), jnp.float32), "bn1_b": jnp.zeros((6,), jnp.float32),
        "conv2_w": u(ks[2], (16, 6, 5, 5), 150), "conv2_b": u(ks[3], (16,), 150),
        "bn2_g": jnp.ones((16,), jnp.float32), "bn2_b": jnp.zeros((16,), jnp.float32),
        "fc_w": u(ks[4], (120, 400), 400), "fc_b": u(ks[5], (120,), 400),
        "fc1_w": u(ks[6], (84, 120), 120), "fc1_b": u(ks[7], (84,), 120),
        "fc2_w": u(ks[8], (NUM_CLASSES, 84), 84), "fc2_b": u(ks[9], (NUM_CLASSES,), 84),
    }


# ----------------------------- pure-JAX reference (for validation) ---------

def _reference_forward(x_nchw, p):
    x = jnp.transpose(x_nchw, (0, 2, 3, 1)).astype(jnp.float32)

    def im2col(a, kh, kw):
        n, h, w, c = a.shape
        oh, ow = h - kh + 1, w - kw + 1
        cols = [a[:, i:i + oh, j:j + ow, :] for i in range(kh) for j in range(kw)]
        pt = jnp.stack(cols, axis=3)
        return pt.reshape(n * oh * ow, kh * kw * c), (n, oh, ow)

    def conv_bn_tanh(a, w_oihw, b, g, beta):
        cout, cin, kh, kw = w_oihw.shape
        pt, (n, oh, ow) = im2col(a, kh, kw)
        wm = jnp.transpose(w_oihw, (2, 3, 1, 0)).reshape(kh * kw * cin, cout)
        y = pt @ wm + b
        mu = jnp.mean(y, axis=0, keepdims=True)
        var = jnp.mean((y - mu) ** 2, axis=0, keepdims=True)
        y = g * (y - mu) * lax.rsqrt(var + BN_EPS) + beta
        return jnp.tanh(y).reshape(n, oh, ow, cout)

    def pool(a):
        return jnp.maximum(
            jnp.maximum(a[:, 0::2, 0::2, :], a[:, 0::2, 1::2, :]),
            jnp.maximum(a[:, 1::2, 0::2, :], a[:, 1::2, 1::2, :]))

    y = pool(conv_bn_tanh(x, p["conv1_w"], p["conv1_b"], p["bn1_g"], p["bn1_b"]))
    y = pool(conv_bn_tanh(y, p["conv2_w"], p["conv2_b"], p["bn2_g"], p["bn2_b"]))
    y = jnp.transpose(y, (0, 3, 1, 2)).reshape(y.shape[0], -1)
    y = jnp.tanh(y @ p["fc_w"].T + p["fc_b"])
    y = jnp.tanh(y @ p["fc1_w"].T + p["fc1_b"])
    return y @ p["fc2_w"].T + p["fc2_b"]


# ----------------------------- main -----------------------------------------

if __name__ == "__main__":
    key = jax.random.PRNGKey(0)
    pkey, xkey = jax.random.split(key)
    params = init_params(pkey)
    kparams = prepare_params(params)          # one-time weight re-layout
    x = jax.random.normal(xkey, (N_IMG, 1, 32, 32), jnp.float32)

    fwd = jax.jit(lenet5_forward)
    out = jax.block_until_ready(fwd(x, kparams))
    assert out.shape == (N_IMG, NUM_CLASSES), out.shape
    assert out.dtype == jnp.float32

    ref = jax.block_until_ready(jax.jit(_reference_forward)(x, params))
    max_err = float(jnp.max(jnp.abs(out - ref)))
    assert max_err < 2e-2, f"mismatch vs pure-JAX reference: {max_err}"

    print("KERNEL_OK")
</pallas_src>

<mosaic_0001>
module attributes {stable_mosaic.version = 11 : i64} {
  func.func @lenet5_kernel(%arg0: i32, %arg1: memref<1x2560xf32, #tpu.memory_space<vmem>>, %arg2: memref<8x25xf32, #tpu.memory_space<vmem>>, %arg3: memref<16x200xf32, #tpu.memory_space<vmem>>, %arg4: memref<16x8xf32, #tpu.memory_space<vmem>>, %arg5: memref<512x120xf32, #tpu.memory_space<vmem>>, %arg6: memref<120x84xf32, #tpu.memory_space<vmem>>, %arg7: memref<84x10xf32, #tpu.memory_space<vmem>>, %arg8: memref<3x128xf32, #tpu.memory_space<vmem>>, %arg9: memref<2x10xf32, #tpu.memory_space<vmem>>, %arg10: memref<25x2304xf32, #tpu.memory_space<vmem>>, %arg11: memref<200x1792xf32, #tpu.memory_space<vmem>>, %arg12: memref<8x512xf32, #tpu.memory_space<vmem>>) attributes {dimension_semantics = [#tpu.dimension_semantics<arbitrary>], iteration_bounds = array<i64: 1>, scalar_prefetch = 0 : i64, scratch_operands = 3 : i64, tpu.core_type = #tpu.core_type<tc>, window_params = [{pipeline_mode = #tpu.pipeline_mode<synchronous>, transform_indices = @transform_0, window_bounds = array<i64: 1, 2560>}, {pipeline_mode = #tpu.pipeline_mode<synchronous>, transform_indices = @transform_1, window_bounds = array<i64: 8, 25>}, {pipeline_mode = #tpu.pipeline_mode<synchronous>, transform_indices = @transform_2, window_bounds = array<i64: 16, 200>}, {pipeline_mode = #tpu.pipeline_mode<synchronous>, transform_indices = @transform_3, window_bounds = array<i64: 16, 8>}, {pipeline_mode = #tpu.pipeline_mode<synchronous>, transform_indices = @transform_4, window_bounds = array<i64: 512, 120>}, {pipeline_mode = #tpu.pipeline_mode<synchronous>, transform_indices = @transform_5, window_bounds = array<i64: 120, 84>}, {pipeline_mode = #tpu.pipeline_mode<synchronous>, transform_indices = @transform_6, window_bounds = array<i64: 84, 10>}, {pipeline_mode = #tpu.pipeline_mode<synchronous>, transform_indices = @transform_7, window_bounds = array<i64: 3, 128>}, {pipeline_mode = #tpu.pipeline_mode<synchronous>, transform_indices = @transform_8, window_bounds = array<i64: 2, 10>}]} {
    %c0 = arith.constant 0 : index
    %c0_0 = arith.constant 0 : index
    %0 = vector.load %arg1[%c0, %c0_0] : memref<1x2560xf32, #tpu.memory_space<vmem>>, vector<1x2560xf32>
    %1 = vector.extract_strided_slice %0 {offsets = [0, 0], sizes = [1, 2304], strides = [1, 1]} : vector<1x2560xf32> to vector<1x2304xf32>
    %c0_1 = arith.constant 0 : index
    %c0_2 = arith.constant 0 : index
    %2 = vector.load %arg10[%c0_1, %c0_2] : memref<25x2304xf32, #tpu.memory_space<vmem>>, vector<1x2304xf32>
    tpu.vector_store %arg10[%c0_1, %c0_2], %1 {strides = array<i32>} : memref<25x2304xf32, #tpu.memory_space<vmem>>, vector<1x2304xf32>,
    %3 = vector.extract_strided_slice %0 {offsets = [0, 1], sizes = [1, 2304], strides = [1, 1]} : vector<1x2560xf32> to vector<1x2304xf32>
    %c1 = arith.constant 1 : index
    %c0_3 = arith.constant 0 : index
    %4 = vector.load %arg10[%c1, %c0_3] : memref<25x2304xf32, #tpu.memory_space<vmem>>, vector<1x2304xf32>
    tpu.vector_store %arg10[%c1, %c0_3], %3 {strides = array<i32>} : memref<25x2304xf32, #tpu.memory_space<vmem>>, vector<1x2304xf32>,
    %5 = vector.extract_strided_slice %0 {offsets = [0, 2], sizes = [1, 2304], strides = [1, 1]} : vector<1x2560xf32> to vector<1x2304xf32>
    %c2 = arith.constant 2 : index
    %c0_4 = arith.constant 0 : index
    %6 = vector.load %arg10[%c2, %c0_4] : memref<25x2304xf32, #tpu.memory_space<vmem>>, vector<1x2304xf32>
    tpu.vector_store %arg10[%c2, %c0_4], %5 {strides = array<i32>} : memref<25x2304xf32, #tpu.memory_space<vmem>>, vector<1x2304xf32>,
    %7 = vector.extract_strided_slice %0 {offsets = [0, 3], sizes = [1, 2304], strides = [1, 1]} : vector<1x2560xf32> to vector<1x2304xf32>
    %c3 = arith.constant 3 : index
    %c0_5 = arith.constant 0 : index
    %8 = vector.load %arg10[%c3, %c0_5] : memref<25x2304xf32, #tpu.memory_space<vmem>>, vector<1x2304xf32>
    tpu.vector_store %arg10[%c3, %c0_5], %7 {strides = array<i32>} : memref<25x2304xf32, #tpu.memory_space<vmem>>, vector<1x2304xf32>,
    %9 = vector.extract_strided_slice %0 {offsets = [0, 4], sizes = [1, 2304], strides = [1, 1]} : vector<1x2560xf32> to vector<1x2304xf32>
    %c4 = arith.constant 4 : index
    %c0_6 = arith.constant 0 : index
    %10 = vector.load %arg10[%c4, %c0_6] : memref<25x2304xf32, #tpu.memory_space<vmem>>, vector<1x2304xf32>
    tpu.vector_store %arg10[%c4, %c0_6], %9 {strides = array<i32>} : memref<25x2304xf32, #tpu.memory_space<vmem>>, vector<1x2304xf32>,
    %11 = vector.extract_strided_slice %0 {offsets = [0, 32], sizes = [1, 2304], strides = [1, 1]} : vector<1x2560xf32> to vector<1x2304xf32>
    %c5 = arith.constant 5 : index
    %c0_7 = arith.constant 0 : index
    %12 = vector.load %arg10[%c5, %c0_7] : memref<25x2304xf32, #tpu.memory_space<vmem>>, vector<1x2304xf32>
    tpu.vector_store %arg10[%c5, %c0_7], %11 {strides = array<i32>} : memref<25x2304xf32, #tpu.memory_space<vmem>>, vector<1x2304xf32>,
    %13 = vector.extract_strided_slice %0 {offsets = [0, 33], sizes = [1, 2304], strides = [1, 1]} : vector<1x2560xf32> to vector<1x2304xf32>
    %c6 = arith.constant 6 : index
    %c0_8 = arith.constant 0 : index
    %14 = vector.load %arg10[%c6, %c0_8] : memref<25x2304xf32, #tpu.memory_space<vmem>>, vector<1x2304xf32>
    tpu.vector_store %arg10[%c6, %c0_8], %13 {strides = array<i32>} : memref<25x2304xf32, #tpu.memory_space<vmem>>, vector<1x2304xf32>,
    %15 = vector.extract_strided_slice %0 {offsets = [0, 34], sizes = [1, 2304], strides = [1, 1]} : vector<1x2560xf32> to vector<1x2304xf32>
    %c7 = arith.constant 7 : index
    %c0_9 = arith.constant 0 : index
    %16 = vector.load %arg10[%c7, %c0_9] : memref<25x2304xf32, #tpu.memory_space<vmem>>, vector<1x2304xf32>
    tpu.vector_store %arg10[%c7, %c0_9], %15 {strides = array<i32>} : memref<25x2304xf32, #tpu.memory_space<vmem>>, vector<1x2304xf32>,
    %17 = vector.extract_strided_slice %0 {offsets = [0, 35], sizes = [1, 2304], strides = [1, 1]} : vector<1x2560xf32> to vector<1x2304xf32>
    %c8 = arith.constant 8 : index
    %c0_10 = arith.constant 0 : index
    %18 = vector.load %arg10[%c8, %c0_10] : memref<25x2304xf32, #tpu.memory_space<vmem>>, vector<1x2304xf32>
    tpu.vector_store %arg10[%c8, %c0_10], %17 {strides = array<i32>} : memref<25x2304xf32, #tpu.memory_space<vmem>>, vector<1x2304xf32>,
    %19 = vector.extract_strided_slice %0 {offsets = [0, 36], sizes = [1, 2304], strides = [1, 1]} : vector<1x2560xf32> to vector<1x2304xf32>
    %c9 = arith.constant 9 : index
    %c0_11 = arith.constant 0 : index
    %20 = vector.load %arg10[%c9, %c0_11] : memref<25x2304xf32, #tpu.memory_space<vmem>>, vector<1x2304xf32>
    tpu.vector_store %arg10[%c9, %c0_11], %19 {strides = array<i32>} : memref<25x2304xf32, #tpu.memory_space<vmem>>, vector<1x2304xf32>,
    %21 = vector.extract_strided_slice %0 {offsets = [0, 64], sizes = [1, 2304], strides = [1, 1]} : vector<1x2560xf32> to vector<1x2304xf32>
    %c10 = arith.constant 10 : index
    %c0_12 = arith.constant 0 : index
    %22 = vector.load %arg10[%c10, %c0_12] : memref<25x2304xf32, #tpu.memory_space<vmem>>, vector<1x2304xf32>
    tpu.vector_store %arg10[%c10, %c0_12], %21 {strides = array<i32>} : memref<25x2304xf32, #tpu.memory_space<vmem>>, vector<1x2304xf32>,
    %23 = vector.extract_strided_slice %0 {offsets = [0, 65], sizes = [1, 2304], strides = [1, 1]} : vector<1x2560xf32> to vector<1x2304xf32>
    %c11 = arith.constant 11 : index
    %c0_13 = arith.constant 0 : index
    %24 = vector.load %arg10[%c11, %c0_13] : memref<25x2304xf32, #tpu.memory_space<vmem>>, vector<1x2304xf32>
    tpu.vector_store %arg10[%c11, %c0_13], %23 {strides = array<i32>} : memref<25x2304xf32, #tpu.memory_space<vmem>>, vector<1x2304xf32>,
    %25 = vector.extract_strided_slice %0 {offsets = [0, 66], sizes = [1, 2304], strides = [1, 1]} : vector<1x2560xf32> to vector<1x2304xf32>
    %c12 = arith.constant 12 : index
    %c0_14 = arith.constant 0 : index
    %26 = vector.load %arg10[%c12, %c0_14] : memref<25x2304xf32, #tpu.memory_space<vmem>>, vector<1x2304xf32>
    tpu.vector_store %arg10[%c12, %c0_14], %25 {strides = array<i32>} : memref<25x2304xf32, #tpu.memory_space<vmem>>, vector<1x2304xf32>,
    %27 = vector.extract_strided_slice %0 {offsets = [0, 67], sizes = [1, 2304], strides = [1, 1]} : vector<1x2560xf32> to vector<1x2304xf32>
    %c13 = arith.constant 13 : index
    %c0_15 = arith.constant 0 : index
    %28 = vector.load %arg10[%c13, %c0_15] : memref<25x2304xf32, #tpu.memory_space<vmem>>, vector<1x2304xf32>
    tpu.vector_store %arg10[%c13, %c0_15], %27 {strides = array<i32>} : memref<25x2304xf32, #tpu.memory_space<vmem>>, vector<1x2304xf32>,
    %29 = vector.extract_strided_slice %0 {offsets = [0, 68], sizes = [1, 2304], strides = [1, 1]} : vector<1x2560xf32> to vector<1x2304xf32>
    %c14 = arith.constant 14 : index
    %c0_16 = arith.constant 0 : index
    %30 = vector.load %arg10[%c14, %c0_16] : memref<25x2304xf32, #tpu.memory_space<vmem>>, vector<1x2304xf32>
    tpu.vector_store %arg10[%c14, %c0_16], %29 {strides = array<i32>} : memref<25x2304xf32, #tpu.memory_space<vmem>>, vector<1x2304xf32>,
    %31 = vector.extract_strided_slice %0 {offsets = [0, 96], sizes = [1, 2304], strides = [1, 1]} : vector<1x2560xf32> to vector<1x2304xf32>
    %c15 = arith.constant 15 : index
    %c0_17 = arith.constant 0 : index
    %32 = vector.load %arg10[%c15, %c0_17] : memref<25x2304xf32, #tpu.memory_space<vmem>>, vector<1x2304xf32>
    tpu.vector_store %arg10[%c15, %c0_17], %31 {strides = array<i32>} : memref<25x2304xf32, #tpu.memory_space<vmem>>, vector<1x2304xf32>,
    %33 = vector.extract_strided_slice %0 {offsets = [0, 97], sizes = [1, 2304], strides = [1, 1]} : vector<1x2560xf32> to vector<1x2304xf32>
    %c16 = arith.constant 16 : index
    %c0_18 = arith.constant 0 : index
    %34 = vector.load %arg10[%c16, %c0_18] : memref<25x2304xf32, #tpu.memory_space<vmem>>, vector<1x2304xf32>
    tpu.vector_store %arg10[%c16, %c0_18], %33 {strides = array<i32>} : memref<25x2304xf32, #tpu.memory_space<vmem>>, vector<1x2304xf32>,
    %35 = vector.extract_strided_slice %0 {offsets = [0, 98], sizes = [1, 2304], strides = [1, 1]} : vector<1x2560xf32> to vector<1x2304xf32>
    %c17 = arith.constant 17 : index
    %c0_19 = arith.constant 0 : index
    %36 = vector.load %arg10[%c17, %c0_19] : memref<25x2304xf32, #tpu.memory_space<vmem>>, vector<1x2304xf32>
    tpu.vector_store %arg10[%c17, %c0_19], %35 {strides = array<i32>} : memref<25x2304xf32, #tpu.memory_space<vmem>>, vector<1x2304xf32>,
    %37 = vector.extract_strided_slice %0 {offsets = [0, 99], sizes = [1, 2304], strides = [1, 1]} : vector<1x2560xf32> to vector<1x2304xf32>
    %c18 = arith.constant 18 : index
    %c0_20 = arith.constant 0 : index
    %38 = vector.load %arg10[%c18, %c0_20] : memref<25x2304xf32, #tpu.memory_space<vmem>>, vector<1x2304xf32>
    tpu.vector_store %arg10[%c18, %c0_20], %37 {strides = array<i32>} : memref<25x2304xf32, #tpu.memory_space<vmem>>, vector<1x2304xf32>,
    %39 = vector.extract_strided_slice %0 {offsets = [0, 100], sizes = [1, 2304], strides = [1, 1]} : vector<1x2560xf32> to vector<1x2304xf32>
    %c19 = arith.constant 19 : index
    %c0_21 = arith.constant 0 : index
    %40 = vector.load %arg10[%c19, %c0_21] : memref<25x2304xf32, #tpu.memory_space<vmem>>, vector<1x2304xf32>
    tpu.vector_store %arg10[%c19, %c0_21], %39 {strides = array<i32>} : memref<25x2304xf32, #tpu.memory_space<vmem>>, vector<1x2304xf32>,
    %41 = vector.extract_strided_slice %0 {offsets = [0, 128], sizes = [1, 2304], strides = [1, 1]} : vector<1x2560xf32> to vector<1x2304xf32>
    %c20 = arith.constant 20 : index
    %c0_22 = arith.constant 0 : index
    %42 = vector.load %arg10[%c20, %c0_22] : memref<25x2304xf32, #tpu.memory_space<vmem>>, vector<1x2304xf32>
    tpu.vector_store %arg10[%c20, %c0_22], %41 {strides = array<i32>} : memref<25x2304xf32, #tpu.memory_space<vmem>>, vector<1x2304xf32>,
    %43 = vector.extract_strided_slice %0 {offsets = [0, 129], sizes = [1, 2304], strides = [1, 1]} : vector<1x2560xf32> to vector<1x2304xf32>
    %c21 = arith.constant 21 : index
    %c0_23 = arith.constant 0 : index
    %44 = vector.load %arg10[%c21, %c0_23] : memref<25x2304xf32, #tpu.memory_space<vmem>>, vector<1x2304xf32>
    tpu.vector_store %arg10[%c21, %c0_23], %43 {strides = array<i32>} : memref<25x2304xf32, #tpu.memory_space<vmem>>, vector<1x2304xf32>,
    %45 = vector.extract_strided_slice %0 {offsets = [0, 130], sizes = [1, 2304], strides = [1, 1]} : vector<1x2560xf32> to vector<1x2304xf32>
    %c22 = arith.constant 22 : index
    %c0_24 = arith.constant 0 : index
    %46 = vector.load %arg10[%c22, %c0_24] : memref<25x2304xf32, #tpu.memory_space<vmem>>, vector<1x2304xf32>
    tpu.vector_store %arg10[%c22, %c0_24], %45 {strides = array<i32>} : memref<25x2304xf32, #tpu.memory_space<vmem>>, vector<1x2304xf32>,
    %47 = vector.extract_strided_slice %0 {offsets = [0, 131], sizes = [1, 2304], strides = [1, 1]} : vector<1x2560xf32> to vector<1x2304xf32>
    %c23 = arith.constant 23 : index
    %c0_25 = arith.constant 0 : index
    %48 = vector.load %arg10[%c23, %c0_25] : memref<25x2304xf32, #tpu.memory_space<vmem>>, vector<1x2304xf32>
    tpu.vector_store %arg10[%c23, %c0_25], %47 {strides = array<i32>} : memref<25x2304xf32, #tpu.memory_space<vmem>>, vector<1x2304xf32>,
    %49 = vector.extract_strided_slice %0 {offsets = [0, 132], sizes = [1, 2304], strides = [1, 1]} : vector<1x2560xf32> to vector<1x2304xf32>
    %c24 = arith.constant 24 : index
    %c0_26 = arith.constant 0 : index
    %50 = vector.load %arg10[%c24, %c0_26] : memref<25x2304xf32, #tpu.memory_space<vmem>>, vector<1x2304xf32>
    tpu.vector_store %arg10[%c24, %c0_26], %49 {strides = array<i32>} : memref<25x2304xf32, #tpu.memory_space<vmem>>, vector<1x2304xf32>,
    %c0_27 = arith.constant 0 : index
    %c0_28 = arith.constant 0 : index
    %51 = vector.load %arg2[%c0_27, %c0_28] : memref<8x25xf32, #tpu.memory_space<vmem>>, vector<8x25xf32>
    %c0_29 = arith.constant 0 : index
    %c0_30 = arith.constant 0 : index
    %52 = vector.load %arg10[%c0_29, %c0_30] : memref<25x2304xf32, #tpu.memory_space<vmem>>, vector<25x2304xf32>
    %cst = arith.constant dense<0.000000e+00> : vector<8x2304xf32>
    %53 = tpu.matmul %51, %52, %cst {dimension_numbers = #tpu.dot_dimension_numbers<[1], [0], [0], [1], [0, 0, 1, 1], [], []>} : vector<8x25xf32>, vector<25x2304xf32>, vector<8x2304xf32> -> vector<8x2304xf32>
    %c0_31 = arith.constant 0 : index
    %c0_32 = arith.constant 0 : index
    %54 = vector.load %arg4[%c0_31, %c0_32] : memref<16x8xf32, #tpu.memory_space<vmem>>, vector<8x1xf32>
    %55 = vector.broadcast %54 : vector<8x1xf32> to vector<8x2304xf32>
    %56 = arith.addf %53, %55 : vector<8x2304xf32>
    %57 = tpu.iota {dimensions = array<i32: 1>} : vector<1x2304xi32>
    %c2048_i32 = arith.constant 2048 : i32
    %58 = vector.broadcast %c2048_i32 : i32 to vector<1x2304xi32>
    %59 = arith.cmpi slt, %57, %58 : vector<1x2304xi32>
    %c31_i32 = arith.constant 31 : i32
    %60 = vector.broadcast %c31_i32 : i32 to vector<1x2304xi32>
    %61 = arith.andi %57, %60 : vector<1x2304xi32>
    %c28_i32 = arith.constant 28 : i32
    %62 = vector.broadcast %c28_i32 : i32 to vector<1x2304xi32>
    %63 = arith.cmpi slt, %61, %62 : vector<1x2304xi32>
    %64 = arith.andi %59, %63 : vector<1x2304xi1>
    %c5_i32 = arith.constant 5 : i32
    %65 = vector.broadcast %c5_i32 : i32 to vector<1x2304xi32>
    %66 = arith.shrsi %57, %65 : vector<1x2304xi32>
    %c31_i32_33 = arith.constant 31 : i32
    %67 = vector.broadcast %c31_i32_33 : i32 to vector<1x2304xi32>
    %68 = arith.andi %66, %67 : vector<1x2304xi32>
    %c28_i32_34 = arith.constant 28 : i32
    %69 = vector.broadcast %c28_i32_34 : i32 to vector<1x2304xi32>
    %70 = arith.cmpi slt, %68, %69 : vector<1x2304xi32>
    %71 = arith.andi %64, %70 : vector<1x2304xi1>
    %72 = arith.extui %71 : vector<1x2304xi1> to vector<1x2304xi32>
    %73 = arith.sitofp %72 : vector<1x2304xi32> to vector<1x2304xf32>
    %74 = vector.broadcast %73 : vector<1x2304xf32> to vector<8x2304xf32>
    %75 = arith.mulf %56, %74 : vector<8x2304xf32>
    %cst_35 = arith.constant dense<0.000000e+00> : vector<8xf32>
    %76 = vector.multi_reduction <add>, %75, %cst_35 [1] : vector<8x2304xf32> to vector<8xf32>
    %77 = vector.shape_cast %76 : vector<8xf32> to vector<8x1xf32>
    %cst_36 = arith.constant 6.37755089E-4 : f32
    %78 = vector.broadcast %cst_36 : f32 to vector<8x1xf32>
    %79 = arith.mulf %77, %78 : vector<8x1xf32>
    %80 = arith.mulf %75, %56 : vector<8x2304xf32>
    %cst_37 = arith.constant dense<0.000000e+00> : vector<8xf32>
    %81 = vector.multi_reduction <add>, %80, %cst_37 [1] : vector<8x2304xf32> to vector<8xf32>
    %82 = vector.shape_cast %81 : vector<8xf32> to vector<8x1xf32>
    %cst_38 = arith.constant 6.37755089E-4 : f32
    %83 = vector.broadcast %cst_38 : f32 to vector<8x1xf32>
    %84 = arith.mulf %82, %83 : vector<8x1xf32>
    %85 = arith.mulf %79, %79 : vector<8x1xf32>
    %86 = arith.subf %84, %85 : vector<8x1xf32>
    %c0_39 = arith.constant 0 : index
    %c1_40 = arith.constant 1 : index
    %87 = vector.load %arg4[%c0_39, %c1_40] : memref<16x8xf32, #tpu.memory_space<vmem>>, vector<8x1xf32>
    %88 = vector.broadcast %79 : vector<8x1xf32> to vector<8x2304xf32>
    %89 = arith.subf %56, %88 : vector<8x2304xf32>
    %90 = vector.broadcast %87 : vector<8x1xf32> to vector<8x2304xf32>
    %91 = arith.mulf %90, %89 : vector<8x2304xf32>
    %cst_41 = arith.constant 9.99999974E-6 : f32
    %92 = vector.broadcast %cst_41 : f32 to vector<8x1xf32>
    %93 = arith.addf %86, %92 : vector<8x1xf32>
    %94 = math.rsqrt %93 : vector<8x1xf32>
    %95 = vector.broadcast %94 : vector<8x1xf32> to vector<8x2304xf32>
    %96 = arith.mulf %91, %95 : vector<8x2304xf32>
    %c0_42 = arith.constant 0 : index
    %c2_43 = arith.constant 2 : index
    %97 = vector.load %arg4[%c0_42, %c2_43] : memref<16x8xf32, #tpu.memory_space<vmem>>, vector<8x1xf32>
    %98 = vector.broadcast %97 : vector<8x1xf32> to vector<8x2304xf32>
    %99 = arith.addf %96, %98 : vector<8x2304xf32>
    %100 = math.tanh %99 : vector<8x2304xf32>
    %101 = vector.extract_strided_slice %100 {offsets = [0, 0], sizes = [8, 2176], strides = [1, 1]} : vector<8x2304xf32> to vector<8x2176xf32>
    %102 = vector.extract_strided_slice %100 {offsets = [0, 1], sizes = [8, 2176], strides = [1, 1]} : vector<8x2304xf32> to vector<8x2176xf32>
    %103 = arith.maximumf %101, %102 : vector<8x2176xf32>
    %104 = vector.extract_strided_slice %100 {offsets = [0, 32], sizes = [8, 2176], strides = [1, 1]} : vector<8x2304xf32> to vector<8x2176xf32>
    %105 = vector.extract_strided_slice %100 {offsets = [0, 33], sizes = [8, 2176], strides = [1, 1]} : vector<8x2304xf32> to vector<8x2176xf32>
    %106 = arith.maximumf %104, %105 : vector<8x2176xf32>
    %107 = arith.maximumf %103, %106 : vector<8x2176xf32>
    %108 = vector.extract_strided_slice %107 {offsets = [0, 0], sizes = [8, 1792], strides = [1, 1]} : vector<8x2176xf32> to vector<8x1792xf32>
    %c0_44 = arith.constant 0 : index
    %c0_45 = arith.constant 0 : index
    %109 = vector.load %arg11[%c0_44, %c0_45] : memref<200x1792xf32, #tpu.memory_space<vmem>>, vector<8x1792xf32>
    tpu.vector_store %arg11[%c0_44, %c0_45], %108 {strides = array<i32>} : memref<200x1792xf32, #tpu.memory_space<vmem>>, vector<8x1792xf32>,
    %110 = vector.extract_strided_slice %107 {offsets = [0, 2], sizes = [8, 1792], strides = [1, 1]} : vector<8x2176xf32> to vector<8x1792xf32>
    %c8_46 = arith.constant 8 : index
    %c0_47 = arith.constant 0 : index
    %111 = vector.load %arg11[%c8_46, %c0_47] : memref<200x1792xf32, #tpu.memory_space<vmem>>, vector<8x1792xf32>
    tpu.vector_store %arg11[%c8_46, %c0_47], %110 {strides = array<i32>} : memref<200x1792xf32, #tpu.memory_space<vmem>>, vector<8x1792xf32>,
    %112 = vector.extract_strided_slice %107 {offsets = [0, 4], sizes = [8, 1792], strides = [1, 1]} : vector<8x2176xf32> to vector<8x1792xf32>
    %c16_48 = arith.constant 16 : index
    %c0_49 = arith.constant 0 : index
    %113 = vector.load %arg11[%c16_48, %c0_49] : memref<200x1792xf32, #tpu.memory_space<vmem>>, vector<8x1792xf32>
    tpu.vector_store %arg11[%c16_48, %c0_49], %112 {strides = array<i32>} : memref<200x1792xf32, #tpu.memory_space<vmem>>, vector<8x1792xf32>,
    %114 = vector.extract_strided_slice %107 {offsets = [0, 6], sizes = [8, 1792], strides = [1, 1]} : vector<8x2176xf32> to vector<8x1792xf32>
    %c24_50 = arith.constant 24 : index
    %c0_51 = arith.constant 0 : index
    %115 = vector.load %arg11[%c24_50, %c0_51] : memref<200x1792xf32, #tpu.memory_space<vmem>>, vector<8x1792xf32>
    tpu.vector_store %arg11[%c24_50, %c0_51], %114 {strides = array<i32>} : memref<200x1792xf32, #tpu.memory_space<vmem>>, vector<8x1792xf32>,
    %116 = vector.extract_strided_slice %107 {offsets = [0, 8], sizes = [8, 1792], strides = [1, 1]} : vector<8x2176xf32> to vector<8x1792xf32>
    %c32 = arith.constant 32 : index
    %c0_52 = arith.constant 0 : index
    %117 = vector.load %arg11[%c32, %c0_52] : memref<200x1792xf32, #tpu.memory_space<vmem>>, vector<8x1792xf32>
    tpu.vector_store %arg11[%c32, %c0_52], %116 {strides = array<i32>} : memref<200x1792xf32, #tpu.memory_space<vmem>>, vector<8x1792xf32>,
    %118 = vector.extract_strided_slice %107 {offsets = [0, 64], sizes = [8, 1792], strides = [1, 1]} : vector<8x2176xf32> to vector<8x1792xf32>
    %c40 = arith.constant 40 : index
    %c0_53 = arith.constant 0 : index
    %119 = vector.load %arg11[%c40, %c0_53] : memref<200x1792xf32, #tpu.memory_space<vmem>>, vector<8x1792xf32>
    tpu.vector_store %arg11[%c40, %c0_53], %118 {strides = array<i32>} : memref<200x1792xf32, #tpu.memory_space<vmem>>, vector<8x1792xf32>,
    %120 = vector.extract_strided_slice %107 {offsets = [0, 66], sizes = [8, 1792], strides = [1, 1]} : vector<8x2176xf32> to vector<8x1792xf32>
    %c48 = arith.constant 48 : index
    %c0_54 = arith.constant 0 : index
    %121 = vector.load %arg11[%c48, %c0_54] : memref<200x1792xf32, #tpu.memory_space<vmem>>, vector<8x1792xf32>
    tpu.vector_store %arg11[%c48, %c0_54], %120 {strides = array<i32>} : memref<200x1792xf32, #tpu.memory_space<vmem>>, vector<8x1792xf32>,
    %122 = vector.extract_strided_slice %107 {offsets = [0, 68], sizes = [8, 1792], strides = [1, 1]} : vector<8x2176xf32> to vector<8x1792xf32>
    %c56 = arith.constant 56 : index
    %c0_55 = arith.constant 0 : index
    %123 = vector.load %arg11[%c56, %c0_55] : memref<200x1792xf32, #tpu.memory_space<vmem>>, vector<8x1792xf32>
    tpu.vector_store %arg11[%c56, %c0_55], %122 {strides = array<i32>} : memref<200x1792xf32, #tpu.memory_space<vmem>>, vector<8x1792xf32>,
    %124 = vector.extract_strided_slice %107 {offsets = [0, 70], sizes = [8, 1792], strides = [1, 1]} : vector<8x2176xf32> to vector<8x1792xf32>
    %c64 = arith.constant 64 : index
    %c0_56 = arith.constant 0 : index
    %125 = vector.load %arg11[%c64, %c0_56] : memref<200x1792xf32, #tpu.memory_space<vmem>>, vector<8x1792xf32>
    tpu.vector_store %arg11[%c64, %c0_56], %124 {strides = array<i32>} : memref<200x1792xf32, #tpu.memory_space<vmem>>, vector<8x1792xf32>,
    %126 = vector.extract_strided_slice %107 {offsets = [0, 72], sizes = [8, 1792], strides = [1, 1]} : vector<8x2176xf32> to vector<8x1792xf32>
    %c72 = arith.constant 72 : index
    %c0_57 = arith.constant 0 : index
    %127 = vector.load %arg11[%c72, %c0_57] : memref<200x1792xf32, #tpu.memory_space<vmem>>, vector<8x1792xf32>
    tpu.vector_store %arg11[%c72, %c0_57], %126 {strides = array<i32>} : memref<200x1792xf32, #tpu.memory_space<vmem>>, vector<8x1792xf32>,
    %128 = vector.extract_strided_slice %107 {offsets = [0, 128], sizes = [8, 1792], strides = [1, 1]} : vector<8x2176xf32> to vector<8x1792xf32>
    %c80 = arith.constant 80 : index
    %c0_58 = arith.constant 0 : index
    %129 = vector.load %arg11[%c80, %c0_58] : memref<200x1792xf32, #tpu.memory_space<vmem>>, vector<8x1792xf32>
    tpu.vector_store %arg11[%c80, %c0_58], %128 {strides = array<i32>} : memref<200x1792xf32, #tpu.memory_space<vmem>>, vector<8x1792xf32>,
    %130 = vector.extract_strided_slice %107 {offsets = [0, 130], sizes = [8, 1792], strides = [1, 1]} : vector<8x2176xf32> to vector<8x1792xf32>
    %c88 = arith.constant 88 : index
    %c0_59 = arith.constant 0 : index
    %131 = vector.load %arg11[%c88, %c0_59] : memref<200x1792xf32, #tpu.memory_space<vmem>>, vector<8x1792xf32>
    tpu.vector_store %arg11[%c88, %c0_59], %130 {strides = array<i32>} : memref<200x1792xf32, #tpu.memory_space<vmem>>, vector<8x1792xf32>,
    %132 = vector.extract_strided_slice %107 {offsets = [0, 132], sizes = [8, 1792], strides = [1, 1]} : vector<8x2176xf32> to vector<8x1792xf32>
    %c96 = arith.constant 96 : index
    %c0_60 = arith.constant 0 : index
    %133 = vector.load %arg11[%c96, %c0_60] : memref<200x1792xf32, #tpu.memory_space<vmem>>, vector<8x1792xf32>
    tpu.vector_store %arg11[%c96, %c0_60], %132 {strides = array<i32>} : memref<200x1792xf32, #tpu.memory_space<vmem>>, vector<8x1792xf32>,
    %134 = vector.extract_strided_slice %107 {offsets = [0, 134], sizes = [8, 1792], strides = [1, 1]} : vector<8x2176xf32> to vector<8x1792xf32>
    %c104 = arith.constant 104 : index
    %c0_61 = arith.constant 0 : index
    %135 = vector.load %arg11[%c104, %c0_61] : memref<200x1792xf32, #tpu.memory_space<vmem>>, vector<8x1792xf32>
    tpu.vector_store %arg11[%c104, %c0_61], %134 {strides = array<i32>} : memref<200x1792xf32, #tpu.memory_space<vmem>>, vector<8x1792xf32>,
    %136 = vector.extract_strided_slice %107 {offsets = [0, 136], sizes = [8, 1792], strides = [1, 1]} : vector<8x2176xf32> to vector<8x1792xf32>
    %c112 = arith.constant 112 : index
    %c0_62 = arith.constant 0 : index
    %137 = vector.load %arg11[%c112, %c0_62] : memref<200x1792xf32, #tpu.memory_space<vmem>>, vector<8x1792xf32>
    tpu.vector_store %arg11[%c112, %c0_62], %136 {strides = array<i32>} : memref<200x1792xf32, #tpu.memory_space<vmem>>, vector<8x1792xf32>,
    %138 = vector.extract_strided_slice %107 {offsets = [0, 192], sizes = [8, 1792], strides = [1, 1]} : vector<8x2176xf32> to vector<8x1792xf32>
    %c120 = arith.constant 120 : index
    %c0_63 = arith.constant 0 : index
    %139 = vector.load %arg11[%c120, %c0_63] : memref<200x1792xf32, #tpu.memory_space<vmem>>, vector<8x1792xf32>
    tpu.vector_store %arg11[%c120, %c0_63], %138 {strides = array<i32>} : memref<200x1792xf32, #tpu.memory_space<vmem>>, vector<8x1792xf32>,
    %140 = vector.extract_strided_slice %107 {offsets = [0, 194], sizes = [8, 1792], strides = [1, 1]} : vector<8x2176xf32> to vector<8x1792xf32>
    %c128 = arith.constant 128 : index
    %c0_64 = arith.constant 0 : index
    %141 = vector.load %arg11[%c128, %c0_64] : memref<200x1792xf32, #tpu.memory_space<vmem>>, vector<8x1792xf32>
    tpu.vector_store %arg11[%c128, %c0_64], %140 {strides = array<i32>} : memref<200x1792xf32, #tpu.memory_space<vmem>>, vector<8x1792xf32>,
    %142 = vector.extract_strided_slice %107 {offsets = [0, 196], sizes = [8, 1792], strides = [1, 1]} : vector<8x2176xf32> to vector<8x1792xf32>
    %c136 = arith.constant 136 : index
    %c0_65 = arith.constant 0 : index
    %143 = vector.load %arg11[%c136, %c0_65] : memref<200x1792xf32, #tpu.memory_space<vmem>>, vector<8x1792xf32>
    tpu.vector_store %arg11[%c136, %c0_65], %142 {strides = array<i32>} : memref<200x1792xf32, #tpu.memory_space<vmem>>, vector<8x1792xf32>,
    %144 = vector.extract_strided_slice %107 {offsets = [0, 198], sizes = [8, 1792], strides = [1, 1]} : vector<8x2176xf32> to vector<8x1792xf32>
    %c144 = arith.constant 144 : index
    %c0_66 = arith.constant 0 : index
    %145 = vector.load %arg11[%c144, %c0_66] : memref<200x1792xf32, #tpu.memory_space<vmem>>, vector<8x1792xf32>
    tpu.vector_store %arg11[%c144, %c0_66], %144 {strides = array<i32>} : memref<200x1792xf32, #tpu.memory_space<vmem>>, vector<8x1792xf32>,
    %146 = vector.extract_strided_slice %107 {offsets = [0, 200], sizes = [8, 1792], strides = [1, 1]} : vector<8x2176xf32> to vector<8x1792xf32>
    %c152 = arith.constant 152 : index
    %c0_67 = arith.constant 0 : index
    %147 = vector.load %arg11[%c152, %c0_67] : memref<200x1792xf32, #tpu.memory_space<vmem>>, vector<8x1792xf32>
    tpu.vector_store %arg11[%c152, %c0_67], %146 {strides = array<i32>} : memref<200x1792xf32, #tpu.memory_space<vmem>>, vector<8x1792xf32>,
    %148 = vector.extract_strided_slice %107 {offsets = [0, 256], sizes = [8, 1792], strides = [1, 1]} : vector<8x2176xf32> to vector<8x1792xf32>
    %c160 = arith.constant 160 : index
    %c0_68 = arith.constant 0 : index
    %149 = vector.load %arg11[%c160, %c0_68] : memref<200x1792xf32, #tpu.memory_space<vmem>>, vector<8x1792xf32>
    tpu.vector_store %arg11[%c160, %c0_68], %148 {strides = array<i32>} : memref<200x1792xf32, #tpu.memory_space<vmem>>, vector<8x1792xf32>,
    %150 = vector.extract_strided_slice %107 {offsets = [0, 258], sizes = [8, 1792], strides = [1, 1]} : vector<8x2176xf32> to vector<8x1792xf32>
    %c168 = arith.constant 168 : index
    %c0_69 = arith.constant 0 : index
    %151 = vector.load %arg11[%c168, %c0_69] : memref<200x1792xf32, #tpu.memory_space<vmem>>, vector<8x1792xf32>
    tpu.vector_store %arg11[%c168, %c0_69], %150 {strides = array<i32>} : memref<200x1792xf32, #tpu.memory_space<vmem>>, vector<8x1792xf32>,
    %152 = vector.extract_strided_slice %107 {offsets = [0, 260], sizes = [8, 1792], strides = [1, 1]} : vector<8x2176xf32> to vector<8x1792xf32>
    %c176 = arith.constant 176 : index
    %c0_70 = arith.constant 0 : index
    %153 = vector.load %arg11[%c176, %c0_70] : memref<200x1792xf32, #tpu.memory_space<vmem>>, vector<8x1792xf32>
    tpu.vector_store %arg11[%c176, %c0_70], %152 {strides = array<i32>} : memref<200x1792xf32, #tpu.memory_space<vmem>>, vector<8x1792xf32>,
    %154 = vector.extract_strided_slice %107 {offsets = [0, 262], sizes = [8, 1792], strides = [1, 1]} : vector<8x2176xf32> to vector<8x1792xf32>
    %c184 = arith.constant 184 : index
    %c0_71 = arith.constant 0 : index
    %155 = vector.load %arg11[%c184, %c0_71] : memref<200x1792xf32, #tpu.memory_space<vmem>>, vector<8x1792xf32>
    tpu.vector_store %arg11[%c184, %c0_71], %154 {strides = array<i32>} : memref<200x1792xf32, #tpu.memory_space<vmem>>, vector<8x1792xf32>,
    %156 = vector.extract_strided_slice %107 {offsets = [0, 264], sizes = [8, 1792], strides = [1, 1]} : vector<8x2176xf32> to vector<8x1792xf32>
    %c192 = arith.constant 192 : index
    %c0_72 = arith.constant 0 : index
    %157 = vector.load %arg11[%c192, %c0_72] : memref<200x1792xf32, #tpu.memory_space<vmem>>, vector<8x1792xf32>
    tpu.vector_store %arg11[%c192, %c0_72], %156 {strides = array<i32>} : memref<200x1792xf32, #tpu.memory_space<vmem>>, vector<8x1792xf32>,
    %c0_73 = arith.constant 0 : index
    %c0_74 = arith.constant 0 : index
    %158 = vector.load %arg3[%c0_73, %c0_74] : memref<16x200xf32, #tpu.memory_space<vmem>>, vector<16x200xf32>
    %c0_75 = arith.constant 0 : index
    %c0_76 = arith.constant 0 : index
    %159 = vector.load %arg11[%c0_75, %c0_76] : memref<200x1792xf32, #tpu.memory_space<vmem>>, vector<200x1792xf32>
    %cst_77 = arith.constant dense<0.000000e+00> : vector<16x1792xf32>
    %160 = tpu.matmul %158, %159, %cst_77 {dimension_numbers = #tpu.dot_dimension_numbers<[1], [0], [0], [1], [0, 0, 1, 1], [], []>} : vector<16x200xf32>, vector<200x1792xf32>, vector<16x1792xf32> -> vector<16x1792xf32>
    %c0_78 = arith.constant 0 : index
    %c3_79 = arith.constant 3 : index
    %161 = vector.load %arg4[%c0_78, %c3_79] : memref<16x8xf32, #tpu.memory_space<vmem>>, vector<16x1xf32>
    %162 = vector.broadcast %161 : vector<16x1xf32> to vector<16x1792xf32>
    %163 = arith.addf %160, %162 : vector<16x1792xf32>
    %164 = tpu.iota {dimensions = array<i32: 1>} : vector<1x1792xi32>
    %c1023_i32 = arith.constant 1023 : i32
    %165 = vector.broadcast %c1023_i32 : i32 to vector<1x1792xi32>
    %166 = arith.andi %164, %165 : vector<1x1792xi32>
    %c2048_i32_80 = arith.constant 2048 : i32
    %167 = vector.broadcast %c2048_i32_80 : i32 to vector<1x1792xi32>
    %168 = arith.cmpi slt, %164, %167 : vector<1x1792xi32>
    %c1_i32 = arith.constant 1 : i32
    %169 = vector.broadcast %c1_i32 : i32 to vector<1x1792xi32>
    %170 = arith.andi %166, %169 : vector<1x1792xi32>
    %c0_i32 = arith.constant 0 : i32
    %171 = vector.broadcast %c0_i32 : i32 to vector<1x1792xi32>
    %172 = arith.cmpi eq, %170, %171 : vector<1x1792xi32>
    %173 = arith.andi %168, %172 : vector<1x1792xi1>
    %c1_i32_81 = arith.constant 1 : i32
    %174 = vector.broadcast %c1_i32_81 : i32 to vector<1x1792xi32>
    %175 = arith.shrsi %166, %174 : vector<1x1792xi32>
    %c31_i32_82 = arith.constant 31 : i32
    %176 = vector.broadcast %c31_i32_82 : i32 to vector<1x1792xi32>
    %177 = arith.andi %175, %176 : vector<1x1792xi32>
    %c10_i32 = arith.constant 10 : i32
    %178 = vector.broadcast %c10_i32 : i32 to vector<1x1792xi32>
    %179 = arith.cmpi slt, %177, %178 : vector<1x1792xi32>
    %180 = arith.andi %173, %179 : vector<1x1792xi1>
    %c6_i32 = arith.constant 6 : i32
    %181 = vector.broadcast %c6_i32 : i32 to vector<1x1792xi32>
    %182 = arith.shrsi %166, %181 : vector<1x1792xi32>
    %c10_i32_83 = arith.constant 10 : i32
    %183 = vector.broadcast %c10_i32_83 : i32 to vector<1x1792xi32>
    %184 = arith.cmpi slt, %182, %183 : vector<1x1792xi32>
    %185 = arith.andi %180, %184 : vector<1x1792xi1>
    %186 = arith.extui %185 : vector<1x1792xi1> to vector<1x1792xi32>
    %187 = arith.sitofp %186 : vector<1x1792xi32> to vector<1x1792xf32>
    %188 = vector.broadcast %187 : vector<1x1792xf32> to vector<16x1792xf32>
    %189 = arith.mulf %163, %188 : vector<16x1792xf32>
    %cst_84 = arith.constant dense<0.000000e+00> : vector<16xf32>
    %190 = vector.multi_reduction <add>, %189, %cst_84 [1] : vector<16x1792xf32> to vector<16xf32>
    %191 = vector.shape_cast %190 : vector<16xf32> to vector<16x1xf32>
    %cst_85 = arith.constant 5.000000e-03 : f32
    %192 = vector.broadcast %cst_85 : f32 to vector<16x1xf32>
    %193 = arith.mulf %191, %192 : vector<16x1xf32>
    %194 = arith.mulf %189, %163 : vector<16x1792xf32>
    %cst_86 = arith.constant dense<0.000000e+00> : vector<16xf32>
    %195 = vector.multi_reduction <add>, %194, %cst_86 [1] : vector<16x1792xf32> to vector<16xf32>
    %196 = vector.shape_cast %195 : vector<16xf32> to vector<16x1xf32>
    %cst_87 = arith.constant 5.000000e-03 : f32
    %197 = vector.broadcast %cst_87 : f32 to vector<16x1xf32>
    %198 = arith.mulf %196, %197 : vector<16x1xf32>
    %199 = arith.mulf %193, %193 : vector<16x1xf32>
    %200 = arith.subf %198, %199 : vector<16x1xf32>
    %c0_88 = arith.constant 0 : index
    %c4_89 = arith.constant 4 : index
    %201 = vector.load %arg4[%c0_88, %c4_89] : memref<16x8xf32, #tpu.memory_space<vmem>>, vector<16x1xf32>
    %202 = vector.broadcast %193 : vector<16x1xf32> to vector<16x1792xf32>
    %203 = arith.subf %163, %202 : vector<16x1792xf32>
    %204 = vector.broadcast %201 : vector<16x1xf32> to vector<16x1792xf32>
    %205 = arith.mulf %204, %203 : vector<16x1792xf32>
    %cst_90 = arith.constant 9.99999974E-6 : f32
    %206 = vector.broadcast %cst_90 : f32 to vector<16x1xf32>
    %207 = arith.addf %200, %206 : vector<16x1xf32>
    %208 = math.rsqrt %207 : vector<16x1xf32>
    %209 = vector.broadcast %208 : vector<16x1xf32> to vector<16x1792xf32>
    %210 = arith.mulf %205, %209 : vector<16x1792xf32>
    %c0_91 = arith.constant 0 : index
    %c5_92 = arith.constant 5 : index
    %211 = vector.load %arg4[%c0_91, %c5_92] : memref<16x8xf32, #tpu.memory_space<vmem>>, vector<16x1xf32>
    %212 = vector.broadcast %211 : vector<16x1xf32> to vector<16x1792xf32>
    %213 = arith.addf %210, %212 : vector<16x1792xf32>
    %214 = math.tanh %213 : vector<16x1792xf32>
    %215 = vector.extract_strided_slice %214 {offsets = [0, 0], sizes = [16, 1664], strides = [1, 1]} : vector<16x1792xf32> to vector<16x1664xf32>
    %216 = vector.extract_strided_slice %214 {offsets = [0, 2], sizes = [16, 1664], strides = [1, 1]} : vector<16x1792xf32> to vector<16x1664xf32>
    %217 = arith.maximumf %215, %216 : vector<16x1664xf32>
    %218 = vector.extract_strided_slice %214 {offsets = [0, 64], sizes = [16, 1664], strides = [1, 1]} : vector<16x1792xf32> to vector<16x1664xf32>
    %219 = vector.extract_strided_slice %214 {offsets = [0, 66], sizes = [16, 1664], strides = [1, 1]} : vector<16x1792xf32> to vector<16x1664xf32>
    %220 = arith.maximumf %218, %219 : vector<16x1664xf32>
    %221 = arith.maximumf %217, %220 : vector<16x1664xf32>
    %222 = vector.extract_strided_slice %221 {offsets = [0, 0], sizes = [16, 640], strides = [1, 1]} : vector<16x1664xf32> to vector<16x640xf32>
    %223 = vector.extract_strided_slice %221 {offsets = [0, 1024], sizes = [16, 640], strides = [1, 1]} : vector<16x1664xf32> to vector<16x640xf32>
    %224 = tpu.concatenate %222, %223 in 0 : vector<16x640xf32>, vector<16x640xf32> -> vector<32x640xf32>
    %225 = tpu.iota {dimensions = array<i32: 0>} : vector<640x32xi32>
    %226 = tpu.iota {dimensions = array<i32: 1>} : vector<640x32xi32>
    %c2_i32 = arith.constant 2 : i32
    %227 = vector.broadcast %c2_i32 : i32 to vector<640x32xi32>
    %228 = arith.shrsi %225, %227 : vector<640x32xi32>
    %c31_i32_93 = arith.constant 31 : i32
    %229 = vector.broadcast %c31_i32_93 : i32 to vector<640x32xi32>
    %230 = arith.andi %228, %229 : vector<640x32xi32>
    %c7_i32 = arith.constant 7 : i32
    %231 = vector.broadcast %c7_i32 : i32 to vector<640x32xi32>
    %232 = arith.shrsi %225, %231 : vector<640x32xi32>
    %c3_i32 = arith.constant 3 : i32
    %233 = vector.broadcast %c3_i32 : i32 to vector<640x32xi32>
    %234 = arith.andi %225, %233 : vector<640x32xi32>
    %c0_i32_94 = arith.constant 0 : i32
    %235 = vector.broadcast %c0_i32_94 : i32 to vector<640x32xi32>
    %236 = arith.cmpi eq, %234, %235 : vector<640x32xi32>
    %c5_i32_95 = arith.constant 5 : i32
    %237 = vector.broadcast %c5_i32_95 : i32 to vector<640x32xi32>
    %238 = arith.cmpi slt, %230, %237 : vector<640x32xi32>
    %239 = arith.andi %236, %238 : vector<640x32xi1>
    %c5_i32_96 = arith.constant 5 : i32
    %240 = vector.broadcast %c5_i32_96 : i32 to vector<640x32xi32>
    %241 = arith.cmpi slt, %232, %240 : vector<640x32xi32>
    %242 = arith.andi %239, %241 : vector<640x32xi1>
    %c5_i32_97 = arith.constant 5 : i32
    %243 = vector.broadcast %c5_i32_97 : i32 to vector<640x32xi32>
    %244 = arith.muli %232, %243 : vector<640x32xi32>
    %245 = arith.addi %244, %230 : vector<640x32xi32>
    %246 = arith.cmpi eq, %226, %245 : vector<640x32xi32>
    %247 = arith.andi %242, %246 : vector<640x32xi1>
    %248 = arith.extui %247 : vector<640x32xi1> to vector<640x32xi32>
    %249 = arith.sitofp %248 : vector<640x32xi32> to vector<640x32xf32>
    %cst_98 = arith.constant dense<0.000000e+00> : vector<32x32xf32>
    %250 = tpu.matmul %224, %249, %cst_98 {dimension_numbers = #tpu.dot_dimension_numbers<[1], [0], [0], [1], [0, 0, 1, 1], [], []>} : vector<32x640xf32>, vector<640x32xf32>, vector<32x32xf32> -> vector<32x32xf32>
    %251 = vector.extract_strided_slice %250 {offsets = [0, 0], sizes = [1, 32], strides = [1, 1]} : vector<32x32xf32> to vector<1x32xf32>
    %c0_99 = arith.constant 0 : index
    %c0_100 = arith.constant 0 : index
    %252 = vector.load %arg12[%c0_99, %c0_100] : memref<8x512xf32, #tpu.memory_space<vmem>>, vector<1x32xf32>
    tpu.vector_store %arg12[%c0_99, %c0_100], %251 {strides = array<i32>} : memref<8x512xf32, #tpu.memory_space<vmem>>, vector<1x32xf32>,
    %253 = vector.extract_strided_slice %250 {offsets = [1, 0], sizes = [1, 32], strides = [1, 1]} : vector<32x32xf32> to vector<1x32xf32>
    %c0_101 = arith.constant 0 : index
    %c32_102 = arith.constant 32 : index
    %254 = vector.load %arg12[%c0_101, %c32_102] : memref<8x512xf32, #tpu.memory_space<vmem>>, vector<1x32xf32>
    tpu.vector_store %arg12[%c0_101, %c32_102], %253 {strides = array<i32>} : memref<8x512xf32, #tpu.memory_space<vmem>>, vector<1x32xf32>,
    %255 = vector.extract_strided_slice %250 {offsets = [2, 0], sizes = [1, 32], strides = [1, 1]} : vector<32x32xf32> to vector<1x32xf32>
    %c0_103 = arith.constant 0 : index
    %c64_104 = arith.constant 64 : index
    %256 = vector.load %arg12[%c0_103, %c64_104] : memref<8x512xf32, #tpu.memory_space<vmem>>, vector<1x32xf32>
    tpu.vector_store %arg12[%c0_103, %c64_104], %255 {strides = array<i32>} : memref<8x512xf32, #tpu.memory_space<vmem>>, vector<1x32xf32>,
    %257 = vector.extract_strided_slice %250 {offsets = [3, 0], sizes = [1, 32], strides = [1, 1]} : vector<32x32xf32> to vector<1x32xf32>
    %c0_105 = arith.constant 0 : index
    %c96_106 = arith.constant 96 : index
    %258 = vector.load %arg12[%c0_105, %c96_106] : memref<8x512xf32, #tpu.memory_space<vmem>>, vector<1x32xf32>
    tpu.vector_store %arg12[%c0_105, %c96_106], %257 {strides = array<i32>} : memref<8x512xf32, #tpu.memory_space<vmem>>, vector<1x32xf32>,
    %259 = vector.extract_strided_slice %250 {offsets = [4, 0], sizes = [1, 32], strides = [1, 1]} : vector<32x32xf32> to vector<1x32xf32>
    %c0_107 = arith.constant 0 : index
    %c128_108 = arith.constant 128 : index
    %260 = vector.load %arg12[%c0_107, %c128_108] : memref<8x512xf32, #tpu.memory_space<vmem>>, vector<1x32xf32>
    tpu.vector_store %arg12[%c0_107, %c128_108], %259 {strides = array<i32>} : memref<8x512xf32, #tpu.memory_space<vmem>>, vector<1x32xf32>,
    %261 = vector.extract_strided_slice %250 {offsets = [5, 0], sizes = [1, 32], strides = [1, 1]} : vector<32x32xf32> to vector<1x32xf32>
    %c0_109 = arith.constant 0 : index
    %c160_110 = arith.constant 160 : index
    %262 = vector.load %arg12[%c0_109, %c160_110] : memref<8x512xf32, #tpu.memory_space<vmem>>, vector<1x32xf32>
    tpu.vector_store %arg12[%c0_109, %c160_110], %261 {strides = array<i32>} : memref<8x512xf32, #tpu.memory_space<vmem>>, vector<1x32xf32>,
    %263 = vector.extract_strided_slice %250 {offsets = [6, 0], sizes = [1, 32], strides = [1, 1]} : vector<32x32xf32> to vector<1x32xf32>
    %c0_111 = arith.constant 0 : index
    %c192_112 = arith.constant 192 : index
    %264 = vector.load %arg12[%c0_111, %c192_112] : memref<8x512xf32, #tpu.memory_space<vmem>>, vector<1x32xf32>
    tpu.vector_store %arg12[%c0_111, %c192_112], %263 {strides = array<i32>} : memref<8x512xf32, #tpu.memory_space<vmem>>, vector<1x32xf32>,
    %265 = vector.extract_strided_slice %250 {offsets = [7, 0], sizes = [1, 32], strides = [1, 1]} : vector<32x32xf32> to vector<1x32xf32>
    %c0_113 = arith.constant 0 : index
    %c224 = arith.constant 224 : index
    %266 = vector.load %arg12[%c0_113, %c224] : memref<8x512xf32, #tpu.memory_space<vmem>>, vector<1x32xf32>
    tpu.vector_store %arg12[%c0_113, %c224], %265 {strides = array<i32>} : memref<8x512xf32, #tpu.memory_space<vmem>>, vector<1x32xf32>,
    %267 = vector.extract_strided_slice %250 {offsets = [8, 0], sizes = [1, 32], strides = [1, 1]} : vector<32x32xf32> to vector<1x32xf32>
    %c0_114 = arith.constant 0 : index
    %c256 = arith.constant 256 : index
    %268 = vector.load %arg12[%c0_114, %c256] : memref<8x512xf32, #tpu.memory_space<vmem>>, vector<1x32xf32>
    tpu.vector_store %arg12[%c0_114, %c256], %267 {strides = array<i32>} : memref<8x512xf32, #tpu.memory_space<vmem>>, vector<1x32xf32>,
    %269 = vector.extract_strided_slice %250 {offsets = [9, 0], sizes = [1, 32], strides = [1, 1]} : vector<32x32xf32> to vector<1x32xf32>
    %c0_115 = arith.constant 0 : index
    %c288 = arith.constant 288 : index
    %270 = vector.load %arg12[%c0_115, %c288] : memref<8x512xf32, #tpu.memory_space<vmem>>, vector<1x32xf32>
    tpu.vector_store %arg12[%c0_115, %c288], %269 {strides = array<i32>} : memref<8x512xf32, #tpu.memory_space<vmem>>, vector<1x32xf32>,
    %271 = vector.extract_strided_slice %250 {offsets = [10, 0], sizes = [1, 32], strides = [1, 1]} : vector<32x32xf32> to vector<1x32xf32>
    %c0_116 = arith.constant 0 : index
    %c320 = arith.constant 320 : index
    %272 = vector.load %arg12[%c0_116, %c320] : memref<8x512xf32, #tpu.memory_space<vmem>>, vector<1x32xf32>
    tpu.vector_store %arg12[%c0_116, %c320], %271 {strides = array<i32>} : memref<8x512xf32, #tpu.memory_space<vmem>>, vector<1x32xf32>,
    %273 = vector.extract_strided_slice %250 {offsets = [11, 0], sizes = [1, 32], strides = [1, 1]} : vector<32x32xf32> to vector<1x32xf32>
    %c0_117 = arith.constant 0 : index
    %c352 = arith.constant 352 : index
    %274 = vector.load %arg12[%c0_117, %c352] : memref<8x512xf32, #tpu.memory_space<vmem>>, vector<1x32xf32>
    tpu.vector_store %arg12[%c0_117, %c352], %273 {strides = array<i32>} : memref<8x512xf32, #tpu.memory_space<vmem>>, vector<1x32xf32>,
    %275 = vector.extract_strided_slice %250 {offsets = [12, 0], sizes = [1, 32], strides = [1, 1]} : vector<32x32xf32> to vector<1x32xf32>
    %c0_118 = arith.constant 0 : index
    %c384 = arith.constant 384 : index
    %276 = vector.load %arg12[%c0_118, %c384] : memref<8x512xf32, #tpu.memory_space<vmem>>, vector<1x32xf32>
    tpu.vector_store %arg12[%c0_118, %c384], %275 {strides = array<i32>} : memref<8x512xf32, #tpu.memory_space<vmem>>, vector<1x32xf32>,
    %277 = vector.extract_strided_slice %250 {offsets = [13, 0], sizes = [1, 32], strides = [1, 1]} : vector<32x32xf32> to vector<1x32xf32>
    %c0_119 = arith.constant 0 : index
    %c416 = arith.constant 416 : index
    %278 = vector.load %arg12[%c0_119, %c416] : memref<8x512xf32, #tpu.memory_space<vmem>>, vector<1x32xf32>
    tpu.vector_store %arg12[%c0_119, %c416], %277 {strides = array<i32>} : memref<8x512xf32, #tpu.memory_space<vmem>>, vector<1x32xf32>,
    %279 = vector.extract_strided_slice %250 {offsets = [14, 0], sizes = [1, 32], strides = [1, 1]} : vector<32x32xf32> to vector<1x32xf32>
    %c0_120 = arith.constant 0 : index
    %c448 = arith.constant 448 : index
    %280 = vector.load %arg12[%c0_120, %c448] : memref<8x512xf32, #tpu.memory_space<vmem>>, vector<1x32xf32>
    tpu.vector_store %arg12[%c0_120, %c448], %279 {strides = array<i32>} : memref<8x512xf32, #tpu.memory_space<vmem>>, vector<1x32xf32>,
    %281 = vector.extract_strided_slice %250 {offsets = [15, 0], sizes = [1, 32], strides = [1, 1]} : vector<32x32xf32> to vector<1x32xf32>
    %c0_121 = arith.constant 0 : index
    %c480 = arith.constant 480 : index
    %282 = vector.load %arg12[%c0_121, %c480] : memref<8x512xf32, #tpu.memory_space<vmem>>, vector<1x32xf32>
    tpu.vector_store %arg12[%c0_121, %c480], %281 {strides = array<i32>} : memref<8x512xf32, #tpu.memory_space<vmem>>, vector<1x32xf32>,
    %283 = vector.extract_strided_slice %250 {offsets = [16, 0], sizes = [1, 32], strides = [1, 1]} : vector<32x32xf32> to vector<1x32xf32>
    %c1_122 = arith.constant 1 : index
    %c0_123 = arith.constant 0 : index
    %284 = vector.load %arg12[%c1_122, %c0_123] : memref<8x512xf32, #tpu.memory_space<vmem>>, vector<1x32xf32>
    tpu.vector_store %arg12[%c1_122, %c0_123], %283 {strides = array<i32>} : memref<8x512xf32, #tpu.memory_space<vmem>>, vector<1x32xf32>,
    %285 = vector.extract_strided_slice %250 {offsets = [17, 0], sizes = [1, 32], strides = [1, 1]} : vector<32x32xf32> to vector<1x32xf32>
    %c1_124 = arith.constant 1 : index
    %c32_125 = arith.constant 32 : index
    %286 = vector.load %arg12[%c1_124, %c32_125] : memref<8x512xf32, #tpu.memory_space<vmem>>, vector<1x32xf32>
    tpu.vector_store %arg12[%c1_124, %c32_125], %285 {strides = array<i32>} : memref<8x512xf32, #tpu.memory_space<vmem>>, vector<1x32xf32>,
    %287 = vector.extract_strided_slice %250 {offsets = [18, 0], sizes = [1, 32], strides = [1, 1]} : vector<32x32xf32> to vector<1x32xf32>
    %c1_126 = arith.constant 1 : index
    %c64_127 = arith.constant 64 : index
    %288 = vector.load %arg12[%c1_126, %c64_127] : memref<8x512xf32, #tpu.memory_space<vmem>>, vector<1x32xf32>
    tpu.vector_store %arg12[%c1_126, %c64_127], %287 {strides = array<i32>} : memref<8x512xf32, #tpu.memory_space<vmem>>, vector<1x32xf32>,
    %289 = vector.extract_strided_slice %250 {offsets = [19, 0], sizes = [1, 32], strides = [1, 1]} : vector<32x32xf32> to vector<1x32xf32>
    %c1_128 = arith.constant 1 : index
    %c96_129 = arith.constant 96 : index
    %290 = vector.load %arg12[%c1_128, %c96_129] : memref<8x512xf32, #tpu.memory_space<vmem>>, vector<1x32xf32>
    tpu.vector_store %arg12[%c1_128, %c96_129], %289 {strides = array<i32>} : memref<8x512xf32, #tpu.memory_space<vmem>>, vector<1x32xf32>,
    %291 = vector.extract_strided_slice %250 {offsets = [20, 0], sizes = [1, 32], strides = [1, 1]} : vector<32x32xf32> to vector<1x32xf32>
    %c1_130 = arith.constant 1 : index
    %c128_131 = arith.constant 128 : index
    %292 = vector.load %arg12[%c1_130, %c128_131] : memref<8x512xf32, #tpu.memory_space<vmem>>, vector<1x32xf32>
    tpu.vector_store %arg12[%c1_130, %c128_131], %291 {strides = array<i32>} : memref<8x512xf32, #tpu.memory_space<vmem>>, vector<1x32xf32>,
    %293 = vector.extract_strided_slice %250 {offsets = [21, 0], sizes = [1, 32], strides = [1, 1]} : vector<32x32xf32> to vector<1x32xf32>
    %c1_132 = arith.constant 1 : index
    %c160_133 = arith.constant 160 : index
    %294 = vector.load %arg12[%c1_132, %c160_133] : memref<8x512xf32, #tpu.memory_space<vmem>>, vector<1x32xf32>
    tpu.vector_store %arg12[%c1_132, %c160_133], %293 {strides = array<i32>} : memref<8x512xf32, #tpu.memory_space<vmem>>, vector<1x32xf32>,
    %295 = vector.extract_strided_slice %250 {offsets = [22, 0], sizes = [1, 32], strides = [1, 1]} : vector<32x32xf32> to vector<1x32xf32>
    %c1_134 = arith.constant 1 : index
    %c192_135 = arith.constant 192 : index
    %296 = vector.load %arg12[%c1_134, %c192_135] : memref<8x512xf32, #tpu.memory_space<vmem>>, vector<1x32xf32>
    tpu.vector_store %arg12[%c1_134, %c192_135], %295 {strides = array<i32>} : memref<8x512xf32, #tpu.memory_space<vmem>>, vector<1x32xf32>,
    %297 = vector.extract_strided_slice %250 {offsets = [23, 0], sizes = [1, 32], strides = [1, 1]} : vector<32x32xf32> to vector<1x32xf32>
    %c1_136 = arith.constant 1 : index
    %c224_137 = arith.constant 224 : index
    %298 = vector.load %arg12[%c1_136, %c224_137] : memref<8x512xf32, #tpu.memory_space<vmem>>, vector<1x32xf32>
    tpu.vector_store %arg12[%c1_136, %c224_137], %297 {strides = array<i32>} : memref<8x512xf32, #tpu.memory_space<vmem>>, vector<1x32xf32>,
    %299 = vector.extract_strided_slice %250 {offsets = [24, 0], sizes = [1, 32], strides = [1, 1]} : vector<32x32xf32> to vector<1x32xf32>
    %c1_138 = arith.constant 1 : index
    %c256_139 = arith.constant 256 : index
    %300 = vector.load %arg12[%c1_138, %c256_139] : memref<8x512xf32, #tpu.memory_space<vmem>>, vector<1x32xf32>
    tpu.vector_store %arg12[%c1_138, %c256_139], %299 {strides = array<i32>} : memref<8x512xf32, #tpu.memory_space<vmem>>, vector<1x32xf32>,
    %301 = vector.extract_strided_slice %250 {offsets = [25, 0], sizes = [1, 32], strides = [1, 1]} : vector<32x32xf32> to vector<1x32xf32>
    %c1_140 = arith.constant 1 : index
    %c288_141 = arith.constant 288 : index
    %302 = vector.load %arg12[%c1_140, %c288_141] : memref<8x512xf32, #tpu.memory_space<vmem>>, vector<1x32xf32>
    tpu.vector_store %arg12[%c1_140, %c288_141], %301 {strides = array<i32>} : memref<8x512xf32, #tpu.memory_space<vmem>>, vector<1x32xf32>,
    %303 = vector.extract_strided_slice %250 {offsets = [26, 0], sizes = [1, 32], strides = [1, 1]} : vector<32x32xf32> to vector<1x32xf32>
    %c1_142 = arith.constant 1 : index
    %c320_143 = arith.constant 320 : index
    %304 = vector.load %arg12[%c1_142, %c320_143] : memref<8x512xf32, #tpu.memory_space<vmem>>, vector<1x32xf32>
    tpu.vector_store %arg12[%c1_142, %c320_143], %303 {strides = array<i32>} : memref<8x512xf32, #tpu.memory_space<vmem>>, vector<1x32xf32>,
    %305 = vector.extract_strided_slice %250 {offsets = [27, 0], sizes = [1, 32], strides = [1, 1]} : vector<32x32xf32> to vector<1x32xf32>
    %c1_144 = arith.constant 1 : index
    %c352_145 = arith.constant 352 : index
    %306 = vector.load %arg12[%c1_144, %c352_145] : memref<8x512xf32, #tpu.memory_space<vmem>>, vector<1x32xf32>
    tpu.vector_store %arg12[%c1_144, %c352_145], %305 {strides = array<i32>} : memref<8x512xf32, #tpu.memory_space<vmem>>, vector<1x32xf32>,
    %307 = vector.extract_strided_slice %250 {offsets = [28, 0], sizes = [1, 32], strides = [1, 1]} : vector<32x32xf32> to vector<1x32xf32>
    %c1_146 = arith.constant 1 : index
    %c384_147 = arith.constant 384 : index
    %308 = vector.load %arg12[%c1_146, %c384_147] : memref<8x512xf32, #tpu.memory_space<vmem>>, vector<1x32xf32>
    tpu.vector_store %arg12[%c1_146, %c384_147], %307 {strides = array<i32>} : memref<8x512xf32, #tpu.memory_space<vmem>>, vector<1x32xf32>,
    %309 = vector.extract_strided_slice %250 {offsets = [29, 0], sizes = [1, 32], strides = [1, 1]} : vector<32x32xf32> to vector<1x32xf32>
    %c1_148 = arith.constant 1 : index
    %c416_149 = arith.constant 416 : index
    %310 = vector.load %arg12[%c1_148, %c416_149] : memref<8x512xf32, #tpu.memory_space<vmem>>, vector<1x32xf32>
    tpu.vector_store %arg12[%c1_148, %c416_149], %309 {strides = array<i32>} : memref<8x512xf32, #tpu.memory_space<vmem>>, vector<1x32xf32>,
    %311 = vector.extract_strided_slice %250 {offsets = [30, 0], sizes = [1, 32], strides = [1, 1]} : vector<32x32xf32> to vector<1x32xf32>
    %c1_150 = arith.constant 1 : index
    %c448_151 = arith.constant 448 : index
    %312 = vector.load %arg12[%c1_150, %c448_151] : memref<8x512xf32, #tpu.memory_space<vmem>>, vector<1x32xf32>
    tpu.vector_store %arg12[%c1_150, %c448_151], %311 {strides = array<i32>} : memref<8x512xf32, #tpu.memory_space<vmem>>, vector<1x32xf32>,
    %313 = vector.extract_strided_slice %250 {offsets = [31, 0], sizes = [1, 32], strides = [1, 1]} : vector<32x32xf32> to vector<1x32xf32>
    %c1_152 = arith.constant 1 : index
    %c480_153 = arith.constant 480 : index
    %314 = vector.load %arg12[%c1_152, %c480_153] : memref<8x512xf32, #tpu.memory_space<vmem>>, vector<1x32xf32>
    tpu.vector_store %arg12[%c1_152, %c480_153], %313 {strides = array<i32>} : memref<8x512xf32, #tpu.memory_space<vmem>>, vector<1x32xf32>,
    %c0_154 = arith.constant 0 : index
    %c0_155 = arith.constant 0 : index
    %315 = vector.load %arg12[%c0_154, %c0_155] : memref<8x512xf32, #tpu.memory_space<vmem>>, vector<2x512xf32>
    %c0_156 = arith.constant 0 : index
    %c0_157 = arith.constant 0 : index
    %316 = vector.load %arg5[%c0_156, %c0_157] : memref<512x120xf32, #tpu.memory_space<vmem>>, vector<512x120xf32>
    %cst_158 = arith.constant dense<0.000000e+00> : vector<2x120xf32>
    %317 = tpu.matmul %315, %316, %cst_158 {dimension_numbers = #tpu.dot_dimension_numbers<[1], [0], [0], [1], [0, 0, 1, 1], [], []>} : vector<2x512xf32>, vector<512x120xf32>, vector<2x120xf32> -> vector<2x120xf32>
    %c0_159 = arith.constant 0 : index
    %c0_160 = arith.constant 0 : index
    %318 = vector.load %arg8[%c0_159, %c0_160] : memref<3x128xf32, #tpu.memory_space<vmem>>, vector<1x120xf32>
    %319 = vector.broadcast %318 : vector<1x120xf32> to vector<2x120xf32>
    %320 = arith.addf %317, %319 : vector<2x120xf32>
    %321 = math.tanh %320 : vector<2x120xf32>
    %c0_161 = arith.constant 0 : index
    %c0_162 = arith.constant 0 : index
    %322 = vector.load %arg6[%c0_161, %c0_162] : memref<120x84xf32, #tpu.memory_space<vmem>>, vector<120x84xf32>
    %cst_163 = arith.constant dense<0.000000e+00> : vector<2x84xf32>
    %323 = tpu.matmul %321, %322, %cst_163 {dimension_numbers = #tpu.dot_dimension_numbers<[1], [0], [0], [1], [0, 0, 1, 1], [], []>} : vector<2x120xf32>, vector<120x84xf32>, vector<2x84xf32> -> vector<2x84xf32>
    %c1_164 = arith.constant 1 : index
    %c0_165 = arith.constant 0 : index
    %324 = vector.load %arg8[%c1_164, %c0_165] : memref<3x128xf32, #tpu.memory_space<vmem>>, vector<1x84xf32>
    %325 = vector.broadcast %324 : vector<1x84xf32> to vector<2x84xf32>
    %326 = arith.addf %323, %325 : vector<2x84xf32>
    %327 = math.tanh %326 : vector<2x84xf32>
    %c0_166 = arith.constant 0 : index
    %c0_167 = arith.constant 0 : index
    %328 = vector.load %arg7[%c0_166, %c0_167] : memref<84x10xf32, #tpu.memory_space<vmem>>, vector<84x10xf32>
    %cst_168 = arith.constant dense<0.000000e+00> : vector<2x10xf32>
    %329 = tpu.matmul %327, %328, %cst_168 {dimension_numbers = #tpu.dot_dimension_numbers<[1], [0], [0], [1], [0, 0, 1, 1], [], []>} : vector<2x84xf32>, vector<84x10xf32>, vector<2x10xf32> -> vector<2x10xf32>
    %c2_169 = arith.constant 2 : index
    %c0_170 = arith.constant 0 : index
    %330 = vector.load %arg8[%c2_169, %c0_170] : memref<3x128xf32, #tpu.memory_space<vmem>>, vector<1x10xf32>
    %331 = vector.broadcast %330 : vector<1x10xf32> to vector<2x10xf32>
    %332 = arith.addf %329, %331 : vector<2x10xf32>
    %c0_171 = arith.constant 0 : index
    %c0_172 = arith.constant 0 : index
    %333 = vector.load %arg9[%c0_171, %c0_172] : memref<2x10xf32, #tpu.memory_space<vmem>>, vector<2x10xf32>
    tpu.vector_store %arg9[%c0_171, %c0_172], %332 {strides = array<i32>} : memref<2x10xf32, #tpu.memory_space<vmem>>, vector<2x10xf32>,
    return
  }
  func.func @transform_0(%arg0: i32) -> (i32, i32) {
    %c0_i32 = arith.constant 0 : i32
    %c0_i32_0 = arith.constant 0 : i32
    %c0_i32_1 = arith.constant 0 : i32
    return %c0_i32, %c0_i32_0 : i32, i32
  }
  func.func @transform_1(%arg0: i32) -> (i32, i32) {
    %c0_i32 = arith.constant 0 : i32
    %c0_i32_0 = arith.constant 0 : i32
    %c0_i32_1 = arith.constant 0 : i32
    return %c0_i32, %c0_i32_0 : i32, i32
  }
  func.func @transform_2(%arg0: i32) -> (i32, i32) {
    %c0_i32 = arith.constant 0 : i32
    %c0_i32_0 = arith.constant 0 : i32
    %c0_i32_1 = arith.constant 0 : i32
    return %c0_i32, %c0_i32_0 : i32, i32
  }
  func.func @transform_3(%arg0: i32) -> (i32, i32) {
    %c0_i32 = arith.constant 0 : i32
    %c0_i32_0 = arith.constant 0 : i32
    %c0_i32_1 = arith.constant 0 : i32
    return %c0_i32, %c0_i32_0 : i32, i32
  }
  func.func @transform_4(%arg0: i32) -> (i32, i32) {
    %c0_i32 = arith.constant 0 : i32
    %c0_i32_0 = arith.constant 0 : i32
    %c0_i32_1 = arith.constant 0 : i32
    return %c0_i32, %c0_i32_0 : i32, i32
  }
  func.func @transform_5(%arg0: i32) -> (i32, i32) {
    %c0_i32 = arith.constant 0 : i32
    %c0_i32_0 = arith.constant 0 : i32
    %c0_i32_1 = arith.constant 0 : i32
    return %c0_i32, %c0_i32_0 : i32, i32
  }
  func.func @transform_6(%arg0: i32) -> (i32, i32) {
    %c0_i32 = arith.constant 0 : i32
    %c0_i32_0 = arith.constant 0 : i32
    %c0_i32_1 = arith.constant 0 : i32
    return %c0_i32, %c0_i32_0 : i32, i32
  }
  func.func @transform_7(%arg0: i32) -> (i32, i32) {
    %c0_i32 = arith.constant 0 : i32
    %c0_i32_0 = arith.constant 0 : i32
    %c0_i32_1 = arith.constant 0 : i32
    return %c0_i32, %c0_i32_0 : i32, i32
  }
  func.func @transform_8(%arg0: i32) -> (i32, i32) {
    %c0_i32 = arith.constant 0 : i32
    %c0_i32_0 = arith.constant 0 : i32
    %c0_i32_1 = arith.constant 0 : i32
    return %c0_i32, %c0_i32_0 : i32, i32
  }
}

</mosaic_0001>

<llo_original>
// kernel: lenet5_forward.1
$region0: #{lenet5_forward.1}
  #allocation0 [shape = 'u32[]', space=smem, size = 0x4, offset = 0x4, fixed_abs, tag = 'smem constant byte address 0x4 - core index']
  #allocation1 [shape = 'u32[144,128]{1,0:T(1,128)}', space=vmem, size = 0x12000, scoped, tag = 'internal scratch']
  #allocation2 [shape = 'f32[25,2304]{1,0:T(8,128)}', space=vmem, size = 0x48000, scoped, tag = 'scratch operand']
  #allocation3 [shape = 'f32[200,1792]{1,0:T(8,128)}', space=vmem, size = 0x15e000, scoped, tag = 'scratch operand']
  #allocation4 [shape = 'f32[8,512]{1,0:T(8,128)}', space=vmem, size = 0x4000, scoped, tag = 'scratch operand']
  %s0 = inlined_call_operand.vmem [shape: f32[1,2560], index: 0, kind: input, shape index: {}]
  %s1 = inlined_call_operand.vmem [shape: f32[8,25], index: 1, kind: input, shape index: {}]
  %s2 = inlined_call_operand.vmem [shape: f32[16,200], index: 2, kind: input, shape index: {}]
  %s3 = inlined_call_operand.vmem [shape: f32[16,8], index: 3, kind: input, shape index: {}]
  %s4 = inlined_call_operand.vmem [shape: f32[512,120], index: 4, kind: input, shape index: {}]
  %s5 = inlined_call_operand.vmem [shape: f32[120,84], index: 5, kind: input, shape index: {}]
  %s6 = inlined_call_operand.vmem [shape: f32[84,10], index: 6, kind: input, shape index: {}]
  %s7 = inlined_call_operand.vmem [shape: f32[3,128], index: 7, kind: input, shape index: {}]
  %s8 = inlined_call_operand.hbm [shape: f32[2,10], index: 8, kind: output, shape index: {}]
  %s9 = sld [smem:[#allocation0]]
  $region42: #{lenet5_forward.1} parent=0
    _
  %s11 = ssub.s32 1, %s9
  %s12 = scalar_select 0, %s11, %s9
  $region1: #{lenet5_forward.1} parent=0
    #allocation5 [shape = 'u8[1024]{0}', space=vmem, size = 0x400, scoped, tag = 'output window, operand 0, single buffered']
    #allocation6 [shape = 's32[1]{0}', space=sflag, size = 0x4, scoped, tag = 'scoped memory for lenet5_forward.1']
    %13 = vsyncpa [#allocation6], 0
    // Predicated region
    $region2: #{lenet5_forward.1} parent=1 // pred_check
      _
    $region3: #{lenet5_forward.1} parent=1 // pred_check_branch
      %15 = sbr.rel (0) target = $region5
    $region4: #{lenet5_forward.1} parent=1 // pred_region
      _
    $region5: #{lenet5_forward.1} parent=1 // pred_fallthru
      _
    // Predicated region
    $region6: #{lenet5_forward.1} parent=1 // pred_check
      _
    $region7: #{lenet5_forward.1} parent=1 // pred_check_branch
      %17 = sbr.rel (0) target = $region9
    $region8: #{lenet5_forward.1} parent=1 // pred_region
      _
    $region9: #{lenet5_forward.1} parent=1 // pred_fallthru
      _
    // Predicated region
    $region10: #{lenet5_forward.1} parent=1 // pred_check
      _
    $region11: #{lenet5_forward.1} parent=1 // pred_check_branch
      %19 = sbr.rel (0) target = $region13
    $region12: #{lenet5_forward.1} parent=1 // pred_region
      _
    $region13: #{lenet5_forward.1} parent=1 // pred_fallthru
      _
    // Predicated region
    $region14: #{lenet5_forward.1} parent=1 // pred_check
      _
    $region15: #{lenet5_forward.1} parent=1 // pred_check_branch
      %21 = sbr.rel (0) target = $region17
    $region16: #{lenet5_forward.1} parent=1 // pred_region
      _
    $region17: #{lenet5_forward.1} parent=1 // pred_fallthru
      _
    // Predicated region
    $region18: #{lenet5_forward.1} parent=1 // pred_check
      _
    $region19: #{lenet5_forward.1} parent=1 // pred_check_branch
      %23 = sbr.rel (0) target = $region21
    $region20: #{lenet5_forward.1} parent=1 // pred_region
      _
    $region21: #{lenet5_forward.1} parent=1 // pred_fallthru
      _
    // Predicated region
    $region22: #{lenet5_forward.1} parent=1 // pred_check
      _
    $region23: #{lenet5_forward.1} parent=1 // pred_check_branch
      %25 = sbr.rel (0) target = $region25
    $region24: #{lenet5_forward.1} parent=1 // pred_region
      _
    $region25: #{lenet5_forward.1} parent=1 // pred_fallthru
      _
    // Predicated region
    $region26: #{lenet5_forward.1} parent=1 // pred_check
      _
    $region27: #{lenet5_forward.1} parent=1 // pred_check_branch
      %27 = sbr.rel (0) target = $region29
    $region28: #{lenet5_forward.1} parent=1 // pred_region
      _
    $region29: #{lenet5_forward.1} parent=1 // pred_fallthru
      _
    // Predicated region
    $region30: #{lenet5_forward.1} parent=1 // pred_check
      _
    $region31: #{lenet5_forward.1} parent=1 // pred_check_branch
      %29 = sbr.rel (0) target = $region33
    $region32: #{lenet5_forward.1} parent=1 // pred_region
      _
    $region33: #{lenet5_forward.1} parent=1 // pred_fallthru
      _
    %v30 = vld [vmem:[%s0] sm:$0xff]
    %v31 = vld [vmem:[%s0 + $0x8] sm:$0xff]
    %v32 = vld [vmem:[%s0 + $0x10] sm:$0xf]
    %33 = vst [vmem:[#allocation2] ss:$8 sm:$0xf] %v30
    %34 = vst [vmem:[#allocation2] ss:$8 sm:$0xf0] %v30
    %s35 = scalar_lea.vmem [#allocation2], 64
    %36 = vst [vmem:[%s35] ss:$8 sm:$0xf] %v31
    %37 = vst [vmem:[%s35] ss:$8 sm:$0xf0] %v31
    %v38 = vlaneseq
    %vm39 = vcmp.ge.s32.totalorder %v38, 0
    %vm40 = vcmp.lt.s32.totalorder %v38, 256
    %vm41 = vmand %vm39, %vm40
    %s42 = scalar_lea.vmem [#allocation2], 128
    %43 = vst.msk [vmem:[%s42] ss:$8 sm:$0x3] %vm41, %v32
    %44 = vst.msk [vmem:[%s42] ss:$8 sm:$0x0] %vm41, %v32
    %48 = vrot.lane.b32.xlu0 %v30, 127
    %v49 = vpop.permute.xlu0 %48
    %50 = vrot.lane.b32.xlu0 %v31, 127
    %v51 = vpop.permute.xlu0 %50
    %52 = vrot.lane.b32.xlu0 %v32, 127
    %v53 = vpop.permute.xlu0 %52
    %v54 = vrot.slane %v49, 1
    %v55 = vrot.slane %v51, 1
    %v56 = vrot.slane %v53, 1
    %vm57 = vcmask 1046528
    %v58 = vsel %vm57, %v54, %v55
    %vm59 = vcmask 1039360
    %v60 = vsel %vm59, %v49, %v58
    %v61 = vsel %vm57, %v55, %v56
    %v62 = vsel %vm59, %v51, %v61
    %v63 = vsel %vm59, %v53, %v56
    %s67 = scalar_lea.vmem [#allocation2], 1
    %68 = vst [vmem:[%s67] ss:$8 sm:$0xf] %v60
    %69 = vst [vmem:[%s67] ss:$8 sm:$0xf0] %v60
    %s70 = scalar_lea.vmem [#allocation2], 65
    %71 = vst [vmem:[%s70] ss:$8 sm:$0xf] %v62
    %72 = vst [vmem:[%s70] ss:$8 sm:$0xf0] %v62
    %s73 = scalar_lea.vmem [#allocation2], 129
    %74 = vst.msk [vmem:[%s73] ss:$8 sm:$0x3] %vm41, %v63
    %75 = vst.msk [vmem:[%s73] ss:$8 sm:$0x0] %vm41, %v63
    %76 = vrot.lane.b32.xlu0 %v30, 126
    %v77 = vpop.permute.xlu0 %76
    %78 = vrot.lane.b32.xlu0 %v31, 126
    %v79 = vpop.permute.xlu0 %78
    %80 = vrot.lane.b32.xlu0 %v32, 126
    %v81 = vpop.permute.xlu0 %80
    %v82 = vrot.slane %v77, 1
    %v83 = vrot.slane %v79, 1
    %v84 = vrot.slane %v81, 1
    %v85 = vsel %vm57, %v82, %v83
    %vm86 = vcmask 1031168
    %v87 = vsel %vm86, %v77, %v85
    %v88 = vsel %vm57, %v83, %v84
    %v89 = vsel %vm86, %v79, %v88
    %v90 = vsel %vm86, %v81, %v84
    %s94 = scalar_lea.vmem [#allocation2], 2
    %95 = vst [vmem:[%s94] ss:$8 sm:$0xf] %v87
    %96 = vst [vmem:[%s94] ss:$8 sm:$0xf0] %v87
    %s97 = scalar_lea.vmem [#allocation2], 66
    %98 = vst [vmem:[%s97] ss:$8 sm:$0xf] %v89
    %99 = vst [vmem:[%s97] ss:$8 sm:$0xf0] %v89
    %s100 = scalar_lea.vmem [#allocation2], 130
    %101 = vst.msk [vmem:[%s100] ss:$8 sm:$0x3] %vm41, %v90
    %102 = vst.msk [vmem:[%s100] ss:$8 sm:$0x0] %vm41, %v90
    %103 = vrot.lane.b32.xlu0 %v30, 125
    %v104 = vpop.permute.xlu0 %103
    %105 = vrot.lane.b32.xlu0 %v31, 125
    %v106 = vpop.permute.xlu0 %105
    %107 = vrot.lane.b32.xlu0 %v32, 125
    %v108 = vpop.permute.xlu0 %107
    %v109 = vrot.slane %v104, 1
    %v110 = vrot.slane %v106, 1
    %v111 = vrot.slane %v108, 1
    %v112 = vsel %vm57, %v109, %v110
    %vm113 = vcmask 1022976
    %v114 = vsel %vm113, %v104, %v112
    %v115 = vsel %vm57, %v110, %v111
    %v116 = vsel %vm113, %v106, %v115
    %v117 = vsel %vm113, %v108, %v111
    %s121 = scalar_lea.vmem [#allocation2], 3
    %122 = vst [vmem:[%s121] ss:$8 sm:$0xf] %v114
    %123 = vst [vmem:[%s121] ss:$8 sm:$0xf0] %v114
    %s124 = scalar_lea.vmem [#allocation2], 67
    %125 = vst [vmem:[%s124] ss:$8 sm:$0xf] %v116
    %126 = vst [vmem:[%s124] ss:$8 sm:$0xf0] %v116
    %s127 = scalar_lea.vmem [#allocation2], 131
    %128 = vst.msk [vmem:[%s127] ss:$8 sm:$0x3] %vm41, %v117
    %129 = vst.msk [vmem:[%s127] ss:$8 sm:$0x0] %vm41, %v117
    %130 = vrot.lane.b32.xlu0 %v30, 124
    %v131 = vpop.permute.xlu0 %130
    %132 = vrot.lane.b32.xlu0 %v31, 124
    %v133 = vpop.permute.xlu0 %132
    %134 = vrot.lane.b32.xlu0 %v32, 124
    %v135 = vpop.permute.xlu0 %134
    %v136 = vrot.slane %v131, 1
    %v137 = vrot.slane %v133, 1
    %v138 = vrot.slane %v135, 1
    %v139 = vsel %vm57, %v136, %v137
    %vm140 = vcmask 1014784
    %v141 = vsel %vm140, %v131, %v139
    %v142 = vsel %vm57, %v137, %v138
    %v143 = vsel %vm140, %v133, %v142
    %v144 = vsel %vm140, %v135, %v138
    %s148 = scalar_lea.vmem [#allocation2], 4
    %149 = vst [vmem:[%s148] ss:$8 sm:$0xf] %v141
    %150 = vst [vmem:[%s148] ss:$8 sm:$0xf0] %v141
    %s151 = scalar_lea.vmem [#allocation2], 68
    %152 = vst [vmem:[%s151] ss:$8 sm:$0xf] %v143
    %153 = vst [vmem:[%s151] ss:$8 sm:$0xf0] %v143
    %s154 = scalar_lea.vmem [#allocation2], 132
    %155 = vst.msk [vmem:[%s154] ss:$8 sm:$0x3] %vm41, %v144
    %156 = vst.msk [vmem:[%s154] ss:$8 sm:$0x0] %vm41, %v144
    %157 = vrot.lane.b32.xlu0 %v30, 96
    %v158 = vpop.permute.xlu0 %157
    %159 = vrot.lane.b32.xlu0 %v31, 96
    %v160 = vpop.permute.xlu0 %159
    %161 = vrot.lane.b32.xlu0 %v32, 96
    %v162 = vpop.permute.xlu0 %161
    %v163 = vrot.slane %v158, 1
    %v164 = vrot.slane %v160, 1
    %v165 = vrot.slane %v162, 1
    %v166 = vsel %vm57, %v163, %v164
    %vm167 = vcmask 785408
    %v168 = vsel %vm167, %v158, %v166
    %v169 = vsel %vm57, %v164, %v165
    %v170 = vsel %vm167, %v160, %v169
    %v171 = vsel %vm167, %v162, %v165
    %s175 = scalar_lea.vmem [#allocation2], 5
    %176 = vst [vmem:[%s175] ss:$8 sm:$0xf] %v168
    %177 = vst [vmem:[%s175] ss:$8 sm:$0xf0] %v168
    %s178 = scalar_lea.vmem [#allocation2], 69
    %179 = vst [vmem:[%s178] ss:$8 sm:$0xf] %v170
    %180 = vst [vmem:[%s178] ss:$8 sm:$0xf0] %v170
    %s181 = scalar_lea.vmem [#allocation2], 133
    %182 = vst.msk [vmem:[%s181] ss:$8 sm:$0x3] %vm41, %v171
    %183 = vst.msk [vmem:[%s181] ss:$8 sm:$0x0] %vm41, %v171
    %184 = vrot.lane.b32.xlu0 %v30, 95
    %v185 = vpop.permute.xlu0 %184
    %186 = vrot.lane.b32.xlu0 %v31, 95
    %v187 = vpop.permute.xlu0 %186
    %188 = vrot.lane.b32.xlu0 %v32, 95
    %v189 = vpop.permute.xlu0 %188
    %v190 = vrot.slane %v185, 1
    %v191 = vrot.slane %v187, 1
    %v192 = vrot.slane %v189, 1
    %v193 = vsel %vm57, %v190, %v191
    %vm194 = vcmask 777216
    %v195 = vsel %vm194, %v185, %v193
    %v196 = vsel %vm57, %v191, %v192
    %v197 = vsel %vm194, %v187, %v196
    %v198 = vsel %vm194, %v189, %v192
    %s202 = scalar_lea.vmem [#allocation2], 6
    %203 = vst [vmem:[%s202] ss:$8 sm:$0xf] %v195
    %204 = vst [vmem:[%s202] ss:$8 sm:$0xf0] %v195
    %s205 = scalar_lea.vmem [#allocation2], 70
    %206 = vst [vmem:[%s205] ss:$8 sm:$0xf] %v197
    %207 = vst [vmem:[%s205] ss:$8 sm:$0xf0] %v197
    %s208 = scalar_lea.vmem [#allocation2], 134
    %209 = vst.msk [vmem:[%s208] ss:$8 sm:$0x3] %vm41, %v198
    %210 = vst.msk [vmem:[%s208] ss:$8 sm:$0x0] %vm41, %v198
    %211 = vrot.lane.b32.xlu0 %v30, 94
    %v212 = vpop.permute.xlu0 %211
    %213 = vrot.lane.b32.xlu0 %v31, 94
    %v214 = vpop.permute.xlu0 %213
    %215 = vrot.lane.b32.xlu0 %v32, 94
    %v216 = vpop.permute.xlu0 %215
    %v217 = vrot.slane %v212, 1
    %v218 = vrot.slane %v214, 1
    %v219 = vrot.slane %v216, 1
    %v220 = vsel %vm57, %v217, %v218
    %vm221 = vcmask 769024
    %v222 = vsel %vm221, %v212, %v220
    %v223 = vsel %vm57, %v218, %v219
    %v224 = vsel %vm221, %v214, %v223
    %v225 = vsel %vm221, %v216, %v219
    %s229 = scalar_lea.vmem [#allocation2], 7
    %230 = vst [vmem:[%s229] ss:$8 sm:$0xf] %v222
    %231 = vst [vmem:[%s229] ss:$8 sm:$0xf0] %v222
    %s232 = scalar_lea.vmem [#allocation2], 71
    %233 = vst [vmem:[%s232] ss:$8 sm:$0xf] %v224
    %234 = vst [vmem:[%s232] ss:$8 sm:$0xf0] %v224
    %s235 = scalar_lea.vmem [#allocation2], 135
    %236 = vst.msk [vmem:[%s235] ss:$8 sm:$0x3] %vm41, %v225
    %237 = vst.msk [vmem:[%s235] ss:$8 sm:$0x0] %vm41, %v225
    %238 = vrot.lane.b32.xlu0 %v30, 93
    %v239 = vpop.permute.xlu0 %238
    %240 = vrot.lane.b32.xlu0 %v31, 93
    %v241 = vpop.permute.xlu0 %240
    %242 = vrot.lane.b32.xlu0 %v32, 93
    %v243 = vpop.permute.xlu0 %242
    %v244 = vrot.slane %v239, 1
    %v245 = vrot.slane %v241, 1
    %v246 = vrot.slane %v243, 1
    %v247 = vsel %vm57, %v244, %v245
    %vm248 = vcmask 760832
    %v249 = vsel %vm248, %v239, %v247
    %v250 = vsel %vm57, %v245, %v246
    %v251 = vsel %vm248, %v241, %v250
    %v252 = vsel %vm248, %v243, %v246
    %s256 = scalar_lea.vmem [#allocation2], 144
    %257 = vst [vmem:[%s256] ss:$8 sm:$0xf] %v249
    %258 = vst [vmem:[%s256] ss:$8 sm:$0xf0] %v249
    %s259 = scalar_lea.vmem [#allocation2], 208
    %260 = vst [vmem:[%s259] ss:$8 sm:$0xf] %v251
    %261 = vst [vmem:[%s259] ss:$8 sm:$0xf0] %v251
    %s262 = scalar_lea.vmem [#allocation2], 272
    %263 = vst.msk [vmem:[%s262] ss:$8 sm:$0x3] %vm41, %v252
    %264 = vst.msk [vmem:[%s262] ss:$8 sm:$0x0] %vm41, %v252
    %265 = vrot.lane.b32.xlu0 %v30, 92
    %v266 = vpop.permute.xlu0 %265
    %267 = vrot.lane.b32.xlu0 %v31, 92
    %v268 = vpop.permute.xlu0 %267
    %269 = vrot.lane.b32.xlu0 %v32, 92
    %v270 = vpop.permute.xlu0 %269
    %v271 = vrot.slane %v266, 1
    %v272 = vrot.slane %v268, 1
    %v273 = vrot.slane %v270, 1
    %v274 = vsel %vm57, %v271, %v272
    %vm275 = vcmask 752640
    %v276 = vsel %vm275, %v266, %v274
    %v277 = vsel %vm57, %v272, %v273
    %v278 = vsel %vm275, %v268, %v277
    %v279 = vsel %vm275, %v270, %v273
    %s283 = scalar_lea.vmem [#allocation2], 145
    %284 = vst [vmem:[%s283] ss:$8 sm:$0xf] %v276
    %285 = vst [vmem:[%s283] ss:$8 sm:$0xf0] %v276
    %s286 = scalar_lea.vmem [#allocation2], 209
    %287 = vst [vmem:[%s286] ss:$8 sm:$0xf] %v278
    %288 = vst [vmem:[%s286] ss:$8 sm:$0xf0] %v278
    %s289 = scalar_lea.vmem [#allocation2], 273
    %290 = vst.msk [vmem:[%s289] ss:$8 sm:$0x3] %vm41, %v279
    %291 = vst.msk [vmem:[%s289] ss:$8 sm:$0x0] %vm41, %v279
    %292 = vrot.lane.b32.xlu0 %v30, 64
    %v293 = vpop.permute.xlu0 %292
    %294 = vrot.lane.b32.xlu0 %v31, 64
    %v295 = vpop.permute.xlu0 %294
    %296 = vrot.lane.b32.xlu0 %v32, 64
    %v297 = vpop.permute.xlu0 %296
    %v298 = vrot.slane %v293, 1
    %v299 = vrot.slane %v295, 1
    %v300 = vrot.slane %v297, 1
    %v301 = vsel %vm57, %v298, %v299
    %vm302 = vcmask 523264
    %v303 = vsel %vm302, %v293, %v301
    %v304 = vsel %vm57, %v299, %v300
    %v305 = vsel %vm302, %v295, %v304
    %v306 = vsel %vm302, %v297, %v300
    %s310 = scalar_lea.vmem [#allocation2], 146
    %311 = vst [vmem:[%s310] ss:$8 sm:$0xf] %v303
    %312 = vst [vmem:[%s310] ss:$8 sm:$0xf0] %v303
    %s313 = scalar_lea.vmem [#allocation2], 210
    %314 = vst [vmem:[%s313] ss:$8 sm:$0xf] %v305
    %315 = vst [vmem:[%s313] ss:$8 sm:$0xf0] %v305
    %s316 = scalar_lea.vmem [#allocation2], 274
    %317 = vst.msk [vmem:[%s316] ss:$8 sm:$0x3] %vm41, %v306
    %318 = vst.msk [vmem:[%s316] ss:$8 sm:$0x0] %vm41, %v306
    %319 = vrot.lane.b32.xlu0 %v30, 63
    %v320 = vpop.permute.xlu0 %319
    %321 = vrot.lane.b32.xlu0 %v31, 63
    %v322 = vpop.permute.xlu0 %321
    %323 = vrot.lane.b32.xlu0 %v32, 63
    %v324 = vpop.permute.xlu0 %323
    %v325 = vrot.slane %v320, 1
    %v326 = vrot.slane %v322, 1
    %v327 = vrot.slane %v324, 1
    %v328 = vsel %vm57, %v325, %v326
    %vm329 = vcmask 515072
    %v330 = vsel %vm329, %v320, %v328
    %v331 = vsel %vm57, %v326, %v327
    %v332 = vsel %vm329, %v322, %v331
    %v333 = vsel %vm329, %v324, %v327
    %s337 = scalar_lea.vmem [#allocation2], 147
    %338 = vst [vmem:[%s337] ss:$8 sm:$0xf] %v330
    %339 = vst [vmem:[%s337] ss:$8 sm:$0xf0] %v330
    %s340 = scalar_lea.vmem [#allocation2], 211
    %341 = vst [vmem:[%s340] ss:$8 sm:$0xf] %v332
    %342 = vst [vmem:[%s340] ss:$8 sm:$0xf0] %v332
    %s343 = scalar_lea.vmem [#allocation2], 275
    %344 = vst.msk [vmem:[%s343] ss:$8 sm:$0x3] %vm41, %v333
    %345 = vst.msk [vmem:[%s343] ss:$8 sm:$0x0] %vm41, %v333
    %346 = vrot.lane.b32.xlu0 %v30, 62
    %v347 = vpop.permute.xlu0 %346
    %348 = vrot.lane.b32.xlu0 %v31, 62
    %v349 = vpop.permute.xlu0 %348
    %350 = vrot.lane.b32.xlu0 %v32, 62
    %v351 = vpop.permute.xlu0 %350
    %v352 = vrot.slane %v347, 1
    %v353 = vrot.slane %v349, 1
    %v354 = vrot.slane %v351, 1
    %v355 = vsel %vm57, %v352, %v353
    %vm356 = vcmask 506880
    %v357 = vsel %vm356, %v347, %v355
    %v358 = vsel %vm57, %v353, %v354
    %v359 = vsel %vm356, %v349, %v358
    %v360 = vsel %vm356, %v351, %v354
    %s364 = scalar_lea.vmem [#allocation2], 148
    %365 = vst [vmem:[%s364] ss:$8 sm:$0xf] %v357
    %366 = vst [vmem:[%s364] ss:$8 sm:$0xf0] %v357
    %s367 = scalar_lea.vmem [#allocation2], 212
    %368 = vst [vmem:[%s367] ss:$8 sm:$0xf] %v359
    %369 = vst [vmem:[%s367] ss:$8 sm:$0xf0] %v359
    %s370 = scalar_lea.vmem [#allocation2], 276
    %371 = vst.msk [vmem:[%s370] ss:$8 sm:$0x3] %vm41, %v360
    %372 = vst.msk [vmem:[%s370] ss:$8 sm:$0x0] %vm41, %v360
    %373 = vrot.lane.b32.xlu0 %v30, 61
    %v374 = vpop.permute.xlu0 %373
    %375 = vrot.lane.b32.xlu0 %v31, 61
    %v376 = vpop.permute.xlu0 %375
    %377 = vrot.lane.b32.xlu0 %v32, 61
    %v378 = vpop.permute.xlu0 %377
    %v379 = vrot.slane %v374, 1
    %v380 = vrot.slane %v376, 1
    %v381 = vrot.slane %v378, 1
    %v382 = vsel %vm57, %v379, %v380
    %vm383 = vcmask 498688
    %v384 = vsel %vm383, %v374, %v382
    %v385 = vsel %vm57, %v380, %v381
    %v386 = vsel %vm383, %v376, %v385
    %v387 = vsel %vm383, %v378, %v381
    %s391 = scalar_lea.vmem [#allocation2], 149
    %392 = vst [vmem:[%s391] ss:$8 sm:$0xf] %v384
    %393 = vst [vmem:[%s391] ss:$8 sm:$0xf0] %v384
    %s394 = scalar_lea.vmem [#allocation2], 213
    %395 = vst [vmem:[%s394] ss:$8 sm:$0xf] %v386
    %396 = vst [vmem:[%s394] ss:$8 sm:$0xf0] %v386
    %s397 = scalar_lea.vmem [#allocation2], 277
    %398 = vst.msk [vmem:[%s397] ss:$8 sm:$0x3] %vm41, %v387
    %399 = vst.msk [vmem:[%s397] ss:$8 sm:$0x0] %vm41, %v387
    %400 = vrot.lane.b32.xlu0 %v30, 60
    %v401 = vpop.permute.xlu0 %400
    %402 = vrot.lane.b32.xlu0 %v31, 60
    %v403 = vpop.permute.xlu0 %402
    %404 = vrot.lane.b32.xlu0 %v32, 60
    %v405 = vpop.permute.xlu0 %404
    %v406 = vrot.slane %v401, 1
    %v407 = vrot.slane %v403, 1
    %v408 = vrot.slane %v405, 1
    %v409 = vsel %vm57, %v406, %v407
    %vm410 = vcmask 490496
    %v411 = vsel %vm410, %v401, %v409
    %v412 = vsel %vm57, %v407, %v408
    %v413 = vsel %vm410, %v403, %v412
    %v414 = vsel %vm410, %v405, %v408
    %s418 = scalar_lea.vmem [#allocation2], 150
    %419 = vst [vmem:[%s418] ss:$8 sm:$0xf] %v411
    %420 = vst [vmem:[%s418] ss:$8 sm:$0xf0] %v411
    %s421 = scalar_lea.vmem [#allocation2], 214
    %422 = vst [vmem:[%s421] ss:$8 sm:$0xf] %v413
    %423 = vst [vmem:[%s421] ss:$8 sm:$0xf0] %v413
    %s424 = scalar_lea.vmem [#allocation2], 278
    %425 = vst.msk [vmem:[%s424] ss:$8 sm:$0x3] %vm41, %v414
    %426 = vst.msk [vmem:[%s424] ss:$8 sm:$0x0] %vm41, %v414
    %427 = vrot.lane.b32.xlu0 %v30, 32
    %v428 = vpop.permute.xlu0 %427
    %429 = vrot.lane.b32.xlu0 %v31, 32
    %v430 = vpop.permute.xlu0 %429
    %431 = vrot.lane.b32.xlu0 %v32, 32
    %v432 = vpop.permute.xlu0 %431
    %v433 = vrot.slane %v428, 1
    %v434 = vrot.slane %v430, 1
    %v435 = vrot.slane %v432, 1
    %v436 = vsel %vm57, %v433, %v434
    %vm437 = vcmask 261120
    %v438 = vsel %vm437, %v428, %v436
    %v439 = vsel %vm57, %v434, %v435
    %v440 = vsel %vm437, %v430, %v439
    %v441 = vsel %vm437, %v432, %v435
    %s445 = scalar_lea.vmem [#allocation2], 151
    %446 = vst [vmem:[%s445] ss:$8 sm:$0xf] %v438
    %447 = vst [vmem:[%s445] ss:$8 sm:$0xf0] %v438
    %s448 = scalar_lea.vmem [#allocation2], 215
    %449 = vst [vmem:[%s448] ss:$8 sm:$0xf] %v440
    %450 = vst [vmem:[%s448] ss:$8 sm:$0xf0] %v440
    %s451 = scalar_lea.vmem [#allocation2], 279
    %452 = vst.msk [vmem:[%s451] ss:$8 sm:$0x3] %vm41, %v441
    %453 = vst.msk [vmem:[%s451] ss:$8 sm:$0x0] %vm41, %v441
    %454 = vrot.lane.b32.xlu0 %v30, 31
    %v455 = vpop.permute.xlu0 %454
    %456 = vrot.lane.b32.xlu0 %v31, 31
    %v457 = vpop.permute.xlu0 %456
    %458 = vrot.lane.b32.xlu0 %v32, 31
    %v459 = vpop.permute.xlu0 %458
    %v460 = vrot.slane %v455, 1
    %v461 = vrot.slane %v457, 1
    %v462 = vrot.slane %v459, 1
    %v463 = vsel %vm57, %v460, %v461
    %vm464 = vcmask 252928
    %v465 = vsel %vm464, %v455, %v463
    %v466 = vsel %vm57, %v461, %v462
    %v467 = vsel %vm464, %v457, %v466
    %v468 = vsel %vm464, %v459, %v462
    %s472 = scalar_lea.vmem [#allocation2], 288
    %473 = vst [vmem:[%s472] ss:$8 sm:$0xf] %v465
    %474 = vst [vmem:[%s472] ss:$8 sm:$0xf0] %v465
    %s475 = scalar_lea.vmem [#allocation2], 352
    %476 = vst [vmem:[%s475] ss:$8 sm:$0xf] %v467
    %477 = vst [vmem:[%s475] ss:$8 sm:$0xf0] %v467
    %s478 = scalar_lea.vmem [#allocation2], 416
    %479 = vst.msk [vmem:[%s478] ss:$8 sm:$0x3] %vm41, %v468
    %480 = vst.msk [vmem:[%s478] ss:$8 sm:$0x0] %vm41, %v468
    %481 = vrot.lane.b32.xlu0 %v30, 30
    %v482 = vpop.permute.xlu0 %481
    %483 = vrot.lane.b32.xlu0 %v31, 30
    %v484 = vpop.permute.xlu0 %483
    %485 = vrot.lane.b32.xlu0 %v32, 30
    %v486 = vpop.permute.xlu0 %485
    %v487 = vrot.slane %v482, 1
    %v488 = vrot.slane %v484, 1
    %v489 = vrot.slane %v486, 1
    %v490 = vsel %vm57, %v487, %v488
    %vm491 = vcmask 244736
    %v492 = vsel %vm491, %v482, %v490
    %v493 = vsel %vm57, %v488, %v489
    %v494 = vsel %vm491, %v484, %v493
    %v495 = vsel %vm491, %v486, %v489
    %s499 = scalar_lea.vmem [#allocation2], 289
    %500 = vst [vmem:[%s499] ss:$8 sm:$0xf] %v492
    %501 = vst [vmem:[%s499] ss:$8 sm:$0xf0] %v492
    %s502 = scalar_lea.vmem [#allocation2], 353
    %503 = vst [vmem:[%s502] ss:$8 sm:$0xf] %v494
    %504 = vst [vmem:[%s502] ss:$8 sm:$0xf0] %v494
    %s505 = scalar_lea.vmem [#allocation2], 417
    %506 = vst.msk [vmem:[%s505] ss:$8 sm:$0x3] %vm41, %v495
    %507 = vst.msk [vmem:[%s505] ss:$8 sm:$0x0] %vm41, %v495
    %508 = vrot.lane.b32.xlu0 %v30, 29
    %v509 = vpop.permute.xlu0 %508
    %510 = vrot.lane.b32.xlu0 %v31, 29
    %v511 = vpop.permute.xlu0 %510
    %512 = vrot.lane.b32.xlu0 %v32, 29
    %v513 = vpop.permute.xlu0 %512
    %v514 = vrot.slane %v509, 1
    %v515 = vrot.slane %v511, 1
    %v516 = vrot.slane %v513, 1
    %v517 = vsel %vm57, %v514, %v515
    %vm518 = vcmask 236544
    %v519 = vsel %vm518, %v509, %v517
    %v520 = vsel %vm57, %v515, %v516
    %v521 = vsel %vm518, %v511, %v520
    %v522 = vsel %vm518, %v513, %v516
    %s526 = scalar_lea.vmem [#allocation2], 290
    %527 = vst [vmem:[%s526] ss:$8 sm:$0xf] %v519
    %528 = vst [vmem:[%s526] ss:$8 sm:$0xf0] %v519
    %s529 = scalar_lea.vmem [#allocation2], 354
    %530 = vst [vmem:[%s529] ss:$8 sm:$0xf] %v521
    %531 = vst [vmem:[%s529] ss:$8 sm:$0xf0] %v521
    %s532 = scalar_lea.vmem [#allocation2], 418
    %533 = vst.msk [vmem:[%s532] ss:$8 sm:$0x3] %vm41, %v522
    %534 = vst.msk [vmem:[%s532] ss:$8 sm:$0x0] %vm41, %v522
    %535 = vrot.lane.b32.xlu0 %v30, 28
    %v536 = vpop.permute.xlu0 %535
    %537 = vrot.lane.b32.xlu0 %v31, 28
    %v538 = vpop.permute.xlu0 %537
    %539 = vrot.lane.b32.xlu0 %v32, 28
    %v540 = vpop.permute.xlu0 %539
    %v541 = vrot.slane %v536, 1
    %v542 = vrot.slane %v538, 1
    %v543 = vrot.slane %v540, 1
    %v544 = vsel %vm57, %v541, %v542
    %vm545 = vcmask 228352
    %v546 = vsel %vm545, %v536, %v544
    %v547 = vsel %vm57, %v542, %v543
    %v548 = vsel %vm545, %v538, %v547
    %v549 = vsel %vm545, %v540, %v543
    %s553 = scalar_lea.vmem [#allocation2], 291
    %554 = vst [vmem:[%s553] ss:$8 sm:$0xf] %v546
    %555 = vst [vmem:[%s553] ss:$8 sm:$0xf0] %v546
    %s556 = scalar_lea.vmem [#allocation2], 355
    %557 = vst [vmem:[%s556] ss:$8 sm:$0xf] %v548
    %558 = vst [vmem:[%s556] ss:$8 sm:$0xf0] %v548
    %s559 = scalar_lea.vmem [#allocation2], 419
    %560 = vst.msk [vmem:[%s559] ss:$8 sm:$0x3] %vm41, %v549
    %561 = vst.msk [vmem:[%s559] ss:$8 sm:$0x0] %vm41, %v549
    %v562 = vrot.slane %v30, 1
    %v563 = vrot.slane %v31, 1
    %v564 = vrot.slane %v32, 1
    %v565 = vsel %vm57, %v562, %v563
    %v566 = vsel %vm57, %v563, %v564
    %s570 = scalar_lea.vmem [#allocation2], 292
    %571 = vst [vmem:[%s570] ss:$8 sm:$0xf] %v565
    %572 = vst [vmem:[%s570] ss:$8 sm:$0xf0] %v565
    %s573 = scalar_lea.vmem [#allocation2], 356
    %574 = vst [vmem:[%s573] ss:$8 sm:$0xf] %v566
    %575 = vst [vmem:[%s573] ss:$8 sm:$0xf0] %v566
    %s576 = scalar_lea.vmem [#allocation2], 420
    %577 = vst.msk [vmem:[%s576] ss:$8 sm:$0x3] %vm41, %v564
    %578 = vst.msk [vmem:[%s576] ss:$8 sm:$0x0] %vm41, %v564
    %v579 = vrot.slane %v49, 2
    %v580 = vrot.slane %v51, 2
    %v581 = vrot.slane %v53, 2
    %vm582 = vcmask 1045504
    %v583 = vsel %vm582, %v579, %v580
    %v584 = vsel %vm59, %v58, %v583
    %v585 = vsel %vm582, %v580, %v581
    %v586 = vsel %vm59, %v61, %v585
    %v587 = vsel %vm59, %v56, %v581
    %s591 = scalar_lea.vmem [#allocation2], 293
    %592 = vst [vmem:[%s591] ss:$8 sm:$0xf] %v584
    %593 = vst [vmem:[%s591] ss:$8 sm:$0xf0] %v584
    %s594 = scalar_lea.vmem [#allocation2], 357
    %595 = vst [vmem:[%s594] ss:$8 sm:$0xf] %v586
    %596 = vst [vmem:[%s594] ss:$8 sm:$0xf0] %v586
    %s597 = scalar_lea.vmem [#allocation2], 421
    %598 = vst.msk [vmem:[%s597] ss:$8 sm:$0x3] %vm41, %v587
    %599 = vst.msk [vmem:[%s597] ss:$8 sm:$0x0] %vm41, %v587
    %v600 = vrot.slane %v77, 2
    %v601 = vrot.slane %v79, 2
    %v602 = vrot.slane %v81, 2
    %v603 = vsel %vm582, %v600, %v601
    %v604 = vsel %vm86, %v85, %v603
    %v605 = vsel %vm582, %v601, %v602
    %v606 = vsel %vm86, %v88, %v605
    %v607 = vsel %vm86, %v84, %v602
    %s611 = scalar_lea.vmem [#allocation2], 294
    %612 = vst [vmem:[%s611] ss:$8 sm:$0xf] %v604
    %613 = vst [vmem:[%s611] ss:$8 sm:$0xf0] %v604
    %s614 = scalar_lea.vmem [#allocation2], 358
    %615 = vst [vmem:[%s614] ss:$8 sm:$0xf] %v606
    %616 = vst [vmem:[%s614] ss:$8 sm:$0xf0] %v606
    %s617 = scalar_lea.vmem [#allocation2], 422
    %618 = vst.msk [vmem:[%s617] ss:$8 sm:$0x3] %vm41, %v607
    %619 = vst.msk [vmem:[%s617] ss:$8 sm:$0x0] %vm41, %v607
    %v620 = vrot.slane %v104, 2
    %v621 = vrot.slane %v106, 2
    %v622 = vrot.slane %v108, 2
    %v623 = vsel %vm582, %v620, %v621
    %v624 = vsel %vm113, %v112, %v623
    %v625 = vsel %vm582, %v621, %v622
    %v626 = vsel %vm113, %v115, %v625
    %v627 = vsel %vm113, %v111, %v622
    %s631 = scalar_lea.vmem [#allocation2], 295
    %632 = vst [vmem:[%s631] ss:$8 sm:$0xf] %v624
    %633 = vst [vmem:[%s631] ss:$8 sm:$0xf0] %v624
    %s634 = scalar_lea.vmem [#allocation2], 359
    %635 = vst [vmem:[%s634] ss:$8 sm:$0xf] %v626
    %636 = vst [vmem:[%s634] ss:$8 sm:$0xf0] %v626
    %s637 = scalar_lea.vmem [#allocation2], 423
    %638 = vst.msk [vmem:[%s637] ss:$8 sm:$0x3] %vm41, %v627
    %639 = vst.msk [vmem:[%s637] ss:$8 sm:$0x0] %vm41, %v627
    %v640 = vrot.slane %v131, 2
    %v641 = vrot.slane %v133, 2
    %v642 = vrot.slane %v135, 2
    %v643 = vsel %vm582, %v640, %v641
    %v644 = vsel %vm140, %v139, %v643
    %v645 = vsel %vm582, %v641, %v642
    %v646 = vsel %vm140, %v142, %v645
    %v647 = vsel %vm140, %v138, %v642
    %s651 = scalar_lea.vmem [#allocation2], 432
    %652 = vst [vmem:[%s651] ss:$8 sm:$0xf] %v644
    %653 = vst [vmem:[%s651] ss:$8 sm:$0xf0] %v644
    %s654 = scalar_lea.vmem [#allocation2], 496
    %655 = vst [vmem:[%s654] ss:$8 sm:$0xf] %v646
    %656 = vst [vmem:[%s654] ss:$8 sm:$0xf0] %v646
    %s657 = scalar_lea.vmem [#allocation2], 560
    %658 = vst.msk [vmem:[%s657] ss:$8 sm:$0x3] %vm41, %v647
    %659 = vst.msk [vmem:[%s657] ss:$8 sm:$0x0] %vm41, %v647
    %v660 = vld [vmem:[%s1] sm:$0xff]
    %v661 = vld [vmem:[#allocation2] sm:$0xff]
    %v662 = vld [vmem:[#allocation2 + $0x8] sm:$0xff]
    %v663 = vld [vmem:[#allocation2 + $0x10] sm:$0xff]
    %v664 = vld [vmem:[#allocation2 + $0x18] sm:$0xff]
    %v665 = vld [vmem:[#allocation2 + $0x20] sm:$0xff]
    %v666 = vld [vmem:[#allocation2 + $0x28] sm:$0xff]
    %v667 = vld [vmem:[#allocation2 + $0x30] sm:$0xff]
    %v668 = vld [vmem:[#allocation2 + $0x38] sm:$0xff]
    %v669 = vld [vmem:[#allocation2 + $0x40] sm:$0xff]
    %v670 = vld [vmem:[#allocation2 + $0x48] sm:$0xff]
    %v671 = vld [vmem:[#allocation2 + $0x50] sm:$0xff]
    %v672 = vld [vmem:[#allocation2 + $0x58] sm:$0xff]
    %v673 = vld [vmem:[#allocation2 + $0x60] sm:$0xff]
    %v674 = vld [vmem:[#allocation2 + $0x68] sm:$0xff]
    %v675 = vld [vmem:[#allocation2 + $0x70] sm:$0xff]
    %v676 = vld [vmem:[#allocation2 + $0x78] sm:$0xff]
    %v677 = vld [vmem:[#allocation2 + $0x80] sm:$0xff]
    %v678 = vld [vmem:[#allocation2 + $0x88] sm:$0xff]
    %v679 = vld [vmem:[#allocation2 + $0x90] sm:$0xff]
    %v680 = vld [vmem:[#allocation2 + $0x98] sm:$0xff]
    %v681 = vld [vmem:[#allocation2 + $0xa0] sm:$0xff]
    %v682 = vld [vmem:[#allocation2 + $0xa8] sm:$0xff]
    %v683 = vld [vmem:[#allocation2 + $0xb0] sm:$0xff]
    %v684 = vld [vmem:[#allocation2 + $0xb8] sm:$0xff]
    %v685 = vld [vmem:[#allocation2 + $0xc0] sm:$0xff]
    %v686 = vld [vmem:[#allocation2 + $0xc8] sm:$0xff]
    %v687 = vld [vmem:[#allocation2 + $0xd0] sm:$0xff]
    %v688 = vld [vmem:[#allocation2 + $0xd8] sm:$0xff]
    %v689 = vld [vmem:[#allocation2 + $0xe0] sm:$0xff]
    %v690 = vld [vmem:[#allocation2 + $0xe8] sm:$0xff]
    %v691 = vld [vmem:[#allocation2 + $0xf0] sm:$0xff]
    %v692 = vld [vmem:[#allocation2 + $0xf8] sm:$0xff]
    %v693 = vld [vmem:[#allocation2 + $0x100] sm:$0xff]
    %v694 = vld [vmem:[#allocation2 + $0x108] sm:$0xff]
    %v695 = vld [vmem:[#allocation2 + $0x110] sm:$0xff]
    %v696 = vld [vmem:[#allocation2 + $0x118] sm:$0xff]
    %v697 = vld [vmem:[#allocation2 + $0x120] sm:$0xff]
    %v698 = vld [vmem:[#allocation2 + $0x128] sm:$0xff]
    %v699 = vld [vmem:[#allocation2 + $0x130] sm:$0xff]
    %v700 = vld [vmem:[#allocation2 + $0x138] sm:$0xff]
    %v701 = vld [vmem:[#allocation2 + $0x140] sm:$0xff]
    %v702 = vld [vmem:[#allocation2 + $0x148] sm:$0xff]
    %v703 = vld [vmem:[#allocation2 + $0x150] sm:$0xff]
    %v704 = vld [vmem:[#allocation2 + $0x158] sm:$0xff]
    %v705 = vld [vmem:[#allocation2 + $0x160] sm:$0xff]
    %v706 = vld [vmem:[#allocation2 + $0x168] sm:$0xff]
    %v707 = vld [vmem:[#allocation2 + $0x170] sm:$0xff]
    %v708 = vld [vmem:[#allocation2 + $0x178] sm:$0xff]
    %v709 = vld [vmem:[#allocation2 + $0x180] sm:$0xff]
    %v710 = vld [vmem:[#allocation2 + $0x188] sm:$0xff]
    %v711 = vld [vmem:[#allocation2 + $0x190] sm:$0xff]
    %v712 = vld [vmem:[#allocation2 + $0x198] sm:$0xff]
    %v713 = vld [vmem:[#allocation2 + $0x1a0] sm:$0xff]
    %v714 = vld [vmem:[#allocation2 + $0x1a8] sm:$0xff]
    %v715 = vld [vmem:[#allocation2 + $0x1b0] sm:$0x1]
    %v716 = vld [vmem:[#allocation2 + $0x1b8] sm:$0x1]
    %v717 = vld [vmem:[#allocation2 + $0x1c0] sm:$0x1]
    %v718 = vld [vmem:[#allocation2 + $0x1c8] sm:$0x1]
    %v719 = vld [vmem:[#allocation2 + $0x1d0] sm:$0x1]
    %v720 = vld [vmem:[#allocation2 + $0x1d8] sm:$0x1]
    %v721 = vld [vmem:[#allocation2 + $0x1e0] sm:$0x1]
    %v722 = vld [vmem:[#allocation2 + $0x1e8] sm:$0x1]
    %v723 = vld [vmem:[#allocation2 + $0x1f0] sm:$0x1]
    %v724 = vld [vmem:[#allocation2 + $0x1f8] sm:$0x1]
    %v725 = vld [vmem:[#allocation2 + $0x200] sm:$0x1]
    %v726 = vld [vmem:[#allocation2 + $0x208] sm:$0x1]
    %v727 = vld [vmem:[#allocation2 + $0x210] sm:$0x1]
    %v728 = vld [vmem:[#allocation2 + $0x218] sm:$0x1]
    %v729 = vld [vmem:[#allocation2 + $0x220] sm:$0x1]
    %v730 = vld [vmem:[#allocation2 + $0x228] sm:$0x1]
    %v731 = vld [vmem:[#allocation2 + $0x230] sm:$0x1]
    %v732 = vld [vmem:[#allocation2 + $0x238] sm:$0x1]
    %v733 = vld [vmem:[%s3] sm:$0xff]
    %735 = vset.pattern.permute.xlu0 0
    %736 = vperm.xlu0 %735, %v733
    %v737 = vpop.permute.xlu0 %736
    %vm739 = vcmask 203776
    %v741 = vsel %vm739, %v660, 0
    %vm743 = vcmask 1040384
    %v745 = vsel %vm743, %v715, 0
    %v748 = vsel %vm743, %v716, 0
    %v751 = vsel %vm743, %v717, 0
    %v754 = vsel %vm743, %v718, 0
    %v757 = vsel %vm743, %v719, 0
    %v760 = vsel %vm743, %v720, 0
    %v763 = vsel %vm743, %v721, 0
    %v766 = vsel %vm743, %v722, 0
    %v769 = vsel %vm743, %v723, 0
    %v772 = vsel %vm743, %v724, 0
    %v775 = vsel %vm743, %v725, 0
    %v778 = vsel %vm743, %v726, 0
    %v781 = vsel %vm743, %v727, 0
    %v784 = vsel %vm743, %v728, 0
    %v787 = vsel %vm743, %v729, 0
    %v790 = vsel %vm743, %v730, 0
    %v793 = vsel %vm743, %v731, 0
    %v796 = vsel %vm743, %v732, 0
    %798 = vmatprep.subr.mxu0 %v662
    %799 = vmatpush1.msra.mxu0 %v661
    %800 = vmatprep.subr.mxu0 %v680
    %801 = vmatpush1.msra.mxu0 %v679
    %802 = vmatprep.subr.mxu0 %v698
    %803 = vmatpush1.msra.mxu0 %v697
    %804 = vmatprep.subr.mxu0 %v748
    %805 = vmatpush1.msra.mxu0 %v745
    %806 = vmatprep.subr.mxu0 0.0
    %807 = vmatpush1.msra.mxu0 0.0
    %808 = vmatprep.subr.mxu0 0.0
    %809 = vmatpush1.msra.mxu0 0.0
    %810 = vmatprep.subr.mxu0 0.0
    %811 = vmatpush1.msra.mxu0 0.0
    %812 = vmatprep.subr.mxu0 0.0
    %813 = vmatpush1.msra.mxu0 0.0
    %814 = vmatprep.subr.mxu0 0.0
    %815 = vmatpush1.msra.mxu0 0.0
    %816 = vmatprep.subr.mxu0 0.0
    %817 = vmatpush1.msra.mxu0 0.0
    %818 = vmatprep.subr.mxu0 0.0
    %819 = vmatpush1.msra.mxu0 0.0
    %820 = vmatprep.subr.mxu0 0.0
    %821 = vmatpush1.msra.mxu0 0.0
    %822 = vmatprep.subr.mxu0 0.0
    %823 = vmatpush1.msra.mxu0 0.0
    %824 = vmatprep.subr.mxu0 0.0
    %825 = vmatpush1.msra.mxu0 0.0
    %826 = vmatprep.subr.mxu0 0.0
    %827 = vmatpush1.msra.mxu0 0.0
    %828 = vmatprep.subr.mxu0 0.0
    %829 = vmatpush1.msra.mxu0 0.0
    %830 = vmatprep.subr.mxu0 0.0
    %831 = vmatpush1.msra.mxu0 0.0
    %832 = vmatprep.subr.mxu0 0.0
    %833 = vmatpush1.msra.mxu0 0.0
    %834 = vmatprep.subr.mxu0 0.0
    %835 = vmatpush1.msra.mxu0 0.0
    %836 = vmatprep.subr.mxu0 0.0
    %837 = vmatpush1.msra.mxu0 0.0
    %838 = vmatprep.subr.mxu0 0.0
    %839 = vmatpush1.msra.mxu0 0.0
    %840 = vmatprep.subr.mxu0 0.0
    %841 = vmatpush1.msra.mxu0 0.0
    %842 = vmatprep.subr.mxu0 0.0
    %843 = vmatpush1.msra.mxu0 0.0
    %844 = vmatprep.subr.mxu0 0.0
    %845 = vmatpush1.msra.mxu0 0.0
    %846 = vmatprep.subr.mxu0 0.0
    %847 = vmatpush1.msra.mxu0 0.0
    %848 = vmatprep.subr.mxu0 0.0
    %849 = vmatpush1.msra.mxu0 0.0
    %850 = vmatprep.subr.mxu0 0.0
    %851 = vmatpush1.msra.mxu0 0.0
    %852 = vmatprep.subr.mxu0 0.0
    %853 = vmatpush1.msra.mxu0 0.0
    %854 = vmatprep.subr.mxu0 0.0
    %855 = vmatpush1.msra.mxu0 0.0
    %856 = vmatprep.subr.mxu0 0.0
    %857 = vmatpush1.msra.mxu0 0.0
    %858 = vmatprep.subr.mxu0 0.0
    %859 = vmatpush1.msra.mxu0 0.0
    %860 = vmatprep.subr.mxu0 0.0
    %861 = vmatpush1.msra.mxu0 0.0
    %862 = vmatprep.mubr.f32.mxu0 0.0
    %863 = vmatmul.mubr.f32.gmra.mrb[0].mxu0 %v741
    %v864 = vpop.f32.mrb[0].mxu0
    %v865 = vadd.f32 %v737, %v864
    %v866 = vpop.f32.mrb[0].mxu0
    %v867 = vadd.f32 %v737, %v866
    %868 = vdwg.mxu0
    %869 = vmatprep.subr.mxu0 %v664
    %870 = vmatpush1.msra.mxu0 %v663
    %871 = vmatprep.subr.mxu0 %v682
    %872 = vmatpush1.msra.mxu0 %v681
    %873 = vmatprep.subr.mxu0 %v700
    %874 = vmatpush1.msra.mxu0 %v699
    %875 = vmatprep.subr.mxu0 %v754
    %876 = vmatpush1.msra.mxu0 %v751
    %877 = vmatprep.subr.mxu0 0.0
    %878 = vmatpush1.msra.mxu0 0.0
    %879 = vmatprep.subr.mxu0 0.0
    %880 = vmatpush1.msra.mxu0 0.0
    %881 = vmatprep.subr.mxu0 0.0
    %882 = vmatpush1.msra.mxu0 0.0
    %883 = vmatprep.subr.mxu0 0.0
    %884 = vmatpush1.msra.mxu0 0.0
    %885 = vmatprep.subr.mxu0 0.0
    %886 = vmatpush1.msra.mxu0 0.0
    %887 = vmatprep.subr.mxu0 0.0
    %888 = vmatpush1.msra.mxu0 0.0
    %889 = vmatprep.subr.mxu0 0.0
    %890 = vmatpush1.msra.mxu0 0.0
    %891 = vmatprep.subr.mxu0 0.0
    %892 = vmatpush1.msra.mxu0 0.0
    %893 = vmatprep.subr.mxu0 0.0
    %894 = vmatpush1.msra.mxu0 0.0
    %895 = vmatprep.subr.mxu0 0.0
    %896 = vmatpush1.msra.mxu0 0.0
    %897 = vmatprep.subr.mxu0 0.0
    %898 = vmatpush1.msra.mxu0 0.0
    %899 = vmatprep.subr.mxu0 0.0
    %900 = vmatpush1.msra.mxu0 0.0
    %901 = vmatprep.subr.mxu0 0.0
    %902 = vmatpush1.msra.mxu0 0.0
    %903 = vmatprep.subr.mxu0 0.0
    %904 = vmatpush1.msra.mxu0 0.0
    %905 = vmatprep.subr.mxu0 0.0
    %906 = vmatpush1.msra.mxu0 0.0
    %907 = vmatprep.subr.mxu0 0.0
    %908 = vmatpush1.msra.mxu0 0.0
    %909 = vmatprep.subr.mxu0 0.0
    %910 = vmatpush1.msra.mxu0 0.0
    %911 = vmatprep.subr.mxu0 0.0
    %912 = vmatpush1.msra.mxu0 0.0
    %913 = vmatprep.subr.mxu0 0.0
    %914 = vmatpush1.msra.mxu0 0.0
    %915 = vmatprep.subr.mxu0 0.0
    %916 = vmatpush1.msra.mxu0 0.0
    %917 = vmatprep.subr.mxu0 0.0
    %918 = vmatpush1.msra.mxu0 0.0
    %919 = vmatprep.subr.mxu0 0.0
    %920 = vmatpush1.msra.mxu0 0.0
    %921 = vmatprep.subr.mxu0 0.0
    %922 = vmatpush1.msra.mxu0 0.0
    %923 = vmatprep.subr.mxu0 0.0
    %924 = vmatpush1.msra.mxu0 0.0
    %925 = vmatprep.subr.mxu0 0.0
    %926 = vmatpush1.msra.mxu0 0.0
    %927 = vmatprep.subr.mxu0 0.0
    %928 = vmatpush1.msra.mxu0 0.0
    %929 = vmatprep.subr.mxu0 0.0
    %930 = vmatpush1.msra.mxu0 0.0
    %931 = vmatprep.subr.mxu0 0.0
    %932 = vmatpush1.msra.mxu0 0.0
    %933 = vmatprep.mubr.f32.mxu0 0.0
    %934 = vmatmul.mubr.f32.gmra.mrb[0].mxu0 %v741
    %v935 = vpop.f32.mrb[0].mxu0
    %v936 = vadd.f32 %v737, %v935
    %v937 = vpop.f32.mrb[0].mxu0
    %v938 = vadd.f32 %v737, %v937
    %939 = vdwg.mxu0
    %940 = vmatprep.subr.mxu0 %v666
    %941 = vmatpush1.msra.mxu0 %v665
    %942 = vmatprep.subr.mxu0 %v684
    %943 = vmatpush1.msra.mxu0 %v683
    %944 = vmatprep.subr.mxu0 %v702
    %945 = vmatpush1.msra.mxu0 %v701
    %946 = vmatprep.subr.mxu0 %v760
    %947 = vmatpush1.msra.mxu0 %v757
    %948 = vmatprep.subr.mxu0 0.0
    %949 = vmatpush1.msra.mxu0 0.0
    %950 = vmatprep.subr.mxu0 0.0
    %951 = vmatpush1.msra.mxu0 0.0
    %952 = vmatprep.subr.mxu0 0.0
    %953 = vmatpush1.msra.mxu0 0.0
    %954 = vmatprep.subr.mxu0 0.0
    %955 = vmatpush1.msra.mxu0 0.0
    %956 = vmatprep.subr.mxu0 0.0
    %957 = vmatpush1.msra.mxu0 0.0
    %958 = vmatprep.subr.mxu0 0.0
    %959 = vmatpush1.msra.mxu0 0.0
    %960 = vmatprep.subr.mxu0 0.0
    %961 = vmatpush1.msra.mxu0 0.0
    %962 = vmatprep.subr.mxu0 0.0
    %963 = vmatpush1.msra.mxu0 0.0
    %964 = vmatprep.subr.mxu0 0.0
    %965 = vmatpush1.msra.mxu0 0.0
    %966 = vmatprep.subr.mxu0 0.0
    %967 = vmatpush1.msra.mxu0 0.0
    %968 = vmatprep.subr.mxu0 0.0
    %969 = vmatpush1.msra.mxu0 0.0
    %970 = vmatprep.subr.mxu0 0.0
    %971 = vmatpush1.msra.mxu0 0.0
    %972 = vmatprep.subr.mxu0 0.0
    %973 = vmatpush1.msra.mxu0 0.0
    %974 = vmatprep.subr.mxu0 0.0
    %975 = vmatpush1.msra.mxu0 0.0
    %976 = vmatprep.subr.mxu0 0.0
    %977 = vmatpush1.msra.mxu0 0.0
    %978 = vmatprep.subr.mxu0 0.0
    %979 = vmatpush1.msra.mxu0 0.0
    %980 = vmatprep.subr.mxu0 0.0
    %981 = vmatpush1.msra.mxu0 0.0
    %982 = vmatprep.subr.mxu0 0.0
    %983 = vmatpush1.msra.mxu0 0.0
    %984 = vmatprep.subr.mxu0 0.0
    %985 = vmatpush1.msra.mxu0 0.0
    %986 = vmatprep.subr.mxu0 0.0
    %987 = vmatpush1.msra.mxu0 0.0
    %988 = vmatprep.subr.mxu0 0.0
    %989 = vmatpush1.msra.mxu0 0.0
    %990 = vmatprep.subr.mxu0 0.0
    %991 = vmatpush1.msra.mxu0 0.0
    %992 = vmatprep.subr.mxu0 0.0
    %993 = vmatpush1.msra.mxu0 0.0
    %994 = vmatprep.subr.mxu0 0.0
    %995 = vmatpush1.msra.mxu0 0.0
    %996 = vmatprep.subr.mxu0 0.0
    %997 = vmatpush1.msra.mxu0 0.0
    %998 = vmatprep.subr.mxu0 0.0
    %999 = vmatpush1.msra.mxu0 0.0
    %1000 = vmatprep.subr.mxu0 0.0
    %1001 = vmatpush1.msra.mxu0 0.0
    %1002 = vmatprep.subr.mxu0 0.0
    %1003 = vmatpush1.msra.mxu0 0.0
    %1004 = vmatprep.mubr.f32.mxu0 0.0
    %1005 = vmatmul.mubr.f32.gmra.mrb[0].mxu0 %v741
    %v1006 = vpop.f32.mrb[0].mxu0
    %v1007 = vadd.f32 %v737, %v1006
    %v1008 = vpop.f32.mrb[0].mxu0
    %v1009 = vadd.f32 %v737, %v1008
    %1010 = vdwg.mxu0
    %1011 = vmatprep.subr.mxu0 %v668
    %1012 = vmatpush1.msra.mxu0 %v667
    %1013 = vmatprep.subr.mxu0 %v686
    %1014 = vmatpush1.msra.mxu0 %v685
    %1015 = vmatprep.subr.mxu0 %v704
    %1016 = vmatpush1.msra.mxu0 %v703
    %1017 = vmatprep.subr.mxu0 %v766
    %1018 = vmatpush1.msra.mxu0 %v763
    %1019 = vmatprep.subr.mxu0 0.0
    %1020 = vmatpush1.msra.mxu0 0.0
    %1021 = vmatprep.subr.mxu0 0.0
    %1022 = vmatpush1.msra.mxu0 0.0
    %1023 = vmatprep.subr.mxu0 0.0
    %1024 = vmatpush1.msra.mxu0 0.0
    %1025 = vmatprep.subr.mxu0 0.0
    %1026 = vmatpush1.msra.mxu0 0.0
    %1027 = vmatprep.subr.mxu0 0.0
    %1028 = vmatpush1.msra.mxu0 0.0
    %1029 = vmatprep.subr.mxu0 0.0
    %1030 = vmatpush1.msra.mxu0 0.0
    %1031 = vmatprep.subr.mxu0 0.0
    %1032 = vmatpush1.msra.mxu0 0.0
    %1033 = vmatprep.subr.mxu0 0.0
    %1034 = vmatpush1.msra.mxu0 0.0
    %1035 = vmatprep.subr.mxu0 0.0
    %1036 = vmatpush1.msra.mxu0 0.0
    %1037 = vmatprep.subr.mxu0 0.0
    %1038 = vmatpush1.msra.mxu0 0.0
    %1039 = vmatprep.subr.mxu0 0.0
    %1040 = vmatpush1.msra.mxu0 0.0
    %1041 = vmatprep.subr.mxu0 0.0
    %1042 = vmatpush1.msra.mxu0 0.0
    %1043 = vmatprep.subr.mxu0 0.0
    %1044 = vmatpush1.msra.mxu0 0.0
    %1045 = vmatprep.subr.mxu0 0.0
    %1046 = vmatpush1.msra.mxu0 0.0
    %1047 = vmatprep.subr.mxu0 0.0
    %1048 = vmatpush1.msra.mxu0 0.0
    %1049 = vmatprep.subr.mxu0 0.0
    %1050 = vmatpush1.msra.mxu0 0.0
    %1051 = vmatprep.subr.mxu0 0.0
    %1052 = vmatpush1.msra.mxu0 0.0
    %1053 = vmatprep.subr.mxu0 0.0
    %1054 = vmatpush1.msra.mxu0 0.0
    %1055 = vmatprep.subr.mxu0 0.0
    %1056 = vmatpush1.msra.mxu0 0.0
    %1057 = vmatprep.subr.mxu0 0.0
    %1058 = vmatpush1.msra.mxu0 0.0
    %1059 = vmatprep.subr.mxu0 0.0
    %1060 = vmatpush1.msra.mxu0 0.0
    %1061 = vmatprep.subr.mxu0 0.0
    %1062 = vmatpush1.msra.mxu0 0.0
    %1063 = vmatprep.subr.mxu0 0.0
    %1064 = vmatpush1.msra.mxu0 0.0
    %1065 = vmatprep.subr.mxu0 0.0
    %1066 = vmatpush1.msra.mxu0 0.0
    %1067 = vmatprep.subr.mxu0 0.0
    %1068 = vmatpush1.msra.mxu0 0.0
    %1069 = vmatprep.subr.mxu0 0.0
    %1070 = vmatpush1.msra.mxu0 0.0
    %1071 = vmatprep.subr.mxu0 0.0
    %1072 = vmatpush1.msra.mxu0 0.0
    %1073 = vmatprep.subr.mxu0 0.0
    %1074 = vmatpush1.msra.mxu0 0.0
    %1075 = vmatprep.mubr.f32.mxu0 0.0
    %1076 = vmatmul.mubr.f32.gmra.mrb[0].mxu0 %v741
    %v1077 = vpop.f32.mrb[0].mxu0
    %v1078 = vadd.f32 %v737, %v1077
    %v1079 = vpop.f32.mrb[0].mxu0
    %v1080 = vadd.f32 %v737, %v1079
    %1081 = vdwg.mxu0
    %1082 = vmatprep.subr.mxu0 %v670
    %1083 = vmatpush1.msra.mxu0 %v669
    %1084 = vmatprep.subr.mxu0 %v688
    %1085 = vmatpush1.msra.mxu0 %v687
    %1086 = vmatprep.subr.mxu0 %v706
    %1087 = vmatpush1.msra.mxu0 %v705
    %1088 = vmatprep.subr.mxu0 %v772
    %1089 = vmatpush1.msra.mxu0 %v769
    %1090 = vmatprep.subr.mxu0 0.0
    %1091 = vmatpush1.msra.mxu0 0.0
    %1092 = vmatprep.subr.mxu0 0.0
    %1093 = vmatpush1.msra.mxu0 0.0
    %1094 = vmatprep.subr.mxu0 0.0
    %1095 = vmatpush1.msra.mxu0 0.0
    %1096 = vmatprep.subr.mxu0 0.0
    %1097 = vmatpush1.msra.mxu0 0.0
    %1098 = vmatprep.subr.mxu0 0.0
    %1099 = vmatpush1.msra.mxu0 0.0
    %1100 = vmatprep.subr.mxu0 0.0
    %1101 = vmatpush1.msra.mxu0 0.0
    %1102 = vmatprep.subr.mxu0 0.0
    %1103 = vmatpush1.msra.mxu0 0.0
    %1104 = vmatprep.subr.mxu0 0.0
    %1105 = vmatpush1.msra.mxu0 0.0
    %1106 = vmatprep.subr.mxu0 0.0
    %1107 = vmatpush1.msra.mxu0 0.0
    %1108 = vmatprep.subr.mxu0 0.0
    %1109 = vmatpush1.msra.mxu0 0.0
    %1110 = vmatprep.subr.mxu0 0.0
    %1111 = vmatpush1.msra.mxu0 0.0
    %1112 = vmatprep.subr.mxu0 0.0
    %1113 = vmatpush1.msra.mxu0 0.0
    %1114 = vmatprep.subr.mxu0 0.0
    %1115 = vmatpush1.msra.mxu0 0.0
    %1116 = vmatprep.subr.mxu0 0.0
    %1117 = vmatpush1.msra.mxu0 0.0
    %1118 = vmatprep.subr.mxu0 0.0
    %1119 = vmatpush1.msra.mxu0 0.0
    %1120 = vmatprep.subr.mxu0 0.0
    %1121 = vmatpush1.msra.mxu0 0.0
    %1122 = vmatprep.subr.mxu0 0.0
    %1123 = vmatpush1.msra.mxu0 0.0
    %1124 = vmatprep.subr.mxu0 0.0
    %1125 = vmatpush1.msra.mxu0 0.0
    %1126 = vmatprep.subr.mxu0 0.0
    %1127 = vmatpush1.msra.mxu0 0.0
    %1128 = vmatprep.subr.mxu0 0.0
    %1129 = vmatpush1.msra.mxu0 0.0
    %1130 = vmatprep.subr.mxu0 0.0
    %1131 = vmatpush1.msra.mxu0 0.0
    %1132 = vmatprep.subr.mxu0 0.0
    %1133 = vmatpush1.msra.mxu0 0.0
    %1134 = vmatprep.subr.mxu0 0.0
    %1135 = vmatpush1.msra.mxu0 0.0
    %1136 = vmatprep.subr.mxu0 0.0
    %1137 = vmatpush1.msra.mxu0 0.0
    %1138 = vmatprep.subr.mxu0 0.0
    %1139 = vmatpush1.msra.mxu0 0.0
    %1140 = vmatprep.subr.mxu0 0.0
    %1141 = vmatpush1.msra.mxu0 0.0
    %1142 = vmatprep.subr.mxu0 0.0
    %1143 = vmatpush1.msra.mxu0 0.0
    %1144 = vmatprep.subr.mxu0 0.0
    %1145 = vmatpush1.msra.mxu0 0.0
    %1146 = vmatprep.mubr.f32.mxu0 0.0
    %1147 = vmatmul.mubr.f32.gmra.mrb[0].mxu0 %v741
    %v1148 = vpop.f32.mrb[0].mxu0
    %v1149 = vadd.f32 %v737, %v1148
    %v1150 = vpop.f32.mrb[0].mxu0
    %v1151 = vadd.f32 %v737, %v1150
    %1152 = vdwg.mxu0
    %1153 = vmatprep.subr.mxu0 %v672
    %1154 = vmatpush1.msra.mxu0 %v671
    %1155 = vmatprep.subr.mxu0 %v690
    %1156 = vmatpush1.msra.mxu0 %v689
    %1157 = vmatprep.subr.mxu0 %v708
    %1158 = vmatpush1.msra.mxu0 %v707
    %1159 = vmatprep.subr.mxu0 %v778
    %1160 = vmatpush1.msra.mxu0 %v775
    %1161 = vmatprep.subr.mxu0 0.0
    %1162 = vmatpush1.msra.mxu0 0.0
    %1163 = vmatprep.subr.mxu0 0.0
    %1164 = vmatpush1.msra.mxu0 0.0
    %1165 = vmatprep.subr.mxu0 0.0
    %1166 = vmatpush1.msra.mxu0 0.0
    %1167 = vmatprep.subr.mxu0 0.0
    %1168 = vmatpush1.msra.mxu0 0.0
    %1169 = vmatprep.subr.mxu0 0.0
    %1170 = vmatpush1.msra.mxu0 0.0
    %1171 = vmatprep.subr.mxu0 0.0
    %1172 = vmatpush1.msra.mxu0 0.0
    %1173 = vmatprep.subr.mxu0 0.0
    %1174 = vmatpush1.msra.mxu0 0.0
    %1175 = vmatprep.subr.mxu0 0.0
    %1176 = vmatpush1.msra.mxu0 0.0
    %1177 = vmatprep.subr.mxu0 0.0
    %1178 = vmatpush1.msra.mxu0 0.0
    %1179 = vmatprep.subr.mxu0 0.0
    %1180 = vmatpush1.msra.mxu0 0.0
    %1181 = vmatprep.subr.mxu0 0.0
    %1182 = vmatpush1.msra.mxu0 0.0
    %1183 = vmatprep.subr.mxu0 0.0
    %1184 = vmatpush1.msra.mxu0 0.0
    %1185 = vmatprep.subr.mxu0 0.0
    %1186 = vmatpush1.msra.mxu0 0.0
    %1187 = vmatprep.subr.mxu0 0.0
    %1188 = vmatpush1.msra.mxu0 0.0
    %1189 = vmatprep.subr.mxu0 0.0
    %1190 = vmatpush1.msra.mxu0 0.0
    %1191 = vmatprep.subr.mxu0 0.0
    %1192 = vmatpush1.msra.mxu0 0.0
    %1193 = vmatprep.subr.mxu0 0.0
    %1194 = vmatpush1.msra.mxu0 0.0
    %1195 = vmatprep.subr.mxu0 0.0
    %1196 = vmatpush1.msra.mxu0 0.0
    %1197 = vmatprep.subr.mxu0 0.0
    %1198 = vmatpush1.msra.mxu0 0.0
    %1199 = vmatprep.subr.mxu0 0.0
    %1200 = vmatpush1.msra.mxu0 0.0
    %1201 = vmatprep.subr.mxu0 0.0
    %1202 = vmatpush1.msra.mxu0 0.0
    %1203 = vmatprep.subr.mxu0 0.0
    %1204 = vmatpush1.msra.mxu0 0.0
    %1205 = vmatprep.subr.mxu0 0.0
    %1206 = vmatpush1.msra.mxu0 0.0
    %1207 = vmatprep.subr.mxu0 0.0
    %1208 = vmatpush1.msra.mxu0 0.0
    %1209 = vmatprep.subr.mxu0 0.0
    %1210 = vmatpush1.msra.mxu0 0.0
    %1211 = vmatprep.subr.mxu0 0.0
    %1212 = vmatpush1.msra.mxu0 0.0
    %1213 = vmatprep.subr.mxu0 0.0
    %1214 = vmatpush1.msra.mxu0 0.0
    %1215 = vmatprep.subr.mxu0 0.0
    %1216 = vmatpush1.msra.mxu0 0.0
    %1217 = vmatprep.mubr.f32.mxu0 0.0
    %1218 = vmatmul.mubr.f32.gmra.mrb[0].mxu0 %v741
    %v1219 = vpop.f32.mrb[0].mxu0
    %v1220 = vadd.f32 %v737, %v1219
    %v1221 = vpop.f32.mrb[0].mxu0
    %v1222 = vadd.f32 %v737, %v1221
    %1223 = vdwg.mxu0
    %1224 = vmatprep.subr.mxu0 %v674
    %1225 = vmatpush1.msra.mxu0 %v673
    %1226 = vmatprep.subr.mxu0 %v692
    %1227 = vmatpush1.msra.mxu0 %v691
    %1228 = vmatprep.subr.mxu0 %v710
    %1229 = vmatpush1.msra.mxu0 %v709
    %1230 = vmatprep.subr.mxu0 %v784
    %1231 = vmatpush1.msra.mxu0 %v781
    %1232 = vmatprep.subr.mxu0 0.0
    %1233 = vmatpush1.msra.mxu0 0.0
    %1234 = vmatprep.subr.mxu0 0.0
    %1235 = vmatpush1.msra.mxu0 0.0
    %1236 = vmatprep.subr.mxu0 0.0
    %1237 = vmatpush1.msra.mxu0 0.0
    %1238 = vmatprep.subr.mxu0 0.0
    %1239 = vmatpush1.msra.mxu0 0.0
    %1240 = vmatprep.subr.mxu0 0.0
    %1241 = vmatpush1.msra.mxu0 0.0
    %1242 = vmatprep.subr.mxu0 0.0
    %1243 = vmatpush1.msra.mxu0 0.0
    %1244 = vmatprep.subr.mxu0 0.0
    %1245 = vmatpush1.msra.mxu0 0.0
    %1246 = vmatprep.subr.mxu0 0.0
    %1247 = vmatpush1.msra.mxu0 0.0
    %1248 = vmatprep.subr.mxu0 0.0
    %1249 = vmatpush1.msra.mxu0 0.0
    %1250 = vmatprep.subr.mxu0 0.0
    %1251 = vmatpush1.msra.mxu0 0.0
    %1252 = vmatprep.subr.mxu0 0.0
    %1253 = vmatpush1.msra.mxu0 0.0
    %1254 = vmatprep.subr.mxu0 0.0
    %1255 = vmatpush1.msra.mxu0 0.0
    %1256 = vmatprep.subr.mxu0 0.0
    %1257 = vmatpush1.msra.mxu0 0.0
    %1258 = vmatprep.subr.mxu0 0.0
    %1259 = vmatpush1.msra.mxu0 0.0
    %1260 = vmatprep.subr.mxu0 0.0
    %1261 = vmatpush1.msra.mxu0 0.0
    %1262 = vmatprep.subr.mxu0 0.0
    %1263 = vmatpush1.msra.mxu0 0.0
    %1264 = vmatprep.subr.mxu0 0.0
    %1265 = vmatpush1.msra.mxu0 0.0
    %1266 = vmatprep.subr.mxu0 0.0
    %1267 = vmatpush1.msra.mxu0 0.0
    %1268 = vmatprep.subr.mxu0 0.0
    %1269 = vmatpush1.msra.mxu0 0.0
    %1270 = vmatprep.subr.mxu0 0.0
    %1271 = vmatpush1.msra.mxu0 0.0
    %1272 = vmatprep.subr.mxu0 0.0
    %1273 = vmatpush1.msra.mxu0 0.0
    %1274 = vmatprep.subr.mxu0 0.0
    %1275 = vmatpush1.msra.mxu0 0.0
    %1276 = vmatprep.subr.mxu0 0.0
    %1277 = vmatpush1.msra.mxu0 0.0
    %1278 = vmatprep.subr.mxu0 0.0
    %1279 = vmatpush1.msra.mxu0 0.0
    %1280 = vmatprep.subr.mxu0 0.0
    %1281 = vmatpush1.msra.mxu0 0.0
    %1282 = vmatprep.subr.mxu0 0.0
    %1283 = vmatpush1.msra.mxu0 0.0
    %1284 = vmatprep.subr.mxu0 0.0
    %1285 = vmatpush1.msra.mxu0 0.0
    %1286 = vmatprep.subr.mxu0 0.0
    %1287 = vmatpush1.msra.mxu0 0.0
    %1288 = vmatprep.mubr.f32.mxu0 0.0
    %1289 = vmatmul.mubr.f32.gmra.mrb[0].mxu0 %v741
    %v1290 = vpop.f32.mrb[0].mxu0
    %v1291 = vadd.f32 %v737, %v1290
    %v1292 = vpop.f32.mrb[0].mxu0
    %v1293 = vadd.f32 %v737, %v1292
    %1294 = vdwg.mxu0
    %1295 = vmatprep.subr.mxu0 %v676
    %1296 = vmatpush1.msra.mxu0 %v675
    %1297 = vmatprep.subr.mxu0 %v694
    %1298 = vmatpush1.msra.mxu0 %v693
    %1299 = vmatprep.subr.mxu0 %v712
    %1300 = vmatpush1.msra.mxu0 %v711
    %1301 = vmatprep.subr.mxu0 %v790
    %1302 = vmatpush1.msra.mxu0 %v787
    %1303 = vmatprep.subr.mxu0 0.0
    %1304 = vmatpush1.msra.mxu0 0.0
    %1305 = vmatprep.subr.mxu0 0.0
    %1306 = vmatpush1.msra.mxu0 0.0
    %1307 = vmatprep.subr.mxu0 0.0
    %1308 = vmatpush1.msra.mxu0 0.0
    %1309 = vmatprep.subr.mxu0 0.0
    %1310 = vmatpush1.msra.mxu0 0.0
    %1311 = vmatprep.subr.mxu0 0.0
    %1312 = vmatpush1.msra.mxu0 0.0
    %1313 = vmatprep.subr.mxu0 0.0
    %1314 = vmatpush1.msra.mxu0 0.0
    %1315 = vmatprep.subr.mxu0 0.0
    %1316 = vmatpush1.msra.mxu0 0.0
    %1317 = vmatprep.subr.mxu0 0.0
    %1318 = vmatpush1.msra.mxu0 0.0
    %1319 = vmatprep.subr.mxu0 0.0
    %1320 = vmatpush1.msra.mxu0 0.0
    %1321 = vmatprep.subr.mxu0 0.0
    %1322 = vmatpush1.msra.mxu0 0.0
    %1323 = vmatprep.subr.mxu0 0.0
    %1324 = vmatpush1.msra.mxu0 0.0
    %1325 = vmatprep.subr.mxu0 0.0
    %1326 = vmatpush1.msra.mxu0 0.0
    %1327 = vmatprep.subr.mxu0 0.0
    %1328 = vmatpush1.msra.mxu0 0.0
    %1329 = vmatprep.subr.mxu0 0.0
    %1330 = vmatpush1.msra.mxu0 0.0
    %1331 = vmatprep.subr.mxu0 0.0
    %1332 = vmatpush1.msra.mxu0 0.0
    %1333 = vmatprep.subr.mxu0 0.0
    %1334 = vmatpush1.msra.mxu0 0.0
    %1335 = vmatprep.subr.mxu0 0.0
    %1336 = vmatpush1.msra.mxu0 0.0
    %1337 = vmatprep.subr.mxu0 0.0
    %1338 = vmatpush1.msra.mxu0 0.0
    %1339 = vmatprep.subr.mxu0 0.0
    %1340 = vmatpush1.msra.mxu0 0.0
    %1341 = vmatprep.subr.mxu0 0.0
    %1342 = vmatpush1.msra.mxu0 0.0
    %1343 = vmatprep.subr.mxu0 0.0
    %1344 = vmatpush1.msra.mxu0 0.0
    %1345 = vmatprep.subr.mxu0 0.0
    %1346 = vmatpush1.msra.mxu0 0.0
    %1347 = vmatprep.subr.mxu0 0.0
    %1348 = vmatpush1.msra.mxu0 0.0
    %1349 = vmatprep.subr.mxu0 0.0
    %1350 = vmatpush1.msra.mxu0 0.0
    %1351 = vmatprep.subr.mxu0 0.0
    %1352 = vmatpush1.msra.mxu0 0.0
    %1353 = vmatprep.subr.mxu0 0.0
    %1354 = vmatpush1.msra.mxu0 0.0
    %1355 = vmatprep.subr.mxu0 0.0
    %1356 = vmatpush1.msra.mxu0 0.0
    %1357 = vmatprep.subr.mxu0 0.0
    %1358 = vmatpush1.msra.mxu0 0.0
    %1359 = vmatprep.mubr.f32.mxu0 0.0
    %1360 = vmatmul.mubr.f32.gmra.mrb[0].mxu0 %v741
    %v1361 = vpop.f32.mrb[0].mxu0
    %v1362 = vadd.f32 %v737, %v1361
    %v1363 = vpop.f32.mrb[0].mxu0
    %v1364 = vadd.f32 %v737, %v1363
    %1365 = vdwg.mxu0
    %1366 = vmatprep.subr.mxu0 %v678
    %1367 = vmatpush1.msra.mxu0 %v677
    %1368 = vmatprep.subr.mxu0 %v696
    %1369 = vmatpush1.msra.mxu0 %v695
    %1370 = vmatprep.subr.mxu0 %v714
    %1371 = vmatpush1.msra.mxu0 %v713
    %1372 = vmatprep.subr.mxu0 %v796
    %1373 = vmatpush1.msra.mxu0 %v793
    %1374 = vmatprep.subr.mxu0 0.0
    %1375 = vmatpush1.msra.mxu0 0.0
    %1376 = vmatprep.subr.mxu0 0.0
    %1377 = vmatpush1.msra.mxu0 0.0
    %1378 = vmatprep.subr.mxu0 0.0
    %1379 = vmatpush1.msra.mxu0 0.0
    %1380 = vmatprep.subr.mxu0 0.0
    %1381 = vmatpush1.msra.mxu0 0.0
    %1382 = vmatprep.subr.mxu0 0.0
    %1383 = vmatpush1.msra.mxu0 0.0
    %1384 = vmatprep.subr.mxu0 0.0
    %1385 = vmatpush1.msra.mxu0 0.0
    %1386 = vmatprep.subr.mxu0 0.0
    %1387 = vmatpush1.msra.mxu0 0.0
    %1388 = vmatprep.subr.mxu0 0.0
    %1389 = vmatpush1.msra.mxu0 0.0
    %1390 = vmatprep.subr.mxu0 0.0
    %1391 = vmatpush1.msra.mxu0 0.0
    %1392 = vmatprep.subr.mxu0 0.0
    %1393 = vmatpush1.msra.mxu0 0.0
    %1394 = vmatprep.subr.mxu0 0.0
    %1395 = vmatpush1.msra.mxu0 0.0
    %1396 = vmatprep.subr.mxu0 0.0
    %1397 = vmatpush1.msra.mxu0 0.0
    %1398 = vmatprep.subr.mxu0 0.0
    %1399 = vmatpush1.msra.mxu0 0.0
    %1400 = vmatprep.subr.mxu0 0.0
    %1401 = vmatpush1.msra.mxu0 0.0
    %1402 = vmatprep.subr.mxu0 0.0
    %1403 = vmatpush1.msra.mxu0 0.0
    %1404 = vmatprep.subr.mxu0 0.0
    %1405 = vmatpush1.msra.mxu0 0.0
    %1406 = vmatprep.subr.mxu0 0.0
    %1407 = vmatpush1.msra.mxu0 0.0
    %1408 = vmatprep.subr.mxu0 0.0
    %1409 = vmatpush1.msra.mxu0 0.0
    %1410 = vmatprep.subr.mxu0 0.0
    %1411 = vmatpush1.msra.mxu0 0.0
    %1412 = vmatprep.subr.mxu0 0.0
    %1413 = vmatpush1.msra.mxu0 0.0
    %1414 = vmatprep.subr.mxu0 0.0
    %1415 = vmatpush1.msra.mxu0 0.0
    %1416 = vmatprep.subr.mxu0 0.0
    %1417 = vmatpush1.msra.mxu0 0.0
    %1418 = vmatprep.subr.mxu0 0.0
    %1419 = vmatpush1.msra.mxu0 0.0
    %1420 = vmatprep.subr.mxu0 0.0
    %1421 = vmatpush1.msra.mxu0 0.0
    %1422 = vmatprep.subr.mxu0 0.0
    %1423 = vmatpush1.msra.mxu0 0.0
    %1424 = vmatprep.subr.mxu0 0.0
    %1425 = vmatpush1.msra.mxu0 0.0
    %1426 = vmatprep.subr.mxu0 0.0
    %1427 = vmatpush1.msra.mxu0 0.0
    %1428 = vmatprep.subr.mxu0 0.0
    %1429 = vmatpush1.msra.mxu0 0.0
    %1430 = vmatprep.mubr.f32.mxu0 0.0
    %1431 = vmatmul.mubr.f32.gmra.mrb[0].mxu0 %v741
    %v1432 = vpop.f32.mrb[0].mxu0
    %v1433 = vadd.f32 %v737, %v1432
    %v1434 = vpop.f32.mrb[0].mxu0
    %v1435 = vadd.f32 %v737, %v1434
    %1436 = vdwg.mxu0
    %v1437 = vlaneseq
    %v1438 = vand.u32 %v1437, 127
    %v1439 = vadd.s32 %v1438, 128
    %v1440 = vadd.s32 %v1438, 256
    %v1441 = vadd.s32 %v1438, 384
    %v1442 = vadd.s32 %v1438, 512
    %v1443 = vadd.s32 %v1438, 640
    %v1444 = vadd.s32 %v1438, 768
    %v1445 = vadd.s32 %v1438, 896
    %v1446 = vadd.s32 %v1438, 1024
    %v1447 = vadd.s32 %v1438, 1152
    %v1448 = vadd.s32 %v1438, 1280
    %v1449 = vadd.s32 %v1438, 1408
    %v1450 = vadd.s32 %v1438, 1536
    %v1451 = vadd.s32 %v1438, 1664
    %v1452 = vadd.s32 %v1438, 1792
    %v1453 = vadd.s32 %v1438, 1920
    %v1454 = vadd.s32 %v1438, 2048
    %v1455 = vadd.s32 %v1438, 2176
    %vm1456 = vcmp.lt.s32.totalorder %v1438, 2048
    %vm1457 = vcmp.lt.s32.totalorder %v1439, 2048
    %vm1458 = vcmp.lt.s32.totalorder %v1440, 2048
    %vm1459 = vcmp.lt.s32.totalorder %v1441, 2048
    %vm1460 = vcmp.lt.s32.totalorder %v1442, 2048
    %vm1461 = vcmp.lt.s32.totalorder %v1443, 2048
    %vm1462 = vcmp.lt.s32.totalorder %v1444, 2048
    %vm1463 = vcmp.lt.s32.totalorder %v1445, 2048
    %vm1464 = vcmp.lt.s32.totalorder %v1446, 2048
    %vm1465 = vcmp.lt.s32.totalorder %v1447, 2048
    %vm1466 = vcmp.lt.s32.totalorder %v1448, 2048
    %vm1467 = vcmp.lt.s32.totalorder %v1449, 2048
    %vm1468 = vcmp.lt.s32.totalorder %v1450, 2048
    %vm1469 = vcmp.lt.s32.totalorder %v1451, 2048
    %vm1470 = vcmp.lt.s32.totalorder %v1452, 2048
    %vm1471 = vcmp.lt.s32.totalorder %v1453, 2048
    %vm1472 = vcmp.lt.s32.totalorder %v1454, 2048
    %vm1473 = vcmp.lt.s32.totalorder %v1455, 2048
    %v1474 = vand.u32 %v1438, 31
    %v1475 = vand.u32 %v1439, 31
    %v1476 = vand.u32 %v1440, 31
    %v1477 = vand.u32 %v1441, 31
    %v1478 = vand.u32 %v1442, 31
    %v1479 = vand.u32 %v1443, 31
    %v1480 = vand.u32 %v1444, 31
    %v1481 = vand.u32 %v1445, 31
    %v1482 = vand.u32 %v1446, 31
    %v1483 = vand.u32 %v1447, 31
    %v1484 = vand.u32 %v1448, 31
    %v1485 = vand.u32 %v1449, 31
    %v1486 = vand.u32 %v1450, 31
    %v1487 = vand.u32 %v1451, 31
    %v1488 = vand.u32 %v1452, 31
    %v1489 = vand.u32 %v1453, 31
    %v1490 = vand.u32 %v1454, 31
    %v1491 = vand.u32 %v1455, 31
    %vm1492 = vcmp.lt.s32.totalorder %v1474, 28
    %vm1493 = vcmp.lt.s32.totalorder %v1475, 28
    %vm1494 = vcmp.lt.s32.totalorder %v1476, 28
    %vm1495 = vcmp.lt.s32.totalorder %v1477, 28
    %vm1496 = vcmp.lt.s32.totalorder %v1478, 28
    %vm1497 = vcmp.lt.s32.totalorder %v1479, 28
    %vm1498 = vcmp.lt.s32.totalorder %v1480, 28
    %vm1499 = vcmp.lt.s32.totalorder %v1481, 28
    %vm1500 = vcmp.lt.s32.totalorder %v1482, 28
    %vm1501 = vcmp.lt.s32.totalorder %v1483, 28
    %vm1502 = vcmp.lt.s32.totalorder %v1484, 28
    %vm1503 = vcmp.lt.s32.totalorder %v1485, 28
    %vm1504 = vcmp.lt.s32.totalorder %v1486, 28
    %vm1505 = vcmp.lt.s32.totalorder %v1487, 28
    %vm1506 = vcmp.lt.s32.totalorder %v1488, 28
    %vm1507 = vcmp.lt.s32.totalorder %v1489, 28
    %vm1508 = vcmp.lt.s32.totalorder %v1490, 28
    %vm1509 = vcmp.lt.s32.totalorder %v1491, 28
    %vm1510 = vmand %vm1456, %vm1492
    %vm1511 = vmand %vm1457, %vm1493
    %vm1512 = vmand %vm1458, %vm1494
    %vm1513 = vmand %vm1459, %vm1495
    %vm1514 = vmand %vm1460, %vm1496
    %vm1515 = vmand %vm1461, %vm1497
    %vm1516 = vmand %vm1462, %vm1498
    %vm1517 = vmand %vm1463, %vm1499
    %vm1518 = vmand %vm1464, %vm1500
    %vm1519 = vmand %vm1465, %vm1501
    %vm1520 = vmand %vm1466, %vm1502
    %vm1521 = vmand %vm1467, %vm1503
    %vm1522 = vmand %vm1468, %vm1504
    %vm1523 = vmand %vm1469, %vm1505
    %vm1524 = vmand %vm1470, %vm1506
    %vm1525 = vmand %vm1471, %vm1507
    %vm1526 = vmand %vm1472, %vm1508
    %vm1527 = vmand %vm1473, %vm1509
    %v1528 = vshra.s32 %v1438, 5
    %v1529 = vshra.s32 %v1439, 5
    %v1530 = vshra.s32 %v1440, 5
    %v1531 = vshra.s32 %v1441, 5
    %v1532 = vshra.s32 %v1442, 5
    %v1533 = vshra.s32 %v1443, 5
    %v1534 = vshra.s32 %v1444, 5
    %v1535 = vshra.s32 %v1445, 5
    %v1536 = vshra.s32 %v1446, 5
    %v1537 = vshra.s32 %v1447, 5
    %v1538 = vshra.s32 %v1448, 5
    %v1539 = vshra.s32 %v1449, 5
    %v1540 = vshra.s32 %v1450, 5
    %v1541 = vshra.s32 %v1451, 5
    %v1542 = vshra.s32 %v1452, 5
    %v1543 = vshra.s32 %v1453, 5
    %v1544 = vshra.s32 %v1454, 5
    %v1545 = vshra.s32 %v1455, 5
    %v1546 = vand.u32 %v1528, 31
    %v1547 = vand.u32 %v1529, 31
    %v1548 = vand.u32 %v1530, 31
    %v1549 = vand.u32 %v1531, 31
    %v1550 = vand.u32 %v1532, 31
    %v1551 = vand.u32 %v1533, 31
    %v1552 = vand.u32 %v1534, 31
    %v1553 = vand.u32 %v1535, 31
    %v1554 = vand.u32 %v1536, 31
    %v1555 = vand.u32 %v1537, 31
    %v1556 = vand.u32 %v1538, 31
    %v1557 = vand.u32 %v1539, 31
    %v1558 = vand.u32 %v1540, 31
    %v1559 = vand.u32 %v1541, 31
    %v1560 = vand.u32 %v1542, 31
    %v1561 = vand.u32 %v1543, 31
    %v1562 = vand.u32 %v1544, 31
    %v1563 = vand.u32 %v1545, 31
    %vm1564 = vcmp.lt.s32.totalorder %v1546, 28
    %vm1565 = vcmp.lt.s32.totalorder %v1547, 28
    %vm1566 = vcmp.lt.s32.totalorder %v1548, 28
    %vm1567 = vcmp.lt.s32.totalorder %v1549, 28
    %vm1568 = vcmp.lt.s32.totalorder %v1550, 28
    %vm1569 = vcmp.lt.s32.totalorder %v1551, 28
    %vm1570 = vcmp.lt.s32.totalorder %v1552, 28
    %vm1571 = vcmp.lt.s32.totalorder %v1553, 28
    %vm1572 = vcmp.lt.s32.totalorder %v1554, 28
    %vm1573 = vcmp.lt.s32.totalorder %v1555, 28
    %vm1574 = vcmp.lt.s32.totalorder %v1556, 28
    %vm1575 = vcmp.lt.s32.totalorder %v1557, 28
    %vm1576 = vcmp.lt.s32.totalorder %v1558, 28
    %vm1577 = vcmp.lt.s32.totalorder %v1559, 28
    %vm1578 = vcmp.lt.s32.totalorder %v1560, 28
    %vm1579 = vcmp.lt.s32.totalorder %v1561, 28
    %vm1580 = vcmp.lt.s32.totalorder %v1562, 28
    %vm1581 = vcmp.lt.s32.totalorder %v1563, 28
    %vm1582 = vmand %vm1510, %vm1564
    %vm1583 = vmand %vm1511, %vm1565
    %vm1584 = vmand %vm1512, %vm1566
    %vm1585 = vmand %vm1513, %vm1567
    %vm1586 = vmand %vm1514, %vm1568
    %vm1587 = vmand %vm1515, %vm1569
    %vm1588 = vmand %vm1516, %vm1570
    %vm1589 = vmand %vm1517, %vm1571
    %vm1590 = vmand %vm1518, %vm1572
    %vm1591 = vmand %vm1519, %vm1573
    %vm1592 = vmand %vm1520, %vm1574
    %vm1593 = vmand %vm1521, %vm1575
    %vm1594 = vmand %vm1522, %vm1576
    %vm1595 = vmand %vm1523, %vm1577
    %vm1596 = vmand %vm1524, %vm1578
    %vm1597 = vmand %vm1525, %vm1579
    %vm1598 = vmand %vm1526, %vm1580
    %vm1599 = vmand %vm1527, %vm1581
    %v1600 = vsel %vm1582, 1, 0
    %v1601 = vsel %vm1583, 1, 0
    %v1602 = vsel %vm1584, 1, 0
    %v1603 = vsel %vm1585, 1, 0
    %v1604 = vsel %vm1586, 1, 0
    %v1605 = vsel %vm1587, 1, 0
    %v1606 = vsel %vm1588, 1, 0
    %v1607 = vsel %vm1589, 1, 0
    %v1608 = vsel %vm1590, 1, 0
    %v1609 = vsel %vm1591, 1, 0
    %v1610 = vsel %vm1592, 1, 0
    %v1611 = vsel %vm1593, 1, 0
    %v1612 = vsel %vm1594, 1, 0
    %v1613 = vsel %vm1595, 1, 0
    %v1614 = vsel %vm1596, 1, 0
    %v1615 = vsel %vm1597, 1, 0
    %v1616 = vsel %vm1598, 1, 0
    %v1617 = vsel %vm1599, 1, 0
    %v1618 = vcvt.s32.f32 %v1600
    %v1619 = vcvt.s32.f32 %v1601
    %v1620 = vcvt.s32.f32 %v1602
    %v1621 = vcvt.s32.f32 %v1603
    %v1622 = vcvt.s32.f32 %v1604
    %v1623 = vcvt.s32.f32 %v1605
    %v1624 = vcvt.s32.f32 %v1606
    %v1625 = vcvt.s32.f32 %v1607
    %v1626 = vcvt.s32.f32 %v1608
    %v1627 = vcvt.s32.f32 %v1609
    %v1628 = vcvt.s32.f32 %v1610
    %v1629 = vcvt.s32.f32 %v1611
    %v1630 = vcvt.s32.f32 %v1612
    %v1631 = vcvt.s32.f32 %v1613
    %v1632 = vcvt.s32.f32 %v1614
    %v1633 = vcvt.s32.f32 %v1615
    %v1634 = vcvt.s32.f32 %v1616
    %v1635 = vcvt.s32.f32 %v1617
    %v1636 = vmul.f32 %v865, %v1618
    %v1637 = vmul.f32 %v867, %v1619
    %v1638 = vmul.f32 %v936, %v1620
    %v1639 = vmul.f32 %v938, %v1621
    %v1640 = vmul.f32 %v1007, %v1622
    %v1641 = vmul.f32 %v1009, %v1623
    %v1642 = vmul.f32 %v1078, %v1624
    %v1643 = vmul.f32 %v1080, %v1625
    %v1644 = vmul.f32 %v1149, %v1626
    %v1645 = vmul.f32 %v1151, %v1627
    %v1646 = vmul.f32 %v1220, %v1628
    %v1647 = vmul.f32 %v1222, %v1629
    %v1648 = vmul.f32 %v1291, %v1630
    %v1649 = vmul.f32 %v1293, %v1631
    %v1650 = vmul.f32 %v1362, %v1632
    %v1651 = vmul.f32 %v1364, %v1633
    %v1652 = vmul.f32 %v1433, %v1634
    %v1653 = vmul.f32 %v1435, %v1635
    %v1654 = vadd.f32 %v1636, %v1637
    %v1655 = vadd.f32 %v1654, %v1638
    %v1656 = vadd.f32 %v1655, %v1639
    %v1657 = vadd.f32 %v1656, %v1640
    %v1658 = vadd.f32 %v1657, %v1641
    %v1659 = vadd.f32 %v1658, %v1642
    %v1660 = vadd.f32 %v1659, %v1643
    %v1661 = vadd.f32 %v1660, %v1644
    %v1662 = vadd.f32 %v1661, %v1645
    %v1663 = vadd.f32 %v1662, %v1646
    %v1664 = vadd.f32 %v1663, %v1647
    %v1665 = vadd.f32 %v1664, %v1648
    %v1666 = vadd.f32 %v1665, %v1649
    %v1667 = vadd.f32 %v1666, %v1650
    %v1668 = vadd.f32 %v1667, %v1651
    %v1669 = vadd.f32 %v1668, %v1652
    %v1670 = vadd.f32 %v1669, %v1653
    %1671 = vadd.xlane.f32.xlu0 %v1670
    %v1672 = vpop.xlane.xlu0 %1671
    %v1673 = vmul.f32 %v1672, 0.0006377551
    %v1674 = vmul.f32 %v1636, %v865
    %v1675 = vmul.f32 %v1637, %v867
    %v1676 = vmul.f32 %v1638, %v936
    %v1677 = vmul.f32 %v1639, %v938
    %v1678 = vmul.f32 %v1640, %v1007
    %v1679 = vmul.f32 %v1641, %v1009
    %v1680 = vmul.f32 %v1642, %v1078
    %v1681 = vmul.f32 %v1643, %v1080
    %v1682 = vmul.f32 %v1644, %v1149
    %v1683 = vmul.f32 %v1645, %v1151
    %v1684 = vmul.f32 %v1646, %v1220
    %v1685 = vmul.f32 %v1647, %v1222
    %v1686 = vmul.f32 %v1648, %v1291
    %v1687 = vmul.f32 %v1649, %v1293
    %v1688 = vmul.f32 %v1650, %v1362
    %v1689 = vmul.f32 %v1651, %v1364
    %v1690 = vmul.f32 %v1652, %v1433
    %v1691 = vmul.f32 %v1653, %v1435
    %v1692 = vadd.f32 %v1674, %v1675
    %v1693 = vadd.f32 %v1692, %v1676
    %v1694 = vadd.f32 %v1693, %v1677
    %v1695 = vadd.f32 %v1694, %v1678
    %v1696 = vadd.f32 %v1695, %v1679
    %v1697 = vadd.f32 %v1696, %v1680
    %v1698 = vadd.f32 %v1697, %v1681
    %v1699 = vadd.f32 %v1698, %v1682
    %v1700 = vadd.f32 %v1699, %v1683
    %v1701 = vadd.f32 %v1700, %v1684
    %v1702 = vadd.f32 %v1701, %v1685
    %v1703 = vadd.f32 %v1702, %v1686
    %v1704 = vadd.f32 %v1703, %v1687
    %v1705 = vadd.f32 %v1704, %v1688
    %v1706 = vadd.f32 %v1705, %v1689
    %v1707 = vadd.f32 %v1706, %v1690
    %v1708 = vadd.f32 %v1707, %v1691
    %1709 = vadd.xlane.f32.xlu0 %v1708
    %v1710 = vpop.xlane.xlu0 %1709
    %v1711 = vmul.f32 %v1710, 0.0006377551
    %v1712 = vmul.f32 %v1673, %v1673
    %v1713 = vsub.f32 %v1711, %v1712
    %v1714 = vsub.f32 %v865, %v1673
    %v1715 = vsub.f32 %v867, %v1673
    %v1716 = vsub.f32 %v936, %v1673
    %v1717 = vsub.f32 %v938, %v1673
    %v1718 = vsub.f32 %v1007, %v1673
    %v1719 = vsub.f32 %v1009, %v1673
    %v1720 = vsub.f32 %v1078, %v1673
    %v1721 = vsub.f32 %v1080, %v1673
    %v1722 = vsub.f32 %v1149, %v1673
    %v1723 = vsub.f32 %v1151, %v1673
    %v1724 = vsub.f32 %v1220, %v1673
    %v1725 = vsub.f32 %v1222, %v1673
    %v1726 = vsub.f32 %v1291, %v1673
    %v1727 = vsub.f32 %v1293, %v1673
    %v1728 = vsub.f32 %v1362, %v1673
    %v1729 = vsub.f32 %v1364, %v1673
    %v1730 = vsub.f32 %v1433, %v1673
    %v1731 = vsub.f32 %v1435, %v1673
    %1732 = vset.pattern.permute.xlu0 1
    %1733 = vperm.xlu0 %1732, %v733
    %v1734 = vpop.permute.xlu0 %1733
    %v1736 = vmul.f32 %v1734, %v1714
    %v1737 = vmul.f32 %v1734, %v1715
    %v1738 = vmul.f32 %v1734, %v1716
    %v1739 = vmul.f32 %v1734, %v1717
    %v1740 = vmul.f32 %v1734, %v1718
    %v1741 = vmul.f32 %v1734, %v1719
    %v1742 = vmul.f32 %v1734, %v1720
    %v1743 = vmul.f32 %v1734, %v1721
    %v1744 = vmul.f32 %v1734, %v1722
    %v1745 = vmul.f32 %v1734, %v1723
    %v1746 = vmul.f32 %v1734, %v1724
    %v1747 = vmul.f32 %v1734, %v1725
    %v1748 = vmul.f32 %v1734, %v1726
    %v1749 = vmul.f32 %v1734, %v1727
    %v1750 = vmul.f32 %v1734, %v1728
    %v1751 = vmul.f32 %v1734, %v1729
    %v1752 = vmul.f32 %v1734, %v1730
    %v1753 = vmul.f32 %v1734, %v1731
    %v1754 = vadd.f32 %v1713, 1e-05
    %v1755 = vrsqrt.pop %v1754
    %v1756 = vmul.f32 %v1736, %v1755
    %v1757 = vmul.f32 %v1737, %v1755
    %v1758 = vmul.f32 %v1738, %v1755
    %v1759 = vmul.f32 %v1739, %v1755
    %v1760 = vmul.f32 %v1740, %v1755
    %v1761 = vmul.f32 %v1741, %v1755
    %v1762 = vmul.f32 %v1742, %v1755
    %v1763 = vmul.f32 %v1743, %v1755
    %v1764 = vmul.f32 %v1744, %v1755
    %v1765 = vmul.f32 %v1745, %v1755
    %v1766 = vmul.f32 %v1746, %v1755
    %v1767 = vmul.f32 %v1747, %v1755
    %v1768 = vmul.f32 %v1748, %v1755
    %v1769 = vmul.f32 %v1749, %v1755
    %v1770 = vmul.f32 %v1750, %v1755
    %v1771 = vmul.f32 %v1751, %v1755
    %v1772 = vmul.f32 %v1752, %v1755
    %v1773 = vmul.f32 %v1753, %v1755
    %1774 = vset.pattern.permute.xlu0 2
    %1775 = vperm.xlu0 %1774, %v733
    %v1776 = vpop.permute.xlu0 %1775
    %v1778 = vadd.f32 %v1756, %v1776
    %v1779 = vadd.f32 %v1757, %v1776
    %v1780 = vadd.f32 %v1758, %v1776
    %v1781 = vadd.f32 %v1759, %v1776
    %v1782 = vadd.f32 %v1760, %v1776
    %v1783 = vadd.f32 %v1761, %v1776
    %v1784 = vadd.f32 %v1762, %v1776
    %v1785 = vadd.f32 %v1763, %v1776
    %v1786 = vadd.f32 %v1764, %v1776
    %v1787 = vadd.f32 %v1765, %v1776
    %v1788 = vadd.f32 %v1766, %v1776
    %v1789 = vadd.f32 %v1767, %v1776
    %v1790 = vadd.f32 %v1768, %v1776
    %v1791 = vadd.f32 %v1769, %v1776
    %v1792 = vadd.f32 %v1770, %v1776
    %v1793 = vadd.f32 %v1771, %v1776
    %v1794 = vadd.f32 %v1772, %v1776
    %v1795 = vadd.f32 %v1773, %v1776
    %v1796 = vtanh.pop %v1778
    %v1797 = vtanh.pop %v1779
    %v1798 = vtanh.pop %v1780
    %v1799 = vtanh.pop %v1781
    %v1800 = vtanh.pop %v1782
    %v1801 = vtanh.pop %v1783
    %v1802 = vtanh.pop %v1784
    %v1803 = vtanh.pop %v1785
    %v1804 = vtanh.pop %v1786
    %v1805 = vtanh.pop %v1787
    %v1806 = vtanh.pop %v1788
    %v1807 = vtanh.pop %v1789
    %v1808 = vtanh.pop %v1790
    %v1809 = vtanh.pop %v1791
    %v1810 = vtanh.pop %v1792
    %v1811 = vtanh.pop %v1793
    %v1812 = vtanh.pop %v1794
    %v1813 = vtanh.pop %v1795
    %1832 = vrot.lane.b32.xlu0 %v1796, 127
    %v1833 = vpop.permute.xlu0 %1832
    %1834 = vrot.lane.b32.xlu0 %v1797, 127
    %v1835 = vpop.permute.xlu0 %1834
    %1836 = vrot.lane.b32.xlu0 %v1798, 127
    %v1837 = vpop.permute.xlu0 %1836
    %1838 = vrot.lane.b32.xlu0 %v1799, 127
    %v1839 = vpop.permute.xlu0 %1838
    %1840 = vrot.lane.b32.xlu0 %v1800, 127
    %v1841 = vpop.permute.xlu0 %1840
    %1842 = vrot.lane.b32.xlu0 %v1801, 127
    %v1843 = vpop.permute.xlu0 %1842
    %1844 = vrot.lane.b32.xlu0 %v1802, 127
    %v1845 = vpop.permute.xlu0 %1844
    %1846 = vrot.lane.b32.xlu0 %v1803, 127
    %v1847 = vpop.permute.xlu0 %1846
    %1848 = vrot.lane.b32.xlu0 %v1804, 127
    %v1849 = vpop.permute.xlu0 %1848
    %1850 = vrot.lane.b32.xlu0 %v1805, 127
    %v1851 = vpop.permute.xlu0 %1850
    %1852 = vrot.lane.b32.xlu0 %v1806, 127
    %v1853 = vpop.permute.xlu0 %1852
    %1854 = vrot.lane.b32.xlu0 %v1807, 127
    %v1855 = vpop.permute.xlu0 %1854
    %1856 = vrot.lane.b32.xlu0 %v1808, 127
    %v1857 = vpop.permute.xlu0 %1856
    %1858 = vrot.lane.b32.xlu0 %v1809, 127
    %v1859 = vpop.permute.xlu0 %1858
    %1860 = vrot.lane.b32.xlu0 %v1810, 127
    %v1861 = vpop.permute.xlu0 %1860
    %1862 = vrot.lane.b32.xlu0 %v1811, 127
    %v1863 = vpop.permute.xlu0 %1862
    %1864 = vrot.lane.b32.xlu0 %v1812, 127
    %v1865 = vpop.permute.xlu0 %1864
    %1866 = vrot.lane.b32.xlu0 %v1813, 127
    %v1867 = vpop.permute.xlu0 %1866
    %v1868 = vsel %vm59, %v1833, %v1835
    %v1869 = vsel %vm59, %v1835, %v1837
    %v1870 = vsel %vm59, %v1837, %v1839
    %v1871 = vsel %vm59, %v1839, %v1841
    %v1872 = vsel %vm59, %v1841, %v1843
    %v1873 = vsel %vm59, %v1843, %v1845
    %v1874 = vsel %vm59, %v1845, %v1847
    %v1875 = vsel %vm59, %v1847, %v1849
    %v1876 = vsel %vm59, %v1849, %v1851
    %v1877 = vsel %vm59, %v1851, %v1853
    %v1878 = vsel %vm59, %v1853, %v1855
    %v1879 = vsel %vm59, %v1855, %v1857
    %v1880 = vsel %vm59, %v1857, %v1859
    %v1881 = vsel %vm59, %v1859, %v1861
    %v1882 = vsel %vm59, %v1861, %v1863
    %v1883 = vsel %vm59, %v1863, %v1865
    %v1884 = vsel %vm59, %v1865, %v1867
    %v1902 = vmax.f32 %v1796, %v1868
    %v1903 = vmax.f32 %v1797, %v1869
    %v1904 = vmax.f32 %v1798, %v1870
    %v1905 = vmax.f32 %v1799, %v1871
    %v1906 = vmax.f32 %v1800, %v1872
    %v1907 = vmax.f32 %v1801, %v1873
    %v1908 = vmax.f32 %v1802, %v1874
    %v1909 = vmax.f32 %v1803, %v1875
    %v1910 = vmax.f32 %v1804, %v1876
    %v1911 = vmax.f32 %v1805, %v1877
    %v1912 = vmax.f32 %v1806, %v1878
    %v1913 = vmax.f32 %v1807, %v1879
    %v1914 = vmax.f32 %v1808, %v1880
    %v1915 = vmax.f32 %v1809, %v1881
    %v1916 = vmax.f32 %v1810, %v1882
    %v1917 = vmax.f32 %v1811, %v1883
    %v1918 = vmax.f32 %v1812, %v1884
    %v1920 = vmax.f32 %v1813, %v1867
    %1939 = vrot.lane.b32.xlu0 %v1902, 96
    %v1940 = vpop.permute.xlu0 %1939
    %1941 = vrot.lane.b32.xlu0 %v1903, 96
    %v1942 = vpop.permute.xlu0 %1941
    %1943 = vrot.lane.b32.xlu0 %v1904, 96
    %v1944 = vpop.permute.xlu0 %1943
    %1945 = vrot.lane.b32.xlu0 %v1905, 96
    %v1946 = vpop.permute.xlu0 %1945
    %1947 = vrot.lane.b32.xlu0 %v1906, 96
    %v1948 = vpop.permute.xlu0 %1947
    %1949 = vrot.lane.b32.xlu0 %v1907, 96
    %v1950 = vpop.permute.xlu0 %1949
    %1951 = vrot.lane.b32.xlu0 %v1908, 96
    %v1952 = vpop.permute.xlu0 %1951
    %1953 = vrot.lane.b32.xlu0 %v1909, 96
    %v1954 = vpop.permute.xlu0 %1953
    %1955 = vrot.lane.b32.xlu0 %v1910, 96
    %v1956 = vpop.permute.xlu0 %1955
    %1957 = vrot.lane.b32.xlu0 %v1911, 96
    %v1958 = vpop.permute.xlu0 %1957
    %1959 = vrot.lane.b32.xlu0 %v1912, 96
    %v1960 = vpop.permute.xlu0 %1959
    %1961 = vrot.lane.b32.xlu0 %v1913, 96
    %v1962 = vpop.permute.xlu0 %1961
    %1963 = vrot.lane.b32.xlu0 %v1914, 96
    %v1964 = vpop.permute.xlu0 %1963
    %1965 = vrot.lane.b32.xlu0 %v1915, 96
    %v1966 = vpop.permute.xlu0 %1965
    %1967 = vrot.lane.b32.xlu0 %v1916, 96
    %v1968 = vpop.permute.xlu0 %1967
    %1969 = vrot.lane.b32.xlu0 %v1917, 96
    %v1970 = vpop.permute.xlu0 %1969
    %1971 = vrot.lane.b32.xlu0 %v1918, 96
    %v1972 = vpop.permute.xlu0 %1971
    %1973 = vrot.lane.b32.xlu0 %v1920, 96
    %v1974 = vpop.permute.xlu0 %1973
    %v1975 = vsel %vm167, %v1940, %v1942
    %v1976 = vsel %vm167, %v1942, %v1944
    %v1977 = vsel %vm167, %v1944, %v1946
    %v1978 = vsel %vm167, %v1946, %v1948
    %v1979 = vsel %vm167, %v1948, %v1950
    %v1980 = vsel %vm167, %v1950, %v1952
    %v1981 = vsel %vm167, %v1952, %v1954
    %v1982 = vsel %vm167, %v1954, %v1956
    %v1983 = vsel %vm167, %v1956, %v1958
    %v1984 = vsel %vm167, %v1958, %v1960
    %v1985 = vsel %vm167, %v1960, %v1962
    %v1986 = vsel %vm167, %v1962, %v1964
    %v1987 = vsel %vm167, %v1964, %v1966
    %v1988 = vsel %vm167, %v1966, %v1968
    %v1989 = vsel %vm167, %v1968, %v1970
    %v1990 = vsel %vm167, %v1970, %v1972
    %v1991 = vsel %vm167, %v1972, %v1974
    %v2009 = vmax.f32 %v1902, %v1975
    %v2010 = vmax.f32 %v1903, %v1976
    %v2011 = vmax.f32 %v1904, %v1977
    %v2012 = vmax.f32 %v1905, %v1978
    %v2013 = vmax.f32 %v1906, %v1979
    %v2014 = vmax.f32 %v1907, %v1980
    %v2015 = vmax.f32 %v1908, %v1981
    %v2016 = vmax.f32 %v1909, %v1982
    %v2017 = vmax.f32 %v1910, %v1983
    %v2018 = vmax.f32 %v1911, %v1984
    %v2019 = vmax.f32 %v1912, %v1985
    %v2020 = vmax.f32 %v1913, %v1986
    %v2021 = vmax.f32 %v1914, %v1987
    %v2022 = vmax.f32 %v1915, %v1988
    %v2023 = vmax.f32 %v1916, %v1989
    %v2024 = vmax.f32 %v1917, %v1990
    %v2025 = vmax.f32 %v1918, %v1991
    %2026 = vst [vmem:[#allocation3] sm:$0xff] %v2009
    %2027 = vst [vmem:[#allocation3 + $0x8] sm:$0xff] %v2010
    %2028 = vst [vmem:[#allocation3 + $0x10] sm:$0xff] %v2011
    %2029 = vst [vmem:[#allocation3 + $0x18] sm:$0xff] %v2012
    %2030 = vst [vmem:[#allocation3 + $0x20] sm:$0xff] %v2013
    %2031 = vst [vmem:[#allocation3 + $0x28] sm:$0xff] %v2014
    %2032 = vst [vmem:[#allocation3 + $0x30] sm:$0xff] %v2015
    %2033 = vst [vmem:[#allocation3 + $0x38] sm:$0xff] %v2016
    %2034 = vst [vmem:[#allocation3 + $0x40] sm:$0xff] %v2017
    %2035 = vst [vmem:[#allocation3 + $0x48] sm:$0xff] %v2018
    %2036 = vst [vmem:[#allocation3 + $0x50] sm:$0xff] %v2019
    %2037 = vst [vmem:[#allocation3 + $0x58] sm:$0xff] %v2020
    %2038 = vst [vmem:[#allocation3 + $0x60] sm:$0xff] %v2021
    %2039 = vst [vmem:[#allocation3 + $0x68] sm:$0xff] %v2022
    %2055 = vrot.lane.b32.xlu0 %v2009, 126
    %v2056 = vpop.permute.xlu0 %2055
    %2057 = vrot.lane.b32.xlu0 %v2010, 126
    %v2058 = vpop.permute.xlu0 %2057
    %2059 = vrot.lane.b32.xlu0 %v2011, 126
    %v2060 = vpop.permute.xlu0 %2059
    %2061 = vrot.lane.b32.xlu0 %v2012, 126
    %v2062 = vpop.permute.xlu0 %2061
    %2063 = vrot.lane.b32.xlu0 %v2013, 126
    %v2064 = vpop.permute.xlu0 %2063
    %2065 = vrot.lane.b32.xlu0 %v2014, 126
    %v2066 = vpop.permute.xlu0 %2065
    %2067 = vrot.lane.b32.xlu0 %v2015, 126
    %v2068 = vpop.permute.xlu0 %2067
    %2069 = vrot.lane.b32.xlu0 %v2016, 126
    %v2070 = vpop.permute.xlu0 %2069
    %2071 = vrot.lane.b32.xlu0 %v2017, 126
    %v2072 = vpop.permute.xlu0 %2071
    %2073 = vrot.lane.b32.xlu0 %v2018, 126
    %v2074 = vpop.permute.xlu0 %2073
    %2075 = vrot.lane.b32.xlu0 %v2019, 126
    %v2076 = vpop.permute.xlu0 %2075
    %2077 = vrot.lane.b32.xlu0 %v2020, 126
    %v2078 = vpop.permute.xlu0 %2077
    %2079 = vrot.lane.b32.xlu0 %v2021, 126
    %v2080 = vpop.permute.xlu0 %2079
    %2081 = vrot.lane.b32.xlu0 %v2022, 126
    %v2082 = vpop.permute.xlu0 %2081
    %2083 = vrot.lane.b32.xlu0 %v2023, 126
    %v2084 = vpop.permute.xlu0 %2083
    %v2085 = vsel %vm86, %v2056, %v2058
    %v2086 = vsel %vm86, %v2058, %v2060
    %v2087 = vsel %vm86, %v2060, %v2062
    %v2088 = vsel %vm86, %v2062, %v2064
    %v2089 = vsel %vm86, %v2064, %v2066
    %v2090 = vsel %vm86, %v2066, %v2068
    %v2091 = vsel %vm86, %v2068, %v2070
    %v2092 = vsel %vm86, %v2070, %v2072
    %v2093 = vsel %vm86, %v2072, %v2074
    %v2094 = vsel %vm86, %v2074, %v2076
    %v2095 = vsel %vm86, %v2076, %v2078
    %v2096 = vsel %vm86, %v2078, %v2080
    %v2097 = vsel %vm86, %v2080, %v2082
    %v2098 = vsel %vm86, %v2082, %v2084
    %2113 = vst [vmem:[#allocation3 + $0x70] sm:$0xff] %v2085
    %2114 = vst [vmem:[#allocation3 + $0x78] sm:$0xff] %v2086
    %2115 = vst [vmem:[#allocation3 + $0x80] sm:$0xff] %v2087
    %2116 = vst [vmem:[#allocation3 + $0x88] sm:$0xff] %v2088
    %2117 = vst [vmem:[#allocation3 + $0x90] sm:$0xff] %v2089
    %2118 = vst [vmem:[#allocation3 + $0x98] sm:$0xff] %v2090
    %2119 = vst [vmem:[#allocation3 + $0xa0] sm:$0xff] %v2091
    %2120 = vst [vmem:[#allocation3 + $0xa8] sm:$0xff] %v2092
    %2121 = vst [vmem:[#allocation3 + $0xb0] sm:$0xff] %v2093
    %2122 = vst [vmem:[#allocation3 + $0xb8] sm:$0xff] %v2094
    %2123 = vst [vmem:[#allocation3 + $0xc0] sm:$0xff] %v2095
    %2124 = vst [vmem:[#allocation3 + $0xc8] sm:$0xff] %v2096
    %2125 = vst [vmem:[#allocation3 + $0xd0] sm:$0xff] %v2097
    %2126 = vst [vmem:[#allocation3 + $0xd8] sm:$0xff] %v2098
    %2127 = vrot.lane.b32.xlu0 %v2009, 124
    %v2128 = vpop.permute.xlu0 %2127
    %2129 = vrot.lane.b32.xlu0 %v2010, 124
    %v2130 = vpop.permute.xlu0 %2129
    %2131 = vrot.lane.b32.xlu0 %v2011, 124
    %v2132 = vpop.permute.xlu0 %2131
    %2133 = vrot.lane.b32.xlu0 %v2012, 124
    %v2134 = vpop.permute.xlu0 %2133
    %2135 = vrot.lane.b32.xlu0 %v2013, 124
    %v2136 = vpop.permute.xlu0 %2135
    %2137 = vrot.lane.b32.xlu0 %v2014, 124
    %v2138 = vpop.permute.xlu0 %2137
    %2139 = vrot.lane.b32.xlu0 %v2015, 124
    %v2140 = vpop.permute.xlu0 %2139
    %2141 = vrot.lane.b32.xlu0 %v2016, 124
    %v2142 = vpop.permute.xlu0 %2141
    %2143 = vrot.lane.b32.xlu0 %v2017, 124
    %v2144 = vpop.permute.xlu0 %2143
    %2145 = vrot.lane.b32.xlu0 %v2018, 124
    %v2146 = vpop.permute.xlu0 %2145
    %2147 = vrot.lane.b32.xlu0 %v2019, 124
    %v2148 = vpop.permute.xlu0 %2147
    %2149 = vrot.lane.b32.xlu0 %v2020, 124
    %v2150 = vpop.permute.xlu0 %2149
    %2151 = vrot.lane.b32.xlu0 %v2021, 124
    %v2152 = vpop.permute.xlu0 %2151
    %2153 = vrot.lane.b32.xlu0 %v2022, 124
    %v2154 = vpop.permute.xlu0 %2153
    %2155 = vrot.lane.b32.xlu0 %v2023, 124
    %v2156 = vpop.permute.xlu0 %2155
    %v2157 = vsel %vm140, %v2128, %v2130
    %v2158 = vsel %vm140, %v2130, %v2132
    %v2159 = vsel %vm140, %v2132, %v2134
    %v2160 = vsel %vm140, %v2134, %v2136
    %v2161 = vsel %vm140, %v2136, %v2138
    %v2162 = vsel %vm140, %v2138, %v2140
    %v2163 = vsel %vm140, %v2140, %v2142
    %v2164 = vsel %vm140, %v2142, %v2144
    %v2165 = vsel %vm140, %v2144, %v2146
    %v2166 = vsel %vm140, %v2146, %v2148
    %v2167 = vsel %vm140, %v2148, %v2150
    %v2168 = vsel %vm140, %v2150, %v2152
    %v2169 = vsel %vm140, %v2152, %v2154
    %v2170 = vsel %vm140, %v2154, %v2156
    %2185 = vst [vmem:[#allocation3 + $0xe0] sm:$0xff] %v2157
    %2186 = vst [vmem:[#allocation3 + $0xe8] sm:$0xff] %v2158
    %2187 = vst [vmem:[#allocation3 + $0xf0] sm:$0xff] %v2159
    %2188 = vst [vmem:[#allocation3 + $0xf8] sm:$0xff] %v2160
    %2189 = vst [vmem:[#allocation3 + $0x100] sm:$0xff] %v2161
    %2190 = vst [vmem:[#allocation3 + $0x108] sm:$0xff] %v2162
    %2191 = vst [vmem:[#allocation3 + $0x110] sm:$0xff] %v2163
    %2192 = vst [vmem:[#allocation3 + $0x118] sm:$0xff] %v2164
    %2193 = vst [vmem:[#allocation3 + $0x120] sm:$0xff] %v2165
    %2194 = vst [vmem:[#allocation3 + $0x128] sm:$0xff] %v2166
    %2195 = vst [vmem:[#allocation3 + $0x130] sm:$0xff] %v2167
    %2196 = vst [vmem:[#allocation3 + $0x138] sm:$0xff] %v2168
    %2197 = vst [vmem:[#allocation3 + $0x140] sm:$0xff] %v2169
    %2198 = vst [vmem:[#allocation3 + $0x148] sm:$0xff] %v2170
    %2199 = vrot.lane.b32.xlu0 %v2009, 122
    %v2200 = vpop.permute.xlu0 %2199
    %2201 = vrot.lane.b32.xlu0 %v2010, 122
    %v2202 = vpop.permute.xlu0 %2201
    %2203 = vrot.lane.b32.xlu0 %v2011, 122
    %v2204 = vpop.permute.xlu0 %2203
    %2205 = vrot.lane.b32.xlu0 %v2012, 122
    %v2206 = vpop.permute.xlu0 %2205
    %2207 = vrot.lane.b32.xlu0 %v2013, 122
    %v2208 = vpop.permute.xlu0 %2207
    %2209 = vrot.lane.b32.xlu0 %v2014, 122
    %v2210 = vpop.permute.xlu0 %2209
    %2211 = vrot.lane.b32.xlu0 %v2015, 122
    %v2212 = vpop.permute.xlu0 %2211
    %2213 = vrot.lane.b32.xlu0 %v2016, 122
    %v2214 = vpop.permute.xlu0 %2213
    %2215 = vrot.lane.b32.xlu0 %v2017, 122
    %v2216 = vpop.permute.xlu0 %2215
    %2217 = vrot.lane.b32.xlu0 %v2018, 122
    %v2218 = vpop.permute.xlu0 %2217
    %2219 = vrot.lane.b32.xlu0 %v2019, 122
    %v2220 = vpop.permute.xlu0 %2219
    %2221 = vrot.lane.b32.xlu0 %v2020, 122
    %v2222 = vpop.permute.xlu0 %2221
    %2223 = vrot.lane.b32.xlu0 %v2021, 122
    %v2224 = vpop.permute.xlu0 %2223
    %2225 = vrot.lane.b32.xlu0 %v2022, 122
    %v2226 = vpop.permute.xlu0 %2225
    %2227 = vrot.lane.b32.xlu0 %v2023, 122
    %v2228 = vpop.permute.xlu0 %2227
    %vm2229 = vcmask 998400
    %v2230 = vsel %vm2229, %v2200, %v2202
    %v2231 = vsel %vm2229, %v2202, %v2204
    %v2232 = vsel %vm2229, %v2204, %v2206
    %v2233 = vsel %vm2229, %v2206, %v2208
    %v2234 = vsel %vm2229, %v2208, %v2210
    %v2235 = vsel %vm2229, %v2210, %v2212
    %v2236 = vsel %vm2229, %v2212, %v2214
    %v2237 = vsel %vm2229, %v2214, %v2216
    %v2238 = vsel %vm2229, %v2216, %v2218
    %v2239 = vsel %vm2229, %v2218, %v2220
    %v2240 = vsel %vm2229, %v2220, %v2222
    %v2241 = vsel %vm2229, %v2222, %v2224
    %v2242 = vsel %vm2229, %v2224, %v2226
    %v2243 = vsel %vm2229, %v2226, %v2228
    %2258 = vst [vmem:[#allocation3 + $0x150] sm:$0xff] %v2230
    %2259 = vst [vmem:[#allocation3 + $0x158] sm:$0xff] %v2231
    %2260 = vst [vmem:[#allocation3 + $0x160] sm:$0xff] %v2232
    %2261 = vst [vmem:[#allocation3 + $0x168] sm:$0xff] %v2233
    %2262 = vst [vmem:[#allocation3 + $0x170] sm:$0xff] %v2234
    %2263 = vst [vmem:[#allocation3 + $0x178] sm:$0xff] %v2235
    %2264 = vst [vmem:[#allocation3 + $0x180] sm:$0xff] %v2236
    %2265 = vst [vmem:[#allocation3 + $0x188] sm:$0xff] %v2237
    %2266 = vst [vmem:[#allocation3 + $0x190] sm:$0xff] %v2238
    %2267 = vst [vmem:[#allocation3 + $0x198] sm:$0xff] %v2239
    %2268 = vst [vmem:[#allocation3 + $0x1a0] sm:$0xff] %v2240
    %2269 = vst [vmem:[#allocation3 + $0x1a8] sm:$0xff] %v2241
    %2270 = vst [vmem:[#allocation3 + $0x1b0] sm:$0xff] %v2242
    %2271 = vst [vmem:[#allocation3 + $0x1b8] sm:$0xff] %v2243
    %2272 = vrot.lane.b32.xlu0 %v2009, 120
    %v2273 = vpop.permute.xlu0 %2272
    %2274 = vrot.lane.b32.xlu0 %v2010, 120
    %v2275 = vpop.permute.xlu0 %2274
    %2276 = vrot.lane.b32.xlu0 %v2011, 120
    %v2277 = vpop.permute.xlu0 %2276
    %2278 = vrot.lane.b32.xlu0 %v2012, 120
    %v2279 = vpop.permute.xlu0 %2278
    %2280 = vrot.lane.b32.xlu0 %v2013, 120
    %v2281 = vpop.permute.xlu0 %2280
    %2282 = vrot.lane.b32.xlu0 %v2014, 120
    %v2283 = vpop.permute.xlu0 %2282
    %2284 = vrot.lane.b32.xlu0 %v2015, 120
    %v2285 = vpop.permute.xlu0 %2284
    %2286 = vrot.lane.b32.xlu0 %v2016, 120
    %v2287 = vpop.permute.xlu0 %2286
    %2288 = vrot.lane.b32.xlu0 %v2017, 120
    %v2289 = vpop.permute.xlu0 %2288
    %2290 = vrot.lane.b32.xlu0 %v2018, 120
    %v2291 = vpop.permute.xlu0 %2290
    %2292 = vrot.lane.b32.xlu0 %v2019, 120
    %v2293 = vpop.permute.xlu0 %2292
    %2294 = vrot.lane.b32.xlu0 %v2020, 120
    %v2295 = vpop.permute.xlu0 %2294
    %2296 = vrot.lane.b32.xlu0 %v2021, 120
    %v2297 = vpop.permute.xlu0 %2296
    %2298 = vrot.lane.b32.xlu0 %v2022, 120
    %v2299 = vpop.permute.xlu0 %2298
    %2300 = vrot.lane.b32.xlu0 %v2023, 120
    %v2301 = vpop.permute.xlu0 %2300
    %vm2302 = vcmask 982016
    %v2303 = vsel %vm2302, %v2273, %v2275
    %v2304 = vsel %vm2302, %v2275, %v2277
    %v2305 = vsel %vm2302, %v2277, %v2279
    %v2306 = vsel %vm2302, %v2279, %v2281
    %v2307 = vsel %vm2302, %v2281, %v2283
    %v2308 = vsel %vm2302, %v2283, %v2285
    %v2309 = vsel %vm2302, %v2285, %v2287
    %v2310 = vsel %vm2302, %v2287, %v2289
    %v2311 = vsel %vm2302, %v2289, %v2291
    %v2312 = vsel %vm2302, %v2291, %v2293
    %v2313 = vsel %vm2302, %v2293, %v2295
    %v2314 = vsel %vm2302, %v2295, %v2297
    %v2315 = vsel %vm2302, %v2297, %v2299
    %v2316 = vsel %vm2302, %v2299, %v2301
    %2331 = vst [vmem:[#allocation3 + $0x1c0] sm:$0xff] %v2303
    %2332 = vst [vmem:[#allocation3 + $0x1c8] sm:$0xff] %v2304
    %2333 = vst [vmem:[#allocation3 + $0x1d0] sm:$0xff] %v2305
    %2334 = vst [vmem:[#allocation3 + $0x1d8] sm:$0xff] %v2306
    %2335 = vst [vmem:[#allocation3 + $0x1e0] sm:$0xff] %v2307
    %2336 = vst [vmem:[#allocation3 + $0x1e8] sm:$0xff] %v2308
    %2337 = vst [vmem:[#allocation3 + $0x1f0] sm:$0xff] %v2309
    %2338 = vst [vmem:[#allocation3 + $0x1f8] sm:$0xff] %v2310
    %2339 = vst [vmem:[#allocation3 + $0x200] sm:$0xff] %v2311
    %2340 = vst [vmem:[#allocation3 + $0x208] sm:$0xff] %v2312
    %2341 = vst [vmem:[#allocation3 + $0x210] sm:$0xff] %v2313
    %2342 = vst [vmem:[#allocation3 + $0x218] sm:$0xff] %v2314
    %2343 = vst [vmem:[#allocation3 + $0x220] sm:$0xff] %v2315
    %2344 = vst [vmem:[#allocation3 + $0x228] sm:$0xff] %v2316
    %2345 = vrot.lane.b32.xlu0 %v2009, 64
    %v2346 = vpop.permute.xlu0 %2345
    %2347 = vrot.lane.b32.xlu0 %v2010, 64
    %v2348 = vpop.permute.xlu0 %2347
    %2349 = vrot.lane.b32.xlu0 %v2011, 64
    %v2350 = vpop.permute.xlu0 %2349
    %2351 = vrot.lane.b32.xlu0 %v2012, 64
    %v2352 = vpop.permute.xlu0 %2351
    %2353 = vrot.lane.b32.xlu0 %v2013, 64
    %v2354 = vpop.permute.xlu0 %2353
    %2355 = vrot.lane.b32.xlu0 %v2014, 64
    %v2356 = vpop.permute.xlu0 %2355
    %2357 = vrot.lane.b32.xlu0 %v2015, 64
    %v2358 = vpop.permute.xlu0 %2357
    %2359 = vrot.lane.b32.xlu0 %v2016, 64
    %v2360 = vpop.permute.xlu0 %2359
    %2361 = vrot.lane.b32.xlu0 %v2017, 64
    %v2362 = vpop.permute.xlu0 %2361
    %2363 = vrot.lane.b32.xlu0 %v2018, 64
    %v2364 = vpop.permute.xlu0 %2363
    %2365 = vrot.lane.b32.xlu0 %v2019, 64
    %v2366 = vpop.permute.xlu0 %2365
    %2367 = vrot.lane.b32.xlu0 %v2020, 64
    %v2368 = vpop.permute.xlu0 %2367
    %2369 = vrot.lane.b32.xlu0 %v2021, 64
    %v2370 = vpop.permute.xlu0 %2369
    %2371 = vrot.lane.b32.xlu0 %v2022, 64
    %v2372 = vpop.permute.xlu0 %2371
    %2373 = vrot.lane.b32.xlu0 %v2023, 64
    %v2374 = vpop.permute.xlu0 %2373
    %v2375 = vsel %vm302, %v2346, %v2348
    %v2376 = vsel %vm302, %v2348, %v2350
    %v2377 = vsel %vm302, %v2350, %v2352
    %v2378 = vsel %vm302, %v2352, %v2354
    %v2379 = vsel %vm302, %v2354, %v2356
    %v2380 = vsel %vm302, %v2356, %v2358
    %v2381 = vsel %vm302, %v2358, %v2360
    %v2382 = vsel %vm302, %v2360, %v2362
    %v2383 = vsel %vm302, %v2362, %v2364
    %v2384 = vsel %vm302, %v2364, %v2366
    %v2385 = vsel %vm302, %v2366, %v2368
    %v2386 = vsel %vm302, %v2368, %v2370
    %v2387 = vsel %vm302, %v2370, %v2372
    %v2388 = vsel %vm302, %v2372, %v2374
    %2403 = vst [vmem:[#allocation3 + $0x230] sm:$0xff] %v2375
    %2404 = vst [vmem:[#allocation3 + $0x238] sm:$0xff] %v2376
    %2405 = vst [vmem:[#allocation3 + $0x240] sm:$0xff] %v2377
    %2406 = vst [vmem:[#allocation3 + $0x248] sm:$0xff] %v2378
    %2407 = vst [vmem:[#allocation3 + $0x250] sm:$0xff] %v2379
    %2408 = vst [vmem:[#allocation3 + $0x258] sm:$0xff] %v2380
    %2409 = vst [vmem:[#allocation3 + $0x260] sm:$0xff] %v2381
    %2410 = vst [vmem:[#allocation3 + $0x268] sm:$0xff] %v2382
    %2411 = vst [vmem:[#allocation3 + $0x270] sm:$0xff] %v2383
    %2412 = vst [vmem:[#allocation3 + $0x278] sm:$0xff] %v2384
    %2413 = vst [vmem:[#allocation3 + $0x280] sm:$0xff] %v2385
    %2414 = vst [vmem:[#allocation3 + $0x288] sm:$0xff] %v2386
    %2415 = vst [vmem:[#allocation3 + $0x290] sm:$0xff] %v2387
    %2416 = vst [vmem:[#allocation3 + $0x298] sm:$0xff] %v2388
    %2417 = vrot.lane.b32.xlu0 %v2009, 62
    %v2418 = vpop.permute.xlu0 %2417
    %2419 = vrot.lane.b32.xlu0 %v2010, 62
    %v2420 = vpop.permute.xlu0 %2419
    %2421 = vrot.lane.b32.xlu0 %v2011, 62
    %v2422 = vpop.permute.xlu0 %2421
    %2423 = vrot.lane.b32.xlu0 %v2012, 62
    %v2424 = vpop.permute.xlu0 %2423
    %2425 = vrot.lane.b32.xlu0 %v2013, 62
    %v2426 = vpop.permute.xlu0 %2425
    %2427 = vrot.lane.b32.xlu0 %v2014, 62
    %v2428 = vpop.permute.xlu0 %2427
    %2429 = vrot.lane.b32.xlu0 %v2015, 62
    %v2430 = vpop.permute.xlu0 %2429
    %2431 = vrot.lane.b32.xlu0 %v2016, 62
    %v2432 = vpop.permute.xlu0 %2431
    %2433 = vrot.lane.b32.xlu0 %v2017, 62
    %v2434 = vpop.permute.xlu0 %2433
    %2435 = vrot.lane.b32.xlu0 %v2018, 62
    %v2436 = vpop.permute.xlu0 %2435
    %2437 = vrot.lane.b32.xlu0 %v2019, 62
    %v2438 = vpop.permute.xlu0 %2437
    %2439 = vrot.lane.b32.xlu0 %v2020, 62
    %v2440 = vpop.permute.xlu0 %2439
    %2441 = vrot.lane.b32.xlu0 %v2021, 62
    %v2442 = vpop.permute.xlu0 %2441
    %2443 = vrot.lane.b32.xlu0 %v2022, 62
    %v2444 = vpop.permute.xlu0 %2443
    %2445 = vrot.lane.b32.xlu0 %v2023, 62
    %v2446 = vpop.permute.xlu0 %2445
    %v2447 = vsel %vm356, %v2418, %v2420
    %v2448 = vsel %vm356, %v2420, %v2422
    %v2449 = vsel %vm356, %v2422, %v2424
    %v2450 = vsel %vm356, %v2424, %v2426
    %v2451 = vsel %vm356, %v2426, %v2428
    %v2452 = vsel %vm356, %v2428, %v2430
    %v2453 = vsel %vm356, %v2430, %v2432
    %v2454 = vsel %vm356, %v2432, %v2434
    %v2455 = vsel %vm356, %v2434, %v2436
    %v2456 = vsel %vm356, %v2436, %v2438
    %v2457 = vsel %vm356, %v2438, %v2440
    %v2458 = vsel %vm356, %v2440, %v2442
    %v2459 = vsel %vm356, %v2442, %v2444
    %v2460 = vsel %vm356, %v2444, %v2446
    %2475 = vst [vmem:[#allocation3 + $0x2a0] sm:$0xff] %v2447
    %2476 = vst [vmem:[#allocation3 + $0x2a8] sm:$0xff] %v2448
    %2477 = vst [vmem:[#allocation3 + $0x2b0] sm:$0xff] %v2449
    %2478 = vst [vmem:[#allocation3 + $0x2b8] sm:$0xff] %v2450
    %2479 = vst [vmem:[#allocation3 + $0x2c0] sm:$0xff] %v2451
    %2480 = vst [vmem:[#allocation3 + $0x2c8] sm:$0xff] %v2452
    %2481 = vst [vmem:[#allocation3 + $0x2d0] sm:$0xff] %v2453
    %2482 = vst [vmem:[#allocation3 + $0x2d8] sm:$0xff] %v2454
    %2483 = vst [vmem:[#allocation3 + $0x2e0] sm:$0xff] %v2455
    %2484 = vst [vmem:[#allocation3 + $0x2e8] sm:$0xff] %v2456
    %2485 = vst [vmem:[#allocation3 + $0x2f0] sm:$0xff] %v2457
    %2486 = vst [vmem:[#allocation3 + $0x2f8] sm:$0xff] %v2458
    %2487 = vst [vmem:[#allocation3 + $0x300] sm:$0xff] %v2459
    %2488 = vst [vmem:[#allocation3 + $0x308] sm:$0xff] %v2460
    %2489 = vrot.lane.b32.xlu0 %v2009, 60
    %v2490 = vpop.permute.xlu0 %2489
    %2491 = vrot.lane.b32.xlu0 %v2010, 60
    %v2492 = vpop.permute.xlu0 %2491
    %2493 = vrot.lane.b32.xlu0 %v2011, 60
    %v2494 = vpop.permute.xlu0 %2493
    %2495 = vrot.lane.b32.xlu0 %v2012, 60
    %v2496 = vpop.permute.xlu0 %2495
    %2497 = vrot.lane.b32.xlu0 %v2013, 60
    %v2498 = vpop.permute.xlu0 %2497
    %2499 = vrot.lane.b32.xlu0 %v2014, 60
    %v2500 = vpop.permute.xlu0 %2499
    %2501 = vrot.lane.b32.xlu0 %v2015, 60
    %v2502 = vpop.permute.xlu0 %2501
    %2503 = vrot.lane.b32.xlu0 %v2016, 60
    %v2504 = vpop.permute.xlu0 %2503
    %2505 = vrot.lane.b32.xlu0 %v2017, 60
    %v2506 = vpop.permute.xlu0 %2505
    %2507 = vrot.lane.b32.xlu0 %v2018, 60
    %v2508 = vpop.permute.xlu0 %2507
    %2509 = vrot.lane.b32.xlu0 %v2019, 60
    %v2510 = vpop.permute.xlu0 %2509
    %2511 = vrot.lane.b32.xlu0 %v2020, 60
    %v2512 = vpop.permute.xlu0 %2511
    %2513 = vrot.lane.b32.xlu0 %v2021, 60
    %v2514 = vpop.permute.xlu0 %2513
    %2515 = vrot.lane.b32.xlu0 %v2022, 60
    %v2516 = vpop.permute.xlu0 %2515
    %2517 = vrot.lane.b32.xlu0 %v2023, 60
    %v2518 = vpop.permute.xlu0 %2517
    %v2519 = vsel %vm410, %v2490, %v2492
    %v2520 = vsel %vm410, %v2492, %v2494
    %v2521 = vsel %vm410, %v2494, %v2496
    %v2522 = vsel %vm410, %v2496, %v2498
    %v2523 = vsel %vm410, %v2498, %v2500
    %v2524 = vsel %vm410, %v2500, %v2502
    %v2525 = vsel %vm410, %v2502, %v2504
    %v2526 = vsel %vm410, %v2504, %v2506
    %v2527 = vsel %vm410, %v2506, %v2508
    %v2528 = vsel %vm410, %v2508, %v2510
    %v2529 = vsel %vm410, %v2510, %v2512
    %v2530 = vsel %vm410, %v2512, %v2514
    %v2531 = vsel %vm410, %v2514, %v2516
    %v2532 = vsel %vm410, %v2516, %v2518
    %2547 = vst [vmem:[#allocation3 + $0x310] sm:$0xff] %v2519
    %2548 = vst [vmem:[#allocation3 + $0x318] sm:$0xff] %v2520
    %2549 = vst [vmem:[#allocation3 + $0x320] sm:$0xff] %v2521
    %2550 = vst [vmem:[#allocation3 + $0x328] sm:$0xff] %v2522
    %2551 = vst [vmem:[#allocation3 + $0x330] sm:$0xff] %v2523
    %2552 = vst [vmem:[#allocation3 + $0x338] sm:$0xff] %v2524
    %2553 = vst [vmem:[#allocation3 + $0x340] sm:$0xff] %v2525
    %2554 = vst [vmem:[#allocation3 + $0x348] sm:$0xff] %v2526
    %2555 = vst [vmem:[#allocation3 + $0x350] sm:$0xff] %v2527
    %2556 = vst [vmem:[#allocation3 + $0x358] sm:$0xff] %v2528
    %2557 = vst [vmem:[#allocation3 + $0x360] sm:$0xff] %v2529
    %2558 = vst [vmem:[#allocation3 + $0x368] sm:$0xff] %v2530
    %2559 = vst [vmem:[#allocation3 + $0x370] sm:$0xff] %v2531
    %2560 = vst [vmem:[#allocation3 + $0x378] sm:$0xff] %v2532
    %2561 = vrot.lane.b32.xlu0 %v2009, 58
    %v2562 = vpop.permute.xlu0 %2561
    %2563 = vrot.lane.b32.xlu0 %v2010, 58
    %v2564 = vpop.permute.xlu0 %2563
    %2565 = vrot.lane.b32.xlu0 %v2011, 58
    %v2566 = vpop.permute.xlu0 %2565
    %2567 = vrot.lane.b32.xlu0 %v2012, 58
    %v2568 = vpop.permute.xlu0 %2567
    %2569 = vrot.lane.b32.xlu0 %v2013, 58
    %v2570 = vpop.permute.xlu0 %2569
    %2571 = vrot.lane.b32.xlu0 %v2014, 58
    %v2572 = vpop.permute.xlu0 %2571
    %2573 = vrot.lane.b32.xlu0 %v2015, 58
    %v2574 = vpop.permute.xlu0 %2573
    %2575 = vrot.lane.b32.xlu0 %v2016, 58
    %v2576 = vpop.permute.xlu0 %2575
    %2577 = vrot.lane.b32.xlu0 %v2017, 58
    %v2578 = vpop.permute.xlu0 %2577
    %2579 = vrot.lane.b32.xlu0 %v2018, 58
    %v2580 = vpop.permute.xlu0 %2579
    %2581 = vrot.lane.b32.xlu0 %v2019, 58
    %v2582 = vpop.permute.xlu0 %2581
    %2583 = vrot.lane.b32.xlu0 %v2020, 58
    %v2584 = vpop.permute.xlu0 %2583
    %2585 = vrot.lane.b32.xlu0 %v2021, 58
    %v2586 = vpop.permute.xlu0 %2585
    %2587 = vrot.lane.b32.xlu0 %v2022, 58
    %v2588 = vpop.permute.xlu0 %2587
    %2589 = vrot.lane.b32.xlu0 %v2023, 58
    %v2590 = vpop.permute.xlu0 %2589
    %vm2591 = vcmask 474112
    %v2592 = vsel %vm2591, %v2562, %v2564
    %v2593 = vsel %vm2591, %v2564, %v2566
    %v2594 = vsel %vm2591, %v2566, %v2568
    %v2595 = vsel %vm2591, %v2568, %v2570
    %v2596 = vsel %vm2591, %v2570, %v2572
    %v2597 = vsel %vm2591, %v2572, %v2574
    %v2598 = vsel %vm2591, %v2574, %v2576
    %v2599 = vsel %vm2591, %v2576, %v2578
    %v2600 = vsel %vm2591, %v2578, %v2580
    %v2601 = vsel %vm2591, %v2580, %v2582
    %v2602 = vsel %vm2591, %v2582, %v2584
    %v2603 = vsel %vm2591, %v2584, %v2586
    %v2604 = vsel %vm2591, %v2586, %v2588
    %v2605 = vsel %vm2591, %v2588, %v2590
    %2620 = vst [vmem:[#allocation3 + $0x380] sm:$0xff] %v2592
    %2621 = vst [vmem:[#allocation3 + $0x388] sm:$0xff] %v2593
    %2622 = vst [vmem:[#allocation3 + $0x390] sm:$0xff] %v2594
    %2623 = vst [vmem:[#allocation3 + $0x398] sm:$0xff] %v2595
    %2624 = vst [vmem:[#allocation3 + $0x3a0] sm:$0xff] %v2596
    %2625 = vst [vmem:[#allocation3 + $0x3a8] sm:$0xff] %v2597
    %2626 = vst [vmem:[#allocation3 + $0x3b0] sm:$0xff] %v2598
    %2627 = vst [vmem:[#allocation3 + $0x3b8] sm:$0xff] %v2599
    %2628 = vst [vmem:[#allocation3 + $0x3c0] sm:$0xff] %v2600
    %2629 = vst [vmem:[#allocation3 + $0x3c8] sm:$0xff] %v2601
    %2630 = vst [vmem:[#allocation3 + $0x3d0] sm:$0xff] %v2602
    %2631 = vst [vmem:[#allocation3 + $0x3d8] sm:$0xff] %v2603
    %2632 = vst [vmem:[#allocation3 + $0x3e0] sm:$0xff] %v2604
    %2633 = vst [vmem:[#allocation3 + $0x3e8] sm:$0xff] %v2605
    %2634 = vrot.lane.b32.xlu0 %v2009, 56
    %v2635 = vpop.permute.xlu0 %2634
    %2636 = vrot.lane.b32.xlu0 %v2010, 56
    %v2637 = vpop.permute.xlu0 %2636
    %2638 = vrot.lane.b32.xlu0 %v2011, 56
    %v2639 = vpop.permute.xlu0 %2638
    %2640 = vrot.lane.b32.xlu0 %v2012, 56
    %v2641 = vpop.permute.xlu0 %2640
    %2642 = vrot.lane.b32.xlu0 %v2013, 56
    %v2643 = vpop.permute.xlu0 %2642
    %2644 = vrot.lane.b32.xlu0 %v2014, 56
    %v2645 = vpop.permute.xlu0 %2644
    %2646 = vrot.lane.b32.xlu0 %v2015, 56
    %v2647 = vpop.permute.xlu0 %2646
    %2648 = vrot.lane.b32.xlu0 %v2016, 56
    %v2649 = vpop.permute.xlu0 %2648
    %2650 = vrot.lane.b32.xlu0 %v2017, 56
    %v2651 = vpop.permute.xlu0 %2650
    %2652 = vrot.lane.b32.xlu0 %v2018, 56
    %v2653 = vpop.permute.xlu0 %2652
    %2654 = vrot.lane.b32.xlu0 %v2019, 56
    %v2655 = vpop.permute.xlu0 %2654
    %2656 = vrot.lane.b32.xlu0 %v2020, 56
    %v2657 = vpop.permute.xlu0 %2656
    %2658 = vrot.lane.b32.xlu0 %v2021, 56
    %v2659 = vpop.permute.xlu0 %2658
    %2660 = vrot.lane.b32.xlu0 %v2022, 56
    %v2661 = vpop.permute.xlu0 %2660
    %2662 = vrot.lane.b32.xlu0 %v2023, 56
    %v2663 = vpop.permute.xlu0 %2662
    %vm2664 = vcmask 457728
    %v2665 = vsel %vm2664, %v2635, %v2637
    %v2666 = vsel %vm2664, %v2637, %v2639
    %v2667 = vsel %vm2664, %v2639, %v2641
    %v2668 = vsel %vm2664, %v2641, %v2643
    %v2669 = vsel %vm2664, %v2643, %v2645
    %v2670 = vsel %vm2664, %v2645, %v2647
    %v2671 = vsel %vm2664, %v2647, %v2649
    %v2672 = vsel %vm2664, %v2649, %v2651
    %v2673 = vsel %vm2664, %v2651, %v2653
    %v2674 = vsel %vm2664, %v2653, %v2655
    %v2675 = vsel %vm2664, %v2655, %v2657
    %v2676 = vsel %vm2664, %v2657, %v2659
    %v2677 = vsel %vm2664, %v2659, %v2661
    %v2678 = vsel %vm2664, %v2661, %v2663
    %2693 = vst [vmem:[#allocation3 + $0x3f0] sm:$0xff] %v2665
    %2694 = vst [vmem:[#allocation3 + $0x3f8] sm:$0xff] %v2666
    %2695 = vst [vmem:[#allocation3 + $0x400] sm:$0xff] %v2667
    %2696 = vst [vmem:[#allocation3 + $0x408] sm:$0xff] %v2668
    %2697 = vst [vmem:[#allocation3 + $0x410] sm:$0xff] %v2669
    %2698 = vst [vmem:[#allocation3 + $0x418] sm:$0xff] %v2670
    %2699 = vst [vmem:[#allocation3 + $0x420] sm:$0xff] %v2671
    %2700 = vst [vmem:[#allocation3 + $0x428] sm:$0xff] %v2672
    %2701 = vst [vmem:[#allocation3 + $0x430] sm:$0xff] %v2673
    %2702 = vst [vmem:[#allocation3 + $0x438] sm:$0xff] %v2674
    %2703 = vst [vmem:[#allocation3 + $0x440] sm:$0xff] %v2675
    %2704 = vst [vmem:[#allocation3 + $0x448] sm:$0xff] %v2676
    %2705 = vst [vmem:[#allocation3 + $0x450] sm:$0xff] %v2677
    %2706 = vst [vmem:[#allocation3 + $0x458] sm:$0xff] %v2678
    %2707 = vst [vmem:[#allocation3 + $0x460] sm:$0xff] %v2010
    %2708 = vst [vmem:[#allocation3 + $0x468] sm:$0xff] %v2011
    %2709 = vst [vmem:[#allocation3 + $0x470] sm:$0xff] %v2012
    %2710 = vst [vmem:[#allocation3 + $0x478] sm:$0xff] %v2013
    %2711 = vst [vmem:[#allocation3 + $0x480] sm:$0xff] %v2014
    %2712 = vst [vmem:[#allocation3 + $0x488] sm:$0xff] %v2015
    %2713 = vst [vmem:[#allocation3 + $0x490] sm:$0xff] %v2016
    %2714 = vst [vmem:[#allocation3 + $0x498] sm:$0xff] %v2017
    %2715 = vst [vmem:[#allocation3 + $0x4a0] sm:$0xff] %v2018
    %2716 = vst [vmem:[#allocation3 + $0x4a8] sm:$0xff] %v2019
    %2717 = vst [vmem:[#allocation3 + $0x4b0] sm:$0xff] %v2020
    %2718 = vst [vmem:[#allocation3 + $0x4b8] sm:$0xff] %v2021
    %2719 = vst [vmem:[#allocation3 + $0x4c0] sm:$0xff] %v2022
    %2720 = vst [vmem:[#allocation3 + $0x4c8] sm:$0xff] %v2023
    %2722 = vrot.lane.b32.xlu0 %v2024, 126
    %v2723 = vpop.permute.xlu0 %2722
    %v2724 = vsel %vm86, %v2084, %v2723
    %2726 = vst [vmem:[#allocation3 + $0x4d0] sm:$0xff] %v2086
    %2727 = vst [vmem:[#allocation3 + $0x4d8] sm:$0xff] %v2087
    %2728 = vst [vmem:[#allocation3 + $0x4e0] sm:$0xff] %v2088
    %2729 = vst [vmem:[#allocation3 + $0x4e8] sm:$0xff] %v2089
    %2730 = vst [vmem:[#allocation3 + $0x4f0] sm:$0xff] %v2090
    %2731 = vst [vmem:[#allocation3 + $0x4f8] sm:$0xff] %v2091
    %2732 = vst [vmem:[#allocation3 + $0x500] sm:$0xff] %v2092
    %2733 = vst [vmem:[#allocation3 + $0x508] sm:$0xff] %v2093
    %2734 = vst [vmem:[#allocation3 + $0x510] sm:$0xff] %v2094
    %2735 = vst [vmem:[#allocation3 + $0x518] sm:$0xff] %v2095
    %2736 = vst [vmem:[#allocation3 + $0x520] sm:$0xff] %v2096
    %2737 = vst [vmem:[#allocation3 + $0x528] sm:$0xff] %v2097
    %2738 = vst [vmem:[#allocation3 + $0x530] sm:$0xff] %v2098
    %2739 = vst [vmem:[#allocation3 + $0x538] sm:$0xff] %v2724
    %2740 = vrot.lane.b32.xlu0 %v2024, 124
    %v2741 = vpop.permute.xlu0 %2740
    %v2742 = vsel %vm140, %v2156, %v2741
    %2744 = vst [vmem:[#allocation3 + $0x540] sm:$0xff] %v2158
    %2745 = vst [vmem:[#allocation3 + $0x548] sm:$0xff] %v2159
    %2746 = vst [vmem:[#allocation3 + $0x550] sm:$0xff] %v2160
    %2747 = vst [vmem:[#allocation3 + $0x558] sm:$0xff] %v2161
    %2748 = vst [vmem:[#allocation3 + $0x560] sm:$0xff] %v2162
    %2749 = vst [vmem:[#allocation3 + $0x568] sm:$0xff] %v2163
    %2750 = vst [vmem:[#allocation3 + $0x570] sm:$0xff] %v2164
    %2751 = vst [vmem:[#allocation3 + $0x578] sm:$0xff] %v2165
    %2752 = vst [vmem:[#allocation3 + $0x580] sm:$0xff] %v2166
    %2753 = vst [vmem:[#allocation3 + $0x588] sm:$0xff] %v2167
    %2754 = vst [vmem:[#allocation3 + $0x590] sm:$0xff] %v2168
    %2755 = vst [vmem:[#allocation3 + $0x598] sm:$0xff] %v2169
    %2756 = vst [vmem:[#allocation3 + $0x5a0] sm:$0xff] %v2170
    %2757 = vst [vmem:[#allocation3 + $0x5a8] sm:$0xff] %v2742
    %2758 = vrot.lane.b32.xlu0 %v2024, 122
    %v2759 = vpop.permute.xlu0 %2758
    %v2760 = vsel %vm2229, %v2228, %v2759
    %2762 = vst [vmem:[#allocation3 + $0x5b0] sm:$0xff] %v2231
    %2763 = vst [vmem:[#allocation3 + $0x5b8] sm:$0xff] %v2232
    %2764 = vst [vmem:[#allocation3 + $0x5c0] sm:$0xff] %v2233
    %2765 = vst [vmem:[#allocation3 + $0x5c8] sm:$0xff] %v2234
    %2766 = vst [vmem:[#allocation3 + $0x5d0] sm:$0xff] %v2235
    %2767 = vst [vmem:[#allocation3 + $0x5d8] sm:$0xff] %v2236
    %2768 = vst [vmem:[#allocation3 + $0x5e0] sm:$0xff] %v2237
    %2769 = vst [vmem:[#allocation3 + $0x5e8] sm:$0xff] %v2238
    %2770 = vst [vmem:[#allocation3 + $0x5f0] sm:$0xff] %v2239
    %2771 = vst [vmem:[#allocation3 + $0x5f8] sm:$0xff] %v2240
    %2772 = vst [vmem:[#allocation3 + $0x600] sm:$0xff] %v2241
    %2773 = vst [vmem:[#allocation3 + $0x608] sm:$0xff] %v2242
    %2774 = vst [vmem:[#allocation3 + $0x610] sm:$0xff] %v2243
    %2775 = vst [vmem:[#allocation3 + $0x618] sm:$0xff] %v2760
    %2776 = vrot.lane.b32.xlu0 %v2024, 120
    %v2777 = vpop.permute.xlu0 %2776
    %v2778 = vsel %vm2302, %v2301, %v2777
    %2780 = vst [vmem:[#allocation3 + $0x620] sm:$0xff] %v2304
    %2781 = vst [vmem:[#allocation3 + $0x628] sm:$0xff] %v2305
    %2782 = vst [vmem:[#allocation3 + $0x630] sm:$0xff] %v2306
    %2783 = vst [vmem:[#allocation3 + $0x638] sm:$0xff] %v2307
    %2784 = vst [vmem:[#allocation3 + $0x640] sm:$0xff] %v2308
    %2785 = vst [vmem:[#allocation3 + $0x648] sm:$0xff] %v2309
    %2786 = vst [vmem:[#allocation3 + $0x650] sm:$0xff] %v2310
    %2787 = vst [vmem:[#allocation3 + $0x658] sm:$0xff] %v2311
    %2788 = vst [vmem:[#allocation3 + $0x660] sm:$0xff] %v2312
    %2789 = vst [vmem:[#allocation3 + $0x668] sm:$0xff] %v2313
    %2790 = vst [vmem:[#allocation3 + $0x670] sm:$0xff] %v2314
    %2791 = vst [vmem:[#allocation3 + $0x678] sm:$0xff] %v2315
    %2792 = vst [vmem:[#allocation3 + $0x680] sm:$0xff] %v2316
    %2793 = vst [vmem:[#allocation3 + $0x688] sm:$0xff] %v2778
    %2794 = vrot.lane.b32.xlu0 %v2024, 64
    %v2795 = vpop.permute.xlu0 %2794
    %v2796 = vsel %vm302, %v2374, %v2795
    %2798 = vst [vmem:[#allocation3 + $0x690] sm:$0xff] %v2376
    %2799 = vst [vmem:[#allocation3 + $0x698] sm:$0xff] %v2377
    %2800 = vst [vmem:[#allocation3 + $0x6a0] sm:$0xff] %v2378
    %2801 = vst [vmem:[#allocation3 + $0x6a8] sm:$0xff] %v2379
    %2802 = vst [vmem:[#allocation3 + $0x6b0] sm:$0xff] %v2380
    %2803 = vst [vmem:[#allocation3 + $0x6b8] sm:$0xff] %v2381
    %2804 = vst [vmem:[#allocation3 + $0x6c0] sm:$0xff] %v2382
    %2805 = vst [vmem:[#allocation3 + $0x6c8] sm:$0xff] %v2383
    %2806 = vst [vmem:[#allocation3 + $0x6d0] sm:$0xff] %v2384
    %2807 = vst [vmem:[#allocation3 + $0x6d8] sm:$0xff] %v2385
    %2808 = vst [vmem:[#allocation3 + $0x6e0] sm:$0xff] %v2386
    %2809 = vst [vmem:[#allocation3 + $0x6e8] sm:$0xff] %v2387
    %2810 = vst [vmem:[#allocation3 + $0x6f0] sm:$0xff] %v2388
    %2811 = vst [vmem:[#allocation3 + $0x6f8] sm:$0xff] %v2796
    %2812 = vrot.lane.b32.xlu0 %v2024, 62
    %v2813 = vpop.permute.xlu0 %2812
    %v2814 = vsel %vm356, %v2446, %v2813
    %2816 = vst [vmem:[#allocation3 + $0x700] sm:$0xff] %v2448
    %2817 = vst [vmem:[#allocation3 + $0x708] sm:$0xff] %v2449
    %2818 = vst [vmem:[#allocation3 + $0x710] sm:$0xff] %v2450
    %2819 = vst [vmem:[#allocation3 + $0x718] sm:$0xff] %v2451
    %2820 = vst [vmem:[#allocation3 + $0x720] sm:$0xff] %v2452
    %2821 = vst [vmem:[#allocation3 + $0x728] sm:$0xff] %v2453
    %2822 = vst [vmem:[#allocation3 + $0x730] sm:$0xff] %v2454
    %2823 = vst [vmem:[#allocation3 + $0x738] sm:$0xff] %v2455
    %2824 = vst [vmem:[#allocation3 + $0x740] sm:$0xff] %v2456
    %2825 = vst [vmem:[#allocation3 + $0x748] sm:$0xff] %v2457
    %2826 = vst [vmem:[#allocation3 + $0x750] sm:$0xff] %v2458
    %2827 = vst [vmem:[#allocation3 + $0x758] sm:$0xff] %v2459
    %2828 = vst [vmem:[#allocation3 + $0x760] sm:$0xff] %v2460
    %2829 = vst [vmem:[#allocation3 + $0x768] sm:$0xff] %v2814
    %2830 = vrot.lane.b32.xlu0 %v2024, 60
    %v2831 = vpop.permute.xlu0 %2830
    %v2832 = vsel %vm410, %v2518, %v2831
    %2834 = vst [vmem:[#allocation3 + $0x770] sm:$0xff] %v2520
    %2835 = vst [vmem:[#allocation3 + $0x778] sm:$0xff] %v2521
    %2836 = vst [vmem:[#allocation3 + $0x780] sm:$0xff] %v2522
    %2837 = vst [vmem:[#allocation3 + $0x788] sm:$0xff] %v2523
    %2838 = vst [vmem:[#allocation3 + $0x790] sm:$0xff] %v2524
    %2839 = vst [vmem:[#allocation3 + $0x798] sm:$0xff] %v2525
    %2840 = vst [vmem:[#allocation3 + $0x7a0] sm:$0xff] %v2526
    %2841 = vst [vmem:[#allocation3 + $0x7a8] sm:$0xff] %v2527
    %2842 = vst [vmem:[#allocation3 + $0x7b0] sm:$0xff] %v2528
    %2843 = vst [vmem:[#allocation3 + $0x7b8] sm:$0xff] %v2529
    %2844 = vst [vmem:[#allocation3 + $0x7c0] sm:$0xff] %v2530
    %2845 = vst [vmem:[#allocation3 + $0x7c8] sm:$0xff] %v2531
    %2846 = vst [vmem:[#allocation3 + $0x7d0] sm:$0xff] %v2532
    %2847 = vst [vmem:[#allocation3 + $0x7d8] sm:$0xff] %v2832
    %2848 = vrot.lane.b32.xlu0 %v2024, 58
    %v2849 = vpop.permute.xlu0 %2848
    %v2850 = vsel %vm2591, %v2590, %v2849
    %2852 = vst [vmem:[#allocation3 + $0x7e0] sm:$0xff] %v2593
    %2853 = vst [vmem:[#allocation3 + $0x7e8] sm:$0xff] %v2594
    %2854 = vst [vmem:[#allocation3 + $0x7f0] sm:$0xff] %v2595
    %2855 = vst [vmem:[#allocation3 + $0x7f8] sm:$0xff] %v2596
    %2856 = vst [vmem:[#allocation3 + $0x800] sm:$0xff] %v2597
    %2857 = vst [vmem:[#allocation3 + $0x808] sm:$0xff] %v2598
    %2858 = vst [vmem:[#allocation3 + $0x810] sm:$0xff] %v2599
    %2859 = vst [vmem:[#allocation3 + $0x818] sm:$0xff] %v2600
    %2860 = vst [vmem:[#allocation3 + $0x820] sm:$0xff] %v2601
    %2861 = vst [vmem:[#allocation3 + $0x828] sm:$0xff] %v2602
    %2862 = vst [vmem:[#allocation3 + $0x830] sm:$0xff] %v2603
    %2863 = vst [vmem:[#allocation3 + $0x838] sm:$0xff] %v2604
    %2864 = vst [vmem:[#allocation3 + $0x840] sm:$0xff] %v2605
    %2865 = vst [vmem:[#allocation3 + $0x848] sm:$0xff] %v2850
    %2866 = vrot.lane.b32.xlu0 %v2024, 56
    %v2867 = vpop.permute.xlu0 %2866
    %v2868 = vsel %vm2664, %v2663, %v2867
    %2870 = vst [vmem:[#allocation3 + $0x850] sm:$0xff] %v2666
    %2871 = vst [vmem:[#allocation3 + $0x858] sm:$0xff] %v2667
    %2872 = vst [vmem:[#allocation3 + $0x860] sm:$0xff] %v2668
    %2873 = vst [vmem:[#allocation3 + $0x868] sm:$0xff] %v2669
    %2874 = vst [vmem:[#allocation3 + $0x870] sm:$0xff] %v2670
    %2875 = vst [vmem:[#allocation3 + $0x878] sm:$0xff] %v2671
    %2876 = vst [vmem:[#allocation3 + $0x880] sm:$0xff] %v2672
    %2877 = vst [vmem:[#allocation3 + $0x888] sm:$0xff] %v2673
    %2878 = vst [vmem:[#allocation3 + $0x890] sm:$0xff] %v2674
    %2879 = vst [vmem:[#allocation3 + $0x898] sm:$0xff] %v2675
    %2880 = vst [vmem:[#allocation3 + $0x8a0] sm:$0xff] %v2676
    %2881 = vst [vmem:[#allocation3 + $0x8a8] sm:$0xff] %v2677
    %2882 = vst [vmem:[#allocation3 + $0x8b0] sm:$0xff] %v2678
    %2883 = vst [vmem:[#allocation3 + $0x8b8] sm:$0xff] %v2868
    %2884 = vst [vmem:[#allocation3 + $0x8c0] sm:$0xff] %v2011
    %2885 = vst [vmem:[#allocation3 + $0x8c8] sm:$0xff] %v2012
    %2886 = vst [vmem:[#allocation3 + $0x8d0] sm:$0xff] %v2013
    %2887 = vst [vmem:[#allocation3 + $0x8d8] sm:$0xff] %v2014
    %2888 = vst [vmem:[#allocation3 + $0x8e0] sm:$0xff] %v2015
    %2889 = vst [vmem:[#allocation3 + $0x8e8] sm:$0xff] %v2016
    %2890 = vst [vmem:[#allocation3 + $0x8f0] sm:$0xff] %v2017
    %2891 = vst [vmem:[#allocation3 + $0x8f8] sm:$0xff] %v2018
    %2892 = vst [vmem:[#allocation3 + $0x900] sm:$0xff] %v2019
    %2893 = vst [vmem:[#allocation3 + $0x908] sm:$0xff] %v2020
    %2894 = vst [vmem:[#allocation3 + $0x910] sm:$0xff] %v2021
    %2895 = vst [vmem:[#allocation3 + $0x918] sm:$0xff] %v2022
    %2896 = vst [vmem:[#allocation3 + $0x920] sm:$0xff] %v2023
    %2897 = vst [vmem:[#allocation3 + $0x928] sm:$0xff] %v2024
    %2899 = vrot.lane.b32.xlu0 %v2025, 126
    %v2900 = vpop.permute.xlu0 %2899
    %v2901 = vsel %vm86, %v2723, %v2900
    %2903 = vst [vmem:[#allocation3 + $0x930] sm:$0xff] %v2087
    %2904 = vst [vmem:[#allocation3 + $0x938] sm:$0xff] %v2088
    %2905 = vst [vmem:[#allocation3 + $0x940] sm:$0xff] %v2089
    %2906 = vst [vmem:[#allocation3 + $0x948] sm:$0xff] %v2090
    %2907 = vst [vmem:[#allocation3 + $0x950] sm:$0xff] %v2091
    %2908 = vst [vmem:[#allocation3 + $0x958] sm:$0xff] %v2092
    %2909 = vst [vmem:[#allocation3 + $0x960] sm:$0xff] %v2093
    %2910 = vst [vmem:[#allocation3 + $0x968] sm:$0xff] %v2094
    %2911 = vst [vmem:[#allocation3 + $0x970] sm:$0xff] %v2095
    %2912 = vst [vmem:[#allocation3 + $0x978] sm:$0xff] %v2096
    %2913 = vst [vmem:[#allocation3 + $0x980] sm:$0xff] %v2097
    %2914 = vst [vmem:[#allocation3 + $0x988] sm:$0xff] %v2098
    %2915 = vst [vmem:[#allocation3 + $0x990] sm:$0xff] %v2724
    %2916 = vst [vmem:[#allocation3 + $0x998] sm:$0xff] %v2901
    %2917 = vrot.lane.b32.xlu0 %v2025, 124
    %v2918 = vpop.permute.xlu0 %2917
    %v2919 = vsel %vm140, %v2741, %v2918
    %2921 = vst [vmem:[#allocation3 + $0x9a0] sm:$0xff] %v2159
    %2922 = vst [vmem:[#allocation3 + $0x9a8] sm:$0xff] %v2160
    %2923 = vst [vmem:[#allocation3 + $0x9b0] sm:$0xff] %v2161
    %2924 = vst [vmem:[#allocation3 + $0x9b8] sm:$0xff] %v2162
    %2925 = vst [vmem:[#allocation3 + $0x9c0] sm:$0xff] %v2163
    %2926 = vst [vmem:[#allocation3 + $0x9c8] sm:$0xff] %v2164
    %2927 = vst [vmem:[#allocation3 + $0x9d0] sm:$0xff] %v2165
    %2928 = vst [vmem:[#allocation3 + $0x9d8] sm:$0xff] %v2166
    %2929 = vst [vmem:[#allocation3 + $0x9e0] sm:$0xff] %v2167
    %2930 = vst [vmem:[#allocation3 + $0x9e8] sm:$0xff] %v2168
    %2931 = vst [vmem:[#allocation3 + $0x9f0] sm:$0xff] %v2169
    %2932 = vst [vmem:[#allocation3 + $0x9f8] sm:$0xff] %v2170
    %2933 = vst [vmem:[#allocation3 + $0xa00] sm:$0xff] %v2742
    %2934 = vst [vmem:[#allocation3 + $0xa08] sm:$0xff] %v2919
    %2935 = vrot.lane.b32.xlu0 %v2025, 122
    %v2936 = vpop.permute.xlu0 %2935
    %v2937 = vsel %vm2229, %v2759, %v2936
    %2939 = vst [vmem:[#allocation3 + $0xa10] sm:$0xff] %v2232
    %2940 = vst [vmem:[#allocation3 + $0xa18] sm:$0xff] %v2233
    %2941 = vst [vmem:[#allocation3 + $0xa20] sm:$0xff] %v2234
    %2942 = vst [vmem:[#allocation3 + $0xa28] sm:$0xff] %v2235
    %2943 = vst [vmem:[#allocation3 + $0xa30] sm:$0xff] %v2236
    %2944 = vst [vmem:[#allocation3 + $0xa38] sm:$0xff] %v2237
    %2945 = vst [vmem:[#allocation3 + $0xa40] sm:$0xff] %v2238
    %2946 = vst [vmem:[#allocation3 + $0xa48] sm:$0xff] %v2239
    %2947 = vst [vmem:[#allocation3 + $0xa50] sm:$0xff] %v2240
    %2948 = vst [vmem:[#allocation3 + $0xa58] sm:$0xff] %v2241
    %2949 = vst [vmem:[#allocation3 + $0xa60] sm:$0xff] %v2242
    %2950 = vst [vmem:[#allocation3 + $0xa68] sm:$0xff] %v2243
    %2951 = vst [vmem:[#allocation3 + $0xa70] sm:$0xff] %v2760
    %2952 = vst [vmem:[#allocation3 + $0xa78] sm:$0xff] %v2937
    %2953 = vrot.lane.b32.xlu0 %v2025, 120
    %v2954 = vpop.permute.xlu0 %2953
    %v2955 = vsel %vm2302, %v2777, %v2954
    %2957 = vst [vmem:[#allocation3 + $0xa80] sm:$0xff] %v2305
    %2958 = vst [vmem:[#allocation3 + $0xa88] sm:$0xff] %v2306
    %2959 = vst [vmem:[#allocation3 + $0xa90] sm:$0xff] %v2307
    %2960 = vst [vmem:[#allocation3 + $0xa98] sm:$0xff] %v2308
    %2961 = vst [vmem:[#allocation3 + $0xaa0] sm:$0xff] %v2309
    %2962 = vst [vmem:[#allocation3 + $0xaa8] sm:$0xff] %v2310
    %2963 = vst [vmem:[#allocation3 + $0xab0] sm:$0xff] %v2311
    %2964 = vst [vmem:[#allocation3 + $0xab8] sm:$0xff] %v2312
    %2965 = vst [vmem:[#allocation3 + $0xac0] sm:$0xff] %v2313
    %2966 = vst [vmem:[#allocation3 + $0xac8] sm:$0xff] %v2314
    %2967 = vst [vmem:[#allocation3 + $0xad0] sm:$0xff] %v2315
    %2968 = vst [vmem:[#allocation3 + $0xad8] sm:$0xff] %v2316
    %2969 = vst [vmem:[#allocation3 + $0xae0] sm:$0xff] %v2778
    %2970 = vst [vmem:[#allocation3 + $0xae8] sm:$0xff] %v2955
    %v2971 = vld [vmem:[%s2] sm:$0xff]
    %v2972 = vld [vmem:[%s2 + $0x8] sm:$0xff]
    %v2973 = vld [vmem:[%s2 + $0x10] sm:$0xff]
    %v2974 = vld [vmem:[%s2 + $0x18] sm:$0xff]
    %v2975 = vld [vmem:[#allocation3] sm:$0xff]
    %v2976 = vld [vmem:[#allocation3 + $0x8] sm:$0xff]
    %v2977 = vld [vmem:[#allocation3 + $0x10] sm:$0xff]
    %v2978 = vld [vmem:[#allocation3 + $0x18] sm:$0xff]
    %v2979 = vld [vmem:[#allocation3 + $0x20] sm:$0xff]
    %v2980 = vld [vmem:[#allocation3 + $0x28] sm:$0xff]
    %v2981 = vld [vmem:[#allocation3 + $0x30] sm:$0xff]
    %v2982 = vld [vmem:[#allocation3 + $0x38] sm:$0xff]
    %v2983 = vld [vmem:[#allocation3 + $0x40] sm:$0xff]
    %v2984 = vld [vmem:[#allocation3 + $0x48] sm:$0xff]
    %v2985 = vld [vmem:[#allocation3 + $0x50] sm:$0xff]
    %v2986 = vld [vmem:[#allocation3 + $0x58] sm:$0xff]
    %v2987 = vld [vmem:[#allocation3 + $0x60] sm:$0xff]
    %v2988 = vld [vmem:[#allocation3 + $0x68] sm:$0xff]
    %v2989 = vld [vmem:[#allocation3 + $0x70] sm:$0xff]
    %v2990 = vld [vmem:[#allocation3 + $0x78] sm:$0xff]
    %v2991 = vld [vmem:[#allocation3 + $0x80] sm:$0xff]
    %v2992 = vld [vmem:[#allocation3 + $0x88] sm:$0xff]
    %v2993 = vld [vmem:[#allocation3 + $0x90] sm:$0xff]
    %v2994 = vld [vmem:[#allocation3 + $0x98] sm:$0xff]
    %v2995 = vld [vmem:[#allocation3 + $0xa0] sm:$0xff]
    %v2996 = vld [vmem:[#allocation3 + $0xa8] sm:$0xff]
    %v2997 = vld [vmem:[#allocation3 + $0xb0] sm:$0xff]
    %v2998 = vld [vmem:[#allocation3 + $0xb8] sm:$0xff]
    %v2999 = vld [vmem:[#allocation3 + $0xc0] sm:$0xff]
    %v3000 = vld [vmem:[#allocation3 + $0xc8] sm:$0xff]
    %v3001 = vld [vmem:[#allocation3 + $0xd0] sm:$0xff]
    %v3002 = vld [vmem:[#allocation3 + $0xd8] sm:$0xff]
    %v3003 = vld [vmem:[#allocation3 + $0xe0] sm:$0xff]
    %v3004 = vld [vmem:[#allocation3 + $0xe8] sm:$0xff]
    %v3005 = vld [vmem:[#allocation3 + $0xf0] sm:$0xff]
    %v3006 = vld [vmem:[#allocation3 + $0xf8] sm:$0xff]
    %v3007 = vld [vmem:[#allocation3 + $0x100] sm:$0xff]
    %v3008 = vld [vmem:[#allocation3 + $0x108] sm:$0xff]
    %v3009 = vld [vmem:[#allocation3 + $0x110] sm:$0xff]
    %v3010 = vld [vmem:[#allocation3 + $0x118] sm:$0xff]
    %v3011 = vld [vmem:[#allocation3 + $0x120] sm:$0xff]
    %v3012 = vld [vmem:[#allocation3 + $0x128] sm:$0xff]
    %v3013 = vld [vmem:[#allocation3 + $0x130] sm:$0xff]
    %v3014 = vld [vmem:[#allocation3 + $0x138] sm:$0xff]
    %v3015 = vld [vmem:[#allocation3 + $0x140] sm:$0xff]
    %v3016 = vld [vmem:[#allocation3 + $0x148] sm:$0xff]
    %v3017 = vld [vmem:[#allocation3 + $0x150] sm:$0xff]
    %v3018 = vld [vmem:[#allocation3 + $0x158] sm:$0xff]
    %v3019 = vld [vmem:[#allocation3 + $0x160] sm:$0xff]
    %v3020 = vld [vmem:[#allocation3 + $0x168] sm:$0xff]
    %v3021 = vld [vmem:[#allocation3 + $0x170] sm:$0xff]
    %v3022 = vld [vmem:[#allocation3 + $0x178] sm:$0xff]
    %v3023 = vld [vmem:[#allocation3 + $0x180] sm:$0xff]
    %v3024 = vld [vmem:[#allocation3 + $0x188] sm:$0xff]
    %v3025 = vld [vmem:[#allocation3 + $0x190] sm:$0xff]
    %v3026 = vld [vmem:[#allocation3 + $0x198] sm:$0xff]
    %v3027 = vld [vmem:[#allocation3 + $0x1a0] sm:$0xff]
    %v3028 = vld [vmem:[#allocation3 + $0x1a8] sm:$0xff]
    %v3029 = vld [vmem:[#allocation3 + $0x1b0] sm:$0xff]
    %v3030 = vld [vmem:[#allocation3 + $0x1b8] sm:$0xff]
    %v3031 = vld [vmem:[#allocation3 + $0x1c0] sm:$0xff]
    %v3032 = vld [vmem:[#allocation3 + $0x1c8] sm:$0xff]
    %v3033 = vld [vmem:[#allocation3 + $0x1d0] sm:$0xff]
    %v3034 = vld [vmem:[#allocation3 + $0x1d8] sm:$0xff]
    %v3035 = vld [vmem:[#allocation3 + $0x1e0] sm:$0xff]
    %v3036 = vld [vmem:[#allocation3 + $0x1e8] sm:$0xff]
    %v3037 = vld [vmem:[#allocation3 + $0x1f0] sm:$0xff]
    %v3038 = vld [vmem:[#allocation3 + $0x1f8] sm:$0xff]
    %v3039 = vld [vmem:[#allocation3 + $0x200] sm:$0xff]
    %v3040 = vld [vmem:[#allocation3 + $0x208] sm:$0xff]
    %v3041 = vld [vmem:[#allocation3 + $0x210] sm:$0xff]
    %v3042 = vld [vmem:[#allocation3 + $0x218] sm:$0xff]
    %v3043 = vld [vmem:[#allocation3 + $0x220] sm:$0xff]
    %v3044 = vld [vmem:[#allocation3 + $0x228] sm:$0xff]
    %v3045 = vld [vmem:[#allocation3 + $0x230] sm:$0xff]
    %v3046 = vld [vmem:[#allocation3 + $0x238] sm:$0xff]
    %v3047 = vld [vmem:[#allocation3 + $0x240] sm:$0xff]
    %v3048 = vld [vmem:[#allocation3 + $0x248] sm:$0xff]
    %v3049 = vld [vmem:[#allocation3 + $0x250] sm:$0xff]
    %v3050 = vld [vmem:[#allocation3 + $0x258] sm:$0xff]
    %v3051 = vld [vmem:[#allocation3 + $0x260] sm:$0xff]
    %v3052 = vld [vmem:[#allocation3 + $0x268] sm:$0xff]
    %v3053 = vld [vmem:[#allocation3 + $0x270] sm:$0xff]
    %v3054 = vld [vmem:[#allocation3 + $0x278] sm:$0xff]
    %v3055 = vld [vmem:[#allocation3 + $0x280] sm:$0xff]
    %v3056 = vld [vmem:[#allocation3 + $0x288] sm:$0xff]
    %v3057 = vld [vmem:[#allocation3 + $0x290] sm:$0xff]
    %v3058 = vld [vmem:[#allocation3 + $0x298] sm:$0xff]
    %v3059 = vld [vmem:[#allocation3 + $0x2a0] sm:$0xff]
    %v3060 = vld [vmem:[#allocation3 + $0x2a8] sm:$0xff]
    %v3061 = vld [vmem:[#allocation3 + $0x2b0] sm:$0xff]
    %v3062 = vld [vmem:[#allocation3 + $0x2b8] sm:$0xff]
    %v3063 = vld [vmem:[#allocation3 + $0x2c0] sm:$0xff]
    %v3064 = vld [vmem:[#allocation3 + $0x2c8] sm:$0xff]
    %v3065 = vld [vmem:[#allocation3 + $0x2d0] sm:$0xff]
    %v3066 = vld [vmem:[#allocation3 + $0x2d8] sm:$0xff]
    %v3067 = vld [vmem:[#allocation3 + $0x2e0] sm:$0xff]
    %v3068 = vld [vmem:[#allocation3 + $0x2e8] sm:$0xff]
    %v3069 = vld [vmem:[#allocation3 + $0x2f0] sm:$0xff]
    %v3070 = vld [vmem:[#allocation3 + $0x2f8] sm:$0xff]
    %v3071 = vld [vmem:[#allocation3 + $0x300] sm:$0xff]
    %v3072 = vld [vmem:[#allocation3 + $0x308] sm:$0xff]
    %v3073 = vld [vmem:[#allocation3 + $0x310] sm:$0xff]
    %v3074 = vld [vmem:[#allocation3 + $0x318] sm:$0xff]
    %v3075 = vld [vmem:[#allocation3 + $0x320] sm:$0xff]
    %v3076 = vld [vmem:[#allocation3 + $0x328] sm:$0xff]
    %v3077 = vld [vmem:[#allocation3 + $0x330] sm:$0xff]
    %v3078 = vld [vmem:[#allocation3 + $0x338] sm:$0xff]
    %v3079 = vld [vmem:[#allocation3 + $0x340] sm:$0xff]
    %v3080 = vld [vmem:[#allocation3 + $0x348] sm:$0xff]
    %v3081 = vld [vmem:[#allocation3 + $0x350] sm:$0xff]
    %v3082 = vld [vmem:[#allocation3 + $0x358] sm:$0xff]
    %v3083 = vld [vmem:[#allocation3 + $0x360] sm:$0xff]
    %v3084 = vld [vmem:[#allocation3 + $0x368] sm:$0xff]
    %v3085 = vld [vmem:[#allocation3 + $0x370] sm:$0xff]
    %v3086 = vld [vmem:[#allocation3 + $0x378] sm:$0xff]
    %v3087 = vld [vmem:[#allocation3 + $0x380] sm:$0xff]
    %v3088 = vld [vmem:[#allocation3 + $0x388] sm:$0xff]
    %v3089 = vld [vmem:[#allocation3 + $0x390] sm:$0xff]
    %v3090 = vld [vmem:[#allocation3 + $0x398] sm:$0xff]
    %v3091 = vld [vmem:[#allocation3 + $0x3a0] sm:$0xff]
    %v3092 = vld [vmem:[#allocation3 + $0x3a8] sm:$0xff]
    %v3093 = vld [vmem:[#allocation3 + $0x3b0] sm:$0xff]
    %v3094 = vld [vmem:[#allocation3 + $0x3b8] sm:$0xff]
    %v3095 = vld [vmem:[#allocation3 + $0x3c0] sm:$0xff]
    %v3096 = vld [vmem:[#allocation3 + $0x3c8] sm:$0xff]
    %v3097 = vld [vmem:[#allocation3 + $0x3d0] sm:$0xff]
    %v3098 = vld [vmem:[#allocation3 + $0x3d8] sm:$0xff]
    %v3099 = vld [vmem:[#allocation3 + $0x3e0] sm:$0xff]
    %v3100 = vld [vmem:[#allocation3 + $0x3e8] sm:$0xff]
    %v3101 = vld [vmem:[#allocation3 + $0x3f0] sm:$0xff]
    %v3102 = vld [vmem:[#allocation3 + $0x3f8] sm:$0xff]
    %v3103 = vld [vmem:[#allocation3 + $0x400] sm:$0xff]
    %v3104 = vld [vmem:[#allocation3 + $0x408] sm:$0xff]
    %v3105 = vld [vmem:[#allocation3 + $0x410] sm:$0xff]
    %v3106 = vld [vmem:[#allocation3 + $0x418] sm:$0xff]
    %v3107 = vld [vmem:[#allocation3 + $0x420] sm:$0xff]
    %v3108 = vld [vmem:[#allocation3 + $0x428] sm:$0xff]
    %v3109 = vld [vmem:[#allocation3 + $0x430] sm:$0xff]
    %v3110 = vld [vmem:[#allocation3 + $0x438] sm:$0xff]
    %v3111 = vld [vmem:[#allocation3 + $0x440] sm:$0xff]
    %v3112 = vld [vmem:[#allocation3 + $0x448] sm:$0xff]
    %v3113 = vld [vmem:[#allocation3 + $0x450] sm:$0xff]
    %v3114 = vld [vmem:[#allocation3 + $0x458] sm:$0xff]
    %v3115 = vld [vmem:[#allocation3 + $0x460] sm:$0xff]
    %v3116 = vld [vmem:[#allocation3 + $0x468] sm:$0xff]
    %v3117 = vld [vmem:[#allocation3 + $0x470] sm:$0xff]
    %v3118 = vld [vmem:[#allocation3 + $0x478] sm:$0xff]
    %v3119 = vld [vmem:[#allocation3 + $0x480] sm:$0xff]
    %v3120 = vld [vmem:[#allocation3 + $0x488] sm:$0xff]
    %v3121 = vld [vmem:[#allocation3 + $0x490] sm:$0xff]
    %v3122 = vld [vmem:[#allocation3 + $0x498] sm:$0xff]
    %v3123 = vld [vmem:[#allocation3 + $0x4a0] sm:$0xff]
    %v3124 = vld [vmem:[#allocation3 + $0x4a8] sm:$0xff]
    %v3125 = vld [vmem:[#allocation3 + $0x4b0] sm:$0xff]
    %v3126 = vld [vmem:[#allocation3 + $0x4b8] sm:$0xff]
    %v3127 = vld [vmem:[#allocation3 + $0x4c0] sm:$0xff]
    %v3128 = vld [vmem:[#allocation3 + $0x4c8] sm:$0xff]
    %v3129 = vld [vmem:[#allocation3 + $0x4d0] sm:$0xff]
    %v3130 = vld [vmem:[#allocation3 + $0x4d8] sm:$0xff]
    %v3131 = vld [vmem:[#allocation3 + $0x4e0] sm:$0xff]
    %v3132 = vld [vmem:[#allocation3 + $0x4e8] sm:$0xff]
    %v3133 = vld [vmem:[#allocation3 + $0x4f0] sm:$0xff]
    %v3134 = vld [vmem:[#allocation3 + $0x4f8] sm:$0xff]
    %v3135 = vld [vmem:[#allocation3 + $0x500] sm:$0xff]
    %v3136 = vld [vmem:[#allocation3 + $0x508] sm:$0xff]
    %v3137 = vld [vmem:[#allocation3 + $0x510] sm:$0xff]
    %v3138 = vld [vmem:[#allocation3 + $0x518] sm:$0xff]
    %v3139 = vld [vmem:[#allocation3 + $0x520] sm:$0xff]
    %v3140 = vld [vmem:[#allocation3 + $0x528] sm:$0xff]
    %v3141 = vld [vmem:[#allocation3 + $0x530] sm:$0xff]
    %v3142 = vld [vmem:[#allocation3 + $0x538] sm:$0xff]
    %v3143 = vld [vmem:[#allocation3 + $0x540] sm:$0xff]
    %v3144 = vld [vmem:[#allocation3 + $0x548] sm:$0xff]
    %v3145 = vld [vmem:[#allocation3 + $0x550] sm:$0xff]
    %v3146 = vld [vmem:[#allocation3 + $0x558] sm:$0xff]
    %v3147 = vld [vmem:[#allocation3 + $0x560] sm:$0xff]
    %v3148 = vld [vmem:[#allocation3 + $0x568] sm:$0xff]
    %v3149 = vld [vmem:[#allocation3 + $0x570] sm:$0xff]
    %v3150 = vld [vmem:[#allocation3 + $0x578] sm:$0xff]
    %v3151 = vld [vmem:[#allocation3 + $0x580] sm:$0xff]
    %v3152 = vld [vmem:[#allocation3 + $0x588] sm:$0xff]
    %v3153 = vld [vmem:[#allocation3 + $0x590] sm:$0xff]
    %v3154 = vld [vmem:[#allocation3 + $0x598] sm:$0xff]
    %v3155 = vld [vmem:[#allocation3 + $0x5a0] sm:$0xff]
    %v3156 = vld [vmem:[#allocation3 + $0x5a8] sm:$0xff]
    %v3157 = vld [vmem:[#allocation3 + $0x5b0] sm:$0xff]
    %v3158 = vld [vmem:[#allocation3 + $0x5b8] sm:$0xff]
    %v3159 = vld [vmem:[#allocation3 + $0x5c0] sm:$0xff]
    %v3160 = vld [vmem:[#allocation3 + $0x5c8] sm:$0xff]
    %v3161 = vld [vmem:[#allocation3 + $0x5d0] sm:$0xff]
    %v3162 = vld [vmem:[#allocation3 + $0x5d8] sm:$0xff]
    %v3163 = vld [vmem:[#allocation3 + $0x5e0] sm:$0xff]
    %v3164 = vld [vmem:[#allocation3 + $0x5e8] sm:$0xff]
    %v3165 = vld [vmem:[#allocation3 + $0x5f0] sm:$0xff]
    %v3166 = vld [vmem:[#allocation3 + $0x5f8] sm:$0xff]
    %v3167 = vld [vmem:[#allocation3 + $0x600] sm:$0xff]
    %v3168 = vld [vmem:[#allocation3 + $0x608] sm:$0xff]
    %v3169 = vld [vmem:[#allocation3 + $0x610] sm:$0xff]
    %v3170 = vld [vmem:[#allocation3 + $0x618] sm:$0xff]
    %v3171 = vld [vmem:[#allocation3 + $0x620] sm:$0xff]
    %v3172 = vld [vmem:[#allocation3 + $0x628] sm:$0xff]
    %v3173 = vld [vmem:[#allocation3 + $0x630] sm:$0xff]
    %v3174 = vld [vmem:[#allocation3 + $0x638] sm:$0xff]
    %v3175 = vld [vmem:[#allocation3 + $0x640] sm:$0xff]
    %v3176 = vld [vmem:[#allocation3 + $0x648] sm:$0xff]
    %v3177 = vld [vmem:[#allocation3 + $0x650] sm:$0xff]
    %v3178 = vld [vmem:[#allocation3 + $0x658] sm:$0xff]
    %v3179 = vld [vmem:[#allocation3 + $0x660] sm:$0xff]
    %v3180 = vld [vmem:[#allocation3 + $0x668] sm:$0xff]
    %v3181 = vld [vmem:[#allocation3 + $0x670] sm:$0xff]
    %v3182 = vld [vmem:[#allocation3 + $0x678] sm:$0xff]
    %v3183 = vld [vmem:[#allocation3 + $0x680] sm:$0xff]
    %v3184 = vld [vmem:[#allocation3 + $0x688] sm:$0xff]
    %v3185 = vld [vmem:[#allocation3 + $0x690] sm:$0xff]
    %v3186 = vld [vmem:[#allocation3 + $0x698] sm:$0xff]
    %v3187 = vld [vmem:[#allocation3 + $0x6a0] sm:$0xff]
    %v3188 = vld [vmem:[#allocation3 + $0x6a8] sm:$0xff]
    %v3189 = vld [vmem:[#allocation3 + $0x6b0] sm:$0xff]
    %v3190 = vld [vmem:[#allocation3 + $0x6b8] sm:$0xff]
    %v3191 = vld [vmem:[#allocation3 + $0x6c0] sm:$0xff]
    %v3192 = vld [vmem:[#allocation3 + $0x6c8] sm:$0xff]
    %v3193 = vld [vmem:[#allocation3 + $0x6d0] sm:$0xff]
    %v3194 = vld [vmem:[#allocation3 + $0x6d8] sm:$0xff]
    %v3195 = vld [vmem:[#allocation3 + $0x6e0] sm:$0xff]
    %v3196 = vld [vmem:[#allocation3 + $0x6e8] sm:$0xff]
    %v3197 = vld [vmem:[#allocation3 + $0x6f0] sm:$0xff]
    %v3198 = vld [vmem:[#allocation3 + $0x6f8] sm:$0xff]
    %v3199 = vld [vmem:[#allocation3 + $0x700] sm:$0xff]
    %v3200 = vld [vmem:[#allocation3 + $0x708] sm:$0xff]
    %v3201 = vld [vmem:[#allocation3 + $0x710] sm:$0xff]
    %v3202 = vld [vmem:[#allocation3 + $0x718] sm:$0xff]
    %v3203 = vld [vmem:[#allocation3 + $0x720] sm:$0xff]
    %v3204 = vld [vmem:[#allocation3 + $0x728] sm:$0xff]
    %v3205 = vld [vmem:[#allocation3 + $0x730] sm:$0xff]
    %v3206 = vld [vmem:[#allocation3 + $0x738] sm:$0xff]
    %v3207 = vld [vmem:[#allocation3 + $0x740] sm:$0xff]
    %v3208 = vld [vmem:[#allocation3 + $0x748] sm:$0xff]
    %v3209 = vld [vmem:[#allocation3 + $0x750] sm:$0xff]
    %v3210 = vld [vmem:[#allocation3 + $0x758] sm:$0xff]
    %v3211 = vld [vmem:[#allocation3 + $0x760] sm:$0xff]
    %v3212 = vld [vmem:[#allocation3 + $0x768] sm:$0xff]
    %v3213 = vld [vmem:[#allocation3 + $0x770] sm:$0xff]
    %v3214 = vld [vmem:[#allocation3 + $0x778] sm:$0xff]
    %v3215 = vld [vmem:[#allocation3 + $0x780] sm:$0xff]
    %v3216 = vld [vmem:[#allocation3 + $0x788] sm:$0xff]
    %v3217 = vld [vmem:[#allocation3 + $0x790] sm:$0xff]
    %v3218 = vld [vmem:[#allocation3 + $0x798] sm:$0xff]
    %v3219 = vld [vmem:[#allocation3 + $0x7a0] sm:$0xff]
    %v3220 = vld [vmem:[#allocation3 + $0x7a8] sm:$0xff]
    %v3221 = vld [vmem:[#allocation3 + $0x7b0] sm:$0xff]
    %v3222 = vld [vmem:[#allocation3 + $0x7b8] sm:$0xff]
    %v3223 = vld [vmem:[#allocation3 + $0x7c0] sm:$0xff]
    %v3224 = vld [vmem:[#allocation3 + $0x7c8] sm:$0xff]
    %v3225 = vld [vmem:[#allocation3 + $0x7d0] sm:$0xff]
    %v3226 = vld [vmem:[#allocation3 + $0x7d8] sm:$0xff]
    %v3227 = vld [vmem:[#allocation3 + $0x7e0] sm:$0xff]
    %v3228 = vld [vmem:[#allocation3 + $0x7e8] sm:$0xff]
    %v3229 = vld [vmem:[#allocation3 + $0x7f0] sm:$0xff]
    %v3230 = vld [vmem:[#allocation3 + $0x7f8] sm:$0xff]
    %v3231 = vld [vmem:[#allocation3 + $0x800] sm:$0xff]
    %v3232 = vld [vmem:[#allocation3 + $0x808] sm:$0xff]
    %v3233 = vld [vmem:[#allocation3 + $0x810] sm:$0xff]
    %v3234 = vld [vmem:[#allocation3 + $0x818] sm:$0xff]
    %v3235 = vld [vmem:[#allocation3 + $0x820] sm:$0xff]
    %v3236 = vld [vmem:[#allocation3 + $0x828] sm:$0xff]
    %v3237 = vld [vmem:[#allocation3 + $0x830] sm:$0xff]
    %v3238 = vld [vmem:[#allocation3 + $0x838] sm:$0xff]
    %v3239 = vld [vmem:[#allocation3 + $0x840] sm:$0xff]
    %v3240 = vld [vmem:[#allocation3 + $0x848] sm:$0xff]
    %v3241 = vld [vmem:[#allocation3 + $0x850] sm:$0xff]
    %v3242 = vld [vmem:[#allocation3 + $0x858] sm:$0xff]
    %v3243 = vld [vmem:[#allocation3 + $0x860] sm:$0xff]
    %v3244 = vld [vmem:[#allocation3 + $0x868] sm:$0xff]
    %v3245 = vld [vmem:[#allocation3 + $0x870] sm:$0xff]
    %v3246 = vld [vmem:[#allocation3 + $0x878] sm:$0xff]
    %v3247 = vld [vmem:[#allocation3 + $0x880] sm:$0xff]
    %v3248 = vld [vmem:[#allocation3 + $0x888] sm:$0xff]
    %v3249 = vld [vmem:[#allocation3 + $0x890] sm:$0xff]
    %v3250 = vld [vmem:[#allocation3 + $0x898] sm:$0xff]
    %v3251 = vld [vmem:[#allocation3 + $0x8a0] sm:$0xff]
    %v3252 = vld [vmem:[#allocation3 + $0x8a8] sm:$0xff]
    %v3253 = vld [vmem:[#allocation3 + $0x8b0] sm:$0xff]
    %v3254 = vld [vmem:[#allocation3 + $0x8b8] sm:$0xff]
    %v3255 = vld [vmem:[#allocation3 + $0x8c0] sm:$0xff]
    %v3256 = vld [vmem:[#allocation3 + $0x8c8] sm:$0xff]
    %v3257 = vld [vmem:[#allocation3 + $0x8d0] sm:$0xff]
    %v3258 = vld [vmem:[#allocation3 + $0x8d8] sm:$0xff]
    %v3259 = vld [vmem:[#allocation3 + $0x8e0] sm:$0xff]
    %v3260 = vld [vmem:[#allocation3 + $0x8e8] sm:$0xff]
    %v3261 = vld [vmem:[#allocation3 + $0x8f0] sm:$0xff]
    %v3262 = vld [vmem:[#allocation3 + $0x8f8] sm:$0xff]
    %v3263 = vld [vmem:[#allocation3 + $0x900] sm:$0xff]
    %v3264 = vld [vmem:[#allocation3 + $0x908] sm:$0xff]
    %v3265 = vld [vmem:[#allocation3 + $0x910] sm:$0xff]
    %v3266 = vld [vmem:[#allocation3 + $0x918] sm:$0xff]
    %v3267 = vld [vmem:[#allocation3 + $0x920] sm:$0xff]
    %v3268 = vld [vmem:[#allocation3 + $0x928] sm:$0xff]
    %v3269 = vld [vmem:[#allocation3 + $0x930] sm:$0xff]
    %v3270 = vld [vmem:[#allocation3 + $0x938] sm:$0xff]
    %v3271 = vld [vmem:[#allocation3 + $0x940] sm:$0xff]
    %v3272 = vld [vmem:[#allocation3 + $0x948] sm:$0xff]
    %v3273 = vld [vmem:[#allocation3 + $0x950] sm:$0xff]
    %v3274 = vld [vmem:[#allocation3 + $0x958] sm:$0xff]
    %v3275 = vld [vmem:[#allocation3 + $0x960] sm:$0xff]
    %v3276 = vld [vmem:[#allocation3 + $0x968] sm:$0xff]
    %v3277 = vld [vmem:[#allocation3 + $0x970] sm:$0xff]
    %v3278 = vld [vmem:[#allocation3 + $0x978] sm:$0xff]
    %v3279 = vld [vmem:[#allocation3 + $0x980] sm:$0xff]
    %v3280 = vld [vmem:[#allocation3 + $0x988] sm:$0xff]
    %v3281 = vld [vmem:[#allocation3 + $0x990] sm:$0xff]
    %v3282 = vld [vmem:[#allocation3 + $0x998] sm:$0xff]
    %v3283 = vld [vmem:[#allocation3 + $0x9a0] sm:$0xff]
    %v3284 = vld [vmem:[#allocation3 + $0x9a8] sm:$0xff]
    %v3285 = vld [vmem:[#allocation3 + $0x9b0] sm:$0xff]
    %v3286 = vld [vmem:[#allocation3 + $0x9b8] sm:$0xff]
    %v3287 = vld [vmem:[#allocation3 + $0x9c0] sm:$0xff]
    %v3288 = vld [vmem:[#allocation3 + $0x9c8] sm:$0xff]
    %v3289 = vld [vmem:[#allocation3 + $0x9d0] sm:$0xff]
    %v3290 = vld [vmem:[#allocation3 + $0x9d8] sm:$0xff]
    %v3291 = vld [vmem:[#allocation3 + $0x9e0] sm:$0xff]
    %v3292 = vld [vmem:[#allocation3 + $0x9e8] sm:$0xff]
    %v3293 = vld [vmem:[#allocation3 + $0x9f0] sm:$0xff]
    %v3294 = vld [vmem:[#allocation3 + $0x9f8] sm:$0xff]
    %v3295 = vld [vmem:[#allocation3 + $0xa00] sm:$0xff]
    %v3296 = vld [vmem:[#allocation3 + $0xa08] sm:$0xff]
    %v3297 = vld [vmem:[#allocation3 + $0xa10] sm:$0xff]
    %v3298 = vld [vmem:[#allocation3 + $0xa18] sm:$0xff]
    %v3299 = vld [vmem:[#allocation3 + $0xa20] sm:$0xff]
    %v3300 = vld [vmem:[#allocation3 + $0xa28] sm:$0xff]
    %v3301 = vld [vmem:[#allocation3 + $0xa30] sm:$0xff]
    %v3302 = vld [vmem:[#allocation3 + $0xa38] sm:$0xff]
    %v3303 = vld [vmem:[#allocation3 + $0xa40] sm:$0xff]
    %v3304 = vld [vmem:[#allocation3 + $0xa48] sm:$0xff]
    %v3305 = vld [vmem:[#allocation3 + $0xa50] sm:$0xff]
    %v3306 = vld [vmem:[#allocation3 + $0xa58] sm:$0xff]
    %v3307 = vld [vmem:[#allocation3 + $0xa60] sm:$0xff]
    %v3308 = vld [vmem:[#allocation3 + $0xa68] sm:$0xff]
    %v3309 = vld [vmem:[#allocation3 + $0xa70] sm:$0xff]
    %v3310 = vld [vmem:[#allocation3 + $0xa78] sm:$0xff]
    %v3311 = vld [vmem:[#allocation3 + $0xa80] sm:$0xff]
    %v3312 = vld [vmem:[#allocation3 + $0xa88] sm:$0xff]
    %v3313 = vld [vmem:[#allocation3 + $0xa90] sm:$0xff]
    %v3314 = vld [vmem:[#allocation3 + $0xa98] sm:$0xff]
    %v3315 = vld [vmem:[#allocation3 + $0xaa0] sm:$0xff]
    %v3316 = vld [vmem:[#allocation3 + $0xaa8] sm:$0xff]
    %v3317 = vld [vmem:[#allocation3 + $0xab0] sm:$0xff]
    %v3318 = vld [vmem:[#allocation3 + $0xab8] sm:$0xff]
    %v3319 = vld [vmem:[#allocation3 + $0xac0] sm:$0xff]
    %v3320 = vld [vmem:[#allocation3 + $0xac8] sm:$0xff]
    %v3321 = vld [vmem:[#allocation3 + $0xad0] sm:$0xff]
    %v3322 = vld [vmem:[#allocation3 + $0xad8] sm:$0xff]
    %v3323 = vld [vmem:[#allocation3 + $0xae0] sm:$0xff]
    %v3324 = vld [vmem:[#allocation3 + $0xae8] sm:$0xff]
    %v3325 = vld [vmem:[%s3] sm:$0xff]
    %v3326 = vld [vmem:[%s3 + $0x8] sm:$0xff]
    %3328 = vset.pattern.permute.xlu0 3
    %3329 = vperm.xlu0 %3328, %v3325
    %v3330 = vpop.permute.xlu0 %3329
    %3333 = vset.pattern.permute.xlu0 3
    %3334 = vperm.xlu0 %3333, %v3326
    %v3335 = vpop.permute.xlu0 %3334
    %vm3337 = vcmask 588800
    %v3339 = vsel %vm3337, %v2972, 0
    %v3342 = vsel %vm3337, %v2974, 0
    %3344 = vmatprep.subr.mxu0 %v2976
    %3345 = vmatpush1.msra.mxu0 %v2975
    %3346 = vmatprep.subr.mxu0 %v2990
    %3347 = vmatpush1.msra.mxu0 %v2989
    %3348 = vmatprep.subr.mxu0 %v3004
    %3349 = vmatpush1.msra.mxu0 %v3003
    %3350 = vmatprep.subr.mxu0 %v3018
    %3351 = vmatpush1.msra.mxu0 %v3017
    %3352 = vmatprep.subr.mxu0 %v3032
    %3353 = vmatpush1.msra.mxu0 %v3031
    %3354 = vmatprep.subr.mxu0 %v3046
    %3355 = vmatpush1.msra.mxu0 %v3045
    %3356 = vmatprep.subr.mxu0 %v3060
    %3357 = vmatpush1.msra.mxu0 %v3059
    %3358 = vmatprep.subr.mxu0 %v3074
    %3359 = vmatpush1.msra.mxu0 %v3073
    %3360 = vmatprep.subr.mxu0 %v3088
    %3361 = vmatpush1.msra.mxu0 %v3087
    %3362 = vmatprep.subr.mxu0 %v3102
    %3363 = vmatpush1.msra.mxu0 %v3101
    %3364 = vmatprep.subr.mxu0 %v3116
    %3365 = vmatpush1.msra.mxu0 %v3115
    %3366 = vmatprep.subr.mxu0 %v3130
    %3367 = vmatpush1.msra.mxu0 %v3129
    %3368 = vmatprep.subr.mxu0 %v3144
    %3369 = vmatpush1.msra.mxu0 %v3143
    %3370 = vmatprep.subr.mxu0 %v3158
    %3371 = vmatpush1.msra.mxu0 %v3157
    %3372 = vmatprep.subr.mxu0 %v3172
    %3373 = vmatpush1.msra.mxu0 %v3171
    %3374 = vmatprep.subr.mxu0 %v3186
    %3375 = vmatpush1.msra.mxu0 %v3185
    %3376 = vmatprep.subr.mxu0 %v3200
    %3377 = vmatpush1.msra.mxu0 %v3199
    %3378 = vmatprep.subr.mxu0 %v3214
    %3379 = vmatpush1.msra.mxu0 %v3213
    %3380 = vmatprep.subr.mxu0 %v3228
    %3381 = vmatpush1.msra.mxu0 %v3227
    %3382 = vmatprep.subr.mxu0 %v3242
    %3383 = vmatpush1.msra.mxu0 %v3241
    %3384 = vmatprep.subr.mxu0 %v3256
    %3385 = vmatpush1.msra.mxu0 %v3255
    %3386 = vmatprep.subr.mxu0 %v3270
    %3387 = vmatpush1.msra.mxu0 %v3269
    %3388 = vmatprep.subr.mxu0 %v3284
    %3389 = vmatpush1.msra.mxu0 %v3283
    %3390 = vmatprep.subr.mxu0 %v3298
    %3391 = vmatpush1.msra.mxu0 %v3297
    %3392 = vmatprep.subr.mxu0 %v3312
    %3393 = vmatpush1.msra.mxu0 %v3311
    %3394 = vmatprep.subr.mxu0 0.0
    %3395 = vmatpush1.msra.mxu0 0.0
    %3396 = vmatprep.subr.mxu0 0.0
    %3397 = vmatpush1.msra.mxu0 0.0
    %3398 = vmatprep.subr.mxu0 0.0
    %3399 = vmatpush1.msra.mxu0 0.0
    %3400 = vmatprep.subr.mxu0 0.0
    %3401 = vmatpush1.msra.mxu0 0.0
    %3402 = vmatprep.subr.mxu0 0.0
    %3403 = vmatpush1.msra.mxu0 0.0
    %3404 = vmatprep.subr.mxu0 0.0
    %3405 = vmatpush1.msra.mxu0 0.0
    %3406 = vmatprep.subr.mxu0 0.0
    %3407 = vmatpush1.msra.mxu0 0.0
    %3408 = vmatprep.mubr.f32.mxu0 %v3339
    %3409 = vmatmul.mubr.f32.gmra.mrb[0].mxu0 %v2971
    %v3410 = vpop.f32.mrb[0].mxu0
    %v3411 = vadd.f32 %v3330, %v3410
    %v3412 = vpop.f32.mrb[0].mxu0
    %v3413 = vadd.f32 %v3330, %v3412
    %3414 = vmatprep.mubr.f32.mxu0 %v3342
    %3415 = vmatmul.mubr.f32.gmra.mrb[0].mxu0 %v2973
    %v3416 = vpop.f32.mrb[0].mxu0
    %v3417 = vadd.f32 %v3335, %v3416
    %v3418 = vpop.f32.mrb[0].mxu0
    %v3419 = vadd.f32 %v3335, %v3418
    %3420 = vdwg.mxu0
    %3421 = vmatprep.subr.mxu0 %v2978
    %3422 = vmatpush1.msra.mxu0 %v2977
    %3423 = vmatprep.subr.mxu0 %v2992
    %3424 = vmatpush1.msra.mxu0 %v2991
    %3425 = vmatprep.subr.mxu0 %v3006
    %3426 = vmatpush1.msra.mxu0 %v3005
    %3427 = vmatprep.subr.mxu0 %v3020
    %3428 = vmatpush1.msra.mxu0 %v3019
    %3429 = vmatprep.subr.mxu0 %v3034
    %3430 = vmatpush1.msra.mxu0 %v3033
    %3431 = vmatprep.subr.mxu0 %v3048
    %3432 = vmatpush1.msra.mxu0 %v3047
    %3433 = vmatprep.subr.mxu0 %v3062
    %3434 = vmatpush1.msra.mxu0 %v3061
    %3435 = vmatprep.subr.mxu0 %v3076
    %3436 = vmatpush1.msra.mxu0 %v3075
    %3437 = vmatprep.subr.mxu0 %v3090
    %3438 = vmatpush1.msra.mxu0 %v3089
    %3439 = vmatprep.subr.mxu0 %v3104
    %3440 = vmatpush1.msra.mxu0 %v3103
    %3441 = vmatprep.subr.mxu0 %v3118
    %3442 = vmatpush1.msra.mxu0 %v3117
    %3443 = vmatprep.subr.mxu0 %v3132
    %3444 = vmatpush1.msra.mxu0 %v3131
    %3445 = vmatprep.subr.mxu0 %v3146
    %3446 = vmatpush1.msra.mxu0 %v3145
    %3447 = vmatprep.subr.mxu0 %v3160
    %3448 = vmatpush1.msra.mxu0 %v3159
    %3449 = vmatprep.subr.mxu0 %v3174
    %3450 = vmatpush1.msra.mxu0 %v3173
    %3451 = vmatprep.subr.mxu0 %v3188
    %3452 = vmatpush1.msra.mxu0 %v3187
    %3453 = vmatprep.subr.mxu0 %v3202
    %3454 = vmatpush1.msra.mxu0 %v3201
    %3455 = vmatprep.subr.mxu0 %v3216
    %3456 = vmatpush1.msra.mxu0 %v3215
    %3457 = vmatprep.subr.mxu0 %v3230
    %3458 = vmatpush1.msra.mxu0 %v3229
    %3459 = vmatprep.subr.mxu0 %v3244
    %3460 = vmatpush1.msra.mxu0 %v3243
    %3461 = vmatprep.subr.mxu0 %v3258
    %3462 = vmatpush1.msra.mxu0 %v3257
    %3463 = vmatprep.subr.mxu0 %v3272
    %3464 = vmatpush1.msra.mxu0 %v3271
    %3465 = vmatprep.subr.mxu0 %v3286
    %3466 = vmatpush1.msra.mxu0 %v3285
    %3467 = vmatprep.subr.mxu0 %v3300
    %3468 = vmatpush1.msra.mxu0 %v3299
    %3469 = vmatprep.subr.mxu0 %v3314
    %3470 = vmatpush1.msra.mxu0 %v3313
    %3471 = vmatprep.subr.mxu0 0.0
    %3472 = vmatpush1.msra.mxu0 0.0
    %3473 = vmatprep.subr.mxu0 0.0
    %3474 = vmatpush1.msra.mxu0 0.0
    %3475 = vmatprep.subr.mxu0 0.0
    %3476 = vmatpush1.msra.mxu0 0.0
    %3477 = vmatprep.subr.mxu0 0.0
    %3478 = vmatpush1.msra.mxu0 0.0
    %3479 = vmatprep.subr.mxu0 0.0
    %3480 = vmatpush1.msra.mxu0 0.0
    %3481 = vmatprep.subr.mxu0 0.0
    %3482 = vmatpush1.msra.mxu0 0.0
    %3483 = vmatprep.subr.mxu0 0.0
    %3484 = vmatpush1.msra.mxu0 0.0
    %3485 = vmatprep.mubr.f32.mxu0 %v3339
    %3486 = vmatmul.mubr.f32.gmra.mrb[0].mxu0 %v2971
    %v3487 = vpop.f32.mrb[0].mxu0
    %v3488 = vadd.f32 %v3330, %v3487
    %v3489 = vpop.f32.mrb[0].mxu0
    %v3490 = vadd.f32 %v3330, %v3489
    %3491 = vmatprep.mubr.f32.mxu0 %v3342
    %3492 = vmatmul.mubr.f32.gmra.mrb[0].mxu0 %v2973
    %v3493 = vpop.f32.mrb[0].mxu0
    %v3494 = vadd.f32 %v3335, %v3493
    %v3495 = vpop.f32.mrb[0].mxu0
    %v3496 = vadd.f32 %v3335, %v3495
    %3497 = vdwg.mxu0
    %3498 = vmatprep.subr.mxu0 %v2980
    %3499 = vmatpush1.msra.mxu0 %v2979
    %3500 = vmatprep.subr.mxu0 %v2994
    %3501 = vmatpush1.msra.mxu0 %v2993
    %3502 = vmatprep.subr.mxu0 %v3008
    %3503 = vmatpush1.msra.mxu0 %v3007
    %3504 = vmatprep.subr.mxu0 %v3022
    %3505 = vmatpush1.msra.mxu0 %v3021
    %3506 = vmatprep.subr.mxu0 %v3036
    %3507 = vmatpush1.msra.mxu0 %v3035
    %3508 = vmatprep.subr.mxu0 %v3050
    %3509 = vmatpush1.msra.mxu0 %v3049
    %3510 = vmatprep.subr.mxu0 %v3064
    %3511 = vmatpush1.msra.mxu0 %v3063
    %3512 = vmatprep.subr.mxu0 %v3078
    %3513 = vmatpush1.msra.mxu0 %v3077
    %3514 = vmatprep.subr.mxu0 %v3092
    %3515 = vmatpush1.msra.mxu0 %v3091
    %3516 = vmatprep.subr.mxu0 %v3106
    %3517 = vmatpush1.msra.mxu0 %v3105
    %3518 = vmatprep.subr.mxu0 %v3120
    %3519 = vmatpush1.msra.mxu0 %v3119
    %3520 = vmatprep.subr.mxu0 %v3134
    %3521 = vmatpush1.msra.mxu0 %v3133
    %3522 = vmatprep.subr.mxu0 %v3148
    %3523 = vmatpush1.msra.mxu0 %v3147
    %3524 = vmatprep.subr.mxu0 %v3162
    %3525 = vmatpush1.msra.mxu0 %v3161
    %3526 = vmatprep.subr.mxu0 %v3176
    %3527 = vmatpush1.msra.mxu0 %v3175
    %3528 = vmatprep.subr.mxu0 %v3190
    %3529 = vmatpush1.msra.mxu0 %v3189
    %3530 = vmatprep.subr.mxu0 %v3204
    %3531 = vmatpush1.msra.mxu0 %v3203
    %3532 = vmatprep.subr.mxu0 %v3218
    %3533 = vmatpush1.msra.mxu0 %v3217
    %3534 = vmatprep.subr.mxu0 %v3232
    %3535 = vmatpush1.msra.mxu0 %v3231
    %3536 = vmatprep.subr.mxu0 %v3246
    %3537 = vmatpush1.msra.mxu0 %v3245
    %3538 = vmatprep.subr.mxu0 %v3260
    %3539 = vmatpush1.msra.mxu0 %v3259
    %3540 = vmatprep.subr.mxu0 %v3274
    %3541 = vmatpush1.msra.mxu0 %v3273
    %3542 = vmatprep.subr.mxu0 %v3288
    %3543 = vmatpush1.msra.mxu0 %v3287
    %3544 = vmatprep.subr.mxu0 %v3302
    %3545 = vmatpush1.msra.mxu0 %v3301
    %3546 = vmatprep.subr.mxu0 %v3316
    %3547 = vmatpush1.msra.mxu0 %v3315
    %3548 = vmatprep.subr.mxu0 0.0
    %3549 = vmatpush1.msra.mxu0 0.0
    %3550 = vmatprep.subr.mxu0 0.0
    %3551 = vmatpush1.msra.mxu0 0.0
    %3552 = vmatprep.subr.mxu0 0.0
    %3553 = vmatpush1.msra.mxu0 0.0
    %3554 = vmatprep.subr.mxu0 0.0
    %3555 = vmatpush1.msra.mxu0 0.0
    %3556 = vmatprep.subr.mxu0 0.0
    %3557 = vmatpush1.msra.mxu0 0.0
    %3558 = vmatprep.subr.mxu0 0.0
    %3559 = vmatpush1.msra.mxu0 0.0
    %3560 = vmatprep.subr.mxu0 0.0
    %3561 = vmatpush1.msra.mxu0 0.0
    %3562 = vmatprep.mubr.f32.mxu0 %v3339
    %3563 = vmatmul.mubr.f32.gmra.mrb[0].mxu0 %v2971
    %v3564 = vpop.f32.mrb[0].mxu0
    %v3565 = vadd.f32 %v3330, %v3564
    %v3566 = vpop.f32.mrb[0].mxu0
    %v3567 = vadd.f32 %v3330, %v3566
    %3568 = vmatprep.mubr.f32.mxu0 %v3342
    %3569 = vmatmul.mubr.f32.gmra.mrb[0].mxu0 %v2973
    %v3570 = vpop.f32.mrb[0].mxu0
    %v3571 = vadd.f32 %v3335, %v3570
    %v3572 = vpop.f32.mrb[0].mxu0
    %v3573 = vadd.f32 %v3335, %v3572
    %3574 = vdwg.mxu0
    %3575 = vmatprep.subr.mxu0 %v2982
    %3576 = vmatpush1.msra.mxu0 %v2981
    %3577 = vmatprep.subr.mxu0 %v2996
    %3578 = vmatpush1.msra.mxu0 %v2995
    %3579 = vmatprep.subr.mxu0 %v3010
    %3580 = vmatpush1.msra.mxu0 %v3009
    %3581 = vmatprep.subr.mxu0 %v3024
    %3582 = vmatpush1.msra.mxu0 %v3023
    %3583 = vmatprep.subr.mxu0 %v3038
    %3584 = vmatpush1.msra.mxu0 %v3037
    %3585 = vmatprep.subr.mxu0 %v3052
    %3586 = vmatpush1.msra.mxu0 %v3051
    %3587 = vmatprep.subr.mxu0 %v3066
    %3588 = vmatpush1.msra.mxu0 %v3065
    %3589 = vmatprep.subr.mxu0 %v3080
    %3590 = vmatpush1.msra.mxu0 %v3079
    %3591 = vmatprep.subr.mxu0 %v3094
    %3592 = vmatpush1.msra.mxu0 %v3093
    %3593 = vmatprep.subr.mxu0 %v3108
    %3594 = vmatpush1.msra.mxu0 %v3107
    %3595 = vmatprep.subr.mxu0 %v3122
    %3596 = vmatpush1.msra.mxu0 %v3121
    %3597 = vmatprep.subr.mxu0 %v3136
    %3598 = vmatpush1.msra.mxu0 %v3135
    %3599 = vmatprep.subr.mxu0 %v3150
    %3600 = vmatpush1.msra.mxu0 %v3149
    %3601 = vmatprep.subr.mxu0 %v3164
    %3602 = vmatpush1.msra.mxu0 %v3163
    %3603 = vmatprep.subr.mxu0 %v3178
    %3604 = vmatpush1.msra.mxu0 %v3177
    %3605 = vmatprep.subr.mxu0 %v3192
    %3606 = vmatpush1.msra.mxu0 %v3191
    %3607 = vmatprep.subr.mxu0 %v3206
    %3608 = vmatpush1.msra.mxu0 %v3205
    %3609 = vmatprep.subr.mxu0 %v3220
    %3610 = vmatpush1.msra.mxu0 %v3219
    %3611 = vmatprep.subr.mxu0 %v3234
    %3612 = vmatpush1.msra.mxu0 %v3233
    %3613 = vmatprep.subr.mxu0 %v3248
    %3614 = vmatpush1.msra.mxu0 %v3247
    %3615 = vmatprep.subr.mxu0 %v3262
    %3616 = vmatpush1.msra.mxu0 %v3261
    %3617 = vmatprep.subr.mxu0 %v3276
    %3618 = vmatpush1.msra.mxu0 %v3275
    %3619 = vmatprep.subr.mxu0 %v3290
    %3620 = vmatpush1.msra.mxu0 %v3289
    %3621 = vmatprep.subr.mxu0 %v3304
    %3622 = vmatpush1.msra.mxu0 %v3303
    %3623 = vmatprep.subr.mxu0 %v3318
    %3624 = vmatpush1.msra.mxu0 %v3317
    %3625 = vmatprep.subr.mxu0 0.0
    %3626 = vmatpush1.msra.mxu0 0.0
    %3627 = vmatprep.subr.mxu0 0.0
    %3628 = vmatpush1.msra.mxu0 0.0
    %3629 = vmatprep.subr.mxu0 0.0
    %3630 = vmatpush1.msra.mxu0 0.0
    %3631 = vmatprep.subr.mxu0 0.0
    %3632 = vmatpush1.msra.mxu0 0.0
    %3633 = vmatprep.subr.mxu0 0.0
    %3634 = vmatpush1.msra.mxu0 0.0
    %3635 = vmatprep.subr.mxu0 0.0
    %3636 = vmatpush1.msra.mxu0 0.0
    %3637 = vmatprep.subr.mxu0 0.0
    %3638 = vmatpush1.msra.mxu0 0.0
    %3639 = vmatprep.mubr.f32.mxu0 %v3339
    %3640 = vmatmul.mubr.f32.gmra.mrb[0].mxu0 %v2971
    %v3641 = vpop.f32.mrb[0].mxu0
    %v3642 = vadd.f32 %v3330, %v3641
    %v3643 = vpop.f32.mrb[0].mxu0
    %v3644 = vadd.f32 %v3330, %v3643
    %3645 = vmatprep.mubr.f32.mxu0 %v3342
    %3646 = vmatmul.mubr.f32.gmra.mrb[0].mxu0 %v2973
    %v3647 = vpop.f32.mrb[0].mxu0
    %v3648 = vadd.f32 %v3335, %v3647
    %v3649 = vpop.f32.mrb[0].mxu0
    %v3650 = vadd.f32 %v3335, %v3649
    %3651 = vdwg.mxu0
    %3652 = vmatprep.subr.mxu0 %v2984
    %3653 = vmatpush1.msra.mxu0 %v2983
    %3654 = vmatprep.subr.mxu0 %v2998
    %3655 = vmatpush1.msra.mxu0 %v2997
    %3656 = vmatprep.subr.mxu0 %v3012
    %3657 = vmatpush1.msra.mxu0 %v3011
    %3658 = vmatprep.subr.mxu0 %v3026
    %3659 = vmatpush1.msra.mxu0 %v3025
    %3660 = vmatprep.subr.mxu0 %v3040
    %3661 = vmatpush1.msra.mxu0 %v3039
    %3662 = vmatprep.subr.mxu0 %v3054
    %3663 = vmatpush1.msra.mxu0 %v3053
    %3664 = vmatprep.subr.mxu0 %v3068
    %3665 = vmatpush1.msra.mxu0 %v3067
    %3666 = vmatprep.subr.mxu0 %v3082
    %3667 = vmatpush1.msra.mxu0 %v3081
    %3668 = vmatprep.subr.mxu0 %v3096
    %3669 = vmatpush1.msra.mxu0 %v3095
    %3670 = vmatprep.subr.mxu0 %v3110
    %3671 = vmatpush1.msra.mxu0 %v3109
    %3672 = vmatprep.subr.mxu0 %v3124
    %3673 = vmatpush1.msra.mxu0 %v3123
    %3674 = vmatprep.subr.mxu0 %v3138
    %3675 = vmatpush1.msra.mxu0 %v3137
    %3676 = vmatprep.subr.mxu0 %v3152
    %3677 = vmatpush1.msra.mxu0 %v3151
    %3678 = vmatprep.subr.mxu0 %v3166
    %3679 = vmatpush1.msra.mxu0 %v3165
    %3680 = vmatprep.subr.mxu0 %v3180
    %3681 = vmatpush1.msra.mxu0 %v3179
    %3682 = vmatprep.subr.mxu0 %v3194
    %3683 = vmatpush1.msra.mxu0 %v3193
    %3684 = vmatprep.subr.mxu0 %v3208
    %3685 = vmatpush1.msra.mxu0 %v3207
    %3686 = vmatprep.subr.mxu0 %v3222
    %3687 = vmatpush1.msra.mxu0 %v3221
    %3688 = vmatprep.subr.mxu0 %v3236
    %3689 = vmatpush1.msra.mxu0 %v3235
    %3690 = vmatprep.subr.mxu0 %v3250
    %3691 = vmatpush1.msra.mxu0 %v3249
    %3692 = vmatprep.subr.mxu0 %v3264
    %3693 = vmatpush1.msra.mxu0 %v3263
    %3694 = vmatprep.subr.mxu0 %v3278
    %3695 = vmatpush1.msra.mxu0 %v3277
    %3696 = vmatprep.subr.mxu0 %v3292
    %3697 = vmatpush1.msra.mxu0 %v3291
    %3698 = vmatprep.subr.mxu0 %v3306
    %3699 = vmatpush1.msra.mxu0 %v3305
    %3700 = vmatprep.subr.mxu0 %v3320
    %3701 = vmatpush1.msra.mxu0 %v3319
    %3702 = vmatprep.subr.mxu0 0.0
    %3703 = vmatpush1.msra.mxu0 0.0
    %3704 = vmatprep.subr.mxu0 0.0
    %3705 = vmatpush1.msra.mxu0 0.0
    %3706 = vmatprep.subr.mxu0 0.0
    %3707 = vmatpush1.msra.mxu0 0.0
    %3708 = vmatprep.subr.mxu0 0.0
    %3709 = vmatpush1.msra.mxu0 0.0
    %3710 = vmatprep.subr.mxu0 0.0
    %3711 = vmatpush1.msra.mxu0 0.0
    %3712 = vmatprep.subr.mxu0 0.0
    %3713 = vmatpush1.msra.mxu0 0.0
    %3714 = vmatprep.subr.mxu0 0.0
    %3715 = vmatpush1.msra.mxu0 0.0
    %3716 = vmatprep.mubr.f32.mxu0 %v3339
    %3717 = vmatmul.mubr.f32.gmra.mrb[0].mxu0 %v2971
    %v3718 = vpop.f32.mrb[0].mxu0
    %v3719 = vadd.f32 %v3330, %v3718
    %v3720 = vpop.f32.mrb[0].mxu0
    %v3721 = vadd.f32 %v3330, %v3720
    %3722 = vmatprep.mubr.f32.mxu0 %v3342
    %3723 = vmatmul.mubr.f32.gmra.mrb[0].mxu0 %v2973
    %v3724 = vpop.f32.mrb[0].mxu0
    %v3725 = vadd.f32 %v3335, %v3724
    %v3726 = vpop.f32.mrb[0].mxu0
    %v3727 = vadd.f32 %v3335, %v3726
    %3728 = vdwg.mxu0
    %3729 = vmatprep.subr.mxu0 %v2986
    %3730 = vmatpush1.msra.mxu0 %v2985
    %3731 = vmatprep.subr.mxu0 %v3000
    %3732 = vmatpush1.msra.mxu0 %v2999
    %3733 = vmatprep.subr.mxu0 %v3014
    %3734 = vmatpush1.msra.mxu0 %v3013
    %3735 = vmatprep.subr.mxu0 %v3028
    %3736 = vmatpush1.msra.mxu0 %v3027
    %3737 = vmatprep.subr.mxu0 %v3042
    %3738 = vmatpush1.msra.mxu0 %v3041
    %3739 = vmatprep.subr.mxu0 %v3056
    %3740 = vmatpush1.msra.mxu0 %v3055
    %3741 = vmatprep.subr.mxu0 %v3070
    %3742 = vmatpush1.msra.mxu0 %v3069
    %3743 = vmatprep.subr.mxu0 %v3084
    %3744 = vmatpush1.msra.mxu0 %v3083
    %3745 = vmatprep.subr.mxu0 %v3098
    %3746 = vmatpush1.msra.mxu0 %v3097
    %3747 = vmatprep.subr.mxu0 %v3112
    %3748 = vmatpush1.msra.mxu0 %v3111
    %3749 = vmatprep.subr.mxu0 %v3126
    %3750 = vmatpush1.msra.mxu0 %v3125
    %3751 = vmatprep.subr.mxu0 %v3140
    %3752 = vmatpush1.msra.mxu0 %v3139
    %3753 = vmatprep.subr.mxu0 %v3154
    %3754 = vmatpush1.msra.mxu0 %v3153
    %3755 = vmatprep.subr.mxu0 %v3168
    %3756 = vmatpush1.msra.mxu0 %v3167
    %3757 = vmatprep.subr.mxu0 %v3182
    %3758 = vmatpush1.msra.mxu0 %v3181
    %3759 = vmatprep.subr.mxu0 %v3196
    %3760 = vmatpush1.msra.mxu0 %v3195
    %3761 = vmatprep.subr.mxu0 %v3210
    %3762 = vmatpush1.msra.mxu0 %v3209
    %3763 = vmatprep.subr.mxu0 %v3224
    %3764 = vmatpush1.msra.mxu0 %v3223
    %3765 = vmatprep.subr.mxu0 %v3238
    %3766 = vmatpush1.msra.mxu0 %v3237
    %3767 = vmatprep.subr.mxu0 %v3252
    %3768 = vmatpush1.msra.mxu0 %v3251
    %3769 = vmatprep.subr.mxu0 %v3266
    %3770 = vmatpush1.msra.mxu0 %v3265
    %3771 = vmatprep.subr.mxu0 %v3280
    %3772 = vmatpush1.msra.mxu0 %v3279
    %3773 = vmatprep.subr.mxu0 %v3294
    %3774 = vmatpush1.msra.mxu0 %v3293
    %3775 = vmatprep.subr.mxu0 %v3308
    %3776 = vmatpush1.msra.mxu0 %v3307
    %3777 = vmatprep.subr.mxu0 %v3322
    %3778 = vmatpush1.msra.mxu0 %v3321
    %3779 = vmatprep.subr.mxu0 0.0
    %3780 = vmatpush1.msra.mxu0 0.0
    %3781 = vmatprep.subr.mxu0 0.0
    %3782 = vmatpush1.msra.mxu0 0.0
    %3783 = vmatprep.subr.mxu0 0.0
    %3784 = vmatpush1.msra.mxu0 0.0
    %3785 = vmatprep.subr.mxu0 0.0
    %3786 = vmatpush1.msra.mxu0 0.0
    %3787 = vmatprep.subr.mxu0 0.0
    %3788 = vmatpush1.msra.mxu0 0.0
    %3789 = vmatprep.subr.mxu0 0.0
    %3790 = vmatpush1.msra.mxu0 0.0
    %3791 = vmatprep.subr.mxu0 0.0
    %3792 = vmatpush1.msra.mxu0 0.0
    %3793 = vmatprep.mubr.f32.mxu0 %v3339
    %3794 = vmatmul.mubr.f32.gmra.mrb[0].mxu0 %v2971
    %v3795 = vpop.f32.mrb[0].mxu0
    %v3796 = vadd.f32 %v3330, %v3795
    %v3797 = vpop.f32.mrb[0].mxu0
    %v3798 = vadd.f32 %v3330, %v3797
    %3799 = vmatprep.mubr.f32.mxu0 %v3342
    %3800 = vmatmul.mubr.f32.gmra.mrb[0].mxu0 %v2973
    %v3801 = vpop.f32.mrb[0].mxu0
    %v3802 = vadd.f32 %v3335, %v3801
    %v3803 = vpop.f32.mrb[0].mxu0
    %v3804 = vadd.f32 %v3335, %v3803
    %3805 = vdwg.mxu0
    %3806 = vmatprep.subr.mxu0 %v2988
    %3807 = vmatpush1.msra.mxu0 %v2987
    %3808 = vmatprep.subr.mxu0 %v3002
    %3809 = vmatpush1.msra.mxu0 %v3001
    %3810 = vmatprep.subr.mxu0 %v3016
    %3811 = vmatpush1.msra.mxu0 %v3015
    %3812 = vmatprep.subr.mxu0 %v3030
    %3813 = vmatpush1.msra.mxu0 %v3029
    %3814 = vmatprep.subr.mxu0 %v3044
    %3815 = vmatpush1.msra.mxu0 %v3043
    %3816 = vmatprep.subr.mxu0 %v3058
    %3817 = vmatpush1.msra.mxu0 %v3057
    %3818 = vmatprep.subr.mxu0 %v3072
    %3819 = vmatpush1.msra.mxu0 %v3071
    %3820 = vmatprep.subr.mxu0 %v3086
    %3821 = vmatpush1.msra.mxu0 %v3085
    %3822 = vmatprep.subr.mxu0 %v3100
    %3823 = vmatpush1.msra.mxu0 %v3099
    %3824 = vmatprep.subr.mxu0 %v3114
    %3825 = vmatpush1.msra.mxu0 %v3113
    %3826 = vmatprep.subr.mxu0 %v3128
    %3827 = vmatpush1.msra.mxu0 %v3127
    %3828 = vmatprep.subr.mxu0 %v3142
    %3829 = vmatpush1.msra.mxu0 %v3141
    %3830 = vmatprep.subr.mxu0 %v3156
    %3831 = vmatpush1.msra.mxu0 %v3155
    %3832 = vmatprep.subr.mxu0 %v3170
    %3833 = vmatpush1.msra.mxu0 %v3169
    %3834 = vmatprep.subr.mxu0 %v3184
    %3835 = vmatpush1.msra.mxu0 %v3183
    %3836 = vmatprep.subr.mxu0 %v3198
    %3837 = vmatpush1.msra.mxu0 %v3197
    %3838 = vmatprep.subr.mxu0 %v3212
    %3839 = vmatpush1.msra.mxu0 %v3211
    %3840 = vmatprep.subr.mxu0 %v3226
    %3841 = vmatpush1.msra.mxu0 %v3225
    %3842 = vmatprep.subr.mxu0 %v3240
    %3843 = vmatpush1.msra.mxu0 %v3239
    %3844 = vmatprep.subr.mxu0 %v3254
    %3845 = vmatpush1.msra.mxu0 %v3253
    %3846 = vmatprep.subr.mxu0 %v3268
    %3847 = vmatpush1.msra.mxu0 %v3267
    %3848 = vmatprep.subr.mxu0 %v3282
    %3849 = vmatpush1.msra.mxu0 %v3281
    %3850 = vmatprep.subr.mxu0 %v3296
    %3851 = vmatpush1.msra.mxu0 %v3295
    %3852 = vmatprep.subr.mxu0 %v3310
    %3853 = vmatpush1.msra.mxu0 %v3309
    %3854 = vmatprep.subr.mxu0 %v3324
    %3855 = vmatpush1.msra.mxu0 %v3323
    %3856 = vmatprep.subr.mxu0 0.0
    %3857 = vmatpush1.msra.mxu0 0.0
    %3858 = vmatprep.subr.mxu0 0.0
    %3859 = vmatpush1.msra.mxu0 0.0
    %3860 = vmatprep.subr.mxu0 0.0
    %3861 = vmatpush1.msra.mxu0 0.0
    %3862 = vmatprep.subr.mxu0 0.0
    %3863 = vmatpush1.msra.mxu0 0.0
    %3864 = vmatprep.subr.mxu0 0.0
    %3865 = vmatpush1.msra.mxu0 0.0
    %3866 = vmatprep.subr.mxu0 0.0
    %3867 = vmatpush1.msra.mxu0 0.0
    %3868 = vmatprep.subr.mxu0 0.0
    %3869 = vmatpush1.msra.mxu0 0.0
    %3870 = vmatprep.mubr.f32.mxu0 %v3339
    %3871 = vmatmul.mubr.f32.gmra.mrb[0].mxu0 %v2971
    %v3872 = vpop.f32.mrb[0].mxu0
    %v3873 = vadd.f32 %v3330, %v3872
    %v3874 = vpop.f32.mrb[0].mxu0
    %v3875 = vadd.f32 %v3330, %v3874
    %3876 = vmatprep.mubr.f32.mxu0 %v3342
    %3877 = vmatmul.mubr.f32.gmra.mrb[0].mxu0 %v2973
    %v3878 = vpop.f32.mrb[0].mxu0
    %v3879 = vadd.f32 %v3335, %v3878
    %v3880 = vpop.f32.mrb[0].mxu0
    %v3881 = vadd.f32 %v3335, %v3880
    %3882 = vdwg.mxu0
    %v3883 = vand.u32 %v1438, 1023
    %v3884 = vand.u32 %v1439, 1023
    %v3885 = vand.u32 %v1440, 1023
    %v3886 = vand.u32 %v1441, 1023
    %v3887 = vand.u32 %v1442, 1023
    %v3888 = vand.u32 %v1443, 1023
    %v3889 = vand.u32 %v1444, 1023
    %v3890 = vand.u32 %v1445, 1023
    %v3891 = vand.u32 %v1446, 1023
    %v3892 = vand.u32 %v1447, 1023
    %v3893 = vand.u32 %v1448, 1023
    %v3894 = vand.u32 %v1449, 1023
    %v3895 = vand.u32 %v1450, 1023
    %v3896 = vand.u32 %v1451, 1023
    %v3897 = vand.u32 %v3883, 1
    %v3898 = vand.u32 %v3884, 1
    %v3899 = vand.u32 %v3885, 1
    %v3900 = vand.u32 %v3886, 1
    %v3901 = vand.u32 %v3887, 1
    %v3902 = vand.u32 %v3888, 1
    %v3903 = vand.u32 %v3889, 1
    %v3904 = vand.u32 %v3890, 1
    %v3905 = vand.u32 %v3891, 1
    %v3906 = vand.u32 %v3892, 1
    %v3907 = vand.u32 %v3893, 1
    %v3908 = vand.u32 %v3894, 1
    %v3909 = vand.u32 %v3895, 1
    %v3910 = vand.u32 %v3896, 1
    %vm3911 = vcmp.eq.s32.totalorder %v3897, 0
    %vm3912 = vcmp.eq.s32.totalorder %v3898, 0
    %vm3913 = vcmp.eq.s32.totalorder %v3899, 0
    %vm3914 = vcmp.eq.s32.totalorder %v3900, 0
    %vm3915 = vcmp.eq.s32.totalorder %v3901, 0
    %vm3916 = vcmp.eq.s32.totalorder %v3902, 0
    %vm3917 = vcmp.eq.s32.totalorder %v3903, 0
    %vm3918 = vcmp.eq.s32.totalorder %v3904, 0
    %vm3919 = vcmp.eq.s32.totalorder %v3905, 0
    %vm3920 = vcmp.eq.s32.totalorder %v3906, 0
    %vm3921 = vcmp.eq.s32.totalorder %v3907, 0
    %vm3922 = vcmp.eq.s32.totalorder %v3908, 0
    %vm3923 = vcmp.eq.s32.totalorder %v3909, 0
    %vm3924 = vcmp.eq.s32.totalorder %v3910, 0
    %vm3925 = vmand %vm1456, %vm3911
    %vm3926 = vmand %vm1457, %vm3912
    %vm3927 = vmand %vm1458, %vm3913
    %vm3928 = vmand %vm1459, %vm3914
    %vm3929 = vmand %vm1460, %vm3915
    %vm3930 = vmand %vm1461, %vm3916
    %vm3931 = vmand %vm1462, %vm3917
    %vm3932 = vmand %vm1463, %vm3918
    %vm3933 = vmand %vm1464, %vm3919
    %vm3934 = vmand %vm1465, %vm3920
    %vm3935 = vmand %vm1466, %vm3921
    %vm3936 = vmand %vm1467, %vm3922
    %vm3937 = vmand %vm1468, %vm3923
    %vm3938 = vmand %vm1469, %vm3924
    %v3939 = vshra.s32 %v3883, 1
    %v3940 = vshra.s32 %v3884, 1
    %v3941 = vshra.s32 %v3885, 1
    %v3942 = vshra.s32 %v3886, 1
    %v3943 = vshra.s32 %v3887, 1
    %v3944 = vshra.s32 %v3888, 1
    %v3945 = vshra.s32 %v3889, 1
    %v3946 = vshra.s32 %v3890, 1
    %v3947 = vshra.s32 %v3891, 1
    %v3948 = vshra.s32 %v3892, 1
    %v3949 = vshra.s32 %v3893, 1
    %v3950 = vshra.s32 %v3894, 1
    %v3951 = vshra.s32 %v3895, 1
    %v3952 = vshra.s32 %v3896, 1
    %v3953 = vand.u32 %v3939, 31
    %v3954 = vand.u32 %v3940, 31
    %v3955 = vand.u32 %v3941, 31
    %v3956 = vand.u32 %v3942, 31
    %v3957 = vand.u32 %v3943, 31
    %v3958 = vand.u32 %v3944, 31
    %v3959 = vand.u32 %v3945, 31
    %v3960 = vand.u32 %v3946, 31
    %v3961 = vand.u32 %v3947, 31
    %v3962 = vand.u32 %v3948, 31
    %v3963 = vand.u32 %v3949, 31
    %v3964 = vand.u32 %v3950, 31
    %v3965 = vand.u32 %v3951, 31
    %v3966 = vand.u32 %v3952, 31
    %vm3967 = vcmp.lt.s32.totalorder %v3953, 10
    %vm3968 = vcmp.lt.s32.totalorder %v3954, 10
    %vm3969 = vcmp.lt.s32.totalorder %v3955, 10
    %vm3970 = vcmp.lt.s32.totalorder %v3956, 10
    %vm3971 = vcmp.lt.s32.totalorder %v3957, 10
    %vm3972 = vcmp.lt.s32.totalorder %v3958, 10
    %vm3973 = vcmp.lt.s32.totalorder %v3959, 10
    %vm3974 = vcmp.lt.s32.totalorder %v3960, 10
    %vm3975 = vcmp.lt.s32.totalorder %v3961, 10
    %vm3976 = vcmp.lt.s32.totalorder %v3962, 10
    %vm3977 = vcmp.lt.s32.totalorder %v3963, 10
    %vm3978 = vcmp.lt.s32.totalorder %v3964, 10
    %vm3979 = vcmp.lt.s32.totalorder %v3965, 10
    %vm3980 = vcmp.lt.s32.totalorder %v3966, 10
    %vm3981 = vmand %vm3925, %vm3967
    %vm3982 = vmand %vm3926, %vm3968
    %vm3983 = vmand %vm3927, %vm3969
    %vm3984 = vmand %vm3928, %vm3970
    %vm3985 = vmand %vm3929, %vm3971
    %vm3986 = vmand %vm3930, %vm3972
    %vm3987 = vmand %vm3931, %vm3973
    %vm3988 = vmand %vm3932, %vm3974
    %vm3989 = vmand %vm3933, %vm3975
    %vm3990 = vmand %vm3934, %vm3976
    %vm3991 = vmand %vm3935, %vm3977
    %vm3992 = vmand %vm3936, %vm3978
    %vm3993 = vmand %vm3937, %vm3979
    %vm3994 = vmand %vm3938, %vm3980
    %v3995 = vshra.s32 %v3883, 6
    %v3996 = vshra.s32 %v3884, 6
    %v3997 = vshra.s32 %v3885, 6
    %v3998 = vshra.s32 %v3886, 6
    %v3999 = vshra.s32 %v3887, 6
    %v4000 = vshra.s32 %v3888, 6
    %v4001 = vshra.s32 %v3889, 6
    %v4002 = vshra.s32 %v3890, 6
    %v4003 = vshra.s32 %v3891, 6
    %v4004 = vshra.s32 %v3892, 6
    %v4005 = vshra.s32 %v3893, 6
    %v4006 = vshra.s32 %v3894, 6
    %v4007 = vshra.s32 %v3895, 6
    %v4008 = vshra.s32 %v3896, 6
    %vm4009 = vcmp.lt.s32.totalorder %v3995, 10
    %vm4010 = vcmp.lt.s32.totalorder %v3996, 10
    %vm4011 = vcmp.lt.s32.totalorder %v3997, 10
    %vm4012 = vcmp.lt.s32.totalorder %v3998, 10
    %vm4013 = vcmp.lt.s32.totalorder %v3999, 10
    %vm4014 = vcmp.lt.s32.totalorder %v4000, 10
    %vm4015 = vcmp.lt.s32.totalorder %v4001, 10
    %vm4016 = vcmp.lt.s32.totalorder %v4002, 10
    %vm4017 = vcmp.lt.s32.totalorder %v4003, 10
    %vm4018 = vcmp.lt.s32.totalorder %v4004, 10
    %vm4019 = vcmp.lt.s32.totalorder %v4005, 10
    %vm4020 = vcmp.lt.s32.totalorder %v4006, 10
    %vm4021 = vcmp.lt.s32.totalorder %v4007, 10
    %vm4022 = vcmp.lt.s32.totalorder %v4008, 10
    %vm4023 = vmand %vm3981, %vm4009
    %vm4024 = vmand %vm3982, %vm4010
    %vm4025 = vmand %vm3983, %vm4011
    %vm4026 = vmand %vm3984, %vm4012
    %vm4027 = vmand %vm3985, %vm4013
    %vm4028 = vmand %vm3986, %vm4014
    %vm4029 = vmand %vm3987, %vm4015
    %vm4030 = vmand %vm3988, %vm4016
    %vm4031 = vmand %vm3989, %vm4017
    %vm4032 = vmand %vm3990, %vm4018
    %vm4033 = vmand %vm3991, %vm4019
    %vm4034 = vmand %vm3992, %vm4020
    %vm4035 = vmand %vm3993, %vm4021
    %vm4036 = vmand %vm3994, %vm4022
    %v4037 = vsel %vm4023, 1, 0
    %v4038 = vsel %vm4024, 1, 0
    %v4039 = vsel %vm4025, 1, 0
    %v4040 = vsel %vm4026, 1, 0
    %v4041 = vsel %vm4027, 1, 0
    %v4042 = vsel %vm4028, 1, 0
    %v4043 = vsel %vm4029, 1, 0
    %v4044 = vsel %vm4030, 1, 0
    %v4045 = vsel %vm4031, 1, 0
    %v4046 = vsel %vm4032, 1, 0
    %v4047 = vsel %vm4033, 1, 0
    %v4048 = vsel %vm4034, 1, 0
    %v4049 = vsel %vm4035, 1, 0
    %v4050 = vsel %vm4036, 1, 0
    %v4051 = vcvt.s32.f32 %v4037
    %v4052 = vcvt.s32.f32 %v4038
    %v4053 = vcvt.s32.f32 %v4039
    %v4054 = vcvt.s32.f32 %v4040
    %v4055 = vcvt.s32.f32 %v4041
    %v4056 = vcvt.s32.f32 %v4042
    %v4057 = vcvt.s32.f32 %v4043
    %v4058 = vcvt.s32.f32 %v4044
    %v4059 = vcvt.s32.f32 %v4045
    %v4060 = vcvt.s32.f32 %v4046
    %v4061 = vcvt.s32.f32 %v4047
    %v4062 = vcvt.s32.f32 %v4048
    %v4063 = vcvt.s32.f32 %v4049
    %v4064 = vcvt.s32.f32 %v4050
    %v4065 = vmul.f32 %v3411, %v4051
    %v4066 = vmul.f32 %v3413, %v4052
    %v4067 = vmul.f32 %v3488, %v4053
    %v4068 = vmul.f32 %v3490, %v4054
    %v4069 = vmul.f32 %v3565, %v4055
    %v4070 = vmul.f32 %v3567, %v4056
    %v4071 = vmul.f32 %v3642, %v4057
    %v4072 = vmul.f32 %v3644, %v4058
    %v4073 = vmul.f32 %v3719, %v4059
    %v4074 = vmul.f32 %v3721, %v4060
    %v4075 = vmul.f32 %v3796, %v4061
    %v4076 = vmul.f32 %v3798, %v4062
    %v4077 = vmul.f32 %v3873, %v4063
    %v4078 = vmul.f32 %v3875, %v4064
    %v4079 = vmul.f32 %v3417, %v4051
    %v4080 = vmul.f32 %v3419, %v4052
    %v4081 = vmul.f32 %v3494, %v4053
    %v4082 = vmul.f32 %v3496, %v4054
    %v4083 = vmul.f32 %v3571, %v4055
    %v4084 = vmul.f32 %v3573, %v4056
    %v4085 = vmul.f32 %v3648, %v4057
    %v4086 = vmul.f32 %v3650, %v4058
    %v4087 = vmul.f32 %v3725, %v4059
    %v4088 = vmul.f32 %v3727, %v4060
    %v4089 = vmul.f32 %v3802, %v4061
    %v4090 = vmul.f32 %v3804, %v4062
    %v4091 = vmul.f32 %v3879, %v4063
    %v4092 = vmul.f32 %v3881, %v4064
    %v4093 = vadd.f32 %v4065, %v4066
    %v4094 = vadd.f32 %v4093, %v4067
    %v4095 = vadd.f32 %v4094, %v4068
    %v4096 = vadd.f32 %v4095, %v4069
    %v4097 = vadd.f32 %v4096, %v4070
    %v4098 = vadd.f32 %v4097, %v4071
    %v4099 = vadd.f32 %v4098, %v4072
    %v4100 = vadd.f32 %v4099, %v4073
    %v4101 = vadd.f32 %v4100, %v4074
    %v4102 = vadd.f32 %v4101, %v4075
    %v4103 = vadd.f32 %v4102, %v4076
    %v4104 = vadd.f32 %v4103, %v4077
    %v4105 = vadd.f32 %v4104, %v4078
    %4106 = vadd.xlane.f32.xlu0 %v4105
    %v4107 = vpop.xlane.xlu0 %4106
    %v4108 = vadd.f32 %v4079, %v4080
    %v4109 = vadd.f32 %v4108, %v4081
    %v4110 = vadd.f32 %v4109, %v4082
    %v4111 = vadd.f32 %v4110, %v4083
    %v4112 = vadd.f32 %v4111, %v4084
    %v4113 = vadd.f32 %v4112, %v4085
    %v4114 = vadd.f32 %v4113, %v4086
    %v4115 = vadd.f32 %v4114, %v4087
    %v4116 = vadd.f32 %v4115, %v4088
    %v4117 = vadd.f32 %v4116, %v4089
    %v4118 = vadd.f32 %v4117, %v4090
    %v4119 = vadd.f32 %v4118, %v4091
    %v4120 = vadd.f32 %v4119, %v4092
    %4121 = vadd.xlane.f32.xlu0 %v4120
    %v4122 = vpop.xlane.xlu0 %4121
    %v4123 = vmul.f32 %v4107, 0.005
    %v4124 = vmul.f32 %v4122, 0.005
    %v4125 = vmul.f32 %v4065, %v3411
    %v4126 = vmul.f32 %v4066, %v3413
    %v4127 = vmul.f32 %v4067, %v3488
    %v4128 = vmul.f32 %v4068, %v3490
    %v4129 = vmul.f32 %v4069, %v3565
    %v4130 = vmul.f32 %v4070, %v3567
    %v4131 = vmul.f32 %v4071, %v3642
    %v4132 = vmul.f32 %v4072, %v3644
    %v4133 = vmul.f32 %v4073, %v3719
    %v4134 = vmul.f32 %v4074, %v3721
    %v4135 = vmul.f32 %v4075, %v3796
    %v4136 = vmul.f32 %v4076, %v3798
    %v4137 = vmul.f32 %v4077, %v3873
    %v4138 = vmul.f32 %v4078, %v3875
    %v4139 = vmul.f32 %v4079, %v3417
    %v4140 = vmul.f32 %v4080, %v3419
    %v4141 = vmul.f32 %v4081, %v3494
    %v4142 = vmul.f32 %v4082, %v3496
    %v4143 = vmul.f32 %v4083, %v3571
    %v4144 = vmul.f32 %v4084, %v3573
    %v4145 = vmul.f32 %v4085, %v3648
    %v4146 = vmul.f32 %v4086, %v3650
    %v4147 = vmul.f32 %v4087, %v3725
    %v4148 = vmul.f32 %v4088, %v3727
    %v4149 = vmul.f32 %v4089, %v3802
    %v4150 = vmul.f32 %v4090, %v3804
    %v4151 = vmul.f32 %v4091, %v3879
    %v4152 = vmul.f32 %v4092, %v3881
    %v4153 = vadd.f32 %v4125, %v4126
    %v4154 = vadd.f32 %v4153, %v4127
    %v4155 = vadd.f32 %v4154, %v4128
    %v4156 = vadd.f32 %v4155, %v4129
    %v4157 = vadd.f32 %v4156, %v4130
    %v4158 = vadd.f32 %v4157, %v4131
    %v4159 = vadd.f32 %v4158, %v4132
    %v4160 = vadd.f32 %v4159, %v4133
    %v4161 = vadd.f32 %v4160, %v4134
    %v4162 = vadd.f32 %v4161, %v4135
    %v4163 = vadd.f32 %v4162, %v4136
    %v4164 = vadd.f32 %v4163, %v4137
    %v4165 = vadd.f32 %v4164, %v4138
    %4166 = vadd.xlane.f32.xlu0 %v4165
    %v4167 = vpop.xlane.xlu0 %4166
    %v4168 = vadd.f32 %v4139, %v4140
    %v4169 = vadd.f32 %v4168, %v4141
    %v4170 = vadd.f32 %v4169, %v4142
    %v4171 = vadd.f32 %v4170, %v4143
    %v4172 = vadd.f32 %v4171, %v4144
    %v4173 = vadd.f32 %v4172, %v4145
    %v4174 = vadd.f32 %v4173, %v4146
    %v4175 = vadd.f32 %v4174, %v4147
    %v4176 = vadd.f32 %v4175, %v4148
    %v4177 = vadd.f32 %v4176, %v4149
    %v4178 = vadd.f32 %v4177, %v4150
    %v4179 = vadd.f32 %v4178, %v4151
    %v4180 = vadd.f32 %v4179, %v4152
    %4181 = vadd.xlane.f32.xlu0 %v4180
    %v4182 = vpop.xlane.xlu0 %4181
    %v4183 = vmul.f32 %v4167, 0.005
    %v4184 = vmul.f32 %v4182, 0.005
    %v4185 = vmul.f32 %v4123, %v4123
    %v4186 = vmul.f32 %v4124, %v4124
    %v4187 = vsub.f32 %v4183, %v4185
    %v4188 = vsub.f32 %v4184, %v4186
    %v4189 = vsub.f32 %v3411, %v4123
    %v4190 = vsub.f32 %v3413, %v4123
    %v4191 = vsub.f32 %v3488, %v4123
    %v4192 = vsub.f32 %v3490, %v4123
    %v4193 = vsub.f32 %v3565, %v4123
    %v4194 = vsub.f32 %v3567, %v4123
    %v4195 = vsub.f32 %v3642, %v4123
    %v4196 = vsub.f32 %v3719, %v4123
    %v4197 = vsub.f32 %v3721, %v4123
    %v4198 = vsub.f32 %v3796, %v4123
    %v4199 = vsub.f32 %v3798, %v4123
    %v4200 = vsub.f32 %v3873, %v4123
    %v4201 = vsub.f32 %v3875, %v4123
    %v4202 = vsub.f32 %v3417, %v4124
    %v4203 = vsub.f32 %v3419, %v4124
    %v4204 = vsub.f32 %v3494, %v4124
    %v4205 = vsub.f32 %v3496, %v4124
    %v4206 = vsub.f32 %v3571, %v4124
    %v4207 = vsub.f32 %v3573, %v4124
    %v4208 = vsub.f32 %v3648, %v4124
    %v4209 = vsub.f32 %v3725, %v4124
    %v4210 = vsub.f32 %v3727, %v4124
    %v4211 = vsub.f32 %v3802, %v4124
    %v4212 = vsub.f32 %v3804, %v4124
    %v4213 = vsub.f32 %v3879, %v4124
    %v4214 = vsub.f32 %v3881, %v4124
    %4215 = vset.pattern.permute.xlu0 4
    %4216 = vperm.xlu0 %4215, %v3325
    %v4217 = vpop.permute.xlu0 %4216
    %4219 = vset.pattern.permute.xlu0 4
    %4220 = vperm.xlu0 %4219, %v3326
    %v4221 = vpop.permute.xlu0 %4220
    %v4223 = vmul.f32 %v4217, %v4189
    %v4224 = vmul.f32 %v4217, %v4190
    %v4225 = vmul.f32 %v4217, %v4191
    %v4226 = vmul.f32 %v4217, %v4192
    %v4227 = vmul.f32 %v4217, %v4193
    %v4228 = vmul.f32 %v4217, %v4194
    %v4229 = vmul.f32 %v4217, %v4195
    %v4230 = vmul.f32 %v4217, %v4196
    %v4231 = vmul.f32 %v4217, %v4197
    %v4232 = vmul.f32 %v4217, %v4198
    %v4233 = vmul.f32 %v4217, %v4199
    %v4234 = vmul.f32 %v4217, %v4200
    %v4235 = vmul.f32 %v4217, %v4201
    %v4236 = vmul.f32 %v4221, %v4202
    %v4237 = vmul.f32 %v4221, %v4203
    %v4238 = vmul.f32 %v4221, %v4204
    %v4239 = vmul.f32 %v4221, %v4205
    %v4240 = vmul.f32 %v4221, %v4206
    %v4241 = vmul.f32 %v4221, %v4207
    %v4242 = vmul.f32 %v4221, %v4208
    %v4243 = vmul.f32 %v4221, %v4209
    %v4244 = vmul.f32 %v4221, %v4210
    %v4245 = vmul.f32 %v4221, %v4211
    %v4246 = vmul.f32 %v4221, %v4212
    %v4247 = vmul.f32 %v4221, %v4213
    %v4248 = vmul.f32 %v4221, %v4214
    %v4249 = vadd.f32 %v4187, 1e-05
    %v4250 = vadd.f32 %v4188, 1e-05
    %v4251 = vrsqrt.pop %v4249
    %v4252 = vrsqrt.pop %v4250
    %v4253 = vmul.f32 %v4223, %v4251
    %v4254 = vmul.f32 %v4224, %v4251
    %v4255 = vmul.f32 %v4225, %v4251
    %v4256 = vmul.f32 %v4226, %v4251
    %v4257 = vmul.f32 %v4227, %v4251
    %v4258 = vmul.f32 %v4228, %v4251
    %v4259 = vmul.f32 %v4229, %v4251
    %v4260 = vmul.f32 %v4230, %v4251
    %v4261 = vmul.f32 %v4231, %v4251
    %v4262 = vmul.f32 %v4232, %v4251
    %v4263 = vmul.f32 %v4233, %v4251
    %v4264 = vmul.f32 %v4234, %v4251
    %v4265 = vmul.f32 %v4235, %v4251
    %v4266 = vmul.f32 %v4236, %v4252
    %v4267 = vmul.f32 %v4237, %v4252
    %v4268 = vmul.f32 %v4238, %v4252
    %v4269 = vmul.f32 %v4239, %v4252
    %v4270 = vmul.f32 %v4240, %v4252
    %v4271 = vmul.f32 %v4241, %v4252
    %v4272 = vmul.f32 %v4242, %v4252
    %v4273 = vmul.f32 %v4243, %v4252
    %v4274 = vmul.f32 %v4244, %v4252
    %v4275 = vmul.f32 %v4245, %v4252
    %v4276 = vmul.f32 %v4246, %v4252
    %v4277 = vmul.f32 %v4247, %v4252
    %v4278 = vmul.f32 %v4248, %v4252
    %4279 = vset.pattern.permute.xlu0 5
    %4280 = vperm.xlu0 %4279, %v3325
    %v4281 = vpop.permute.xlu0 %4280
    %4283 = vset.pattern.permute.xlu0 5
    %4284 = vperm.xlu0 %4283, %v3326
    %v4285 = vpop.permute.xlu0 %4284
    %v4287 = vadd.f32 %v4253, %v4281
    %v4288 = vadd.f32 %v4254, %v4281
    %v4289 = vadd.f32 %v4255, %v4281
    %v4290 = vadd.f32 %v4256, %v4281
    %v4291 = vadd.f32 %v4257, %v4281
    %v4292 = vadd.f32 %v4258, %v4281
    %v4293 = vadd.f32 %v4259, %v4281
    %v4294 = vadd.f32 %v4260, %v4281
    %v4295 = vadd.f32 %v4261, %v4281
    %v4296 = vadd.f32 %v4262, %v4281
    %v4297 = vadd.f32 %v4263, %v4281
    %v4298 = vadd.f32 %v4264, %v4281
    %v4299 = vadd.f32 %v4265, %v4281
    %v4300 = vadd.f32 %v4266, %v4285
    %v4301 = vadd.f32 %v4267, %v4285
    %v4302 = vadd.f32 %v4268, %v4285
    %v4303 = vadd.f32 %v4269, %v4285
    %v4304 = vadd.f32 %v4270, %v4285
    %v4305 = vadd.f32 %v4271, %v4285
    %v4306 = vadd.f32 %v4272, %v4285
    %v4307 = vadd.f32 %v4273, %v4285
    %v4308 = vadd.f32 %v4274, %v4285
    %v4309 = vadd.f32 %v4275, %v4285
    %v4310 = vadd.f32 %v4276, %v4285
    %v4311 = vadd.f32 %v4277, %v4285
    %v4312 = vadd.f32 %v4278, %v4285
    %v4313 = vtanh.pop %v4287
    %v4314 = vtanh.pop %v4288
    %v4315 = vtanh.pop %v4289
    %v4316 = vtanh.pop %v4290
    %v4317 = vtanh.pop %v4291
    %v4318 = vtanh.pop %v4292
    %v4319 = vtanh.pop %v4293
    %v4320 = vtanh.pop %v4294
    %v4321 = vtanh.pop %v4295
    %v4322 = vtanh.pop %v4296
    %v4323 = vtanh.pop %v4297
    %v4324 = vtanh.pop %v4298
    %v4325 = vtanh.pop %v4299
    %v4326 = vtanh.pop %v4300
    %v4327 = vtanh.pop %v4301
    %v4328 = vtanh.pop %v4302
    %v4329 = vtanh.pop %v4303
    %v4330 = vtanh.pop %v4304
    %v4331 = vtanh.pop %v4305
    %v4332 = vtanh.pop %v4306
    %v4333 = vtanh.pop %v4307
    %v4334 = vtanh.pop %v4308
    %v4335 = vtanh.pop %v4309
    %v4336 = vtanh.pop %v4310
    %v4337 = vtanh.pop %v4311
    %v4338 = vtanh.pop %v4312
    %4363 = vrot.lane.b32.xlu0 %v4313, 126
    %v4364 = vpop.permute.xlu0 %4363
    %4365 = vrot.lane.b32.xlu0 %v4314, 126
    %v4366 = vpop.permute.xlu0 %4365
    %4367 = vrot.lane.b32.xlu0 %v4315, 126
    %v4368 = vpop.permute.xlu0 %4367
    %4369 = vrot.lane.b32.xlu0 %v4316, 126
    %v4370 = vpop.permute.xlu0 %4369
    %4371 = vrot.lane.b32.xlu0 %v4317, 126
    %v4372 = vpop.permute.xlu0 %4371
    %4373 = vrot.lane.b32.xlu0 %v4318, 126
    %v4374 = vpop.permute.xlu0 %4373
    %4375 = vrot.lane.b32.xlu0 %v4320, 126
    %v4376 = vpop.permute.xlu0 %4375
    %4377 = vrot.lane.b32.xlu0 %v4321, 126
    %v4378 = vpop.permute.xlu0 %4377
    %4379 = vrot.lane.b32.xlu0 %v4322, 126
    %v4380 = vpop.permute.xlu0 %4379
    %4381 = vrot.lane.b32.xlu0 %v4323, 126
    %v4382 = vpop.permute.xlu0 %4381
    %4383 = vrot.lane.b32.xlu0 %v4324, 126
    %v4384 = vpop.permute.xlu0 %4383
    %4385 = vrot.lane.b32.xlu0 %v4325, 126
    %v4386 = vpop.permute.xlu0 %4385
    %4387 = vrot.lane.b32.xlu0 %v4326, 126
    %v4388 = vpop.permute.xlu0 %4387
    %4389 = vrot.lane.b32.xlu0 %v4327, 126
    %v4390 = vpop.permute.xlu0 %4389
    %4391 = vrot.lane.b32.xlu0 %v4328, 126
    %v4392 = vpop.permute.xlu0 %4391
    %4393 = vrot.lane.b32.xlu0 %v4329, 126
    %v4394 = vpop.permute.xlu0 %4393
    %4395 = vrot.lane.b32.xlu0 %v4330, 126
    %v4396 = vpop.permute.xlu0 %4395
    %4397 = vrot.lane.b32.xlu0 %v4331, 126
    %v4398 = vpop.permute.xlu0 %4397
    %4399 = vrot.lane.b32.xlu0 %v4333, 126
    %v4400 = vpop.permute.xlu0 %4399
    %4401 = vrot.lane.b32.xlu0 %v4334, 126
    %v4402 = vpop.permute.xlu0 %4401
    %4403 = vrot.lane.b32.xlu0 %v4335, 126
    %v4404 = vpop.permute.xlu0 %4403
    %4405 = vrot.lane.b32.xlu0 %v4336, 126
    %v4406 = vpop.permute.xlu0 %4405
    %4407 = vrot.lane.b32.xlu0 %v4337, 126
    %v4408 = vpop.permute.xlu0 %4407
    %4409 = vrot.lane.b32.xlu0 %v4338, 126
    %v4410 = vpop.permute.xlu0 %4409
    %v4411 = vsel %vm86, %v4364, %v4366
    %v4412 = vsel %vm86, %v4366, %v4368
    %v4413 = vsel %vm86, %v4368, %v4370
    %v4414 = vsel %vm86, %v4370, %v4372
    %v4415 = vsel %vm86, %v4372, %v4374
    %v4416 = vsel %vm86, %v4376, %v4378
    %v4417 = vsel %vm86, %v4378, %v4380
    %v4418 = vsel %vm86, %v4380, %v4382
    %v4419 = vsel %vm86, %v4382, %v4384
    %v4420 = vsel %vm86, %v4384, %v4386
    %v4421 = vsel %vm86, %v4388, %v4390
    %v4422 = vsel %vm86, %v4390, %v4392
    %v4423 = vsel %vm86, %v4392, %v4394
    %v4424 = vsel %vm86, %v4394, %v4396
    %v4425 = vsel %vm86, %v4396, %v4398
    %v4426 = vsel %vm86, %v4400, %v4402
    %v4427 = vsel %vm86, %v4402, %v4404
    %v4428 = vsel %vm86, %v4404, %v4406
    %v4429 = vsel %vm86, %v4406, %v4408
    %v4430 = vsel %vm86, %v4408, %v4410
    %v4451 = vmax.f32 %v4313, %v4411
    %v4452 = vmax.f32 %v4314, %v4412
    %v4453 = vmax.f32 %v4315, %v4413
    %v4454 = vmax.f32 %v4316, %v4414
    %v4455 = vmax.f32 %v4317, %v4415
    %v4456 = vmax.f32 %v4320, %v4416
    %v4457 = vmax.f32 %v4321, %v4417
    %v4458 = vmax.f32 %v4322, %v4418
    %v4459 = vmax.f32 %v4323, %v4419
    %v4460 = vmax.f32 %v4324, %v4420
    %v4461 = vmax.f32 %v4326, %v4421
    %v4462 = vmax.f32 %v4327, %v4422
    %v4463 = vmax.f32 %v4328, %v4423
    %v4464 = vmax.f32 %v4329, %v4424
    %v4465 = vmax.f32 %v4330, %v4425
    %v4466 = vmax.f32 %v4333, %v4426
    %v4467 = vmax.f32 %v4334, %v4427
    %v4468 = vmax.f32 %v4335, %v4428
    %v4469 = vmax.f32 %v4336, %v4429
    %v4470 = vmax.f32 %v4337, %v4430
    %4473 = vrot.lane.b32.xlu0 %v4319, 126
    %v4474 = vpop.permute.xlu0 %4473
    %4475 = vrot.lane.b32.xlu0 %v4332, 126
    %v4476 = vpop.permute.xlu0 %4475
    %v4477 = vsel %vm86, %v4374, %v4474
    %v4478 = vsel %vm86, %v4398, %v4476
    %v4483 = vmax.f32 %v4318, %v4477
    %v4484 = vmax.f32 %v4325, %v4386
    %v4485 = vmax.f32 %v4331, %v4478
    %v4486 = vmax.f32 %v4338, %v4410
    %4511 = vrot.lane.b32.xlu0 %v4451, 64
    %v4512 = vpop.permute.xlu0 %4511
    %4513 = vrot.lane.b32.xlu0 %v4452, 64
    %v4514 = vpop.permute.xlu0 %4513
    %4515 = vrot.lane.b32.xlu0 %v4453, 64
    %v4516 = vpop.permute.xlu0 %4515
    %4517 = vrot.lane.b32.xlu0 %v4454, 64
    %v4518 = vpop.permute.xlu0 %4517
    %4519 = vrot.lane.b32.xlu0 %v4455, 64
    %v4520 = vpop.permute.xlu0 %4519
    %4521 = vrot.lane.b32.xlu0 %v4483, 64
    %v4522 = vpop.permute.xlu0 %4521
    %4523 = vrot.lane.b32.xlu0 %v4456, 64
    %v4524 = vpop.permute.xlu0 %4523
    %4525 = vrot.lane.b32.xlu0 %v4457, 64
    %v4526 = vpop.permute.xlu0 %4525
    %4527 = vrot.lane.b32.xlu0 %v4458, 64
    %v4528 = vpop.permute.xlu0 %4527
    %4529 = vrot.lane.b32.xlu0 %v4459, 64
    %v4530 = vpop.permute.xlu0 %4529
    %4531 = vrot.lane.b32.xlu0 %v4460, 64
    %v4532 = vpop.permute.xlu0 %4531
    %4533 = vrot.lane.b32.xlu0 %v4484, 64
    %v4534 = vpop.permute.xlu0 %4533
    %4535 = vrot.lane.b32.xlu0 %v4461, 64
    %v4536 = vpop.permute.xlu0 %4535
    %4537 = vrot.lane.b32.xlu0 %v4462, 64
    %v4538 = vpop.permute.xlu0 %4537
    %4539 = vrot.lane.b32.xlu0 %v4463, 64
    %v4540 = vpop.permute.xlu0 %4539
    %4541 = vrot.lane.b32.xlu0 %v4464, 64
    %v4542 = vpop.permute.xlu0 %4541
    %4543 = vrot.lane.b32.xlu0 %v4465, 64
    %v4544 = vpop.permute.xlu0 %4543
    %4545 = vrot.lane.b32.xlu0 %v4485, 64
    %v4546 = vpop.permute.xlu0 %4545
    %4547 = vrot.lane.b32.xlu0 %v4466, 64
    %v4548 = vpop.permute.xlu0 %4547
    %4549 = vrot.lane.b32.xlu0 %v4467, 64
    %v4550 = vpop.permute.xlu0 %4549
    %4551 = vrot.lane.b32.xlu0 %v4468, 64
    %v4552 = vpop.permute.xlu0 %4551
    %4553 = vrot.lane.b32.xlu0 %v4469, 64
    %v4554 = vpop.permute.xlu0 %4553
    %4555 = vrot.lane.b32.xlu0 %v4470, 64
    %v4556 = vpop.permute.xlu0 %4555
    %4557 = vrot.lane.b32.xlu0 %v4486, 64
    %v4558 = vpop.permute.xlu0 %4557
    %v4559 = vsel %vm302, %v4512, %v4514
    %v4560 = vsel %vm302, %v4514, %v4516
    %v4561 = vsel %vm302, %v4516, %v4518
    %v4562 = vsel %vm302, %v4518, %v4520
    %v4563 = vsel %vm302, %v4520, %v4522
    %v4564 = vsel %vm302, %v4524, %v4526
    %v4565 = vsel %vm302, %v4526, %v4528
    %v4566 = vsel %vm302, %v4528, %v4530
    %v4567 = vsel %vm302, %v4530, %v4532
    %v4568 = vsel %vm302, %v4532, %v4534
    %v4569 = vsel %vm302, %v4536, %v4538
    %v4570 = vsel %vm302, %v4538, %v4540
    %v4571 = vsel %vm302, %v4540, %v4542
    %v4572 = vsel %vm302, %v4542, %v4544
    %v4573 = vsel %vm302, %v4544, %v4546
    %v4574 = vsel %vm302, %v4548, %v4550
    %v4575 = vsel %vm302, %v4550, %v4552
    %v4576 = vsel %vm302, %v4552, %v4554
    %v4577 = vsel %vm302, %v4554, %v4556
    %v4578 = vsel %vm302, %v4556, %v4558
    %v4599 = vmax.f32 %v4451, %v4559
    %v4600 = vmax.f32 %v4452, %v4560
    %v4601 = vmax.f32 %v4453, %v4561
    %v4602 = vmax.f32 %v4454, %v4562
    %v4603 = vmax.f32 %v4455, %v4563
    %v4604 = vmax.f32 %v4456, %v4564
    %v4605 = vmax.f32 %v4457, %v4565
    %v4606 = vmax.f32 %v4458, %v4566
    %v4607 = vmax.f32 %v4459, %v4567
    %v4608 = vmax.f32 %v4460, %v4568
    %v4609 = vmax.f32 %v4461, %v4569
    %v4610 = vmax.f32 %v4462, %v4570
    %v4611 = vmax.f32 %v4463, %v4571
    %v4612 = vmax.f32 %v4464, %v4572
    %v4613 = vmax.f32 %v4465, %v4573
    %v4614 = vmax.f32 %v4466, %v4574
    %v4615 = vmax.f32 %v4467, %v4575
    %v4616 = vmax.f32 %v4468, %v4576
    %v4617 = vmax.f32 %v4469, %v4577
    %v4618 = vmax.f32 %v4470, %v4578
    %v4619 = vlaneseq
    %v4620 = vshrl.u32 %v4619, 7
    %v4621 = vadd.s32 %v4620, 8
    %v4622 = vadd.s32 %v4620, 16
    %v4623 = vadd.s32 %v4620, 24
    %v4624 = vadd.s32 %v4620, 32
    %v4625 = vadd.s32 %v4620, 40
    %v4626 = vadd.s32 %v4620, 48
    %v4627 = vadd.s32 %v4620, 56
    %v4628 = vadd.s32 %v4620, 64
    %v4629 = vadd.s32 %v4620, 72
    %v4630 = vadd.s32 %v4620, 80
    %v4631 = vadd.s32 %v4620, 88
    %v4632 = vadd.s32 %v4620, 96
    %v4633 = vadd.s32 %v4620, 104
    %v4634 = vadd.s32 %v4620, 112
    %v4635 = vadd.s32 %v4620, 120
    %v4636 = vadd.s32 %v4620, 128
    %v4637 = vadd.s32 %v4620, 136
    %v4638 = vadd.s32 %v4620, 144
    %v4639 = vadd.s32 %v4620, 152
    %v4640 = vadd.s32 %v4620, 160
    %v4641 = vadd.s32 %v4620, 168
    %v4642 = vadd.s32 %v4620, 176
    %v4643 = vadd.s32 %v4620, 184
    %v4644 = vadd.s32 %v4620, 192
    %v4645 = vadd.s32 %v4620, 200
    %v4646 = vadd.s32 %v4620, 208
    %v4647 = vadd.s32 %v4620, 216
    %v4648 = vadd.s32 %v4620, 224
    %v4649 = vadd.s32 %v4620, 232
    %v4650 = vadd.s32 %v4620, 240
    %v4651 = vadd.s32 %v4620, 248
    %v4652 = vadd.s32 %v4620, 256
    %v4653 = vadd.s32 %v4620, 264
    %v4654 = vadd.s32 %v4620, 272
    %v4655 = vadd.s32 %v4620, 280
    %v4656 = vadd.s32 %v4620, 288
    %v4657 = vadd.s32 %v4620, 296
    %v4658 = vadd.s32 %v4620, 304
    %v4659 = vadd.s32 %v4620, 312
    %v4660 = vadd.s32 %v4620, 320
    %v4661 = vadd.s32 %v4620, 328
    %v4662 = vadd.s32 %v4620, 336
    %v4663 = vadd.s32 %v4620, 344
    %v4664 = vadd.s32 %v4620, 352
    %v4665 = vadd.s32 %v4620, 360
    %v4666 = vadd.s32 %v4620, 368
    %v4667 = vadd.s32 %v4620, 376
    %v4668 = vadd.s32 %v4620, 384
    %v4669 = vadd.s32 %v4620, 392
    %v4670 = vadd.s32 %v4620, 400
    %v4671 = vadd.s32 %v4620, 408
    %v4672 = vadd.s32 %v4620, 416
    %v4673 = vadd.s32 %v4620, 424
    %v4674 = vadd.s32 %v4620, 432
    %v4675 = vadd.s32 %v4620, 440
    %v4676 = vadd.s32 %v4620, 448
    %v4677 = vadd.s32 %v4620, 456
    %v4678 = vadd.s32 %v4620, 464
    %v4679 = vadd.s32 %v4620, 472
    %v4680 = vadd.s32 %v4620, 480
    %v4681 = vadd.s32 %v4620, 488
    %v4682 = vadd.s32 %v4620, 496
    %v4683 = vadd.s32 %v4620, 504
    %v4684 = vadd.s32 %v4620, 512
    %v4685 = vadd.s32 %v4620, 520
    %v4686 = vadd.s32 %v4620, 528
    %v4687 = vadd.s32 %v4620, 536
    %v4688 = vadd.s32 %v4620, 544
    %v4689 = vadd.s32 %v4620, 552
    %v4690 = vadd.s32 %v4620, 560
    %v4691 = vadd.s32 %v4620, 568
    %v4692 = vadd.s32 %v4620, 576
    %v4693 = vadd.s32 %v4620, 584
    %v4694 = vadd.s32 %v4620, 592
    %v4695 = vadd.s32 %v4620, 600
    %v4696 = vadd.s32 %v4620, 608
    %v4697 = vadd.s32 %v4620, 616
    %v4698 = vadd.s32 %v4620, 624
    %v4699 = vadd.s32 %v4620, 632
    %v4700 = vshra.s32 %v4620, 2
    %v4701 = vshra.s32 %v4621, 2
    %v4702 = vshra.s32 %v4622, 2
    %v4703 = vshra.s32 %v4623, 2
    %v4704 = vshra.s32 %v4624, 2
    %v4705 = vshra.s32 %v4625, 2
    %v4706 = vshra.s32 %v4626, 2
    %v4707 = vshra.s32 %v4627, 2
    %v4708 = vshra.s32 %v4628, 2
    %v4709 = vshra.s32 %v4629, 2
    %v4710 = vshra.s32 %v4630, 2
    %v4711 = vshra.s32 %v4631, 2
    %v4712 = vshra.s32 %v4632, 2
    %v4713 = vshra.s32 %v4633, 2
    %v4714 = vshra.s32 %v4634, 2
    %v4715 = vshra.s32 %v4635, 2
    %v4716 = vshra.s32 %v4636, 2
    %v4717 = vshra.s32 %v4637, 2
    %v4718 = vshra.s32 %v4638, 2
    %v4719 = vshra.s32 %v4639, 2
    %v4720 = vshra.s32 %v4640, 2
    %v4721 = vshra.s32 %v4641, 2
    %v4722 = vshra.s32 %v4642, 2
    %v4723 = vshra.s32 %v4643, 2
    %v4724 = vshra.s32 %v4644, 2
    %v4725 = vshra.s32 %v4645, 2
    %v4726 = vshra.s32 %v4646, 2
    %v4727 = vshra.s32 %v4647, 2
    %v4728 = vshra.s32 %v4648, 2
    %v4729 = vshra.s32 %v4649, 2
    %v4730 = vshra.s32 %v4650, 2
    %v4731 = vshra.s32 %v4651, 2
    %v4732 = vshra.s32 %v4652, 2
    %v4733 = vshra.s32 %v4653, 2
    %v4734 = vshra.s32 %v4654, 2
    %v4735 = vshra.s32 %v4655, 2
    %v4736 = vshra.s32 %v4656, 2
    %v4737 = vshra.s32 %v4657, 2
    %v4738 = vshra.s32 %v4658, 2
    %v4739 = vshra.s32 %v4659, 2
    %v4740 = vshra.s32 %v4660, 2
    %v4741 = vshra.s32 %v4661, 2
    %v4742 = vshra.s32 %v4662, 2
    %v4743 = vshra.s32 %v4663, 2
    %v4744 = vshra.s32 %v4664, 2
    %v4745 = vshra.s32 %v4665, 2
    %v4746 = vshra.s32 %v4666, 2
    %v4747 = vshra.s32 %v4667, 2
    %v4748 = vshra.s32 %v4668, 2
    %v4749 = vshra.s32 %v4669, 2
    %v4750 = vshra.s32 %v4670, 2
    %v4751 = vshra.s32 %v4671, 2
    %v4752 = vshra.s32 %v4672, 2
    %v4753 = vshra.s32 %v4673, 2
    %v4754 = vshra.s32 %v4674, 2
    %v4755 = vshra.s32 %v4675, 2
    %v4756 = vshra.s32 %v4676, 2
    %v4757 = vshra.s32 %v4677, 2
    %v4758 = vshra.s32 %v4678, 2
    %v4759 = vshra.s32 %v4679, 2
    %v4760 = vshra.s32 %v4680, 2
    %v4761 = vshra.s32 %v4681, 2
    %v4762 = vshra.s32 %v4682, 2
    %v4763 = vshra.s32 %v4683, 2
    %v4764 = vshra.s32 %v4684, 2
    %v4765 = vshra.s32 %v4685, 2
    %v4766 = vshra.s32 %v4686, 2
    %v4767 = vshra.s32 %v4687, 2
    %v4768 = vshra.s32 %v4688, 2
    %v4769 = vshra.s32 %v4689, 2
    %v4770 = vshra.s32 %v4690, 2
    %v4771 = vshra.s32 %v4691, 2
    %v4772 = vshra.s32 %v4692, 2
    %v4773 = vshra.s32 %v4693, 2
    %v4774 = vshra.s32 %v4694, 2
    %v4775 = vshra.s32 %v4695, 2
    %v4776 = vshra.s32 %v4696, 2
    %v4777 = vshra.s32 %v4697, 2
    %v4778 = vshra.s32 %v4698, 2
    %v4779 = vshra.s32 %v4699, 2
    %v4780 = vand.u32 %v4700, 31
    %v4781 = vand.u32 %v4701, 31
    %v4782 = vand.u32 %v4702, 31
    %v4783 = vand.u32 %v4703, 31
    %v4784 = vand.u32 %v4704, 31
    %v4785 = vand.u32 %v4705, 31
    %v4786 = vand.u32 %v4706, 31
    %v4787 = vand.u32 %v4707, 31
    %v4788 = vand.u32 %v4708, 31
    %v4789 = vand.u32 %v4709, 31
    %v4790 = vand.u32 %v4710, 31
    %v4791 = vand.u32 %v4711, 31
    %v4792 = vand.u32 %v4712, 31
    %v4793 = vand.u32 %v4713, 31
    %v4794 = vand.u32 %v4714, 31
    %v4795 = vand.u32 %v4715, 31
    %v4796 = vand.u32 %v4716, 31
    %v4797 = vand.u32 %v4717, 31
    %v4798 = vand.u32 %v4718, 31
    %v4799 = vand.u32 %v4719, 31
    %v4800 = vand.u32 %v4720, 31
    %v4801 = vand.u32 %v4721, 31
    %v4802 = vand.u32 %v4722, 31
    %v4803 = vand.u32 %v4723, 31
    %v4804 = vand.u32 %v4724, 31
    %v4805 = vand.u32 %v4725, 31
    %v4806 = vand.u32 %v4726, 31
    %v4807 = vand.u32 %v4727, 31
    %v4808 = vand.u32 %v4728, 31
    %v4809 = vand.u32 %v4729, 31
    %v4810 = vand.u32 %v4730, 31
    %v4811 = vand.u32 %v4731, 31
    %v4812 = vand.u32 %v4732, 31
    %v4813 = vand.u32 %v4733, 31
    %v4814 = vand.u32 %v4734, 31
    %v4815 = vand.u32 %v4735, 31
    %v4816 = vand.u32 %v4736, 31
    %v4817 = vand.u32 %v4737, 31
    %v4818 = vand.u32 %v4738, 31
    %v4819 = vand.u32 %v4739, 31
    %v4820 = vand.u32 %v4740, 31
    %v4821 = vand.u32 %v4741, 31
    %v4822 = vand.u32 %v4742, 31
    %v4823 = vand.u32 %v4743, 31
    %v4824 = vand.u32 %v4744, 31
    %v4825 = vand.u32 %v4745, 31
    %v4826 = vand.u32 %v4746, 31
    %v4827 = vand.u32 %v4747, 31
    %v4828 = vand.u32 %v4748, 31
    %v4829 = vand.u32 %v4749, 31
    %v4830 = vand.u32 %v4750, 31
    %v4831 = vand.u32 %v4751, 31
    %v4832 = vand.u32 %v4752, 31
    %v4833 = vand.u32 %v4753, 31
    %v4834 = vand.u32 %v4754, 31
    %v4835 = vand.u32 %v4755, 31
    %v4836 = vand.u32 %v4756, 31
    %v4837 = vand.u32 %v4757, 31
    %v4838 = vand.u32 %v4758, 31
    %v4839 = vand.u32 %v4759, 31
    %v4840 = vand.u32 %v4760, 31
    %v4841 = vand.u32 %v4761, 31
    %v4842 = vand.u32 %v4762, 31
    %v4843 = vand.u32 %v4763, 31
    %v4844 = vand.u32 %v4764, 31
    %v4845 = vand.u32 %v4765, 31
    %v4846 = vand.u32 %v4766, 31
    %v4847 = vand.u32 %v4767, 31
    %v4848 = vand.u32 %v4768, 31
    %v4849 = vand.u32 %v4769, 31
    %v4850 = vand.u32 %v4770, 31
    %v4851 = vand.u32 %v4771, 31
    %v4852 = vand.u32 %v4772, 31
    %v4853 = vand.u32 %v4773, 31
    %v4854 = vand.u32 %v4774, 31
    %v4855 = vand.u32 %v4775, 31
    %v4856 = vand.u32 %v4776, 31
    %v4857 = vand.u32 %v4777, 31
    %v4858 = vand.u32 %v4778, 31
    %v4859 = vand.u32 %v4779, 31
    %v4860 = vshra.s32 %v4620, 7
    %v4861 = vshra.s32 %v4621, 7
    %v4862 = vshra.s32 %v4622, 7
    %v4863 = vshra.s32 %v4623, 7
    %v4864 = vshra.s32 %v4624, 7
    %v4865 = vshra.s32 %v4625, 7
    %v4866 = vshra.s32 %v4626, 7
    %v4867 = vshra.s32 %v4627, 7
    %v4868 = vshra.s32 %v4628, 7
    %v4869 = vshra.s32 %v4629, 7
    %v4870 = vshra.s32 %v4630, 7
    %v4871 = vshra.s32 %v4631, 7
    %v4872 = vshra.s32 %v4632, 7
    %v4873 = vshra.s32 %v4633, 7
    %v4874 = vshra.s32 %v4634, 7
    %v4875 = vshra.s32 %v4635, 7
    %v4876 = vshra.s32 %v4636, 7
    %v4877 = vshra.s32 %v4637, 7
    %v4878 = vshra.s32 %v4638, 7
    %v4879 = vshra.s32 %v4639, 7
    %v4880 = vshra.s32 %v4640, 7
    %v4881 = vshra.s32 %v4641, 7
    %v4882 = vshra.s32 %v4642, 7
    %v4883 = vshra.s32 %v4643, 7
    %v4884 = vshra.s32 %v4644, 7
    %v4885 = vshra.s32 %v4645, 7
    %v4886 = vshra.s32 %v4646, 7
    %v4887 = vshra.s32 %v4647, 7
    %v4888 = vshra.s32 %v4648, 7
    %v4889 = vshra.s32 %v4649, 7
    %v4890 = vshra.s32 %v4650, 7
    %v4891 = vshra.s32 %v4651, 7
    %v4892 = vshra.s32 %v4652, 7
    %v4893 = vshra.s32 %v4653, 7
    %v4894 = vshra.s32 %v4654, 7
    %v4895 = vshra.s32 %v4655, 7
    %v4896 = vshra.s32 %v4656, 7
    %v4897 = vshra.s32 %v4657, 7
    %v4898 = vshra.s32 %v4658, 7
    %v4899 = vshra.s32 %v4659, 7
    %v4900 = vshra.s32 %v4660, 7
    %v4901 = vshra.s32 %v4661, 7
    %v4902 = vshra.s32 %v4662, 7
    %v4903 = vshra.s32 %v4663, 7
    %v4904 = vshra.s32 %v4664, 7
    %v4905 = vshra.s32 %v4665, 7
    %v4906 = vshra.s32 %v4666, 7
    %v4907 = vshra.s32 %v4667, 7
    %v4908 = vshra.s32 %v4668, 7
    %v4909 = vshra.s32 %v4669, 7
    %v4910 = vshra.s32 %v4670, 7
    %v4911 = vshra.s32 %v4671, 7
    %v4912 = vshra.s32 %v4672, 7
    %v4913 = vshra.s32 %v4673, 7
    %v4914 = vshra.s32 %v4674, 7
    %v4915 = vshra.s32 %v4675, 7
    %v4916 = vshra.s32 %v4676, 7
    %v4917 = vshra.s32 %v4677, 7
    %v4918 = vshra.s32 %v4678, 7
    %v4919 = vshra.s32 %v4679, 7
    %v4920 = vshra.s32 %v4680, 7
    %v4921 = vshra.s32 %v4681, 7
    %v4922 = vshra.s32 %v4682, 7
    %v4923 = vshra.s32 %v4683, 7
    %v4924 = vshra.s32 %v4684, 7
    %v4925 = vshra.s32 %v4685, 7
    %v4926 = vshra.s32 %v4686, 7
    %v4927 = vshra.s32 %v4687, 7
    %v4928 = vshra.s32 %v4688, 7
    %v4929 = vshra.s32 %v4689, 7
    %v4930 = vshra.s32 %v4690, 7
    %v4931 = vshra.s32 %v4691, 7
    %v4932 = vshra.s32 %v4692, 7
    %v4933 = vshra.s32 %v4693, 7
    %v4934 = vshra.s32 %v4694, 7
    %v4935 = vshra.s32 %v4695, 7
    %v4936 = vshra.s32 %v4696, 7
    %v4937 = vshra.s32 %v4697, 7
    %v4938 = vshra.s32 %v4698, 7
    %v4939 = vshra.s32 %v4699, 7
    %v4940 = vand.u32 %v4620, 3
    %v4941 = vand.u32 %v4621, 3
    %v4942 = vand.u32 %v4622, 3
    %v4943 = vand.u32 %v4623, 3
    %v4944 = vand.u32 %v4624, 3
    %v4945 = vand.u32 %v4625, 3
    %v4946 = vand.u32 %v4626, 3
    %v4947 = vand.u32 %v4627, 3
    %v4948 = vand.u32 %v4628, 3
    %v4949 = vand.u32 %v4629, 3
    %v4950 = vand.u32 %v4630, 3
    %v4951 = vand.u32 %v4631, 3
    %v4952 = vand.u32 %v4632, 3
    %v4953 = vand.u32 %v4633, 3
    %v4954 = vand.u32 %v4634, 3
    %v4955 = vand.u32 %v4635, 3
    %v4956 = vand.u32 %v4636, 3
    %v4957 = vand.u32 %v4637, 3
    %v4958 = vand.u32 %v4638, 3
    %v4959 = vand.u32 %v4639, 3
    %v4960 = vand.u32 %v4640, 3
    %v4961 = vand.u32 %v4641, 3
    %v4962 = vand.u32 %v4642, 3
    %v4963 = vand.u32 %v4643, 3
    %v4964 = vand.u32 %v4644, 3
    %v4965 = vand.u32 %v4645, 3
    %v4966 = vand.u32 %v4646, 3
    %v4967 = vand.u32 %v4647, 3
    %v4968 = vand.u32 %v4648, 3
    %v4969 = vand.u32 %v4649, 3
    %v4970 = vand.u32 %v4650, 3
    %v4971 = vand.u32 %v4651, 3
    %v4972 = vand.u32 %v4652, 3
    %v4973 = vand.u32 %v4653, 3
    %v4974 = vand.u32 %v4654, 3
    %v4975 = vand.u32 %v4655, 3
    %v4976 = vand.u32 %v4656, 3
    %v4977 = vand.u32 %v4657, 3
    %v4978 = vand.u32 %v4658, 3
    %v4979 = vand.u32 %v4659, 3
    %v4980 = vand.u32 %v4660, 3
    %v4981 = vand.u32 %v4661, 3
    %v4982 = vand.u32 %v4662, 3
    %v4983 = vand.u32 %v4663, 3
    %v4984 = vand.u32 %v4664, 3
    %v4985 = vand.u32 %v4665, 3
    %v4986 = vand.u32 %v4666, 3
    %v4987 = vand.u32 %v4667, 3
    %v4988 = vand.u32 %v4668, 3
    %v4989 = vand.u32 %v4669, 3
    %v4990 = vand.u32 %v4670, 3
    %v4991 = vand.u32 %v4671, 3
    %v4992 = vand.u32 %v4672, 3
    %v4993 = vand.u32 %v4673, 3
    %v4994 = vand.u32 %v4674, 3
    %v4995 = vand.u32 %v4675, 3
    %v4996 = vand.u32 %v4676, 3
    %v4997 = vand.u32 %v4677, 3
    %v4998 = vand.u32 %v4678, 3
    %v4999 = vand.u32 %v4679, 3
    %v5000 = vand.u32 %v4680, 3
    %v5001 = vand.u32 %v4681, 3
    %v5002 = vand.u32 %v4682, 3
    %v5003 = vand.u32 %v4683, 3
    %v5004 = vand.u32 %v4684, 3
    %v5005 = vand.u32 %v4685, 3
    %v5006 = vand.u32 %v4686, 3
    %v5007 = vand.u32 %v4687, 3
    %v5008 = vand.u32 %v4688, 3
    %v5009 = vand.u32 %v4689, 3
    %v5010 = vand.u32 %v4690, 3
    %v5011 = vand.u32 %v4691, 3
    %v5012 = vand.u32 %v4692, 3
    %v5013 = vand.u32 %v4693, 3
    %v5014 = vand.u32 %v4694, 3
    %v5015 = vand.u32 %v4695, 3
    %v5016 = vand.u32 %v4696, 3
    %v5017 = vand.u32 %v4697, 3
    %v5018 = vand.u32 %v4698, 3
    %v5019 = vand.u32 %v4699, 3
    %vm5020 = vcmp.eq.s32.totalorder %v4940, 0
    %vm5021 = vcmp.eq.s32.totalorder %v4941, 0
    %vm5022 = vcmp.eq.s32.totalorder %v4942, 0
    %vm5023 = vcmp.eq.s32.totalorder %v4943, 0
    %vm5024 = vcmp.eq.s32.totalorder %v4944, 0
    %vm5025 = vcmp.eq.s32.totalorder %v4945, 0
    %vm5026 = vcmp.eq.s32.totalorder %v4946, 0
    %vm5027 = vcmp.eq.s32.totalorder %v4947, 0
    %vm5028 = vcmp.eq.s32.totalorder %v4948, 0
    %vm5029 = vcmp.eq.s32.totalorder %v4949, 0
    %vm5030 = vcmp.eq.s32.totalorder %v4950, 0
    %vm5031 = vcmp.eq.s32.totalorder %v4951, 0
    %vm5032 = vcmp.eq.s32.totalorder %v4952, 0
    %vm5033 = vcmp.eq.s32.totalorder %v4953, 0
    %vm5034 = vcmp.eq.s32.totalorder %v4954, 0
    %vm5035 = vcmp.eq.s32.totalorder %v4955, 0
    %vm5036 = vcmp.eq.s32.totalorder %v4956, 0
    %vm5037 = vcmp.eq.s32.totalorder %v4957, 0
    %vm5038 = vcmp.eq.s32.totalorder %v4958, 0
    %vm5039 = vcmp.eq.s32.totalorder %v4959, 0
    %vm5040 = vcmp.eq.s32.totalorder %v4960, 0
    %vm5041 = vcmp.eq.s32.totalorder %v4961, 0
    %vm5042 = vcmp.eq.s32.totalorder %v4962, 0
    %vm5043 = vcmp.eq.s32.totalorder %v4963, 0
    %vm5044 = vcmp.eq.s32.totalorder %v4964, 0
    %vm5045 = vcmp.eq.s32.totalorder %v4965, 0
    %vm5046 = vcmp.eq.s32.totalorder %v4966, 0
    %vm5047 = vcmp.eq.s32.totalorder %v4967, 0
    %vm5048 = vcmp.eq.s32.totalorder %v4968, 0
    %vm5049 = vcmp.eq.s32.totalorder %v4969, 0
    %vm5050 = vcmp.eq.s32.totalorder %v4970, 0
    %vm5051 = vcmp.eq.s32.totalorder %v4971, 0
    %vm5052 = vcmp.eq.s32.totalorder %v4972, 0
    %vm5053 = vcmp.eq.s32.totalorder %v4973, 0
    %vm5054 = vcmp.eq.s32.totalorder %v4974, 0
    %vm5055 = vcmp.eq.s32.totalorder %v4975, 0
    %vm5056 = vcmp.eq.s32.totalorder %v4976, 0
    %vm5057 = vcmp.eq.s32.totalorder %v4977, 0
    %vm5058 = vcmp.eq.s32.totalorder %v4978, 0
    %vm5059 = vcmp.eq.s32.totalorder %v4979, 0
    %vm5060 = vcmp.eq.s32.totalorder %v4980, 0
    %vm5061 = vcmp.eq.s32.totalorder %v4981, 0
    %vm5062 = vcmp.eq.s32.totalorder %v4982, 0
    %vm5063 = vcmp.eq.s32.totalorder %v4983, 0
    %vm5064 = vcmp.eq.s32.totalorder %v4984, 0
    %vm5065 = vcmp.eq.s32.totalorder %v4985, 0
    %vm5066 = vcmp.eq.s32.totalorder %v4986, 0
    %vm5067 = vcmp.eq.s32.totalorder %v4987, 0
    %vm5068 = vcmp.eq.s32.totalorder %v4988, 0
    %vm5069 = vcmp.eq.s32.totalorder %v4989, 0
    %vm5070 = vcmp.eq.s32.totalorder %v4990, 0
    %vm5071 = vcmp.eq.s32.totalorder %v4991, 0
    %vm5072 = vcmp.eq.s32.totalorder %v4992, 0
    %vm5073 = vcmp.eq.s32.totalorder %v4993, 0
    %vm5074 = vcmp.eq.s32.totalorder %v4994, 0
    %vm5075 = vcmp.eq.s32.totalorder %v4995, 0
    %vm5076 = vcmp.eq.s32.totalorder %v4996, 0
    %vm5077 = vcmp.eq.s32.totalorder %v4997, 0
    %vm5078 = vcmp.eq.s32.totalorder %v4998, 0
    %vm5079 = vcmp.eq.s32.totalorder %v4999, 0
    %vm5080 = vcmp.eq.s32.totalorder %v5000, 0
    %vm5081 = vcmp.eq.s32.totalorder %v5001, 0
    %vm5082 = vcmp.eq.s32.totalorder %v5002, 0
    %vm5083 = vcmp.eq.s32.totalorder %v5003, 0
    %vm5084 = vcmp.eq.s32.totalorder %v5004, 0
    %vm5085 = vcmp.eq.s32.totalorder %v5005, 0
    %vm5086 = vcmp.eq.s32.totalorder %v5006, 0
    %vm5087 = vcmp.eq.s32.totalorder %v5007, 0
    %vm5088 = vcmp.eq.s32.totalorder %v5008, 0
    %vm5089 = vcmp.eq.s32.totalorder %v5009, 0
    %vm5090 = vcmp.eq.s32.totalorder %v5010, 0
    %vm5091 = vcmp.eq.s32.totalorder %v5011, 0
    %vm5092 = vcmp.eq.s32.totalorder %v5012, 0
    %vm5093 = vcmp.eq.s32.totalorder %v5013, 0
    %vm5094 = vcmp.eq.s32.totalorder %v5014, 0
    %vm5095 = vcmp.eq.s32.totalorder %v5015, 0
    %vm5096 = vcmp.eq.s32.totalorder %v5016, 0
    %vm5097 = vcmp.eq.s32.totalorder %v5017, 0
    %vm5098 = vcmp.eq.s32.totalorder %v5018, 0
    %vm5099 = vcmp.eq.s32.totalorder %v5019, 0
    %vm5100 = vcmp.lt.s32.totalorder %v4780, 5
    %vm5101 = vcmp.lt.s32.totalorder %v4781, 5
    %vm5102 = vcmp.lt.s32.totalorder %v4782, 5
    %vm5103 = vcmp.lt.s32.totalorder %v4783, 5
    %vm5104 = vcmp.lt.s32.totalorder %v4784, 5
    %vm5105 = vcmp.lt.s32.totalorder %v4785, 5
    %vm5106 = vcmp.lt.s32.totalorder %v4786, 5
    %vm5107 = vcmp.lt.s32.totalorder %v4787, 5
    %vm5108 = vcmp.lt.s32.totalorder %v4788, 5
    %vm5109 = vcmp.lt.s32.totalorder %v4789, 5
    %vm5110 = vcmp.lt.s32.totalorder %v4790, 5
    %vm5111 = vcmp.lt.s32.totalorder %v4791, 5
    %vm5112 = vcmp.lt.s32.totalorder %v4792, 5
    %vm5113 = vcmp.lt.s32.totalorder %v4793, 5
    %vm5114 = vcmp.lt.s32.totalorder %v4794, 5
    %vm5115 = vcmp.lt.s32.totalorder %v4795, 5
    %vm5116 = vcmp.lt.s32.totalorder %v4796, 5
    %vm5117 = vcmp.lt.s32.totalorder %v4797, 5
    %vm5118 = vcmp.lt.s32.totalorder %v4798, 5
    %vm5119 = vcmp.lt.s32.totalorder %v4799, 5
    %vm5120 = vcmp.lt.s32.totalorder %v4800, 5
    %vm5121 = vcmp.lt.s32.totalorder %v4801, 5
    %vm5122 = vcmp.lt.s32.totalorder %v4802, 5
    %vm5123 = vcmp.lt.s32.totalorder %v4803, 5
    %vm5124 = vcmp.lt.s32.totalorder %v4804, 5
    %vm5125 = vcmp.lt.s32.totalorder %v4805, 5
    %vm5126 = vcmp.lt.s32.totalorder %v4806, 5
    %vm5127 = vcmp.lt.s32.totalorder %v4807, 5
    %vm5128 = vcmp.lt.s32.totalorder %v4808, 5
    %vm5129 = vcmp.lt.s32.totalorder %v4809, 5
    %vm5130 = vcmp.lt.s32.totalorder %v4810, 5
    %vm5131 = vcmp.lt.s32.totalorder %v4811, 5
    %vm5132 = vcmp.lt.s32.totalorder %v4812, 5
    %vm5133 = vcmp.lt.s32.totalorder %v4813, 5
    %vm5134 = vcmp.lt.s32.totalorder %v4814, 5
    %vm5135 = vcmp.lt.s32.totalorder %v4815, 5
    %vm5136 = vcmp.lt.s32.totalorder %v4816, 5
    %vm5137 = vcmp.lt.s32.totalorder %v4817, 5
    %vm5138 = vcmp.lt.s32.totalorder %v4818, 5
    %vm5139 = vcmp.lt.s32.totalorder %v4819, 5
    %vm5140 = vcmp.lt.s32.totalorder %v4820, 5
    %vm5141 = vcmp.lt.s32.totalorder %v4821, 5
    %vm5142 = vcmp.lt.s32.totalorder %v4822, 5
    %vm5143 = vcmp.lt.s32.totalorder %v4823, 5
    %vm5144 = vcmp.lt.s32.totalorder %v4824, 5
    %vm5145 = vcmp.lt.s32.totalorder %v4825, 5
    %vm5146 = vcmp.lt.s32.totalorder %v4826, 5
    %vm5147 = vcmp.lt.s32.totalorder %v4827, 5
    %vm5148 = vcmp.lt.s32.totalorder %v4828, 5
    %vm5149 = vcmp.lt.s32.totalorder %v4829, 5
    %vm5150 = vcmp.lt.s32.totalorder %v4830, 5
    %vm5151 = vcmp.lt.s32.totalorder %v4831, 5
    %vm5152 = vcmp.lt.s32.totalorder %v4832, 5
    %vm5153 = vcmp.lt.s32.totalorder %v4833, 5
    %vm5154 = vcmp.lt.s32.totalorder %v4834, 5
    %vm5155 = vcmp.lt.s32.totalorder %v4835, 5
    %vm5156 = vcmp.lt.s32.totalorder %v4836, 5
    %vm5157 = vcmp.lt.s32.totalorder %v4837, 5
    %vm5158 = vcmp.lt.s32.totalorder %v4838, 5
    %vm5159 = vcmp.lt.s32.totalorder %v4839, 5
    %vm5160 = vcmp.lt.s32.totalorder %v4840, 5
    %vm5161 = vcmp.lt.s32.totalorder %v4841, 5
    %vm5162 = vcmp.lt.s32.totalorder %v4842, 5
    %vm5163 = vcmp.lt.s32.totalorder %v4843, 5
    %vm5164 = vcmp.lt.s32.totalorder %v4844, 5
    %vm5165 = vcmp.lt.s32.totalorder %v4845, 5
    %vm5166 = vcmp.lt.s32.totalorder %v4846, 5
    %vm5167 = vcmp.lt.s32.totalorder %v4847, 5
    %vm5168 = vcmp.lt.s32.totalorder %v4848, 5
    %vm5169 = vcmp.lt.s32.totalorder %v4849, 5
    %vm5170 = vcmp.lt.s32.totalorder %v4850, 5
    %vm5171 = vcmp.lt.s32.totalorder %v4851, 5
    %vm5172 = vcmp.lt.s32.totalorder %v4852, 5
    %vm5173 = vcmp.lt.s32.totalorder %v4853, 5
    %vm5174 = vcmp.lt.s32.totalorder %v4854, 5
    %vm5175 = vcmp.lt.s32.totalorder %v4855, 5
    %vm5176 = vcmp.lt.s32.totalorder %v4856, 5
    %vm5177 = vcmp.lt.s32.totalorder %v4857, 5
    %vm5178 = vcmp.lt.s32.totalorder %v4858, 5
    %vm5179 = vcmp.lt.s32.totalorder %v4859, 5
    %vm5180 = vmand %vm5020, %vm5100
    %vm5181 = vmand %vm5021, %vm5101
    %vm5182 = vmand %vm5022, %vm5102
    %vm5183 = vmand %vm5023, %vm5103
    %vm5184 = vmand %vm5024, %vm5104
    %vm5185 = vmand %vm5025, %vm5105
    %vm5186 = vmand %vm5026, %vm5106
    %vm5187 = vmand %vm5027, %vm5107
    %vm5188 = vmand %vm5028, %vm5108
    %vm5189 = vmand %vm5029, %vm5109
    %vm5190 = vmand %vm5030, %vm5110
    %vm5191 = vmand %vm5031, %vm5111
    %vm5192 = vmand %vm5032, %vm5112
    %vm5193 = vmand %vm5033, %vm5113
    %vm5194 = vmand %vm5034, %vm5114
    %vm5195 = vmand %vm5035, %vm5115
    %vm5196 = vmand %vm5036, %vm5116
    %vm5197 = vmand %vm5037, %vm5117
    %vm5198 = vmand %vm5038, %vm5118
    %vm5199 = vmand %vm5039, %vm5119
    %vm5200 = vmand %vm5040, %vm5120
    %vm5201 = vmand %vm5041, %vm5121
    %vm5202 = vmand %vm5042, %vm5122
    %vm5203 = vmand %vm5043, %vm5123
    %vm5204 = vmand %vm5044, %vm5124
    %vm5205 = vmand %vm5045, %vm5125
    %vm5206 = vmand %vm5046, %vm5126
    %vm5207 = vmand %vm5047, %vm5127
    %vm5208 = vmand %vm5048, %vm5128
    %vm5209 = vmand %vm5049, %vm5129
    %vm5210 = vmand %vm5050, %vm5130
    %vm5211 = vmand %vm5051, %vm5131
    %vm5212 = vmand %vm5052, %vm5132
    %vm5213 = vmand %vm5053, %vm5133
    %vm5214 = vmand %vm5054, %vm5134
    %vm5215 = vmand %vm5055, %vm5135
    %vm5216 = vmand %vm5056, %vm5136
    %vm5217 = vmand %vm5057, %vm5137
    %vm5218 = vmand %vm5058, %vm5138
    %vm5219 = vmand %vm5059, %vm5139
    %vm5220 = vmand %vm5060, %vm5140
    %vm5221 = vmand %vm5061, %vm5141
    %vm5222 = vmand %vm5062, %vm5142
    %vm5223 = vmand %vm5063, %vm5143
    %vm5224 = vmand %vm5064, %vm5144
    %vm5225 = vmand %vm5065, %vm5145
    %vm5226 = vmand %vm5066, %vm5146
    %vm5227 = vmand %vm5067, %vm5147
    %vm5228 = vmand %vm5068, %vm5148
    %vm5229 = vmand %vm5069, %vm5149
    %vm5230 = vmand %vm5070, %vm5150
    %vm5231 = vmand %vm5071, %vm5151
    %vm5232 = vmand %vm5072, %vm5152
    %vm5233 = vmand %vm5073, %vm5153
    %vm5234 = vmand %vm5074, %vm5154
    %vm5235 = vmand %vm5075, %vm5155
    %vm5236 = vmand %vm5076, %vm5156
    %vm5237 = vmand %vm5077, %vm5157
    %vm5238 = vmand %vm5078, %vm5158
    %vm5239 = vmand %vm5079, %vm5159
    %vm5240 = vmand %vm5080, %vm5160
    %vm5241 = vmand %vm5081, %vm5161
    %vm5242 = vmand %vm5082, %vm5162
    %vm5243 = vmand %vm5083, %vm5163
    %vm5244 = vmand %vm5084, %vm5164
    %vm5245 = vmand %vm5085, %vm5165
    %vm5246 = vmand %vm5086, %vm5166
    %vm5247 = vmand %vm5087, %vm5167
    %vm5248 = vmand %vm5088, %vm5168
    %vm5249 = vmand %vm5089, %vm5169
    %vm5250 = vmand %vm5090, %vm5170
    %vm5251 = vmand %vm5091, %vm5171
    %vm5252 = vmand %vm5092, %vm5172
    %vm5253 = vmand %vm5093, %vm5173
    %vm5254 = vmand %vm5094, %vm5174
    %vm5255 = vmand %vm5095, %vm5175
    %vm5256 = vmand %vm5096, %vm5176
    %vm5257 = vmand %vm5097, %vm5177
    %vm5258 = vmand %vm5098, %vm5178
    %vm5259 = vmand %vm5099, %vm5179
    %vm5260 = vcmp.lt.s32.totalorder %v4860, 5
    %vm5261 = vcmp.lt.s32.totalorder %v4861, 5
    %vm5262 = vcmp.lt.s32.totalorder %v4862, 5
    %vm5263 = vcmp.lt.s32.totalorder %v4863, 5
    %vm5264 = vcmp.lt.s32.totalorder %v4864, 5
    %vm5265 = vcmp.lt.s32.totalorder %v4865, 5
    %vm5266 = vcmp.lt.s32.totalorder %v4866, 5
    %vm5267 = vcmp.lt.s32.totalorder %v4867, 5
    %vm5268 = vcmp.lt.s32.totalorder %v4868, 5
    %vm5269 = vcmp.lt.s32.totalorder %v4869, 5
    %vm5270 = vcmp.lt.s32.totalorder %v4870, 5
    %vm5271 = vcmp.lt.s32.totalorder %v4871, 5
    %vm5272 = vcmp.lt.s32.totalorder %v4872, 5
    %vm5273 = vcmp.lt.s32.totalorder %v4873, 5
    %vm5274 = vcmp.lt.s32.totalorder %v4874, 5
    %vm5275 = vcmp.lt.s32.totalorder %v4875, 5
    %vm5276 = vcmp.lt.s32.totalorder %v4876, 5
    %vm5277 = vcmp.lt.s32.totalorder %v4877, 5
    %vm5278 = vcmp.lt.s32.totalorder %v4878, 5
    %vm5279 = vcmp.lt.s32.totalorder %v4879, 5
    %vm5280 = vcmp.lt.s32.totalorder %v4880, 5
    %vm5281 = vcmp.lt.s32.totalorder %v4881, 5
    %vm5282 = vcmp.lt.s32.totalorder %v4882, 5
    %vm5283 = vcmp.lt.s32.totalorder %v4883, 5
    %vm5284 = vcmp.lt.s32.totalorder %v4884, 5
    %vm5285 = vcmp.lt.s32.totalorder %v4885, 5
    %vm5286 = vcmp.lt.s32.totalorder %v4886, 5
    %vm5287 = vcmp.lt.s32.totalorder %v4887, 5
    %vm5288 = vcmp.lt.s32.totalorder %v4888, 5
    %vm5289 = vcmp.lt.s32.totalorder %v4889, 5
    %vm5290 = vcmp.lt.s32.totalorder %v4890, 5
    %vm5291 = vcmp.lt.s32.totalorder %v4891, 5
    %vm5292 = vcmp.lt.s32.totalorder %v4892, 5
    %vm5293 = vcmp.lt.s32.totalorder %v4893, 5
    %vm5294 = vcmp.lt.s32.totalorder %v4894, 5
    %vm5295 = vcmp.lt.s32.totalorder %v4895, 5
    %vm5296 = vcmp.lt.s32.totalorder %v4896, 5
    %vm5297 = vcmp.lt.s32.totalorder %v4897, 5
    %vm5298 = vcmp.lt.s32.totalorder %v4898, 5
    %vm5299 = vcmp.lt.s32.totalorder %v4899, 5
    %vm5300 = vcmp.lt.s32.totalorder %v4900, 5
    %vm5301 = vcmp.lt.s32.totalorder %v4901, 5
    %vm5302 = vcmp.lt.s32.totalorder %v4902, 5
    %vm5303 = vcmp.lt.s32.totalorder %v4903, 5
    %vm5304 = vcmp.lt.s32.totalorder %v4904, 5
    %vm5305 = vcmp.lt.s32.totalorder %v4905, 5
    %vm5306 = vcmp.lt.s32.totalorder %v4906, 5
    %vm5307 = vcmp.lt.s32.totalorder %v4907, 5
    %vm5308 = vcmp.lt.s32.totalorder %v4908, 5
    %vm5309 = vcmp.lt.s32.totalorder %v4909, 5
    %vm5310 = vcmp.lt.s32.totalorder %v4910, 5
    %vm5311 = vcmp.lt.s32.totalorder %v4911, 5
    %vm5312 = vcmp.lt.s32.totalorder %v4912, 5
    %vm5313 = vcmp.lt.s32.totalorder %v4913, 5
    %vm5314 = vcmp.lt.s32.totalorder %v4914, 5
    %vm5315 = vcmp.lt.s32.totalorder %v4915, 5
    %vm5316 = vcmp.lt.s32.totalorder %v4916, 5
    %vm5317 = vcmp.lt.s32.totalorder %v4917, 5
    %vm5318 = vcmp.lt.s32.totalorder %v4918, 5
    %vm5319 = vcmp.lt.s32.totalorder %v4919, 5
    %vm5320 = vcmp.lt.s32.totalorder %v4920, 5
    %vm5321 = vcmp.lt.s32.totalorder %v4921, 5
    %vm5322 = vcmp.lt.s32.totalorder %v4922, 5
    %vm5323 = vcmp.lt.s32.totalorder %v4923, 5
    %vm5324 = vcmp.lt.s32.totalorder %v4924, 5
    %vm5325 = vcmp.lt.s32.totalorder %v4925, 5
    %vm5326 = vcmp.lt.s32.totalorder %v4926, 5
    %vm5327 = vcmp.lt.s32.totalorder %v4927, 5
    %vm5328 = vcmp.lt.s32.totalorder %v4928, 5
    %vm5329 = vcmp.lt.s32.totalorder %v4929, 5
    %vm5330 = vcmp.lt.s32.totalorder %v4930, 5
    %vm5331 = vcmp.lt.s32.totalorder %v4931, 5
    %vm5332 = vcmp.lt.s32.totalorder %v4932, 5
    %vm5333 = vcmp.lt.s32.totalorder %v4933, 5
    %vm5334 = vcmp.lt.s32.totalorder %v4934, 5
    %vm5335 = vcmp.lt.s32.totalorder %v4935, 5
    %vm5336 = vcmp.lt.s32.totalorder %v4936, 5
    %vm5337 = vcmp.lt.s32.totalorder %v4937, 5
    %vm5338 = vcmp.lt.s32.totalorder %v4938, 5
    %vm5339 = vcmp.lt.s32.totalorder %v4939, 5
    %vm5340 = vmand %vm5180, %vm5260
    %vm5341 = vmand %vm5181, %vm5261
    %vm5342 = vmand %vm5182, %vm5262
    %vm5343 = vmand %vm5183, %vm5263
    %vm5344 = vmand %vm5184, %vm5264
    %vm5345 = vmand %vm5185, %vm5265
    %vm5346 = vmand %vm5186, %vm5266
    %vm5347 = vmand %vm5187, %vm5267
    %vm5348 = vmand %vm5188, %vm5268
    %vm5349 = vmand %vm5189, %vm5269
    %vm5350 = vmand %vm5190, %vm5270
    %vm5351 = vmand %vm5191, %vm5271
    %vm5352 = vmand %vm5192, %vm5272
    %vm5353 = vmand %vm5193, %vm5273
    %vm5354 = vmand %vm5194, %vm5274
    %vm5355 = vmand %vm5195, %vm5275
    %vm5356 = vmand %vm5196, %vm5276
    %vm5357 = vmand %vm5197, %vm5277
    %vm5358 = vmand %vm5198, %vm5278
    %vm5359 = vmand %vm5199, %vm5279
    %vm5360 = vmand %vm5200, %vm5280
    %vm5361 = vmand %vm5201, %vm5281
    %vm5362 = vmand %vm5202, %vm5282
    %vm5363 = vmand %vm5203, %vm5283
    %vm5364 = vmand %vm5204, %vm5284
    %vm5365 = vmand %vm5205, %vm5285
    %vm5366 = vmand %vm5206, %vm5286
    %vm5367 = vmand %vm5207, %vm5287
    %vm5368 = vmand %vm5208, %vm5288
    %vm5369 = vmand %vm5209, %vm5289
    %vm5370 = vmand %vm5210, %vm5290
    %vm5371 = vmand %vm5211, %vm5291
    %vm5372 = vmand %vm5212, %vm5292
    %vm5373 = vmand %vm5213, %vm5293
    %vm5374 = vmand %vm5214, %vm5294
    %vm5375 = vmand %vm5215, %vm5295
    %vm5376 = vmand %vm5216, %vm5296
    %vm5377 = vmand %vm5217, %vm5297
    %vm5378 = vmand %vm5218, %vm5298
    %vm5379 = vmand %vm5219, %vm5299
    %vm5380 = vmand %vm5220, %vm5300
    %vm5381 = vmand %vm5221, %vm5301
    %vm5382 = vmand %vm5222, %vm5302
    %vm5383 = vmand %vm5223, %vm5303
    %vm5384 = vmand %vm5224, %vm5304
    %vm5385 = vmand %vm5225, %vm5305
    %vm5386 = vmand %vm5226, %vm5306
    %vm5387 = vmand %vm5227, %vm5307
    %vm5388 = vmand %vm5228, %vm5308
    %vm5389 = vmand %vm5229, %vm5309
    %vm5390 = vmand %vm5230, %vm5310
    %vm5391 = vmand %vm5231, %vm5311
    %vm5392 = vmand %vm5232, %vm5312
    %vm5393 = vmand %vm5233, %vm5313
    %vm5394 = vmand %vm5234, %vm5314
    %vm5395 = vmand %vm5235, %vm5315
    %vm5396 = vmand %vm5236, %vm5316
    %vm5397 = vmand %vm5237, %vm5317
    %vm5398 = vmand %vm5238, %vm5318
    %vm5399 = vmand %vm5239, %vm5319
    %vm5400 = vmand %vm5240, %vm5320
    %vm5401 = vmand %vm5241, %vm5321
    %vm5402 = vmand %vm5242, %vm5322
    %vm5403 = vmand %vm5243, %vm5323
    %vm5404 = vmand %vm5244, %vm5324
    %vm5405 = vmand %vm5245, %vm5325
    %vm5406 = vmand %vm5246, %vm5326
    %vm5407 = vmand %vm5247, %vm5327
    %vm5408 = vmand %vm5248, %vm5328
    %vm5409 = vmand %vm5249, %vm5329
    %vm5410 = vmand %vm5250, %vm5330
    %vm5411 = vmand %vm5251, %vm5331
    %vm5412 = vmand %vm5252, %vm5332
    %vm5413 = vmand %vm5253, %vm5333
    %vm5414 = vmand %vm5254, %vm5334
    %vm5415 = vmand %vm5255, %vm5335
    %vm5416 = vmand %vm5256, %vm5336
    %vm5417 = vmand %vm5257, %vm5337
    %vm5418 = vmand %vm5258, %vm5338
    %vm5419 = vmand %vm5259, %vm5339
    %v5420 = vmul.u32 %v4860, 5
    %v5421 = vmul.u32 %v4861, 5
    %v5422 = vmul.u32 %v4862, 5
    %v5423 = vmul.u32 %v4863, 5
    %v5424 = vmul.u32 %v4864, 5
    %v5425 = vmul.u32 %v4865, 5
    %v5426 = vmul.u32 %v4866, 5
    %v5427 = vmul.u32 %v4867, 5
    %v5428 = vmul.u32 %v4868, 5
    %v5429 = vmul.u32 %v4869, 5
    %v5430 = vmul.u32 %v4870, 5
    %v5431 = vmul.u32 %v4871, 5
    %v5432 = vmul.u32 %v4872, 5
    %v5433 = vmul.u32 %v4873, 5
    %v5434 = vmul.u32 %v4874, 5
    %v5435 = vmul.u32 %v4875, 5
    %v5436 = vmul.u32 %v4876, 5
    %v5437 = vmul.u32 %v4877, 5
    %v5438 = vmul.u32 %v4878, 5
    %v5439 = vmul.u32 %v4879, 5
    %v5440 = vmul.u32 %v4880, 5
    %v5441 = vmul.u32 %v4881, 5
    %v5442 = vmul.u32 %v4882, 5
    %v5443 = vmul.u32 %v4883, 5
    %v5444 = vmul.u32 %v4884, 5
    %v5445 = vmul.u32 %v4885, 5
    %v5446 = vmul.u32 %v4886, 5
    %v5447 = vmul.u32 %v4887, 5
    %v5448 = vmul.u32 %v4888, 5
    %v5449 = vmul.u32 %v4889, 5
    %v5450 = vmul.u32 %v4890, 5
    %v5451 = vmul.u32 %v4891, 5
    %v5452 = vmul.u32 %v4892, 5
    %v5453 = vmul.u32 %v4893, 5
    %v5454 = vmul.u32 %v4894, 5
    %v5455 = vmul.u32 %v4895, 5
    %v5456 = vmul.u32 %v4896, 5
    %v5457 = vmul.u32 %v4897, 5
    %v5458 = vmul.u32 %v4898, 5
    %v5459 = vmul.u32 %v4899, 5
    %v5460 = vmul.u32 %v4900, 5
    %v5461 = vmul.u32 %v4901, 5
    %v5462 = vmul.u32 %v4902, 5
    %v5463 = vmul.u32 %v4903, 5
    %v5464 = vmul.u32 %v4904, 5
    %v5465 = vmul.u32 %v4905, 5
    %v5466 = vmul.u32 %v4906, 5
    %v5467 = vmul.u32 %v4907, 5
    %v5468 = vmul.u32 %v4908, 5
    %v5469 = vmul.u32 %v4909, 5
    %v5470 = vmul.u32 %v4910, 5
    %v5471 = vmul.u32 %v4911, 5
    %v5472 = vmul.u32 %v4912, 5
    %v5473 = vmul.u32 %v4913, 5
    %v5474 = vmul.u32 %v4914, 5
    %v5475 = vmul.u32 %v4915, 5
    %v5476 = vmul.u32 %v4916, 5
    %v5477 = vmul.u32 %v4917, 5
    %v5478 = vmul.u32 %v4918, 5
    %v5479 = vmul.u32 %v4919, 5
    %v5480 = vmul.u32 %v4920, 5
    %v5481 = vmul.u32 %v4921, 5
    %v5482 = vmul.u32 %v4922, 5
    %v5483 = vmul.u32 %v4923, 5
    %v5484 = vmul.u32 %v4924, 5
    %v5485 = vmul.u32 %v4925, 5
    %v5486 = vmul.u32 %v4926, 5
    %v5487 = vmul.u32 %v4927, 5
    %v5488 = vmul.u32 %v4928, 5
    %v5489 = vmul.u32 %v4929, 5
    %v5490 = vmul.u32 %v4930, 5
    %v5491 = vmul.u32 %v4931, 5
    %v5492 = vmul.u32 %v4932, 5
    %v5493 = vmul.u32 %v4933, 5
    %v5494 = vmul.u32 %v4934, 5
    %v5495 = vmul.u32 %v4935, 5
    %v5496 = vmul.u32 %v4936, 5
    %v5497 = vmul.u32 %v4937, 5
    %v5498 = vmul.u32 %v4938, 5
    %v5499 = vmul.u32 %v4939, 5
    %v5500 = vadd.s32 %v5420, %v4780
    %v5501 = vadd.s32 %v5421, %v4781
    %v5502 = vadd.s32 %v5422, %v4782
    %v5503 = vadd.s32 %v5423, %v4783
    %v5504 = vadd.s32 %v5424, %v4784
    %v5505 = vadd.s32 %v5425, %v4785
    %v5506 = vadd.s32 %v5426, %v4786
    %v5507 = vadd.s32 %v5427, %v4787
    %v5508 = vadd.s32 %v5428, %v4788
    %v5509 = vadd.s32 %v5429, %v4789
    %v5510 = vadd.s32 %v5430, %v4790
    %v5511 = vadd.s32 %v5431, %v4791
    %v5512 = vadd.s32 %v5432, %v4792
    %v5513 = vadd.s32 %v5433, %v4793
    %v5514 = vadd.s32 %v5434, %v4794
    %v5515 = vadd.s32 %v5435, %v4795
    %v5516 = vadd.s32 %v5436, %v4796
    %v5517 = vadd.s32 %v5437, %v4797
    %v5518 = vadd.s32 %v5438, %v4798
    %v5519 = vadd.s32 %v5439, %v4799
    %v5520 = vadd.s32 %v5440, %v4800
    %v5521 = vadd.s32 %v5441, %v4801
    %v5522 = vadd.s32 %v5442, %v4802
    %v5523 = vadd.s32 %v5443, %v4803
    %v5524 = vadd.s32 %v5444, %v4804
    %v5525 = vadd.s32 %v5445, %v4805
    %v5526 = vadd.s32 %v5446, %v4806
    %v5527 = vadd.s32 %v5447, %v4807
    %v5528 = vadd.s32 %v5448, %v4808
    %v5529 = vadd.s32 %v5449, %v4809
    %v5530 = vadd.s32 %v5450, %v4810
    %v5531 = vadd.s32 %v5451, %v4811
    %v5532 = vadd.s32 %v5452, %v4812
    %v5533 = vadd.s32 %v5453, %v4813
    %v5534 = vadd.s32 %v5454, %v4814
    %v5535 = vadd.s32 %v5455, %v4815
    %v5536 = vadd.s32 %v5456, %v4816
    %v5537 = vadd.s32 %v5457, %v4817
    %v5538 = vadd.s32 %v5458, %v4818
    %v5539 = vadd.s32 %v5459, %v4819
    %v5540 = vadd.s32 %v5460, %v4820
    %v5541 = vadd.s32 %v5461, %v4821
    %v5542 = vadd.s32 %v5462, %v4822
    %v5543 = vadd.s32 %v5463, %v4823
    %v5544 = vadd.s32 %v5464, %v4824
    %v5545 = vadd.s32 %v5465, %v4825
    %v5546 = vadd.s32 %v5466, %v4826
    %v5547 = vadd.s32 %v5467, %v4827
    %v5548 = vadd.s32 %v5468, %v4828
    %v5549 = vadd.s32 %v5469, %v4829
    %v5550 = vadd.s32 %v5470, %v4830
    %v5551 = vadd.s32 %v5471, %v4831
    %v5552 = vadd.s32 %v5472, %v4832
    %v5553 = vadd.s32 %v5473, %v4833
    %v5554 = vadd.s32 %v5474, %v4834
    %v5555 = vadd.s32 %v5475, %v4835
    %v5556 = vadd.s32 %v5476, %v4836
    %v5557 = vadd.s32 %v5477, %v4837
    %v5558 = vadd.s32 %v5478, %v4838
    %v5559 = vadd.s32 %v5479, %v4839
    %v5560 = vadd.s32 %v5480, %v4840
    %v5561 = vadd.s32 %v5481, %v4841
    %v5562 = vadd.s32 %v5482, %v4842
    %v5563 = vadd.s32 %v5483, %v4843
    %v5564 = vadd.s32 %v5484, %v4844
    %v5565 = vadd.s32 %v5485, %v4845
    %v5566 = vadd.s32 %v5486, %v4846
    %v5567 = vadd.s32 %v5487, %v4847
    %v5568 = vadd.s32 %v5488, %v4848
    %v5569 = vadd.s32 %v5489, %v4849
    %v5570 = vadd.s32 %v5490, %v4850
    %v5571 = vadd.s32 %v5491, %v4851
    %v5572 = vadd.s32 %v5492, %v4852
    %v5573 = vadd.s32 %v5493, %v4853
    %v5574 = vadd.s32 %v5494, %v4854
    %v5575 = vadd.s32 %v5495, %v4855
    %v5576 = vadd.s32 %v5496, %v4856
    %v5577 = vadd.s32 %v5497, %v4857
    %v5578 = vadd.s32 %v5498, %v4858
    %v5579 = vadd.s32 %v5499, %v4859
    %vm5580 = vcmp.eq.s32.totalorder %v1438, %v5500
    %vm5581 = vcmp.eq.s32.totalorder %v1438, %v5501
    %vm5582 = vcmp.eq.s32.totalorder %v1438, %v5502
    %vm5583 = vcmp.eq.s32.totalorder %v1438, %v5503
    %vm5584 = vcmp.eq.s32.totalorder %v1438, %v5504
    %vm5585 = vcmp.eq.s32.totalorder %v1438, %v5505
    %vm5586 = vcmp.eq.s32.totalorder %v1438, %v5506
    %vm5587 = vcmp.eq.s32.totalorder %v1438, %v5507
    %vm5588 = vcmp.eq.s32.totalorder %v1438, %v5508
    %vm5589 = vcmp.eq.s32.totalorder %v1438, %v5509
    %vm5590 = vcmp.eq.s32.totalorder %v1438, %v5510
    %vm5591 = vcmp.eq.s32.totalorder %v1438, %v5511
    %vm5592 = vcmp.eq.s32.totalorder %v1438, %v5512
    %vm5593 = vcmp.eq.s32.totalorder %v1438, %v5513
    %vm5594 = vcmp.eq.s32.totalorder %v1438, %v5514
    %vm5595 = vcmp.eq.s32.totalorder %v1438, %v5515
    %vm5596 = vcmp.eq.s32.totalorder %v1438, %v5516
    %vm5597 = vcmp.eq.s32.totalorder %v1438, %v5517
    %vm5598 = vcmp.eq.s32.totalorder %v1438, %v5518
    %vm5599 = vcmp.eq.s32.totalorder %v1438, %v5519
    %vm5600 = vcmp.eq.s32.totalorder %v1438, %v5520
    %vm5601 = vcmp.eq.s32.totalorder %v1438, %v5521
    %vm5602 = vcmp.eq.s32.totalorder %v1438, %v5522
    %vm5603 = vcmp.eq.s32.totalorder %v1438, %v5523
    %vm5604 = vcmp.eq.s32.totalorder %v1438, %v5524
    %vm5605 = vcmp.eq.s32.totalorder %v1438, %v5525
    %vm5606 = vcmp.eq.s32.totalorder %v1438, %v5526
    %vm5607 = vcmp.eq.s32.totalorder %v1438, %v5527
    %vm5608 = vcmp.eq.s32.totalorder %v1438, %v5528
    %vm5609 = vcmp.eq.s32.totalorder %v1438, %v5529
    %vm5610 = vcmp.eq.s32.totalorder %v1438, %v5530
    %vm5611 = vcmp.eq.s32.totalorder %v1438, %v5531
    %vm5612 = vcmp.eq.s32.totalorder %v1438, %v5532
    %vm5613 = vcmp.eq.s32.totalorder %v1438, %v5533
    %vm5614 = vcmp.eq.s32.totalorder %v1438, %v5534
    %vm5615 = vcmp.eq.s32.totalorder %v1438, %v5535
    %vm5616 = vcmp.eq.s32.totalorder %v1438, %v5536
    %vm5617 = vcmp.eq.s32.totalorder %v1438, %v5537
    %vm5618 = vcmp.eq.s32.totalorder %v1438, %v5538
    %vm5619 = vcmp.eq.s32.totalorder %v1438, %v5539
    %vm5620 = vcmp.eq.s32.totalorder %v1438, %v5540
    %vm5621 = vcmp.eq.s32.totalorder %v1438, %v5541
    %vm5622 = vcmp.eq.s32.totalorder %v1438, %v5542
    %vm5623 = vcmp.eq.s32.totalorder %v1438, %v5543
    %vm5624 = vcmp.eq.s32.totalorder %v1438, %v5544
    %vm5625 = vcmp.eq.s32.totalorder %v1438, %v5545
    %vm5626 = vcmp.eq.s32.totalorder %v1438, %v5546
    %vm5627 = vcmp.eq.s32.totalorder %v1438, %v5547
    %vm5628 = vcmp.eq.s32.totalorder %v1438, %v5548
    %vm5629 = vcmp.eq.s32.totalorder %v1438, %v5549
    %vm5630 = vcmp.eq.s32.totalorder %v1438, %v5550
    %vm5631 = vcmp.eq.s32.totalorder %v1438, %v5551
    %vm5632 = vcmp.eq.s32.totalorder %v1438, %v5552
    %vm5633 = vcmp.eq.s32.totalorder %v1438, %v5553
    %vm5634 = vcmp.eq.s32.totalorder %v1438, %v5554
    %vm5635 = vcmp.eq.s32.totalorder %v1438, %v5555
    %vm5636 = vcmp.eq.s32.totalorder %v1438, %v5556
    %vm5637 = vcmp.eq.s32.totalorder %v1438, %v5557
    %vm5638 = vcmp.eq.s32.totalorder %v1438, %v5558
    %vm5639 = vcmp.eq.s32.totalorder %v1438, %v5559
    %vm5640 = vcmp.eq.s32.totalorder %v1438, %v5560
    %vm5641 = vcmp.eq.s32.totalorder %v1438, %v5561
    %vm5642 = vcmp.eq.s32.totalorder %v1438, %v5562
    %vm5643 = vcmp.eq.s32.totalorder %v1438, %v5563
    %vm5644 = vcmp.eq.s32.totalorder %v1438, %v5564
    %vm5645 = vcmp.eq.s32.totalorder %v1438, %v5565
    %vm5646 = vcmp.eq.s32.totalorder %v1438, %v5566
    %vm5647 = vcmp.eq.s32.totalorder %v1438, %v5567
    %vm5648 = vcmp.eq.s32.totalorder %v1438, %v5568
    %vm5649 = vcmp.eq.s32.totalorder %v1438, %v5569
    %vm5650 = vcmp.eq.s32.totalorder %v1438, %v5570
    %vm5651 = vcmp.eq.s32.totalorder %v1438, %v5571
    %vm5652 = vcmp.eq.s32.totalorder %v1438, %v5572
    %vm5653 = vcmp.eq.s32.totalorder %v1438, %v5573
    %vm5654 = vcmp.eq.s32.totalorder %v1438, %v5574
    %vm5655 = vcmp.eq.s32.totalorder %v1438, %v5575
    %vm5656 = vcmp.eq.s32.totalorder %v1438, %v5576
    %vm5657 = vcmp.eq.s32.totalorder %v1438, %v5577
    %vm5658 = vcmp.eq.s32.totalorder %v1438, %v5578
    %vm5659 = vcmp.eq.s32.totalorder %v1438, %v5579
    %vm5660 = vmand %vm5340, %vm5580
    %vm5661 = vmand %vm5341, %vm5581
    %vm5662 = vmand %vm5342, %vm5582
    %vm5663 = vmand %vm5343, %vm5583
    %vm5664 = vmand %vm5344, %vm5584
    %vm5665 = vmand %vm5345, %vm5585
    %vm5666 = vmand %vm5346, %vm5586
    %vm5667 = vmand %vm5347, %vm5587
    %vm5668 = vmand %vm5348, %vm5588
    %vm5669 = vmand %vm5349, %vm5589
    %vm5670 = vmand %vm5350, %vm5590
    %vm5671 = vmand %vm5351, %vm5591
    %vm5672 = vmand %vm5352, %vm5592
    %vm5673 = vmand %vm5353, %vm5593
    %vm5674 = vmand %vm5354, %vm5594
    %vm5675 = vmand %vm5355, %vm5595
    %vm5676 = vmand %vm5356, %vm5596
    %vm5677 = vmand %vm5357, %vm5597
    %vm5678 = vmand %vm5358, %vm5598
    %vm5679 = vmand %vm5359, %vm5599
    %vm5680 = vmand %vm5360, %vm5600
    %vm5681 = vmand %vm5361, %vm5601
    %vm5682 = vmand %vm5362, %vm5602
    %vm5683 = vmand %vm5363, %vm5603
    %vm5684 = vmand %vm5364, %vm5604
    %vm5685 = vmand %vm5365, %vm5605
    %vm5686 = vmand %vm5366, %vm5606
    %vm5687 = vmand %vm5367, %vm5607
    %vm5688 = vmand %vm5368, %vm5608
    %vm5689 = vmand %vm5369, %vm5609
    %vm5690 = vmand %vm5370, %vm5610
    %vm5691 = vmand %vm5371, %vm5611
    %vm5692 = vmand %vm5372, %vm5612
    %vm5693 = vmand %vm5373, %vm5613
    %vm5694 = vmand %vm5374, %vm5614
    %vm5695 = vmand %vm5375, %vm5615
    %vm5696 = vmand %vm5376, %vm5616
    %vm5697 = vmand %vm5377, %vm5617
    %vm5698 = vmand %vm5378, %vm5618
    %vm5699 = vmand %vm5379, %vm5619
    %vm5700 = vmand %vm5380, %vm5620
    %vm5701 = vmand %vm5381, %vm5621
    %vm5702 = vmand %vm5382, %vm5622
    %vm5703 = vmand %vm5383, %vm5623
    %vm5704 = vmand %vm5384, %vm5624
    %vm5705 = vmand %vm5385, %vm5625
    %vm5706 = vmand %vm5386, %vm5626
    %vm5707 = vmand %vm5387, %vm5627
    %vm5708 = vmand %vm5388, %vm5628
    %vm5709 = vmand %vm5389, %vm5629
    %vm5710 = vmand %vm5390, %vm5630
    %vm5711 = vmand %vm5391, %vm5631
    %vm5712 = vmand %vm5392, %vm5632
    %vm5713 = vmand %vm5393, %vm5633
    %vm5714 = vmand %vm5394, %vm5634
    %vm5715 = vmand %vm5395, %vm5635
    %vm5716 = vmand %vm5396, %vm5636
    %vm5717 = vmand %vm5397, %vm5637
    %vm5718 = vmand %vm5398, %vm5638
    %vm5719 = vmand %vm5399, %vm5639
    %vm5720 = vmand %vm5400, %vm5640
    %vm5721 = vmand %vm5401, %vm5641
    %vm5722 = vmand %vm5402, %vm5642
    %vm5723 = vmand %vm5403, %vm5643
    %vm5724 = vmand %vm5404, %vm5644
    %vm5725 = vmand %vm5405, %vm5645
    %vm5726 = vmand %vm5406, %vm5646
    %vm5727 = vmand %vm5407, %vm5647
    %vm5728 = vmand %vm5408, %vm5648
    %vm5729 = vmand %vm5409, %vm5649
    %vm5730 = vmand %vm5410, %vm5650
    %vm5731 = vmand %vm5411, %vm5651
    %vm5732 = vmand %vm5412, %vm5652
    %vm5733 = vmand %vm5413, %vm5653
    %vm5734 = vmand %vm5414, %vm5654
    %vm5735 = vmand %vm5415, %vm5655
    %vm5736 = vmand %vm5416, %vm5656
    %vm5737 = vmand %vm5417, %vm5657
    %vm5738 = vmand %vm5418, %vm5658
    %vm5739 = vmand %vm5419, %vm5659
    %v5740 = vsel %vm5660, 1, 0
    %v5741 = vsel %vm5661, 1, 0
    %v5742 = vsel %vm5662, 1, 0
    %v5743 = vsel %vm5663, 1, 0
    %v5744 = vsel %vm5664, 1, 0
    %v5745 = vsel %vm5665, 1, 0
    %v5746 = vsel %vm5666, 1, 0
    %v5747 = vsel %vm5667, 1, 0
    %v5748 = vsel %vm5668, 1, 0
    %v5749 = vsel %vm5669, 1, 0
    %v5750 = vsel %vm5670, 1, 0
    %v5751 = vsel %vm5671, 1, 0
    %v5752 = vsel %vm5672, 1, 0
    %v5753 = vsel %vm5673, 1, 0
    %v5754 = vsel %vm5674, 1, 0
    %v5755 = vsel %vm5675, 1, 0
    %v5756 = vsel %vm5676, 1, 0
    %v5757 = vsel %vm5677, 1, 0
    %v5758 = vsel %vm5678, 1, 0
    %v5759 = vsel %vm5679, 1, 0
    %v5760 = vsel %vm5680, 1, 0
    %v5761 = vsel %vm5681, 1, 0
    %v5762 = vsel %vm5682, 1, 0
    %v5763 = vsel %vm5683, 1, 0
    %v5764 = vsel %vm5684, 1, 0
    %v5765 = vsel %vm5685, 1, 0
    %v5766 = vsel %vm5686, 1, 0
    %v5767 = vsel %vm5687, 1, 0
    %v5768 = vsel %vm5688, 1, 0
    %v5769 = vsel %vm5689, 1, 0
    %v5770 = vsel %vm5690, 1, 0
    %v5771 = vsel %vm5691, 1, 0
    %v5772 = vsel %vm5692, 1, 0
    %v5773 = vsel %vm5693, 1, 0
    %v5774 = vsel %vm5694, 1, 0
    %v5775 = vsel %vm5695, 1, 0
    %v5776 = vsel %vm5696, 1, 0
    %v5777 = vsel %vm5697, 1, 0
    %v5778 = vsel %vm5698, 1, 0
    %v5779 = vsel %vm5699, 1, 0
    %v5780 = vsel %vm5700, 1, 0
    %v5781 = vsel %vm5701, 1, 0
    %v5782 = vsel %vm5702, 1, 0
    %v5783 = vsel %vm5703, 1, 0
    %v5784 = vsel %vm5704, 1, 0
    %v5785 = vsel %vm5705, 1, 0
    %v5786 = vsel %vm5706, 1, 0
    %v5787 = vsel %vm5707, 1, 0
    %v5788 = vsel %vm5708, 1, 0
    %v5789 = vsel %vm5709, 1, 0
    %v5790 = vsel %vm5710, 1, 0
    %v5791 = vsel %vm5711, 1, 0
    %v5792 = vsel %vm5712, 1, 0
    %v5793 = vsel %vm5713, 1, 0
    %v5794 = vsel %vm5714, 1, 0
    %v5795 = vsel %vm5715, 1, 0
    %v5796 = vsel %vm5716, 1, 0
    %v5797 = vsel %vm5717, 1, 0
    %v5798 = vsel %vm5718, 1, 0
    %v5799 = vsel %vm5719, 1, 0
    %v5800 = vsel %vm5720, 1, 0
    %v5801 = vsel %vm5721, 1, 0
    %v5802 = vsel %vm5722, 1, 0
    %v5803 = vsel %vm5723, 1, 0
    %v5804 = vsel %vm5724, 1, 0
    %v5805 = vsel %vm5725, 1, 0
    %v5806 = vsel %vm5726, 1, 0
    %v5807 = vsel %vm5727, 1, 0
    %v5808 = vsel %vm5728, 1, 0
    %v5809 = vsel %vm5729, 1, 0
    %v5810 = vsel %vm5730, 1, 0
    %v5811 = vsel %vm5731, 1, 0
    %v5812 = vsel %vm5732, 1, 0
    %v5813 = vsel %vm5733, 1, 0
    %v5814 = vsel %vm5734, 1, 0
    %v5815 = vsel %vm5735, 1, 0
    %v5816 = vsel %vm5736, 1, 0
    %v5817 = vsel %vm5737, 1, 0
    %v5818 = vsel %vm5738, 1, 0
    %v5819 = vsel %vm5739, 1, 0
    %v5820 = vcvt.s32.f32 %v5740
    %v5821 = vcvt.s32.f32 %v5741
    %v5822 = vcvt.s32.f32 %v5742
    %v5823 = vcvt.s32.f32 %v5743
    %v5824 = vcvt.s32.f32 %v5744
    %v5825 = vcvt.s32.f32 %v5745
    %v5826 = vcvt.s32.f32 %v5746
    %v5827 = vcvt.s32.f32 %v5747
    %v5828 = vcvt.s32.f32 %v5748
    %v5829 = vcvt.s32.f32 %v5749
    %v5830 = vcvt.s32.f32 %v5750
    %v5831 = vcvt.s32.f32 %v5751
    %v5832 = vcvt.s32.f32 %v5752
    %v5833 = vcvt.s32.f32 %v5753
    %v5834 = vcvt.s32.f32 %v5754
    %v5835 = vcvt.s32.f32 %v5755
    %v5836 = vcvt.s32.f32 %v5756
    %v5837 = vcvt.s32.f32 %v5757
    %v5838 = vcvt.s32.f32 %v5758
    %v5839 = vcvt.s32.f32 %v5759
    %v5840 = vcvt.s32.f32 %v5760
    %v5841 = vcvt.s32.f32 %v5761
    %v5842 = vcvt.s32.f32 %v5762
    %v5843 = vcvt.s32.f32 %v5763
    %v5844 = vcvt.s32.f32 %v5764
    %v5845 = vcvt.s32.f32 %v5765
    %v5846 = vcvt.s32.f32 %v5766
    %v5847 = vcvt.s32.f32 %v5767
    %v5848 = vcvt.s32.f32 %v5768
    %v5849 = vcvt.s32.f32 %v5769
    %v5850 = vcvt.s32.f32 %v5770
    %v5851 = vcvt.s32.f32 %v5771
    %v5852 = vcvt.s32.f32 %v5772
    %v5853 = vcvt.s32.f32 %v5773
    %v5854 = vcvt.s32.f32 %v5774
    %v5855 = vcvt.s32.f32 %v5775
    %v5856 = vcvt.s32.f32 %v5776
    %v5857 = vcvt.s32.f32 %v5777
    %v5858 = vcvt.s32.f32 %v5778
    %v5859 = vcvt.s32.f32 %v5779
    %v5860 = vcvt.s32.f32 %v5780
    %v5861 = vcvt.s32.f32 %v5781
    %v5862 = vcvt.s32.f32 %v5782
    %v5863 = vcvt.s32.f32 %v5783
    %v5864 = vcvt.s32.f32 %v5784
    %v5865 = vcvt.s32.f32 %v5785
    %v5866 = vcvt.s32.f32 %v5786
    %v5867 = vcvt.s32.f32 %v5787
    %v5868 = vcvt.s32.f32 %v5788
    %v5869 = vcvt.s32.f32 %v5789
    %v5870 = vcvt.s32.f32 %v5790
    %v5871 = vcvt.s32.f32 %v5791
    %v5872 = vcvt.s32.f32 %v5792
    %v5873 = vcvt.s32.f32 %v5793
    %v5874 = vcvt.s32.f32 %v5794
    %v5875 = vcvt.s32.f32 %v5795
    %v5876 = vcvt.s32.f32 %v5796
    %v5877 = vcvt.s32.f32 %v5797
    %v5878 = vcvt.s32.f32 %v5798
    %v5879 = vcvt.s32.f32 %v5799
    %v5880 = vcvt.s32.f32 %v5800
    %v5881 = vcvt.s32.f32 %v5801
    %v5882 = vcvt.s32.f32 %v5802
    %v5883 = vcvt.s32.f32 %v5803
    %v5884 = vcvt.s32.f32 %v5804
    %v5885 = vcvt.s32.f32 %v5805
    %v5886 = vcvt.s32.f32 %v5806
    %v5887 = vcvt.s32.f32 %v5807
    %v5888 = vcvt.s32.f32 %v5808
    %v5889 = vcvt.s32.f32 %v5809
    %v5890 = vcvt.s32.f32 %v5810
    %v5891 = vcvt.s32.f32 %v5811
    %v5892 = vcvt.s32.f32 %v5812
    %v5893 = vcvt.s32.f32 %v5813
    %v5894 = vcvt.s32.f32 %v5814
    %v5895 = vcvt.s32.f32 %v5815
    %v5896 = vcvt.s32.f32 %v5816
    %v5897 = vcvt.s32.f32 %v5817
    %v5898 = vcvt.s32.f32 %v5818
    %v5899 = vcvt.s32.f32 %v5819
    %5900 = vmatprep.subr.mxu0 0.0
    %5901 = vmatpush1.msra.mxu0 %v5820
    %5902 = vmatprep.subr.mxu0 0.0
    %5903 = vmatpush1.msra.mxu0 %v5821
    %5904 = vmatprep.subr.mxu0 0.0
    %5905 = vmatpush1.msra.mxu0 %v5822
    %5906 = vmatprep.subr.mxu0 0.0
    %5907 = vmatpush1.msra.mxu0 %v5823
    %5908 = vmatprep.subr.mxu0 0.0
    %5909 = vmatpush1.msra.mxu0 %v5824
    %5910 = vmatprep.subr.mxu0 0.0
    %5911 = vmatpush1.msra.mxu0 %v5825
    %5912 = vmatprep.subr.mxu0 0.0
    %5913 = vmatpush1.msra.mxu0 %v5826
    %5914 = vmatprep.subr.mxu0 0.0
    %5915 = vmatpush1.msra.mxu0 %v5827
    %5916 = vmatprep.subr.mxu0 0.0
    %5917 = vmatpush1.msra.mxu0 %v5828
    %5918 = vmatprep.subr.mxu0 0.0
    %5919 = vmatpush1.msra.mxu0 %v5829
    %5920 = vmatprep.subr.mxu0 0.0
    %5921 = vmatpush1.msra.mxu0 %v5830
    %5922 = vmatprep.subr.mxu0 0.0
    %5923 = vmatpush1.msra.mxu0 %v5831
    %5924 = vmatprep.subr.mxu0 0.0
    %5925 = vmatpush1.msra.mxu0 %v5832
    %5926 = vmatprep.subr.mxu0 0.0
    %5927 = vmatpush1.msra.mxu0 %v5833
    %5928 = vmatprep.subr.mxu0 0.0
    %5929 = vmatpush1.msra.mxu0 %v5834
    %5930 = vmatprep.subr.mxu0 0.0
    %5931 = vmatpush1.msra.mxu0 %v5835
    %5932 = vmatprep.subr.mxu0 0.0
    %5933 = vmatpush1.msra.mxu0 %v5836
    %5934 = vmatprep.subr.mxu0 0.0
    %5935 = vmatpush1.msra.mxu0 %v5837
    %5936 = vmatprep.subr.mxu0 0.0
    %5937 = vmatpush1.msra.mxu0 %v5838
    %5938 = vmatprep.subr.mxu0 0.0
    %5939 = vmatpush1.msra.mxu0 %v5839
    %5940 = vmatprep.subr.mxu0 0.0
    %5941 = vmatpush1.msra.mxu0 %v5840
    %5942 = vmatprep.subr.mxu0 0.0
    %5943 = vmatpush1.msra.mxu0 %v5841
    %5944 = vmatprep.subr.mxu0 0.0
    %5945 = vmatpush1.msra.mxu0 %v5842
    %5946 = vmatprep.subr.mxu0 0.0
    %5947 = vmatpush1.msra.mxu0 %v5843
    %5948 = vmatprep.subr.mxu0 0.0
    %5949 = vmatpush1.msra.mxu0 %v5844
    %5950 = vmatprep.subr.mxu0 0.0
    %5951 = vmatpush1.msra.mxu0 %v5845
    %5952 = vmatprep.subr.mxu0 0.0
    %5953 = vmatpush1.msra.mxu0 %v5846
    %5954 = vmatprep.subr.mxu0 0.0
    %5955 = vmatpush1.msra.mxu0 %v5847
    %5956 = vmatprep.subr.mxu0 0.0
    %5957 = vmatpush1.msra.mxu0 %v5848
    %5958 = vmatprep.subr.mxu0 0.0
    %5959 = vmatpush1.msra.mxu0 %v5849
    %5960 = vmatprep.subr.mxu0 0.0
    %5961 = vmatpush1.msra.mxu0 %v5850
    %5962 = vmatprep.subr.mxu0 0.0
    %5963 = vmatpush1.msra.mxu0 %v5851
    %5964 = vmatprep.mubr.f32.mxu0 %v4600
    %5965 = vmatmul.mubr.f32.gmra.mrb[0].mxu0 %v4599
    %v5966 = vpop.f32.mrb[0].mxu0
    %v5967 = vadd.f32 0.0, %v5966
    %v5968 = vpop.f32.mrb[0].mxu0
    %5969 = vmatprep.mubr.f32.mxu0 %v4610
    %5970 = vmatmul.mubr.f32.gmra.mrb[0].mxu0 %v4609
    %v5971 = vpop.f32.mrb[0].mxu0
    %v5972 = vadd.f32 0.0, %v5971
    %v5973 = vpop.f32.mrb[0].mxu0
    %5974 = vmatprep.mubr.f32.mxu0 %v4605
    %5975 = vmatmul.mubr.f32.gmra.mrb[0].mxu0 %v4604
    %v5976 = vpop.f32.mrb[0].mxu0
    %v5977 = vadd.f32 0.0, %v5976
    %v5978 = vpop.f32.mrb[0].mxu0
    %5979 = vmatprep.mubr.f32.mxu0 %v4615
    %5980 = vmatmul.mubr.f32.gmra.mrb[0].mxu0 %v4614
    %v5981 = vpop.f32.mrb[0].mxu0
    %v5982 = vadd.f32 0.0, %v5981
    %v5983 = vpop.f32.mrb[0].mxu0
    %5984 = vdwg.mxu0
    %5985 = vmatprep.subr.mxu0 0.0
    %5986 = vmatpush1.msra.mxu0 %v5852
    %5987 = vmatprep.subr.mxu0 0.0
    %5988 = vmatpush1.msra.mxu0 %v5853
    %5989 = vmatprep.subr.mxu0 0.0
    %5990 = vmatpush1.msra.mxu0 %v5854
    %5991 = vmatprep.subr.mxu0 0.0
    %5992 = vmatpush1.msra.mxu0 %v5855
    %5993 = vmatprep.subr.mxu0 0.0
    %5994 = vmatpush1.msra.mxu0 %v5856
    %5995 = vmatprep.subr.mxu0 0.0
    %5996 = vmatpush1.msra.mxu0 %v5857
    %5997 = vmatprep.subr.mxu0 0.0
    %5998 = vmatpush1.msra.mxu0 %v5858
    %5999 = vmatprep.subr.mxu0 0.0
    %6000 = vmatpush1.msra.mxu0 %v5859
    %6001 = vmatprep.subr.mxu0 0.0
    %6002 = vmatpush1.msra.mxu0 %v5860
    %6003 = vmatprep.subr.mxu0 0.0
    %6004 = vmatpush1.msra.mxu0 %v5861
    %6005 = vmatprep.subr.mxu0 0.0
    %6006 = vmatpush1.msra.mxu0 %v5862
    %6007 = vmatprep.subr.mxu0 0.0
    %6008 = vmatpush1.msra.mxu0 %v5863
    %6009 = vmatprep.subr.mxu0 0.0
    %6010 = vmatpush1.msra.mxu0 %v5864
    %6011 = vmatprep.subr.mxu0 0.0
    %6012 = vmatpush1.msra.mxu0 %v5865
    %6013 = vmatprep.subr.mxu0 0.0
    %6014 = vmatpush1.msra.mxu0 %v5866
    %6015 = vmatprep.subr.mxu0 0.0
    %6016 = vmatpush1.msra.mxu0 %v5867
    %6017 = vmatprep.subr.mxu0 0.0
    %6018 = vmatpush1.msra.mxu0 %v5868
    %6019 = vmatprep.subr.mxu0 0.0
    %6020 = vmatpush1.msra.mxu0 %v5869
    %6021 = vmatprep.subr.mxu0 0.0
    %6022 = vmatpush1.msra.mxu0 %v5870
    %6023 = vmatprep.subr.mxu0 0.0
    %6024 = vmatpush1.msra.mxu0 %v5871
    %6025 = vmatprep.subr.mxu0 0.0
    %6026 = vmatpush1.msra.mxu0 %v5872
    %6027 = vmatprep.subr.mxu0 0.0
    %6028 = vmatpush1.msra.mxu0 %v5873
    %6029 = vmatprep.subr.mxu0 0.0
    %6030 = vmatpush1.msra.mxu0 %v5874
    %6031 = vmatprep.subr.mxu0 0.0
    %6032 = vmatpush1.msra.mxu0 %v5875
    %6033 = vmatprep.subr.mxu0 0.0
    %6034 = vmatpush1.msra.mxu0 %v5876
    %6035 = vmatprep.subr.mxu0 0.0
    %6036 = vmatpush1.msra.mxu0 %v5877
    %6037 = vmatprep.subr.mxu0 0.0
    %6038 = vmatpush1.msra.mxu0 %v5878
    %6039 = vmatprep.subr.mxu0 0.0
    %6040 = vmatpush1.msra.mxu0 %v5879
    %6041 = vmatprep.subr.mxu0 0.0
    %6042 = vmatpush1.msra.mxu0 %v5880
    %6043 = vmatprep.subr.mxu0 0.0
    %6044 = vmatpush1.msra.mxu0 %v5881
    %6045 = vmatprep.subr.mxu0 0.0
    %6046 = vmatpush1.msra.mxu0 %v5882
    %6047 = vmatprep.subr.mxu0 0.0
    %6048 = vmatpush1.msra.mxu0 %v5883
    %6049 = vmatprep.mubr.f32.mxu0 %v4602
    %6050 = vmatmul.mubr.f32.gmra.mrb[0].mxu0 %v4601
    %v6051 = vpop.f32.mrb[0].mxu0
    %v6052 = vadd.f32 %v5967, %v6051
    %v6053 = vpop.f32.mrb[0].mxu0
    %6054 = vmatprep.mubr.f32.mxu0 %v4612
    %6055 = vmatmul.mubr.f32.gmra.mrb[0].mxu0 %v4611
    %v6056 = vpop.f32.mrb[0].mxu0
    %v6057 = vadd.f32 %v5972, %v6056
    %v6058 = vpop.f32.mrb[0].mxu0
    %6059 = vmatprep.mubr.f32.mxu0 %v4607
    %6060 = vmatmul.mubr.f32.gmra.mrb[0].mxu0 %v4606
    %v6061 = vpop.f32.mrb[0].mxu0
    %v6062 = vadd.f32 %v5977, %v6061
    %v6063 = vpop.f32.mrb[0].mxu0
    %6064 = vmatprep.mubr.f32.mxu0 %v4617
    %6065 = vmatmul.mubr.f32.gmra.mrb[0].mxu0 %v4616
    %v6066 = vpop.f32.mrb[0].mxu0
    %v6067 = vadd.f32 %v5982, %v6066
    %v6068 = vpop.f32.mrb[0].mxu0
    %6069 = vdwg.mxu0
    %6070 = vmatprep.subr.mxu0 0.0
    %6071 = vmatpush1.msra.mxu0 %v5884
    %6072 = vmatprep.subr.mxu0 0.0
    %6073 = vmatpush1.msra.mxu0 %v5885
    %6074 = vmatprep.subr.mxu0 0.0
    %6075 = vmatpush1.msra.mxu0 %v5886
    %6076 = vmatprep.subr.mxu0 0.0
    %6077 = vmatpush1.msra.mxu0 %v5887
    %6078 = vmatprep.subr.mxu0 0.0
    %6079 = vmatpush1.msra.mxu0 %v5888
    %6080 = vmatprep.subr.mxu0 0.0
    %6081 = vmatpush1.msra.mxu0 %v5889
    %6082 = vmatprep.subr.mxu0 0.0
    %6083 = vmatpush1.msra.mxu0 %v5890
    %6084 = vmatprep.subr.mxu0 0.0
    %6085 = vmatpush1.msra.mxu0 %v5891
    %6086 = vmatprep.subr.mxu0 0.0
    %6087 = vmatpush1.msra.mxu0 %v5892
    %6088 = vmatprep.subr.mxu0 0.0
    %6089 = vmatpush1.msra.mxu0 %v5893
    %6090 = vmatprep.subr.mxu0 0.0
    %6091 = vmatpush1.msra.mxu0 %v5894
    %6092 = vmatprep.subr.mxu0 0.0
    %6093 = vmatpush1.msra.mxu0 %v5895
    %6094 = vmatprep.subr.mxu0 0.0
    %6095 = vmatpush1.msra.mxu0 %v5896
    %6096 = vmatprep.subr.mxu0 0.0
    %6097 = vmatpush1.msra.mxu0 %v5897
    %6098 = vmatprep.subr.mxu0 0.0
    %6099 = vmatpush1.msra.mxu0 %v5898
    %6100 = vmatprep.subr.mxu0 0.0
    %6101 = vmatpush1.msra.mxu0 %v5899
    %6102 = vmatprep.subr.mxu0 0.0
    %6103 = vmatpush1.msra.mxu0 0.0
    %6104 = vmatprep.subr.mxu0 0.0
    %6105 = vmatpush1.msra.mxu0 0.0
    %6106 = vmatprep.subr.mxu0 0.0
    %6107 = vmatpush1.msra.mxu0 0.0
    %6108 = vmatprep.subr.mxu0 0.0
    %6109 = vmatpush1.msra.mxu0 0.0
    %6110 = vmatprep.subr.mxu0 0.0
    %6111 = vmatpush1.msra.mxu0 0.0
    %6112 = vmatprep.subr.mxu0 0.0
    %6113 = vmatpush1.msra.mxu0 0.0
    %6114 = vmatprep.subr.mxu0 0.0
    %6115 = vmatpush1.msra.mxu0 0.0
    %6116 = vmatprep.subr.mxu0 0.0
    %6117 = vmatpush1.msra.mxu0 0.0
    %6118 = vmatprep.subr.mxu0 0.0
    %6119 = vmatpush1.msra.mxu0 0.0
    %6120 = vmatprep.subr.mxu0 0.0
    %6121 = vmatpush1.msra.mxu0 0.0
    %6122 = vmatprep.subr.mxu0 0.0
    %6123 = vmatpush1.msra.mxu0 0.0
    %6124 = vmatprep.subr.mxu0 0.0
    %6125 = vmatpush1.msra.mxu0 0.0
    %6126 = vmatprep.subr.mxu0 0.0
    %6127 = vmatpush1.msra.mxu0 0.0
    %6128 = vmatprep.subr.mxu0 0.0
    %6129 = vmatpush1.msra.mxu0 0.0
    %6130 = vmatprep.subr.mxu0 0.0
    %6131 = vmatpush1.msra.mxu0 0.0
    %6132 = vmatprep.subr.mxu0 0.0
    %6133 = vmatpush1.msra.mxu0 0.0
    %6134 = vmatprep.mubr.f32.mxu0 0.0
    %6135 = vmatmul.mubr.f32.gmra.mrb[0].mxu0 %v4603
    %v6136 = vpop.f32.mrb[0].mxu0
    %v6137 = vadd.f32 %v6052, %v6136
    %v6138 = vpop.f32.mrb[0].mxu0
    %6139 = vmatprep.mubr.f32.mxu0 0.0
    %6140 = vmatmul.mubr.f32.gmra.mrb[0].mxu0 %v4613
    %v6141 = vpop.f32.mrb[0].mxu0
    %v6142 = vadd.f32 %v6057, %v6141
    %v6143 = vpop.f32.mrb[0].mxu0
    %6144 = vmatprep.mubr.f32.mxu0 0.0
    %6145 = vmatmul.mubr.f32.gmra.mrb[0].mxu0 %v4608
    %v6146 = vpop.f32.mrb[0].mxu0
    %v6147 = vadd.f32 %v6062, %v6146
    %v6148 = vpop.f32.mrb[0].mxu0
    %6149 = vmatprep.mubr.f32.mxu0 0.0
    %6150 = vmatmul.mubr.f32.gmra.mrb[0].mxu0 %v4618
    %v6151 = vpop.f32.mrb[0].mxu0
    %v6152 = vadd.f32 %v6067, %v6151
    %v6153 = vpop.f32.mrb[0].mxu0
    %6154 = vdwg.mxu0
    %vm6155 = vcmask 253952
    %6156 = vst.msk [vmem:[#allocation4] sm:$0x1] %vm6155, %v6137
    %v6158 = vrot.slane %v6137, 1
    %6159 = vrot.lane.b32.xlu0 %v6158, 32
    %v6160 = vpop.permute.xlu0 %6159
    %vm6162 = vcmask 516352
    %6163 = vst.msk [vmem:[#allocation4] sm:$0x1] %vm6162, %v6160
    %v6164 = vrot.slane %v6137, 2
    %6165 = vrot.lane.b32.xlu0 %v6164, 64
    %v6166 = vpop.permute.xlu0 %6165
    %vm6168 = vcmask 778752
    %6169 = vst.msk [vmem:[#allocation4] sm:$0x1] %vm6168, %v6166
    %v6170 = vrot.slane %v6137, 3
    %6171 = vrot.lane.b32.xlu0 %v6170, 96
    %v6172 = vpop.permute.xlu0 %6171
    %vm6174 = vcmask 1041152
    %6175 = vst.msk [vmem:[#allocation4] sm:$0x1] %vm6174, %v6172
    %v6176 = vrot.slane %v6137, 4
    %6178 = vst.msk [vmem:[#allocation4 + $0x8] sm:$0x1] %vm6155, %v6176
    %v6179 = vrot.slane %v6137, 5
    %6180 = vrot.lane.b32.xlu0 %v6179, 32
    %v6181 = vpop.permute.xlu0 %6180
    %6183 = vst.msk [vmem:[#allocation4 + $0x8] sm:$0x1] %vm6162, %v6181
    %v6184 = vrot.slane %v6137, 6
    %6185 = vrot.lane.b32.xlu0 %v6184, 64
    %v6186 = vpop.permute.xlu0 %6185
    %6188 = vst.msk [vmem:[#allocation4 + $0x8] sm:$0x1] %vm6168, %v6186
    %v6189 = vrot.slane %v6137, 7
    %6190 = vrot.lane.b32.xlu0 %v6189, 96
    %v6191 = vpop.permute.xlu0 %6190
    %6193 = vst.msk [vmem:[#allocation4 + $0x8] sm:$0x1] %vm6174, %v6191
    %6194 = vst.msk [vmem:[#allocation4 + $0x10] sm:$0x1] %vm6155, %v6142
    %v6196 = vrot.slane %v6142, 1
    %6197 = vrot.lane.b32.xlu0 %v6196, 32
    %v6198 = vpop.permute.xlu0 %6197
    %6200 = vst.msk [vmem:[#allocation4 + $0x10] sm:$0x1] %vm6162, %v6198
    %v6201 = vrot.slane %v6142, 2
    %6202 = vrot.lane.b32.xlu0 %v6201, 64
    %v6203 = vpop.permute.xlu0 %6202
    %6205 = vst.msk [vmem:[#allocation4 + $0x10] sm:$0x1] %vm6168, %v6203
    %v6206 = vrot.slane %v6142, 3
    %6207 = vrot.lane.b32.xlu0 %v6206, 96
    %v6208 = vpop.permute.xlu0 %6207
    %6210 = vst.msk [vmem:[#allocation4 + $0x10] sm:$0x1] %vm6174, %v6208
    %v6211 = vrot.slane %v6142, 4
    %6213 = vst.msk [vmem:[#allocation4 + $0x18] sm:$0x1] %vm6155, %v6211
    %v6214 = vrot.slane %v6142, 5
    %6215 = vrot.lane.b32.xlu0 %v6214, 32
    %v6216 = vpop.permute.xlu0 %6215
    %6218 = vst.msk [vmem:[#allocation4 + $0x18] sm:$0x1] %vm6162, %v6216
    %v6219 = vrot.slane %v6142, 6
    %6220 = vrot.lane.b32.xlu0 %v6219, 64
    %v6221 = vpop.permute.xlu0 %6220
    %6223 = vst.msk [vmem:[#allocation4 + $0x18] sm:$0x1] %vm6168, %v6221
    %v6224 = vrot.slane %v6142, 7
    %6225 = vrot.lane.b32.xlu0 %v6224, 96
    %v6226 = vpop.permute.xlu0 %6225
    %6228 = vst.msk [vmem:[#allocation4 + $0x18] sm:$0x1] %vm6174, %v6226
    %6229 = vst.msk [vmem:[#allocation4 + $0x1] sm:$0x1] %vm6155, %v6147
    %v6231 = vrot.slane %v6147, 1
    %6232 = vrot.lane.b32.xlu0 %v6231, 32
    %v6233 = vpop.permute.xlu0 %6232
    %6235 = vst.msk [vmem:[#allocation4 + $0x1] sm:$0x1] %vm6162, %v6233
    %v6236 = vrot.slane %v6147, 2
    %6237 = vrot.lane.b32.xlu0 %v6236, 64
    %v6238 = vpop.permute.xlu0 %6237
    %6240 = vst.msk [vmem:[#allocation4 + $0x1] sm:$0x1] %vm6168, %v6238
    %v6241 = vrot.slane %v6147, 3
    %6242 = vrot.lane.b32.xlu0 %v6241, 96
    %v6243 = vpop.permute.xlu0 %6242
    %6245 = vst.msk [vmem:[#allocation4 + $0x1] sm:$0x1] %vm6174, %v6243
    %v6246 = vrot.slane %v6147, 4
    %6248 = vst.msk [vmem:[#allocation4 + $0x9] sm:$0x1] %vm6155, %v6246
    %v6249 = vrot.slane %v6147, 5
    %6250 = vrot.lane.b32.xlu0 %v6249, 32
    %v6251 = vpop.permute.xlu0 %6250
    %6253 = vst.msk [vmem:[#allocation4 + $0x9] sm:$0x1] %vm6162, %v6251
    %v6254 = vrot.slane %v6147, 6
    %6255 = vrot.lane.b32.xlu0 %v6254, 64
    %v6256 = vpop.permute.xlu0 %6255
    %6258 = vst.msk [vmem:[#allocation4 + $0x9] sm:$0x1] %vm6168, %v6256
    %v6259 = vrot.slane %v6147, 7
    %6260 = vrot.lane.b32.xlu0 %v6259, 96
    %v6261 = vpop.permute.xlu0 %6260
    %6263 = vst.msk [vmem:[#allocation4 + $0x9] sm:$0x1] %vm6174, %v6261
    %6264 = vst.msk [vmem:[#allocation4 + $0x11] sm:$0x1] %vm6155, %v6152
    %v6266 = vrot.slane %v6152, 1
    %6267 = vrot.lane.b32.xlu0 %v6266, 32
    %v6268 = vpop.permute.xlu0 %6267
    %6270 = vst.msk [vmem:[#allocation4 + $0x11] sm:$0x1] %vm6162, %v6268
    %v6271 = vrot.slane %v6152, 2
    %6272 = vrot.lane.b32.xlu0 %v6271, 64
    %v6273 = vpop.permute.xlu0 %6272
    %6275 = vst.msk [vmem:[#allocation4 + $0x11] sm:$0x1] %vm6168, %v6273
    %v6276 = vrot.slane %v6152, 3
    %6277 = vrot.lane.b32.xlu0 %v6276, 96
    %v6278 = vpop.permute.xlu0 %6277
    %6280 = vst.msk [vmem:[#allocation4 + $0x11] sm:$0x1] %vm6174, %v6278
    %v6281 = vrot.slane %v6152, 4
    %6283 = vst.msk [vmem:[#allocation4 + $0x19] sm:$0x1] %vm6155, %v6281
    %v6284 = vrot.slane %v6152, 5
    %6285 = vrot.lane.b32.xlu0 %v6284, 32
    %v6286 = vpop.permute.xlu0 %6285
    %6288 = vst.msk [vmem:[#allocation4 + $0x19] sm:$0x1] %vm6162, %v6286
    %v6289 = vrot.slane %v6152, 6
    %6290 = vrot.lane.b32.xlu0 %v6289, 64
    %v6291 = vpop.permute.xlu0 %6290
    %6293 = vst.msk [vmem:[#allocation4 + $0x19] sm:$0x1] %vm6168, %v6291
    %v6294 = vrot.slane %v6152, 7
    %6295 = vrot.lane.b32.xlu0 %v6294, 96
    %v6296 = vpop.permute.xlu0 %6295
    %6298 = vst.msk [vmem:[#allocation4 + $0x19] sm:$0x1] %vm6174, %v6296
    %v6299 = vld [vmem:[#allocation4] sm:$0x3]
    %v6300 = vld [vmem:[#allocation4 + $0x8] sm:$0x3]
    %v6301 = vld [vmem:[#allocation4 + $0x10] sm:$0x3]
    %v6302 = vld [vmem:[#allocation4 + $0x18] sm:$0x3]
    %v6303 = vld [vmem:[%s4] sm:$0xff]
    %v6304 = vld [vmem:[%s4 + $0x8] sm:$0xff]
    %v6305 = vld [vmem:[%s4 + $0x10] sm:$0xff]
    %v6306 = vld [vmem:[%s4 + $0x18] sm:$0xff]
    %v6307 = vld [vmem:[%s4 + $0x20] sm:$0xff]
    %v6308 = vld [vmem:[%s4 + $0x28] sm:$0xff]
    %v6309 = vld [vmem:[%s4 + $0x30] sm:$0xff]
    %v6310 = vld [vmem:[%s4 + $0x38] sm:$0xff]
    %v6311 = vld [vmem:[%s4 + $0x40] sm:$0xff]
    %v6312 = vld [vmem:[%s4 + $0x48] sm:$0xff]
    %v6313 = vld [vmem:[%s4 + $0x50] sm:$0xff]
    %v6314 = vld [vmem:[%s4 + $0x58] sm:$0xff]
    %v6315 = vld [vmem:[%s4 + $0x60] sm:$0xff]
    %v6316 = vld [vmem:[%s4 + $0x68] sm:$0xff]
    %v6317 = vld [vmem:[%s4 + $0x70] sm:$0xff]
    %v6318 = vld [vmem:[%s4 + $0x78] sm:$0xff]
    %v6319 = vld [vmem:[%s4 + $0x80] sm:$0xff]
    %v6320 = vld [vmem:[%s4 + $0x88] sm:$0xff]
    %v6321 = vld [vmem:[%s4 + $0x90] sm:$0xff]
    %v6322 = vld [vmem:[%s4 + $0x98] sm:$0xff]
    %v6323 = vld [vmem:[%s4 + $0xa0] sm:$0xff]
    %v6324 = vld [vmem:[%s4 + $0xa8] sm:$0xff]
    %v6325 = vld [vmem:[%s4 + $0xb0] sm:$0xff]
    %v6326 = vld [vmem:[%s4 + $0xb8] sm:$0xff]
    %v6327 = vld [vmem:[%s4 + $0xc0] sm:$0xff]
    %v6328 = vld [vmem:[%s4 + $0xc8] sm:$0xff]
    %v6329 = vld [vmem:[%s4 + $0xd0] sm:$0xff]
    %v6330 = vld [vmem:[%s4 + $0xd8] sm:$0xff]
    %v6331 = vld [vmem:[%s4 + $0xe0] sm:$0xff]
    %v6332 = vld [vmem:[%s4 + $0xe8] sm:$0xff]
    %v6333 = vld [vmem:[%s4 + $0xf0] sm:$0xff]
    %v6334 = vld [vmem:[%s4 + $0xf8] sm:$0xff]
    %v6335 = vld [vmem:[%s4 + $0x100] sm:$0xff]
    %v6336 = vld [vmem:[%s4 + $0x108] sm:$0xff]
    %v6337 = vld [vmem:[%s4 + $0x110] sm:$0xff]
    %v6338 = vld [vmem:[%s4 + $0x118] sm:$0xff]
    %v6339 = vld [vmem:[%s4 + $0x120] sm:$0xff]
    %v6340 = vld [vmem:[%s4 + $0x128] sm:$0xff]
    %v6341 = vld [vmem:[%s4 + $0x130] sm:$0xff]
    %v6342 = vld [vmem:[%s4 + $0x138] sm:$0xff]
    %v6343 = vld [vmem:[%s4 + $0x140] sm:$0xff]
    %v6344 = vld [vmem:[%s4 + $0x148] sm:$0xff]
    %v6345 = vld [vmem:[%s4 + $0x150] sm:$0xff]
    %v6346 = vld [vmem:[%s4 + $0x158] sm:$0xff]
    %v6347 = vld [vmem:[%s4 + $0x160] sm:$0xff]
    %v6348 = vld [vmem:[%s4 + $0x168] sm:$0xff]
    %v6349 = vld [vmem:[%s4 + $0x170] sm:$0xff]
    %v6350 = vld [vmem:[%s4 + $0x178] sm:$0xff]
    %v6351 = vld [vmem:[%s4 + $0x180] sm:$0xff]
    %v6352 = vld [vmem:[%s4 + $0x188] sm:$0xff]
    %v6353 = vld [vmem:[%s4 + $0x190] sm:$0xff]
    %v6354 = vld [vmem:[%s4 + $0x198] sm:$0xff]
    %v6355 = vld [vmem:[%s4 + $0x1a0] sm:$0xff]
    %v6356 = vld [vmem:[%s4 + $0x1a8] sm:$0xff]
    %v6357 = vld [vmem:[%s4 + $0x1b0] sm:$0xff]
    %v6358 = vld [vmem:[%s4 + $0x1b8] sm:$0xff]
    %v6359 = vld [vmem:[%s4 + $0x1c0] sm:$0xff]
    %v6360 = vld [vmem:[%s4 + $0x1c8] sm:$0xff]
    %v6361 = vld [vmem:[%s4 + $0x1d0] sm:$0xff]
    %v6362 = vld [vmem:[%s4 + $0x1d8] sm:$0xff]
    %v6363 = vld [vmem:[%s4 + $0x1e0] sm:$0xff]
    %v6364 = vld [vmem:[%s4 + $0x1e8] sm:$0xff]
    %v6365 = vld [vmem:[%s4 + $0x1f0] sm:$0xff]
    %v6366 = vld [vmem:[%s4 + $0x1f8] sm:$0xff]
    %v6367 = vld [vmem:[%s7] sm:$0x1]
    %v6368 = vlaneseq
    %v6369 = vshrl.u32 %v6368, 7
    %v6370 = vsub.s32 0, %v6369
    %v6371 = vrot.slane %v6367, %v6370
    %6372 = vmatprep.subr.mxu0 0.0
    %6373 = vmatpush1.msra.mxu0 %v6303
    %6374 = vmatprep.subr.mxu0 0.0
    %6375 = vmatpush1.msra.mxu0 %v6304
    %6376 = vmatprep.subr.mxu0 0.0
    %6377 = vmatpush1.msra.mxu0 %v6305
    %6378 = vmatprep.subr.mxu0 0.0
    %6379 = vmatpush1.msra.mxu0 %v6306
    %6380 = vmatprep.subr.mxu0 0.0
    %6381 = vmatpush1.msra.mxu0 %v6307
    %6382 = vmatprep.subr.mxu0 0.0
    %6383 = vmatpush1.msra.mxu0 %v6308
    %6384 = vmatprep.subr.mxu0 0.0
    %6385 = vmatpush1.msra.mxu0 %v6309
    %6386 = vmatprep.subr.mxu0 0.0
    %6387 = vmatpush1.msra.mxu0 %v6310
    %6388 = vmatprep.subr.mxu0 0.0
    %6389 = vmatpush1.msra.mxu0 %v6311
    %6390 = vmatprep.subr.mxu0 0.0
    %6391 = vmatpush1.msra.mxu0 %v6312
    %6392 = vmatprep.subr.mxu0 0.0
    %6393 = vmatpush1.msra.mxu0 %v6313
    %6394 = vmatprep.subr.mxu0 0.0
    %6395 = vmatpush1.msra.mxu0 %v6314
    %6396 = vmatprep.subr.mxu0 0.0
    %6397 = vmatpush1.msra.mxu0 %v6315
    %6398 = vmatprep.subr.mxu0 0.0
    %6399 = vmatpush1.msra.mxu0 %v6316
    %6400 = vmatprep.subr.mxu0 0.0
    %6401 = vmatpush1.msra.mxu0 %v6317
    %6402 = vmatprep.subr.mxu0 0.0
    %6403 = vmatpush1.msra.mxu0 %v6318
    %6404 = vmatprep.subr.mxu0 0.0
    %6405 = vmatpush1.msra.mxu0 %v6319
    %6406 = vmatprep.subr.mxu0 0.0
    %6407 = vmatpush1.msra.mxu0 %v6320
    %6408 = vmatprep.subr.mxu0 0.0
    %6409 = vmatpush1.msra.mxu0 %v6321
    %6410 = vmatprep.subr.mxu0 0.0
    %6411 = vmatpush1.msra.mxu0 %v6322
    %6412 = vmatprep.subr.mxu0 0.0
    %6413 = vmatpush1.msra.mxu0 %v6323
    %6414 = vmatprep.subr.mxu0 0.0
    %6415 = vmatpush1.msra.mxu0 %v6324
    %6416 = vmatprep.subr.mxu0 0.0
    %6417 = vmatpush1.msra.mxu0 %v6325
    %6418 = vmatprep.subr.mxu0 0.0
    %6419 = vmatpush1.msra.mxu0 %v6326
    %6420 = vmatprep.subr.mxu0 0.0
    %6421 = vmatpush1.msra.mxu0 %v6327
    %6422 = vmatprep.subr.mxu0 0.0
    %6423 = vmatpush1.msra.mxu0 %v6328
    %6424 = vmatprep.subr.mxu0 0.0
    %6425 = vmatpush1.msra.mxu0 %v6329
    %6426 = vmatprep.subr.mxu0 0.0
    %6427 = vmatpush1.msra.mxu0 %v6330
    %6428 = vmatprep.subr.mxu0 0.0
    %6429 = vmatpush1.msra.mxu0 %v6331
    %6430 = vmatprep.subr.mxu0 0.0
    %6431 = vmatpush1.msra.mxu0 %v6332
    %6432 = vmatprep.subr.mxu0 0.0
    %6433 = vmatpush1.msra.mxu0 %v6333
    %6434 = vmatprep.subr.mxu0 0.0
    %6435 = vmatpush1.msra.mxu0 %v6334
    %6436 = vmatprep.mubr.f32.mxu0 %v6300
    %6437 = vmatmul.mubr.f32.gmra.mrb[0].mxu0 %v6299
    %v6438 = vpop.f32.mrb[0].mxu0
    %v6439 = vadd.f32 %v6371, %v6438
    %v6440 = vpop.f32.mrb[0].mxu0
    %6441 = vdwg.mxu0
    %6442 = vmatprep.subr.mxu0 0.0
    %6443 = vmatpush1.msra.mxu0 %v6335
    %6444 = vmatprep.subr.mxu0 0.0
    %6445 = vmatpush1.msra.mxu0 %v6336
    %6446 = vmatprep.subr.mxu0 0.0
    %6447 = vmatpush1.msra.mxu0 %v6337
    %6448 = vmatprep.subr.mxu0 0.0
    %6449 = vmatpush1.msra.mxu0 %v6338
    %6450 = vmatprep.subr.mxu0 0.0
    %6451 = vmatpush1.msra.mxu0 %v6339
    %6452 = vmatprep.subr.mxu0 0.0
    %6453 = vmatpush1.msra.mxu0 %v6340
    %6454 = vmatprep.subr.mxu0 0.0
    %6455 = vmatpush1.msra.mxu0 %v6341
    %6456 = vmatprep.subr.mxu0 0.0
    %6457 = vmatpush1.msra.mxu0 %v6342
    %6458 = vmatprep.subr.mxu0 0.0
    %6459 = vmatpush1.msra.mxu0 %v6343
    %6460 = vmatprep.subr.mxu0 0.0
    %6461 = vmatpush1.msra.mxu0 %v6344
    %6462 = vmatprep.subr.mxu0 0.0
    %6463 = vmatpush1.msra.mxu0 %v6345
    %6464 = vmatprep.subr.mxu0 0.0
    %6465 = vmatpush1.msra.mxu0 %v6346
    %6466 = vmatprep.subr.mxu0 0.0
    %6467 = vmatpush1.msra.mxu0 %v6347
    %6468 = vmatprep.subr.mxu0 0.0
    %6469 = vmatpush1.msra.mxu0 %v6348
    %6470 = vmatprep.subr.mxu0 0.0
    %6471 = vmatpush1.msra.mxu0 %v6349
    %6472 = vmatprep.subr.mxu0 0.0
    %6473 = vmatpush1.msra.mxu0 %v6350
    %6474 = vmatprep.subr.mxu0 0.0
    %6475 = vmatpush1.msra.mxu0 %v6351
    %6476 = vmatprep.subr.mxu0 0.0
    %6477 = vmatpush1.msra.mxu0 %v6352
    %6478 = vmatprep.subr.mxu0 0.0
    %6479 = vmatpush1.msra.mxu0 %v6353
    %6480 = vmatprep.subr.mxu0 0.0
    %6481 = vmatpush1.msra.mxu0 %v6354
    %6482 = vmatprep.subr.mxu0 0.0
    %6483 = vmatpush1.msra.mxu0 %v6355
    %6484 = vmatprep.subr.mxu0 0.0
    %6485 = vmatpush1.msra.mxu0 %v6356
    %6486 = vmatprep.subr.mxu0 0.0
    %6487 = vmatpush1.msra.mxu0 %v6357
    %6488 = vmatprep.subr.mxu0 0.0
    %6489 = vmatpush1.msra.mxu0 %v6358
    %6490 = vmatprep.subr.mxu0 0.0
    %6491 = vmatpush1.msra.mxu0 %v6359
    %6492 = vmatprep.subr.mxu0 0.0
    %6493 = vmatpush1.msra.mxu0 %v6360
    %6494 = vmatprep.subr.mxu0 0.0
    %6495 = vmatpush1.msra.mxu0 %v6361
    %6496 = vmatprep.subr.mxu0 0.0
    %6497 = vmatpush1.msra.mxu0 %v6362
    %6498 = vmatprep.subr.mxu0 0.0
    %6499 = vmatpush1.msra.mxu0 %v6363
    %6500 = vmatprep.subr.mxu0 0.0
    %6501 = vmatpush1.msra.mxu0 %v6364
    %6502 = vmatprep.subr.mxu0 0.0
    %6503 = vmatpush1.msra.mxu0 %v6365
    %6504 = vmatprep.subr.mxu0 0.0
    %6505 = vmatpush1.msra.mxu0 %v6366
    %6506 = vmatprep.mubr.f32.mxu0 %v6302
    %6507 = vmatmul.mubr.f32.gmra.mrb[0].mxu0 %v6301
    %v6508 = vpop.f32.mrb[0].mxu0
    %v6509 = vadd.f32 %v6439, %v6508
    %v6510 = vpop.f32.mrb[0].mxu0
    %6511 = vdwg.mxu0
    %v6512 = vtanh.pop %v6509
    %v6513 = vld [vmem:[%s5] sm:$0xff]
    %v6514 = vld [vmem:[%s5 + $0x8] sm:$0xff]
    %v6515 = vld [vmem:[%s5 + $0x10] sm:$0xff]
    %v6516 = vld [vmem:[%s5 + $0x18] sm:$0xff]
    %v6517 = vld [vmem:[%s5 + $0x20] sm:$0xff]
    %v6518 = vld [vmem:[%s5 + $0x28] sm:$0xff]
    %v6519 = vld [vmem:[%s5 + $0x30] sm:$0xff]
    %v6520 = vld [vmem:[%s5 + $0x38] sm:$0xff]
    %v6521 = vld [vmem:[%s5 + $0x40] sm:$0xff]
    %v6522 = vld [vmem:[%s5 + $0x48] sm:$0xff]
    %v6523 = vld [vmem:[%s5 + $0x50] sm:$0xff]
    %v6524 = vld [vmem:[%s5 + $0x58] sm:$0xff]
    %v6525 = vld [vmem:[%s5 + $0x60] sm:$0xff]
    %v6526 = vld [vmem:[%s5 + $0x68] sm:$0xff]
    %v6527 = vld [vmem:[%s5 + $0x70] sm:$0xff]
    %v6528 = vld [vmem:[%s7 + $0x1] sm:$0x1]
    %v6529 = vlaneseq
    %v6530 = vshrl.u32 %v6529, 7
    %v6531 = vsub.s32 0, %v6530
    %v6532 = vrot.slane %v6528, %v6531
    %v6534 = vsel %vm2302, %v6512, 0
    %6536 = vmatprep.subr.mxu0 0.0
    %6537 = vmatpush1.msra.mxu0 %v6513
    %6538 = vmatprep.subr.mxu0 0.0
    %6539 = vmatpush1.msra.mxu0 %v6514
    %6540 = vmatprep.subr.mxu0 0.0
    %6541 = vmatpush1.msra.mxu0 %v6515
    %6542 = vmatprep.subr.mxu0 0.0
    %6543 = vmatpush1.msra.mxu0 %v6516
    %6544 = vmatprep.subr.mxu0 0.0
    %6545 = vmatpush1.msra.mxu0 %v6517
    %6546 = vmatprep.subr.mxu0 0.0
    %6547 = vmatpush1.msra.mxu0 %v6518
    %6548 = vmatprep.subr.mxu0 0.0
    %6549 = vmatpush1.msra.mxu0 %v6519
    %6550 = vmatprep.subr.mxu0 0.0
    %6551 = vmatpush1.msra.mxu0 %v6520
    %6552 = vmatprep.subr.mxu0 0.0
    %6553 = vmatpush1.msra.mxu0 %v6521
    %6554 = vmatprep.subr.mxu0 0.0
    %6555 = vmatpush1.msra.mxu0 %v6522
    %6556 = vmatprep.subr.mxu0 0.0
    %6557 = vmatpush1.msra.mxu0 %v6523
    %6558 = vmatprep.subr.mxu0 0.0
    %6559 = vmatpush1.msra.mxu0 %v6524
    %6560 = vmatprep.subr.mxu0 0.0
    %6561 = vmatpush1.msra.mxu0 %v6525
    %6562 = vmatprep.subr.mxu0 0.0
    %6563 = vmatpush1.msra.mxu0 %v6526
    %6564 = vmatprep.subr.mxu0 0.0
    %6565 = vmatpush1.msra.mxu0 %v6527
    %6566 = vmatprep.subr.mxu0 0.0
    %6567 = vmatpush1.msra.mxu0 0.0
    %6568 = vmatprep.subr.mxu0 0.0
    %6569 = vmatpush1.msra.mxu0 0.0
    %6570 = vmatprep.subr.mxu0 0.0
    %6571 = vmatpush1.msra.mxu0 0.0
    %6572 = vmatprep.subr.mxu0 0.0
    %6573 = vmatpush1.msra.mxu0 0.0
    %6574 = vmatprep.subr.mxu0 0.0
    %6575 = vmatpush1.msra.mxu0 0.0
    %6576 = vmatprep.subr.mxu0 0.0
    %6577 = vmatpush1.msra.mxu0 0.0
    %6578 = vmatprep.subr.mxu0 0.0
    %6579 = vmatpush1.msra.mxu0 0.0
    %6580 = vmatprep.subr.mxu0 0.0
    %6581 = vmatpush1.msra.mxu0 0.0
    %6582 = vmatprep.subr.mxu0 0.0
    %6583 = vmatpush1.msra.mxu0 0.0
    %6584 = vmatprep.subr.mxu0 0.0
    %6585 = vmatpush1.msra.mxu0 0.0
    %6586 = vmatprep.subr.mxu0 0.0
    %6587 = vmatpush1.msra.mxu0 0.0
    %6588 = vmatprep.subr.mxu0 0.0
    %6589 = vmatpush1.msra.mxu0 0.0
    %6590 = vmatprep.subr.mxu0 0.0
    %6591 = vmatpush1.msra.mxu0 0.0
    %6592 = vmatprep.subr.mxu0 0.0
    %6593 = vmatpush1.msra.mxu0 0.0
    %6594 = vmatprep.subr.mxu0 0.0
    %6595 = vmatpush1.msra.mxu0 0.0
    %6596 = vmatprep.subr.mxu0 0.0
    %6597 = vmatpush1.msra.mxu0 0.0
    %6598 = vmatprep.subr.mxu0 0.0
    %6599 = vmatpush1.msra.mxu0 0.0
    %6600 = vmatprep.mubr.f32.mxu0 0.0
    %6601 = vmatmul.mubr.f32.gmra.mrb[0].mxu0 %v6534
    %v6602 = vpop.f32.mrb[0].mxu0
    %v6603 = vadd.f32 %v6532, %v6602
    %v6604 = vpop.f32.mrb[0].mxu0
    %6605 = vdwg.mxu0
    %v6606 = vtanh.pop %v6603
    %v6607 = vld [vmem:[%s6] sm:$0xff]
    %v6608 = vld [vmem:[%s6 + $0x8] sm:$0xff]
    %v6609 = vld [vmem:[%s6 + $0x10] sm:$0xff]
    %v6610 = vld [vmem:[%s6 + $0x18] sm:$0xff]
    %v6611 = vld [vmem:[%s6 + $0x20] sm:$0xff]
    %v6612 = vld [vmem:[%s6 + $0x28] sm:$0xff]
    %v6613 = vld [vmem:[%s6 + $0x30] sm:$0xff]
    %v6614 = vld [vmem:[%s6 + $0x38] sm:$0xff]
    %v6615 = vld [vmem:[%s6 + $0x40] sm:$0xff]
    %v6616 = vld [vmem:[%s6 + $0x48] sm:$0xff]
    %v6617 = vld [vmem:[%s6 + $0x50] sm:$0xf]
    %v6618 = vld [vmem:[%s7 + $0x2] sm:$0x1]
    %v6619 = vlaneseq
    %v6620 = vshrl.u32 %v6619, 7
    %v6621 = vsub.s32 0, %v6620
    %v6622 = vrot.slane %v6618, %v6621
    %vm6623 = vcmask 687104
    %v6625 = vsel %vm6623, %v6606, 0
    %vm6627 = vcmask 1043456
    %v6629 = vsel %vm6627, %v6617, 0
    %6631 = vmatprep.subr.mxu0 0.0
    %6632 = vmatpush1.msra.mxu0 %v6607
    %6633 = vmatprep.subr.mxu0 0.0
    %6634 = vmatpush1.msra.mxu0 %v6608
    %6635 = vmatprep.subr.mxu0 0.0
    %6636 = vmatpush1.msra.mxu0 %v6609
    %6637 = vmatprep.subr.mxu0 0.0
    %6638 = vmatpush1.msra.mxu0 %v6610
    %6639 = vmatprep.subr.mxu0 0.0
    %6640 = vmatpush1.msra.mxu0 %v6611
    %6641 = vmatprep.subr.mxu0 0.0
    %6642 = vmatpush1.msra.mxu0 %v6612
    %6643 = vmatprep.subr.mxu0 0.0
    %6644 = vmatpush1.msra.mxu0 %v6613
    %6645 = vmatprep.subr.mxu0 0.0
    %6646 = vmatpush1.msra.mxu0 %v6614
    %6647 = vmatprep.subr.mxu0 0.0
    %6648 = vmatpush1.msra.mxu0 %v6615
    %6649 = vmatprep.subr.mxu0 0.0
    %6650 = vmatpush1.msra.mxu0 %v6616
    %6651 = vmatprep.subr.mxu0 0.0
    %6652 = vmatpush1.msra.mxu0 %v6629
    %6653 = vmatprep.subr.mxu0 0.0
    %6654 = vmatpush1.msra.mxu0 0.0
    %6655 = vmatprep.subr.mxu0 0.0
    %6656 = vmatpush1.msra.mxu0 0.0
    %6657 = vmatprep.subr.mxu0 0.0
    %6658 = vmatpush1.msra.mxu0 0.0
    %6659 = vmatprep.subr.mxu0 0.0
    %6660 = vmatpush1.msra.mxu0 0.0
    %6661 = vmatprep.subr.mxu0 0.0
    %6662 = vmatpush1.msra.mxu0 0.0
    %6663 = vmatprep.subr.mxu0 0.0
    %6664 = vmatpush1.msra.mxu0 0.0
    %6665 = vmatprep.subr.mxu0 0.0
    %6666 = vmatpush1.msra.mxu0 0.0
    %6667 = vmatprep.subr.mxu0 0.0
    %6668 = vmatpush1.msra.mxu0 0.0
    %6669 = vmatprep.subr.mxu0 0.0
    %6670 = vmatpush1.msra.mxu0 0.0
    %6671 = vmatprep.subr.mxu0 0.0
    %6672 = vmatpush1.msra.mxu0 0.0
    %6673 = vmatprep.subr.mxu0 0.0
    %6674 = vmatpush1.msra.mxu0 0.0
    %6675 = vmatprep.subr.mxu0 0.0
    %6676 = vmatpush1.msra.mxu0 0.0
    %6677 = vmatprep.subr.mxu0 0.0
    %6678 = vmatpush1.msra.mxu0 0.0
    %6679 = vmatprep.subr.mxu0 0.0
    %6680 = vmatpush1.msra.mxu0 0.0
    %6681 = vmatprep.subr.mxu0 0.0
    %6682 = vmatpush1.msra.mxu0 0.0
    %6683 = vmatprep.subr.mxu0 0.0
    %6684 = vmatpush1.msra.mxu0 0.0
    %6685 = vmatprep.subr.mxu0 0.0
    %6686 = vmatpush1.msra.mxu0 0.0
    %6687 = vmatprep.subr.mxu0 0.0
    %6688 = vmatpush1.msra.mxu0 0.0
    %6689 = vmatprep.subr.mxu0 0.0
    %6690 = vmatpush1.msra.mxu0 0.0
    %6691 = vmatprep.subr.mxu0 0.0
    %6692 = vmatpush1.msra.mxu0 0.0
    %6693 = vmatprep.subr.mxu0 0.0
    %6694 = vmatpush1.msra.mxu0 0.0
    %6695 = vmatprep.mubr.f32.mxu0 0.0
    %6696 = vmatmul.mubr.f32.gmra.mrb[0].mxu0 %v6625
    %v6697 = vpop.f32.mrb[0].mxu0
    %v6698 = vadd.f32 %v6622, %v6697
    %v6699 = vpop.f32.mrb[0].mxu0
    %6700 = vdwg.mxu0
    %vm6701 = vcmask 74752
    %6702 = vst.msk [vmem:[#allocation5] sm:$0x3] %vm6701, %v6698
    // Predicated region
    $region34: #{lenet5_forward.1} parent=1 // pred_check
      _
    $region35: #{lenet5_forward.1} parent=1 // pred_check_branch
      %6704 = sbr.rel (0) target = $region37
    $region36: #{lenet5_forward.1} parent=1 // pred_region
      %s6706 = ssub.s32 32, 32
      %6707 = vsyncadd [#allocation6], %s6706
      %s6709 = sshll.u32 [#allocation5], 4
      %s6710 = int_to_ptr.vmem [resolvable:$true] %s6709
      %6712 = dma.vmem_to_hbm [thread:$0]  %s6710, 32, %s8, [#allocation6]
    $region37: #{lenet5_forward.1} parent=1 // pred_fallthru
      _
    // Predicated region
    $region38: #{lenet5_forward.1} parent=1 // pred_check
      _
    $region39: #{lenet5_forward.1} parent=1 // pred_check_branch
      %6714 = sbr.rel (0) target = $region41
    $region40: #{lenet5_forward.1} parent=1 // pred_region
      %6715 = dma.done [#allocation6], 32
    $region41: #{lenet5_forward.1} parent=1 // pred_fallthru
      _
    %6716 = vsyncpa [#allocation6], 1

</llo_original>
